<compile_context>
chip_gen: v7x
topology: tpu7x:2x2x1
jax: 0.10.0
libtpu: 0.0.40
codegen_flags: <defaults>
</compile_context>

<pallas_src>
import jax
import jax.numpy as jnp
import numpy as np
from jax import lax
from jax.experimental import pallas as pl
from jax.experimental.pallas import tpu as pltpu

PAD = 18  # spatial zero-pad; covers the largest dilation (18)


# ----------------------------------------------------------------------------
# Pallas kernel: one grid step per (batch, row-tile).
# ----------------------------------------------------------------------------
def aspp_kernel(x_ref, w1_ref, w2_ref, w3_ref, w4_ref, wf_ref,
                sc_ref, bi_ref, b5_ref, o_ref):
    _, TH, W, Cp = o_ref.shape
    Cin = x_ref.shape[-1]
    # first output row handled by this tile (in unpadded coordinates)
    r0 = pl.multiple_of(pl.program_id(1) * TH, TH)

    def tap(dy, dx):
        # shifted (TH, W, Cin) window of the padded image -> (TH*W, Cin) bf16
        return x_ref[0, pl.ds(r0 + dy, TH), pl.ds(dx, W), :].reshape(TH * W, Cin)

    def bn_relu(y, i):
        # folded BN (scale, bias) + ReLU in f32
        return jnp.maximum(y * sc_ref[i] + bi_ref[i], 0.0)

    # branch 1: 1x1 conv + bn1 + relu, immediately folded into convf.
    y = bn_relu(jnp.dot(tap(PAD, PAD), w1_ref[...],
                        preferred_element_type=jnp.float32), 0)
    yf = jnp.dot(y.astype(jnp.bfloat16), wf_ref[0],
                 preferred_element_type=jnp.float32)

    # branches 2-4: dilated 3x3 convs as 9 shifted-slice matmuls each,
    # each branch folded into the convf accumulator right away.
    for b, (w_ref, d) in enumerate(((w2_ref, 6), (w3_ref, 12), (w4_ref, 18)), 1):
        acc = jnp.zeros((TH * W, Cp), jnp.float32)
        for ky in range(3):
            for kx in range(3):
                acc += jnp.dot(tap(PAD + (ky - 1) * d, PAD + (kx - 1) * d),
                               w_ref[3 * ky + kx],
                               preferred_element_type=jnp.float32)
        y = bn_relu(acc, b)
        yf += jnp.dot(y.astype(jnp.bfloat16), wf_ref[b],
                      preferred_element_type=jnp.float32)

    # branch 5: precomputed per-batch pooled bias (constant over pixels).
    yf += b5_ref[0]

    # bnf + relu
    out = jnp.maximum(yf * sc_ref[4] + bi_ref[4], 0.0)
    o_ref[0] = out.reshape(TH, W, Cp).astype(o_ref.dtype)


# ----------------------------------------------------------------------------
# Wrapper: layout plumbing (pad, weight reshapes, pooled-branch bias).
# ----------------------------------------------------------------------------
def aspp_forward(x_nchw, p, tile_h=8):
    N, Cin, H, W = x_nchw.shape
    Cout = p['w1'].shape[-1]
    Cp = ((Cout + 127) // 128) * 128          # lane-dense output channels
    TH = tile_h
    while H % TH:                              # largest divisor of H <= tile_h
        TH -= 1
    Hp, Wp = H + 2 * PAD, W + 2 * PAD

    x = jnp.transpose(x_nchw, (0, 2, 3, 1)).astype(jnp.float32)          # NHWC
    xpad = jnp.pad(x, ((0, 0), (PAD, PAD), (PAD, PAD), (0, 0))).astype(jnp.bfloat16)

    padc = lambda w: jnp.pad(w, [(0, 0)] * (w.ndim - 1) + [(0, Cp - Cout)])
    rb = lambda a: a.astype(jnp.bfloat16)

    # weights as aligned per-tap / per-branch blocks (no row-slicing in-kernel)
    w1 = rb(padc(p['w1'].reshape(Cin, Cout)))                  # (Cin, Cp)
    w2 = rb(padc(p['w2'].reshape(9, Cin, Cout)))               # (9, Cin, Cp)
    w3 = rb(padc(p['w3'].reshape(9, Cin, Cout)))
    w4 = rb(padc(p['w4'].reshape(9, Cin, Cout)))
    wf = p['wf'].reshape(5, Cout, Cout)                        # per-branch blocks
    wf4 = rb(jnp.pad(wf[:4], ((0, 0), (0, Cp - Cout), (0, Cp - Cout))))  # (4,Cp,Cp)

    sc = padc(p['s']).reshape(5, 1, Cp).astype(jnp.float32)
    bi = padc(p['b']).reshape(5, 1, Cp).astype(jnp.float32)

    # global-average-pool branch -> per-batch bias on the convf accumulator
    xm = jnp.mean(x, axis=(1, 2))                              # (N, Cin)
    y5 = jnp.maximum(jnp.dot(xm, p['w5'].reshape(Cin, Cout),
                             precision=lax.Precision.HIGHEST), 0.0)
    b5 = jnp.dot(y5, wf[4].astype(jnp.bfloat16).astype(jnp.float32),
                 precision=lax.Precision.HIGHEST)              # (N, Cout)
    b5 = padc(b5).reshape(N, 1, Cp).astype(jnp.float32)

    full = lambda shape: pl.BlockSpec(shape, lambda n, i: (0,) * len(shape))

    flops = 2 * N * H * W * (28 * Cin * Cp + 4 * Cp * Cp)
    bytes_accessed = int(
        xpad.size * xpad.dtype.itemsize
        + sum(a.size * a.dtype.itemsize for a in (w1, w2, w3, w4, wf4, sc, bi, b5))
        + N * H * W * Cp * 4)

    out = pl.pallas_call(
        aspp_kernel,
        out_shape=jax.ShapeDtypeStruct((N, H, W, Cp), jnp.float32),
        grid_spec=pltpu.PrefetchScalarGridSpec(
            num_scalar_prefetch=0,
            grid=(N, H // TH),
            in_specs=[
                pl.BlockSpec((1, Hp, Wp, Cin), lambda n, i: (n, 0, 0, 0)),  # padded img
                full((Cin, Cp)),        # w1
                full((9, Cin, Cp)),     # w2 (dilation 6)
                full((9, Cin, Cp)),     # w3 (dilation 12)
                full((9, Cin, Cp)),     # w4 (dilation 18)
                full((4, Cp, Cp)),      # convf weight blocks for branches 1-4
                full((5, 1, Cp)),       # folded BN scales (bn1..bn4, bnf)
                full((5, 1, Cp)),       # folded BN biases
                pl.BlockSpec((1, 1, Cp), lambda n, i: (n, 0, 0)),           # pooled bias
            ],
            out_specs=pl.BlockSpec((1, TH, W, Cp), lambda n, i: (n, i, 0, 0)),
        ),
        compiler_params=pltpu.CompilerParams(
            dimension_semantics=("parallel", "parallel"),
            vmem_limit_bytes=48 * 1024 * 1024),
        cost_estimate=pl.CostEstimate(flops=flops, transcendentals=0,
                                      bytes_accessed=bytes_accessed),
    )(xpad, w1, w2, w3, w4, wf4, sc, bi, b5)

    # drop channel padding, back to NCHW to match the PyTorch module
    return jnp.transpose(out[..., :Cout], (0, 3, 1, 2))


# ----------------------------------------------------------------------------
# Pure-JAX reference (lax.conv) for the correctness check.  Operands are
# rounded through bf16 to match the kernel's matmul operand precision.
# ----------------------------------------------------------------------------
def ref_aspp(x_nchw, p):
    x = jnp.transpose(x_nchw, (0, 2, 3, 1)).astype(jnp.float32)
    rb = lambda a: a.astype(jnp.bfloat16).astype(jnp.float32)
    xb = rb(x)

    def conv(inp, w, d):
        pad = ((d, d), (d, d)) if w.shape[0] == 3 else ((0, 0), (0, 0))
        return lax.conv_general_dilated(
            inp, w, window_strides=(1, 1), padding=pad, rhs_dilation=(d, d),
            dimension_numbers=('NHWC', 'HWIO', 'NHWC'),
            precision=lax.Precision.HIGHEST)

    def bn_relu(y, i):
        return jnp.maximum(y * p['s'][i] + p['b'][i], 0.0)

    y1 = bn_relu(conv(xb, rb(p['w1']), 1), 0)
    y2 = bn_relu(conv(xb, rb(p['w2']), 6), 1)
    y3 = bn_relu(conv(xb, rb(p['w3']), 12), 2)
    y4 = bn_relu(conv(xb, rb(p['w4']), 18), 3)
    xm = jnp.mean(x, axis=(1, 2), keepdims=True)
    y5 = jnp.maximum(conv(xm, p['w5'], 1), 0.0)
    y5 = jnp.broadcast_to(y5, y4.shape)    # bilinear 1x1 -> HxW == broadcast
    cat = jnp.concatenate([y1, y2, y3, y4, y5], axis=-1)
    yf = bn_relu(conv(cat, rb(p['wf']), 1), 4)
    return jnp.transpose(yf, (0, 3, 1, 2))


def make_params(key, cin, cout):
    ks = jax.random.split(key, 10)
    p = {
        'w1': 0.2 * jax.random.normal(ks[0], (1, 1, cin, cout), jnp.float32),
        'w2': 0.2 * jax.random.normal(ks[1], (3, 3, cin, cout), jnp.float32),
        'w3': 0.2 * jax.random.normal(ks[2], (3, 3, cin, cout), jnp.float32),
        'w4': 0.2 * jax.random.normal(ks[3], (3, 3, cin, cout), jnp.float32),
        'w5': 0.2 * jax.random.normal(ks[4], (1, 1, cin, cout), jnp.float32),
        'wf': 0.2 * jax.random.normal(ks[5], (1, 1, 5 * cout, cout), jnp.float32),
    }
    # BatchNorm (eval-mode) params for bn1..bn4, bnf -> fold into scale/bias.
    gamma = 1.0 + 0.1 * jax.random.normal(ks[6], (5, cout), jnp.float32)
    beta = 0.1 * jax.random.normal(ks[7], (5, cout), jnp.float32)
    rmean = 0.1 * jax.random.normal(ks[8], (5, cout), jnp.float32)
    rvar = 0.5 + jnp.abs(jax.random.normal(ks[9], (5, cout), jnp.float32)) * 0.5
    s = gamma / jnp.sqrt(rvar + 1e-5)
    p['s'] = s
    p['b'] = beta - rmean * s
    # NOTE: bn5 exists in __init__ but is unused in forward -> not created.
    return p


if __name__ == "__main__":
    N, Cin, H, W = 2, 4, 16, 16
    Cout = 8

    key = jax.random.PRNGKey(0)
    kx, kp = jax.random.split(key)
    x = jax.random.normal(kx, (N, Cin, H, W), jnp.float32)
    params = make_params(kp, Cin, Cout)

    out = jax.block_until_ready(aspp_forward(x, params))
    ref = jax.block_until_ready(ref_aspp(x, params))

    assert out.shape == (N, Cout, H, W)
    np.testing.assert_allclose(np.asarray(out), np.asarray(ref),
                               rtol=2e-2, atol=2e-2)
    print("KERNEL_OK")
</pallas_src>

<mosaic_0001>
module attributes {stable_mosaic.version = 11 : i64} {
  func.func @aspp_kernel(%arg0: i32, %arg1: i32, %arg2: memref<1x52x52x4xbf16, #tpu.memory_space<vmem>>, %arg3: memref<4x128xbf16, #tpu.memory_space<vmem>>, %arg4: memref<9x4x128xbf16, #tpu.memory_space<vmem>>, %arg5: memref<9x4x128xbf16, #tpu.memory_space<vmem>>, %arg6: memref<9x4x128xbf16, #tpu.memory_space<vmem>>, %arg7: memref<4x128x128xbf16, #tpu.memory_space<vmem>>, %arg8: memref<5x1x128xf32, #tpu.memory_space<vmem>>, %arg9: memref<5x1x128xf32, #tpu.memory_space<vmem>>, %arg10: memref<1x1x128xf32, #tpu.memory_space<vmem>>, %arg11: memref<1x8x16x128xf32, #tpu.memory_space<vmem>>) attributes {dimension_semantics = [#tpu.dimension_semantics<parallel>, #tpu.dimension_semantics<parallel>], iteration_bounds = array<i64: 2, 2>, scalar_prefetch = 0 : i64, scratch_operands = 0 : i64, tpu.core_type = #tpu.core_type<tc>, window_params = [{transform_indices = @transform_0, window_bounds = array<i64: 1, 52, 52, 4>}, {pipeline_mode = #tpu.pipeline_mode<synchronous>, transform_indices = @transform_1, window_bounds = array<i64: 4, 128>}, {pipeline_mode = #tpu.pipeline_mode<synchronous>, transform_indices = @transform_2, window_bounds = array<i64: 9, 4, 128>}, {pipeline_mode = #tpu.pipeline_mode<synchronous>, transform_indices = @transform_3, window_bounds = array<i64: 9, 4, 128>}, {pipeline_mode = #tpu.pipeline_mode<synchronous>, transform_indices = @transform_4, window_bounds = array<i64: 9, 4, 128>}, {pipeline_mode = #tpu.pipeline_mode<synchronous>, transform_indices = @transform_5, window_bounds = array<i64: 4, 128, 128>}, {pipeline_mode = #tpu.pipeline_mode<synchronous>, transform_indices = @transform_6, window_bounds = array<i64: 5, 1, 128>}, {pipeline_mode = #tpu.pipeline_mode<synchronous>, transform_indices = @transform_7, window_bounds = array<i64: 5, 1, 128>}, {transform_indices = @transform_8, window_bounds = array<i64: 1, 1, 128>}, {transform_indices = @transform_9, window_bounds = array<i64: 1, 8, 16, 128>}]} {
    %c8_i32 = arith.constant 8 : i32
    %0 = arith.muli %arg1, %c8_i32 : i32
    %1 = tpu.assume_multiple %0, 8 : i32
    %c18_i32 = arith.constant 18 : i32
    %2 = arith.addi %1, %c18_i32 : i32
    %c0 = arith.constant 0 : index
    %3 = arith.index_cast %2 : i32 to index
    %c18 = arith.constant 18 : index
    %c0_0 = arith.constant 0 : index
    %4 = vector.load %arg2[%c0, %3, %c18, %c0_0] : memref<1x52x52x4xbf16, #tpu.memory_space<vmem>>, vector<1x8x16x4xbf16>
    %5 = vector.shape_cast %4 : vector<1x8x16x4xbf16> to vector<8x16x4xbf16>
    %6 = vector.shape_cast %5 : vector<8x16x4xbf16> to vector<128x4xbf16>
    %c0_1 = arith.constant 0 : index
    %c0_2 = arith.constant 0 : index
    %7 = vector.load %arg3[%c0_1, %c0_2] : memref<4x128xbf16, #tpu.memory_space<vmem>>, vector<4x128xbf16>
    %cst = arith.constant dense<0.000000e+00> : vector<128x128xf32>
    %8 = tpu.matmul %6, %7, %cst {dimension_numbers = #tpu.dot_dimension_numbers<[1], [0], [0], [1], [0, 0, 1, 1], [], []>} : vector<128x4xbf16>, vector<4x128xbf16>, vector<128x128xf32> -> vector<128x128xf32>
    %c0_3 = arith.constant 0 : index
    %c0_4 = arith.constant 0 : index
    %c0_5 = arith.constant 0 : index
    %9 = vector.load %arg8[%c0_3, %c0_4, %c0_5] : memref<5x1x128xf32, #tpu.memory_space<vmem>>, vector<1x1x128xf32>
    %10 = vector.shape_cast %9 : vector<1x1x128xf32> to vector<1x128xf32>
    %11 = vector.broadcast %10 : vector<1x128xf32> to vector<128x128xf32>
    %12 = arith.mulf %8, %11 : vector<128x128xf32>
    %c0_6 = arith.constant 0 : index
    %c0_7 = arith.constant 0 : index
    %c0_8 = arith.constant 0 : index
    %13 = vector.load %arg9[%c0_6, %c0_7, %c0_8] : memref<5x1x128xf32, #tpu.memory_space<vmem>>, vector<1x1x128xf32>
    %14 = vector.shape_cast %13 : vector<1x1x128xf32> to vector<1x128xf32>
    %15 = vector.broadcast %14 : vector<1x128xf32> to vector<128x128xf32>
    %16 = arith.addf %12, %15 : vector<128x128xf32>
    %cst_9 = arith.constant 0.000000e+00 : f32
    %17 = vector.broadcast %cst_9 : f32 to vector<128x128xf32>
    %18 = arith.maximumf %16, %17 : vector<128x128xf32>
    %19 = arith.truncf %18 : vector<128x128xf32> to vector<128x128xbf16>
    %c0_10 = arith.constant 0 : index
    %c0_11 = arith.constant 0 : index
    %c0_12 = arith.constant 0 : index
    %20 = vector.load %arg7[%c0_10, %c0_11, %c0_12] : memref<4x128x128xbf16, #tpu.memory_space<vmem>>, vector<1x128x128xbf16>
    %21 = vector.shape_cast %20 : vector<1x128x128xbf16> to vector<128x128xbf16>
    %cst_13 = arith.constant dense<0.000000e+00> : vector<128x128xf32>
    %22 = tpu.matmul %19, %21, %cst_13 {dimension_numbers = #tpu.dot_dimension_numbers<[1], [0], [0], [1], [0, 0, 1, 1], [], []>} : vector<128x128xbf16>, vector<128x128xbf16>, vector<128x128xf32> -> vector<128x128xf32>
    %cst_14 = arith.constant 0.000000e+00 : f32
    %23 = vector.broadcast %cst_14 : f32 to vector<128x128xf32>
    %c12_i32 = arith.constant 12 : i32
    %24 = arith.addi %1, %c12_i32 : i32
    %c0_15 = arith.constant 0 : index
    %25 = arith.index_cast %24 : i32 to index
    %c12 = arith.constant 12 : index
    %c0_16 = arith.constant 0 : index
    %26 = vector.load %arg2[%c0_15, %25, %c12, %c0_16] : memref<1x52x52x4xbf16, #tpu.memory_space<vmem>>, vector<1x8x16x4xbf16>
    %27 = vector.shape_cast %26 : vector<1x8x16x4xbf16> to vector<8x16x4xbf16>
    %28 = vector.shape_cast %27 : vector<8x16x4xbf16> to vector<128x4xbf16>
    %c0_17 = arith.constant 0 : index
    %c0_18 = arith.constant 0 : index
    %c0_19 = arith.constant 0 : index
    %29 = vector.load %arg4[%c0_17, %c0_18, %c0_19] : memref<9x4x128xbf16, #tpu.memory_space<vmem>>, vector<1x4x128xbf16>
    %30 = vector.shape_cast %29 : vector<1x4x128xbf16> to vector<4x128xbf16>
    %cst_20 = arith.constant dense<0.000000e+00> : vector<128x128xf32>
    %31 = tpu.matmul %28, %30, %cst_20 {dimension_numbers = #tpu.dot_dimension_numbers<[1], [0], [0], [1], [0, 0, 1, 1], [], []>} : vector<128x4xbf16>, vector<4x128xbf16>, vector<128x128xf32> -> vector<128x128xf32>
    %32 = arith.addf %23, %31 : vector<128x128xf32>
    %c12_i32_21 = arith.constant 12 : i32
    %33 = arith.addi %1, %c12_i32_21 : i32
    %c0_22 = arith.constant 0 : index
    %34 = arith.index_cast %33 : i32 to index
    %c18_23 = arith.constant 18 : index
    %c0_24 = arith.constant 0 : index
    %35 = vector.load %arg2[%c0_22, %34, %c18_23, %c0_24] : memref<1x52x52x4xbf16, #tpu.memory_space<vmem>>, vector<1x8x16x4xbf16>
    %36 = vector.shape_cast %35 : vector<1x8x16x4xbf16> to vector<8x16x4xbf16>
    %37 = vector.shape_cast %36 : vector<8x16x4xbf16> to vector<128x4xbf16>
    %c1 = arith.constant 1 : index
    %c0_25 = arith.constant 0 : index
    %c0_26 = arith.constant 0 : index
    %38 = vector.load %arg4[%c1, %c0_25, %c0_26] : memref<9x4x128xbf16, #tpu.memory_space<vmem>>, vector<1x4x128xbf16>
    %39 = vector.shape_cast %38 : vector<1x4x128xbf16> to vector<4x128xbf16>
    %cst_27 = arith.constant dense<0.000000e+00> : vector<128x128xf32>
    %40 = tpu.matmul %37, %39, %cst_27 {dimension_numbers = #tpu.dot_dimension_numbers<[1], [0], [0], [1], [0, 0, 1, 1], [], []>} : vector<128x4xbf16>, vector<4x128xbf16>, vector<128x128xf32> -> vector<128x128xf32>
    %41 = arith.addf %32, %40 : vector<128x128xf32>
    %c12_i32_28 = arith.constant 12 : i32
    %42 = arith.addi %1, %c12_i32_28 : i32
    %c0_29 = arith.constant 0 : index
    %43 = arith.index_cast %42 : i32 to index
    %c24 = arith.constant 24 : index
    %c0_30 = arith.constant 0 : index
    %44 = vector.load %arg2[%c0_29, %43, %c24, %c0_30] : memref<1x52x52x4xbf16, #tpu.memory_space<vmem>>, vector<1x8x16x4xbf16>
    %45 = vector.shape_cast %44 : vector<1x8x16x4xbf16> to vector<8x16x4xbf16>
    %46 = vector.shape_cast %45 : vector<8x16x4xbf16> to vector<128x4xbf16>
    %c2 = arith.constant 2 : index
    %c0_31 = arith.constant 0 : index
    %c0_32 = arith.constant 0 : index
    %47 = vector.load %arg4[%c2, %c0_31, %c0_32] : memref<9x4x128xbf16, #tpu.memory_space<vmem>>, vector<1x4x128xbf16>
    %48 = vector.shape_cast %47 : vector<1x4x128xbf16> to vector<4x128xbf16>
    %cst_33 = arith.constant dense<0.000000e+00> : vector<128x128xf32>
    %49 = tpu.matmul %46, %48, %cst_33 {dimension_numbers = #tpu.dot_dimension_numbers<[1], [0], [0], [1], [0, 0, 1, 1], [], []>} : vector<128x4xbf16>, vector<4x128xbf16>, vector<128x128xf32> -> vector<128x128xf32>
    %50 = arith.addf %41, %49 : vector<128x128xf32>
    %c18_i32_34 = arith.constant 18 : i32
    %51 = arith.addi %1, %c18_i32_34 : i32
    %c0_35 = arith.constant 0 : index
    %52 = arith.index_cast %51 : i32 to index
    %c12_36 = arith.constant 12 : index
    %c0_37 = arith.constant 0 : index
    %53 = vector.load %arg2[%c0_35, %52, %c12_36, %c0_37] : memref<1x52x52x4xbf16, #tpu.memory_space<vmem>>, vector<1x8x16x4xbf16>
    %54 = vector.shape_cast %53 : vector<1x8x16x4xbf16> to vector<8x16x4xbf16>
    %55 = vector.shape_cast %54 : vector<8x16x4xbf16> to vector<128x4xbf16>
    %c3 = arith.constant 3 : index
    %c0_38 = arith.constant 0 : index
    %c0_39 = arith.constant 0 : index
    %56 = vector.load %arg4[%c3, %c0_38, %c0_39] : memref<9x4x128xbf16, #tpu.memory_space<vmem>>, vector<1x4x128xbf16>
    %57 = vector.shape_cast %56 : vector<1x4x128xbf16> to vector<4x128xbf16>
    %cst_40 = arith.constant dense<0.000000e+00> : vector<128x128xf32>
    %58 = tpu.matmul %55, %57, %cst_40 {dimension_numbers = #tpu.dot_dimension_numbers<[1], [0], [0], [1], [0, 0, 1, 1], [], []>} : vector<128x4xbf16>, vector<4x128xbf16>, vector<128x128xf32> -> vector<128x128xf32>
    %59 = arith.addf %50, %58 : vector<128x128xf32>
    %c18_i32_41 = arith.constant 18 : i32
    %60 = arith.addi %1, %c18_i32_41 : i32
    %c0_42 = arith.constant 0 : index
    %61 = arith.index_cast %60 : i32 to index
    %c18_43 = arith.constant 18 : index
    %c0_44 = arith.constant 0 : index
    %62 = vector.load %arg2[%c0_42, %61, %c18_43, %c0_44] : memref<1x52x52x4xbf16, #tpu.memory_space<vmem>>, vector<1x8x16x4xbf16>
    %63 = vector.shape_cast %62 : vector<1x8x16x4xbf16> to vector<8x16x4xbf16>
    %64 = vector.shape_cast %63 : vector<8x16x4xbf16> to vector<128x4xbf16>
    %c4 = arith.constant 4 : index
    %c0_45 = arith.constant 0 : index
    %c0_46 = arith.constant 0 : index
    %65 = vector.load %arg4[%c4, %c0_45, %c0_46] : memref<9x4x128xbf16, #tpu.memory_space<vmem>>, vector<1x4x128xbf16>
    %66 = vector.shape_cast %65 : vector<1x4x128xbf16> to vector<4x128xbf16>
    %cst_47 = arith.constant dense<0.000000e+00> : vector<128x128xf32>
    %67 = tpu.matmul %64, %66, %cst_47 {dimension_numbers = #tpu.dot_dimension_numbers<[1], [0], [0], [1], [0, 0, 1, 1], [], []>} : vector<128x4xbf16>, vector<4x128xbf16>, vector<128x128xf32> -> vector<128x128xf32>
    %68 = arith.addf %59, %67 : vector<128x128xf32>
    %c18_i32_48 = arith.constant 18 : i32
    %69 = arith.addi %1, %c18_i32_48 : i32
    %c0_49 = arith.constant 0 : index
    %70 = arith.index_cast %69 : i32 to index
    %c24_50 = arith.constant 24 : index
    %c0_51 = arith.constant 0 : index
    %71 = vector.load %arg2[%c0_49, %70, %c24_50, %c0_51] : memref<1x52x52x4xbf16, #tpu.memory_space<vmem>>, vector<1x8x16x4xbf16>
    %72 = vector.shape_cast %71 : vector<1x8x16x4xbf16> to vector<8x16x4xbf16>
    %73 = vector.shape_cast %72 : vector<8x16x4xbf16> to vector<128x4xbf16>
    %c5 = arith.constant 5 : index
    %c0_52 = arith.constant 0 : index
    %c0_53 = arith.constant 0 : index
    %74 = vector.load %arg4[%c5, %c0_52, %c0_53] : memref<9x4x128xbf16, #tpu.memory_space<vmem>>, vector<1x4x128xbf16>
    %75 = vector.shape_cast %74 : vector<1x4x128xbf16> to vector<4x128xbf16>
    %cst_54 = arith.constant dense<0.000000e+00> : vector<128x128xf32>
    %76 = tpu.matmul %73, %75, %cst_54 {dimension_numbers = #tpu.dot_dimension_numbers<[1], [0], [0], [1], [0, 0, 1, 1], [], []>} : vector<128x4xbf16>, vector<4x128xbf16>, vector<128x128xf32> -> vector<128x128xf32>
    %77 = arith.addf %68, %76 : vector<128x128xf32>
    %c24_i32 = arith.constant 24 : i32
    %78 = arith.addi %1, %c24_i32 : i32
    %c0_55 = arith.constant 0 : index
    %79 = arith.index_cast %78 : i32 to index
    %c12_56 = arith.constant 12 : index
    %c0_57 = arith.constant 0 : index
    %80 = vector.load %arg2[%c0_55, %79, %c12_56, %c0_57] : memref<1x52x52x4xbf16, #tpu.memory_space<vmem>>, vector<1x8x16x4xbf16>
    %81 = vector.shape_cast %80 : vector<1x8x16x4xbf16> to vector<8x16x4xbf16>
    %82 = vector.shape_cast %81 : vector<8x16x4xbf16> to vector<128x4xbf16>
    %c6 = arith.constant 6 : index
    %c0_58 = arith.constant 0 : index
    %c0_59 = arith.constant 0 : index
    %83 = vector.load %arg4[%c6, %c0_58, %c0_59] : memref<9x4x128xbf16, #tpu.memory_space<vmem>>, vector<1x4x128xbf16>
    %84 = vector.shape_cast %83 : vector<1x4x128xbf16> to vector<4x128xbf16>
    %cst_60 = arith.constant dense<0.000000e+00> : vector<128x128xf32>
    %85 = tpu.matmul %82, %84, %cst_60 {dimension_numbers = #tpu.dot_dimension_numbers<[1], [0], [0], [1], [0, 0, 1, 1], [], []>} : vector<128x4xbf16>, vector<4x128xbf16>, vector<128x128xf32> -> vector<128x128xf32>
    %86 = arith.addf %77, %85 : vector<128x128xf32>
    %c24_i32_61 = arith.constant 24 : i32
    %87 = arith.addi %1, %c24_i32_61 : i32
    %c0_62 = arith.constant 0 : index
    %88 = arith.index_cast %87 : i32 to index
    %c18_63 = arith.constant 18 : index
    %c0_64 = arith.constant 0 : index
    %89 = vector.load %arg2[%c0_62, %88, %c18_63, %c0_64] : memref<1x52x52x4xbf16, #tpu.memory_space<vmem>>, vector<1x8x16x4xbf16>
    %90 = vector.shape_cast %89 : vector<1x8x16x4xbf16> to vector<8x16x4xbf16>
    %91 = vector.shape_cast %90 : vector<8x16x4xbf16> to vector<128x4xbf16>
    %c7 = arith.constant 7 : index
    %c0_65 = arith.constant 0 : index
    %c0_66 = arith.constant 0 : index
    %92 = vector.load %arg4[%c7, %c0_65, %c0_66] : memref<9x4x128xbf16, #tpu.memory_space<vmem>>, vector<1x4x128xbf16>
    %93 = vector.shape_cast %92 : vector<1x4x128xbf16> to vector<4x128xbf16>
    %cst_67 = arith.constant dense<0.000000e+00> : vector<128x128xf32>
    %94 = tpu.matmul %91, %93, %cst_67 {dimension_numbers = #tpu.dot_dimension_numbers<[1], [0], [0], [1], [0, 0, 1, 1], [], []>} : vector<128x4xbf16>, vector<4x128xbf16>, vector<128x128xf32> -> vector<128x128xf32>
    %95 = arith.addf %86, %94 : vector<128x128xf32>
    %c24_i32_68 = arith.constant 24 : i32
    %96 = arith.addi %1, %c24_i32_68 : i32
    %c0_69 = arith.constant 0 : index
    %97 = arith.index_cast %96 : i32 to index
    %c24_70 = arith.constant 24 : index
    %c0_71 = arith.constant 0 : index
    %98 = vector.load %arg2[%c0_69, %97, %c24_70, %c0_71] : memref<1x52x52x4xbf16, #tpu.memory_space<vmem>>, vector<1x8x16x4xbf16>
    %99 = vector.shape_cast %98 : vector<1x8x16x4xbf16> to vector<8x16x4xbf16>
    %100 = vector.shape_cast %99 : vector<8x16x4xbf16> to vector<128x4xbf16>
    %c8 = arith.constant 8 : index
    %c0_72 = arith.constant 0 : index
    %c0_73 = arith.constant 0 : index
    %101 = vector.load %arg4[%c8, %c0_72, %c0_73] : memref<9x4x128xbf16, #tpu.memory_space<vmem>>, vector<1x4x128xbf16>
    %102 = vector.shape_cast %101 : vector<1x4x128xbf16> to vector<4x128xbf16>
    %cst_74 = arith.constant dense<0.000000e+00> : vector<128x128xf32>
    %103 = tpu.matmul %100, %102, %cst_74 {dimension_numbers = #tpu.dot_dimension_numbers<[1], [0], [0], [1], [0, 0, 1, 1], [], []>} : vector<128x4xbf16>, vector<4x128xbf16>, vector<128x128xf32> -> vector<128x128xf32>
    %104 = arith.addf %95, %103 : vector<128x128xf32>
    %c1_75 = arith.constant 1 : index
    %c0_76 = arith.constant 0 : index
    %c0_77 = arith.constant 0 : index
    %105 = vector.load %arg8[%c1_75, %c0_76, %c0_77] : memref<5x1x128xf32, #tpu.memory_space<vmem>>, vector<1x1x128xf32>
    %106 = vector.shape_cast %105 : vector<1x1x128xf32> to vector<1x128xf32>
    %107 = vector.broadcast %106 : vector<1x128xf32> to vector<128x128xf32>
    %108 = arith.mulf %104, %107 : vector<128x128xf32>
    %c1_78 = arith.constant 1 : index
    %c0_79 = arith.constant 0 : index
    %c0_80 = arith.constant 0 : index
    %109 = vector.load %arg9[%c1_78, %c0_79, %c0_80] : memref<5x1x128xf32, #tpu.memory_space<vmem>>, vector<1x1x128xf32>
    %110 = vector.shape_cast %109 : vector<1x1x128xf32> to vector<1x128xf32>
    %111 = vector.broadcast %110 : vector<1x128xf32> to vector<128x128xf32>
    %112 = arith.addf %108, %111 : vector<128x128xf32>
    %cst_81 = arith.constant 0.000000e+00 : f32
    %113 = vector.broadcast %cst_81 : f32 to vector<128x128xf32>
    %114 = arith.maximumf %112, %113 : vector<128x128xf32>
    %115 = arith.truncf %114 : vector<128x128xf32> to vector<128x128xbf16>
    %c1_82 = arith.constant 1 : index
    %c0_83 = arith.constant 0 : index
    %c0_84 = arith.constant 0 : index
    %116 = vector.load %arg7[%c1_82, %c0_83, %c0_84] : memref<4x128x128xbf16, #tpu.memory_space<vmem>>, vector<1x128x128xbf16>
    %117 = vector.shape_cast %116 : vector<1x128x128xbf16> to vector<128x128xbf16>
    %cst_85 = arith.constant dense<0.000000e+00> : vector<128x128xf32>
    %118 = tpu.matmul %115, %117, %cst_85 {dimension_numbers = #tpu.dot_dimension_numbers<[1], [0], [0], [1], [0, 0, 1, 1], [], []>} : vector<128x128xbf16>, vector<128x128xbf16>, vector<128x128xf32> -> vector<128x128xf32>
    %119 = arith.addf %22, %118 : vector<128x128xf32>
    %cst_86 = arith.constant 0.000000e+00 : f32
    %120 = vector.broadcast %cst_86 : f32 to vector<128x128xf32>
    %c6_i32 = arith.constant 6 : i32
    %121 = arith.addi %1, %c6_i32 : i32
    %c0_87 = arith.constant 0 : index
    %122 = arith.index_cast %121 : i32 to index
    %c6_88 = arith.constant 6 : index
    %c0_89 = arith.constant 0 : index
    %123 = vector.load %arg2[%c0_87, %122, %c6_88, %c0_89] : memref<1x52x52x4xbf16, #tpu.memory_space<vmem>>, vector<1x8x16x4xbf16>
    %124 = vector.shape_cast %123 : vector<1x8x16x4xbf16> to vector<8x16x4xbf16>
    %125 = vector.shape_cast %124 : vector<8x16x4xbf16> to vector<128x4xbf16>
    %c0_90 = arith.constant 0 : index
    %c0_91 = arith.constant 0 : index
    %c0_92 = arith.constant 0 : index
    %126 = vector.load %arg5[%c0_90, %c0_91, %c0_92] : memref<9x4x128xbf16, #tpu.memory_space<vmem>>, vector<1x4x128xbf16>
    %127 = vector.shape_cast %126 : vector<1x4x128xbf16> to vector<4x128xbf16>
    %cst_93 = arith.constant dense<0.000000e+00> : vector<128x128xf32>
    %128 = tpu.matmul %125, %127, %cst_93 {dimension_numbers = #tpu.dot_dimension_numbers<[1], [0], [0], [1], [0, 0, 1, 1], [], []>} : vector<128x4xbf16>, vector<4x128xbf16>, vector<128x128xf32> -> vector<128x128xf32>
    %129 = arith.addf %120, %128 : vector<128x128xf32>
    %c6_i32_94 = arith.constant 6 : i32
    %130 = arith.addi %1, %c6_i32_94 : i32
    %c0_95 = arith.constant 0 : index
    %131 = arith.index_cast %130 : i32 to index
    %c18_96 = arith.constant 18 : index
    %c0_97 = arith.constant 0 : index
    %132 = vector.load %arg2[%c0_95, %131, %c18_96, %c0_97] : memref<1x52x52x4xbf16, #tpu.memory_space<vmem>>, vector<1x8x16x4xbf16>
    %133 = vector.shape_cast %132 : vector<1x8x16x4xbf16> to vector<8x16x4xbf16>
    %134 = vector.shape_cast %133 : vector<8x16x4xbf16> to vector<128x4xbf16>
    %c1_98 = arith.constant 1 : index
    %c0_99 = arith.constant 0 : index
    %c0_100 = arith.constant 0 : index
    %135 = vector.load %arg5[%c1_98, %c0_99, %c0_100] : memref<9x4x128xbf16, #tpu.memory_space<vmem>>, vector<1x4x128xbf16>
    %136 = vector.shape_cast %135 : vector<1x4x128xbf16> to vector<4x128xbf16>
    %cst_101 = arith.constant dense<0.000000e+00> : vector<128x128xf32>
    %137 = tpu.matmul %134, %136, %cst_101 {dimension_numbers = #tpu.dot_dimension_numbers<[1], [0], [0], [1], [0, 0, 1, 1], [], []>} : vector<128x4xbf16>, vector<4x128xbf16>, vector<128x128xf32> -> vector<128x128xf32>
    %138 = arith.addf %129, %137 : vector<128x128xf32>
    %c6_i32_102 = arith.constant 6 : i32
    %139 = arith.addi %1, %c6_i32_102 : i32
    %c0_103 = arith.constant 0 : index
    %140 = arith.index_cast %139 : i32 to index
    %c30 = arith.constant 30 : index
    %c0_104 = arith.constant 0 : index
    %141 = vector.load %arg2[%c0_103, %140, %c30, %c0_104] : memref<1x52x52x4xbf16, #tpu.memory_space<vmem>>, vector<1x8x16x4xbf16>
    %142 = vector.shape_cast %141 : vector<1x8x16x4xbf16> to vector<8x16x4xbf16>
    %143 = vector.shape_cast %142 : vector<8x16x4xbf16> to vector<128x4xbf16>
    %c2_105 = arith.constant 2 : index
    %c0_106 = arith.constant 0 : index
    %c0_107 = arith.constant 0 : index
    %144 = vector.load %arg5[%c2_105, %c0_106, %c0_107] : memref<9x4x128xbf16, #tpu.memory_space<vmem>>, vector<1x4x128xbf16>
    %145 = vector.shape_cast %144 : vector<1x4x128xbf16> to vector<4x128xbf16>
    %cst_108 = arith.constant dense<0.000000e+00> : vector<128x128xf32>
    %146 = tpu.matmul %143, %145, %cst_108 {dimension_numbers = #tpu.dot_dimension_numbers<[1], [0], [0], [1], [0, 0, 1, 1], [], []>} : vector<128x4xbf16>, vector<4x128xbf16>, vector<128x128xf32> -> vector<128x128xf32>
    %147 = arith.addf %138, %146 : vector<128x128xf32>
    %c18_i32_109 = arith.constant 18 : i32
    %148 = arith.addi %1, %c18_i32_109 : i32
    %c0_110 = arith.constant 0 : index
    %149 = arith.index_cast %148 : i32 to index
    %c6_111 = arith.constant 6 : index
    %c0_112 = arith.constant 0 : index
    %150 = vector.load %arg2[%c0_110, %149, %c6_111, %c0_112] : memref<1x52x52x4xbf16, #tpu.memory_space<vmem>>, vector<1x8x16x4xbf16>
    %151 = vector.shape_cast %150 : vector<1x8x16x4xbf16> to vector<8x16x4xbf16>
    %152 = vector.shape_cast %151 : vector<8x16x4xbf16> to vector<128x4xbf16>
    %c3_113 = arith.constant 3 : index
    %c0_114 = arith.constant 0 : index
    %c0_115 = arith.constant 0 : index
    %153 = vector.load %arg5[%c3_113, %c0_114, %c0_115] : memref<9x4x128xbf16, #tpu.memory_space<vmem>>, vector<1x4x128xbf16>
    %154 = vector.shape_cast %153 : vector<1x4x128xbf16> to vector<4x128xbf16>
    %cst_116 = arith.constant dense<0.000000e+00> : vector<128x128xf32>
    %155 = tpu.matmul %152, %154, %cst_116 {dimension_numbers = #tpu.dot_dimension_numbers<[1], [0], [0], [1], [0, 0, 1, 1], [], []>} : vector<128x4xbf16>, vector<4x128xbf16>, vector<128x128xf32> -> vector<128x128xf32>
    %156 = arith.addf %147, %155 : vector<128x128xf32>
    %c18_i32_117 = arith.constant 18 : i32
    %157 = arith.addi %1, %c18_i32_117 : i32
    %c0_118 = arith.constant 0 : index
    %158 = arith.index_cast %157 : i32 to index
    %c18_119 = arith.constant 18 : index
    %c0_120 = arith.constant 0 : index
    %159 = vector.load %arg2[%c0_118, %158, %c18_119, %c0_120] : memref<1x52x52x4xbf16, #tpu.memory_space<vmem>>, vector<1x8x16x4xbf16>
    %160 = vector.shape_cast %159 : vector<1x8x16x4xbf16> to vector<8x16x4xbf16>
    %161 = vector.shape_cast %160 : vector<8x16x4xbf16> to vector<128x4xbf16>
    %c4_121 = arith.constant 4 : index
    %c0_122 = arith.constant 0 : index
    %c0_123 = arith.constant 0 : index
    %162 = vector.load %arg5[%c4_121, %c0_122, %c0_123] : memref<9x4x128xbf16, #tpu.memory_space<vmem>>, vector<1x4x128xbf16>
    %163 = vector.shape_cast %162 : vector<1x4x128xbf16> to vector<4x128xbf16>
    %cst_124 = arith.constant dense<0.000000e+00> : vector<128x128xf32>
    %164 = tpu.matmul %161, %163, %cst_124 {dimension_numbers = #tpu.dot_dimension_numbers<[1], [0], [0], [1], [0, 0, 1, 1], [], []>} : vector<128x4xbf16>, vector<4x128xbf16>, vector<128x128xf32> -> vector<128x128xf32>
    %165 = arith.addf %156, %164 : vector<128x128xf32>
    %c18_i32_125 = arith.constant 18 : i32
    %166 = arith.addi %1, %c18_i32_125 : i32
    %c0_126 = arith.constant 0 : index
    %167 = arith.index_cast %166 : i32 to index
    %c30_127 = arith.constant 30 : index
    %c0_128 = arith.constant 0 : index
    %168 = vector.load %arg2[%c0_126, %167, %c30_127, %c0_128] : memref<1x52x52x4xbf16, #tpu.memory_space<vmem>>, vector<1x8x16x4xbf16>
    %169 = vector.shape_cast %168 : vector<1x8x16x4xbf16> to vector<8x16x4xbf16>
    %170 = vector.shape_cast %169 : vector<8x16x4xbf16> to vector<128x4xbf16>
    %c5_129 = arith.constant 5 : index
    %c0_130 = arith.constant 0 : index
    %c0_131 = arith.constant 0 : index
    %171 = vector.load %arg5[%c5_129, %c0_130, %c0_131] : memref<9x4x128xbf16, #tpu.memory_space<vmem>>, vector<1x4x128xbf16>
    %172 = vector.shape_cast %171 : vector<1x4x128xbf16> to vector<4x128xbf16>
    %cst_132 = arith.constant dense<0.000000e+00> : vector<128x128xf32>
    %173 = tpu.matmul %170, %172, %cst_132 {dimension_numbers = #tpu.dot_dimension_numbers<[1], [0], [0], [1], [0, 0, 1, 1], [], []>} : vector<128x4xbf16>, vector<4x128xbf16>, vector<128x128xf32> -> vector<128x128xf32>
    %174 = arith.addf %165, %173 : vector<128x128xf32>
    %c30_i32 = arith.constant 30 : i32
    %175 = arith.addi %1, %c30_i32 : i32
    %c0_133 = arith.constant 0 : index
    %176 = arith.index_cast %175 : i32 to index
    %c6_134 = arith.constant 6 : index
    %c0_135 = arith.constant 0 : index
    %177 = vector.load %arg2[%c0_133, %176, %c6_134, %c0_135] : memref<1x52x52x4xbf16, #tpu.memory_space<vmem>>, vector<1x8x16x4xbf16>
    %178 = vector.shape_cast %177 : vector<1x8x16x4xbf16> to vector<8x16x4xbf16>
    %179 = vector.shape_cast %178 : vector<8x16x4xbf16> to vector<128x4xbf16>
    %c6_136 = arith.constant 6 : index
    %c0_137 = arith.constant 0 : index
    %c0_138 = arith.constant 0 : index
    %180 = vector.load %arg5[%c6_136, %c0_137, %c0_138] : memref<9x4x128xbf16, #tpu.memory_space<vmem>>, vector<1x4x128xbf16>
    %181 = vector.shape_cast %180 : vector<1x4x128xbf16> to vector<4x128xbf16>
    %cst_139 = arith.constant dense<0.000000e+00> : vector<128x128xf32>
    %182 = tpu.matmul %179, %181, %cst_139 {dimension_numbers = #tpu.dot_dimension_numbers<[1], [0], [0], [1], [0, 0, 1, 1], [], []>} : vector<128x4xbf16>, vector<4x128xbf16>, vector<128x128xf32> -> vector<128x128xf32>
    %183 = arith.addf %174, %182 : vector<128x128xf32>
    %c30_i32_140 = arith.constant 30 : i32
    %184 = arith.addi %1, %c30_i32_140 : i32
    %c0_141 = arith.constant 0 : index
    %185 = arith.index_cast %184 : i32 to index
    %c18_142 = arith.constant 18 : index
    %c0_143 = arith.constant 0 : index
    %186 = vector.load %arg2[%c0_141, %185, %c18_142, %c0_143] : memref<1x52x52x4xbf16, #tpu.memory_space<vmem>>, vector<1x8x16x4xbf16>
    %187 = vector.shape_cast %186 : vector<1x8x16x4xbf16> to vector<8x16x4xbf16>
    %188 = vector.shape_cast %187 : vector<8x16x4xbf16> to vector<128x4xbf16>
    %c7_144 = arith.constant 7 : index
    %c0_145 = arith.constant 0 : index
    %c0_146 = arith.constant 0 : index
    %189 = vector.load %arg5[%c7_144, %c0_145, %c0_146] : memref<9x4x128xbf16, #tpu.memory_space<vmem>>, vector<1x4x128xbf16>
    %190 = vector.shape_cast %189 : vector<1x4x128xbf16> to vector<4x128xbf16>
    %cst_147 = arith.constant dense<0.000000e+00> : vector<128x128xf32>
    %191 = tpu.matmul %188, %190, %cst_147 {dimension_numbers = #tpu.dot_dimension_numbers<[1], [0], [0], [1], [0, 0, 1, 1], [], []>} : vector<128x4xbf16>, vector<4x128xbf16>, vector<128x128xf32> -> vector<128x128xf32>
    %192 = arith.addf %183, %191 : vector<128x128xf32>
    %c30_i32_148 = arith.constant 30 : i32
    %193 = arith.addi %1, %c30_i32_148 : i32
    %c0_149 = arith.constant 0 : index
    %194 = arith.index_cast %193 : i32 to index
    %c30_150 = arith.constant 30 : index
    %c0_151 = arith.constant 0 : index
    %195 = vector.load %arg2[%c0_149, %194, %c30_150, %c0_151] : memref<1x52x52x4xbf16, #tpu.memory_space<vmem>>, vector<1x8x16x4xbf16>
    %196 = vector.shape_cast %195 : vector<1x8x16x4xbf16> to vector<8x16x4xbf16>
    %197 = vector.shape_cast %196 : vector<8x16x4xbf16> to vector<128x4xbf16>
    %c8_152 = arith.constant 8 : index
    %c0_153 = arith.constant 0 : index
    %c0_154 = arith.constant 0 : index
    %198 = vector.load %arg5[%c8_152, %c0_153, %c0_154] : memref<9x4x128xbf16, #tpu.memory_space<vmem>>, vector<1x4x128xbf16>
    %199 = vector.shape_cast %198 : vector<1x4x128xbf16> to vector<4x128xbf16>
    %cst_155 = arith.constant dense<0.000000e+00> : vector<128x128xf32>
    %200 = tpu.matmul %197, %199, %cst_155 {dimension_numbers = #tpu.dot_dimension_numbers<[1], [0], [0], [1], [0, 0, 1, 1], [], []>} : vector<128x4xbf16>, vector<4x128xbf16>, vector<128x128xf32> -> vector<128x128xf32>
    %201 = arith.addf %192, %200 : vector<128x128xf32>
    %c2_156 = arith.constant 2 : index
    %c0_157 = arith.constant 0 : index
    %c0_158 = arith.constant 0 : index
    %202 = vector.load %arg8[%c2_156, %c0_157, %c0_158] : memref<5x1x128xf32, #tpu.memory_space<vmem>>, vector<1x1x128xf32>
    %203 = vector.shape_cast %202 : vector<1x1x128xf32> to vector<1x128xf32>
    %204 = vector.broadcast %203 : vector<1x128xf32> to vector<128x128xf32>
    %205 = arith.mulf %201, %204 : vector<128x128xf32>
    %c2_159 = arith.constant 2 : index
    %c0_160 = arith.constant 0 : index
    %c0_161 = arith.constant 0 : index
    %206 = vector.load %arg9[%c2_159, %c0_160, %c0_161] : memref<5x1x128xf32, #tpu.memory_space<vmem>>, vector<1x1x128xf32>
    %207 = vector.shape_cast %206 : vector<1x1x128xf32> to vector<1x128xf32>
    %208 = vector.broadcast %207 : vector<1x128xf32> to vector<128x128xf32>
    %209 = arith.addf %205, %208 : vector<128x128xf32>
    %cst_162 = arith.constant 0.000000e+00 : f32
    %210 = vector.broadcast %cst_162 : f32 to vector<128x128xf32>
    %211 = arith.maximumf %209, %210 : vector<128x128xf32>
    %212 = arith.truncf %211 : vector<128x128xf32> to vector<128x128xbf16>
    %c2_163 = arith.constant 2 : index
    %c0_164 = arith.constant 0 : index
    %c0_165 = arith.constant 0 : index
    %213 = vector.load %arg7[%c2_163, %c0_164, %c0_165] : memref<4x128x128xbf16, #tpu.memory_space<vmem>>, vector<1x128x128xbf16>
    %214 = vector.shape_cast %213 : vector<1x128x128xbf16> to vector<128x128xbf16>
    %cst_166 = arith.constant dense<0.000000e+00> : vector<128x128xf32>
    %215 = tpu.matmul %212, %214, %cst_166 {dimension_numbers = #tpu.dot_dimension_numbers<[1], [0], [0], [1], [0, 0, 1, 1], [], []>} : vector<128x128xbf16>, vector<128x128xbf16>, vector<128x128xf32> -> vector<128x128xf32>
    %216 = arith.addf %119, %215 : vector<128x128xf32>
    %cst_167 = arith.constant 0.000000e+00 : f32
    %217 = vector.broadcast %cst_167 : f32 to vector<128x128xf32>
    %c0_i32 = arith.constant 0 : i32
    %218 = arith.addi %1, %c0_i32 : i32
    %c0_168 = arith.constant 0 : index
    %219 = arith.index_cast %218 : i32 to index
    %c0_169 = arith.constant 0 : index
    %c0_170 = arith.constant 0 : index
    %220 = vector.load %arg2[%c0_168, %219, %c0_169, %c0_170] : memref<1x52x52x4xbf16, #tpu.memory_space<vmem>>, vector<1x8x16x4xbf16>
    %221 = vector.shape_cast %220 : vector<1x8x16x4xbf16> to vector<8x16x4xbf16>
    %222 = vector.shape_cast %221 : vector<8x16x4xbf16> to vector<128x4xbf16>
    %c0_171 = arith.constant 0 : index
    %c0_172 = arith.constant 0 : index
    %c0_173 = arith.constant 0 : index
    %223 = vector.load %arg6[%c0_171, %c0_172, %c0_173] : memref<9x4x128xbf16, #tpu.memory_space<vmem>>, vector<1x4x128xbf16>
    %224 = vector.shape_cast %223 : vector<1x4x128xbf16> to vector<4x128xbf16>
    %cst_174 = arith.constant dense<0.000000e+00> : vector<128x128xf32>
    %225 = tpu.matmul %222, %224, %cst_174 {dimension_numbers = #tpu.dot_dimension_numbers<[1], [0], [0], [1], [0, 0, 1, 1], [], []>} : vector<128x4xbf16>, vector<4x128xbf16>, vector<128x128xf32> -> vector<128x128xf32>
    %226 = arith.addf %217, %225 : vector<128x128xf32>
    %c0_i32_175 = arith.constant 0 : i32
    %227 = arith.addi %1, %c0_i32_175 : i32
    %c0_176 = arith.constant 0 : index
    %228 = arith.index_cast %227 : i32 to index
    %c18_177 = arith.constant 18 : index
    %c0_178 = arith.constant 0 : index
    %229 = vector.load %arg2[%c0_176, %228, %c18_177, %c0_178] : memref<1x52x52x4xbf16, #tpu.memory_space<vmem>>, vector<1x8x16x4xbf16>
    %230 = vector.shape_cast %229 : vector<1x8x16x4xbf16> to vector<8x16x4xbf16>
    %231 = vector.shape_cast %230 : vector<8x16x4xbf16> to vector<128x4xbf16>
    %c1_179 = arith.constant 1 : index
    %c0_180 = arith.constant 0 : index
    %c0_181 = arith.constant 0 : index
    %232 = vector.load %arg6[%c1_179, %c0_180, %c0_181] : memref<9x4x128xbf16, #tpu.memory_space<vmem>>, vector<1x4x128xbf16>
    %233 = vector.shape_cast %232 : vector<1x4x128xbf16> to vector<4x128xbf16>
    %cst_182 = arith.constant dense<0.000000e+00> : vector<128x128xf32>
    %234 = tpu.matmul %231, %233, %cst_182 {dimension_numbers = #tpu.dot_dimension_numbers<[1], [0], [0], [1], [0, 0, 1, 1], [], []>} : vector<128x4xbf16>, vector<4x128xbf16>, vector<128x128xf32> -> vector<128x128xf32>
    %235 = arith.addf %226, %234 : vector<128x128xf32>
    %c0_i32_183 = arith.constant 0 : i32
    %236 = arith.addi %1, %c0_i32_183 : i32
    %c0_184 = arith.constant 0 : index
    %237 = arith.index_cast %236 : i32 to index
    %c36 = arith.constant 36 : index
    %c0_185 = arith.constant 0 : index
    %238 = vector.load %arg2[%c0_184, %237, %c36, %c0_185] : memref<1x52x52x4xbf16, #tpu.memory_space<vmem>>, vector<1x8x16x4xbf16>
    %239 = vector.shape_cast %238 : vector<1x8x16x4xbf16> to vector<8x16x4xbf16>
    %240 = vector.shape_cast %239 : vector<8x16x4xbf16> to vector<128x4xbf16>
    %c2_186 = arith.constant 2 : index
    %c0_187 = arith.constant 0 : index
    %c0_188 = arith.constant 0 : index
    %241 = vector.load %arg6[%c2_186, %c0_187, %c0_188] : memref<9x4x128xbf16, #tpu.memory_space<vmem>>, vector<1x4x128xbf16>
    %242 = vector.shape_cast %241 : vector<1x4x128xbf16> to vector<4x128xbf16>
    %cst_189 = arith.constant dense<0.000000e+00> : vector<128x128xf32>
    %243 = tpu.matmul %240, %242, %cst_189 {dimension_numbers = #tpu.dot_dimension_numbers<[1], [0], [0], [1], [0, 0, 1, 1], [], []>} : vector<128x4xbf16>, vector<4x128xbf16>, vector<128x128xf32> -> vector<128x128xf32>
    %244 = arith.addf %235, %243 : vector<128x128xf32>
    %c18_i32_190 = arith.constant 18 : i32
    %245 = arith.addi %1, %c18_i32_190 : i32
    %c0_191 = arith.constant 0 : index
    %246 = arith.index_cast %245 : i32 to index
    %c0_192 = arith.constant 0 : index
    %c0_193 = arith.constant 0 : index
    %247 = vector.load %arg2[%c0_191, %246, %c0_192, %c0_193] : memref<1x52x52x4xbf16, #tpu.memory_space<vmem>>, vector<1x8x16x4xbf16>
    %248 = vector.shape_cast %247 : vector<1x8x16x4xbf16> to vector<8x16x4xbf16>
    %249 = vector.shape_cast %248 : vector<8x16x4xbf16> to vector<128x4xbf16>
    %c3_194 = arith.constant 3 : index
    %c0_195 = arith.constant 0 : index
    %c0_196 = arith.constant 0 : index
    %250 = vector.load %arg6[%c3_194, %c0_195, %c0_196] : memref<9x4x128xbf16, #tpu.memory_space<vmem>>, vector<1x4x128xbf16>
    %251 = vector.shape_cast %250 : vector<1x4x128xbf16> to vector<4x128xbf16>
    %cst_197 = arith.constant dense<0.000000e+00> : vector<128x128xf32>
    %252 = tpu.matmul %249, %251, %cst_197 {dimension_numbers = #tpu.dot_dimension_numbers<[1], [0], [0], [1], [0, 0, 1, 1], [], []>} : vector<128x4xbf16>, vector<4x128xbf16>, vector<128x128xf32> -> vector<128x128xf32>
    %253 = arith.addf %244, %252 : vector<128x128xf32>
    %c18_i32_198 = arith.constant 18 : i32
    %254 = arith.addi %1, %c18_i32_198 : i32
    %c0_199 = arith.constant 0 : index
    %255 = arith.index_cast %254 : i32 to index
    %c18_200 = arith.constant 18 : index
    %c0_201 = arith.constant 0 : index
    %256 = vector.load %arg2[%c0_199, %255, %c18_200, %c0_201] : memref<1x52x52x4xbf16, #tpu.memory_space<vmem>>, vector<1x8x16x4xbf16>
    %257 = vector.shape_cast %256 : vector<1x8x16x4xbf16> to vector<8x16x4xbf16>
    %258 = vector.shape_cast %257 : vector<8x16x4xbf16> to vector<128x4xbf16>
    %c4_202 = arith.constant 4 : index
    %c0_203 = arith.constant 0 : index
    %c0_204 = arith.constant 0 : index
    %259 = vector.load %arg6[%c4_202, %c0_203, %c0_204] : memref<9x4x128xbf16, #tpu.memory_space<vmem>>, vector<1x4x128xbf16>
    %260 = vector.shape_cast %259 : vector<1x4x128xbf16> to vector<4x128xbf16>
    %cst_205 = arith.constant dense<0.000000e+00> : vector<128x128xf32>
    %261 = tpu.matmul %258, %260, %cst_205 {dimension_numbers = #tpu.dot_dimension_numbers<[1], [0], [0], [1], [0, 0, 1, 1], [], []>} : vector<128x4xbf16>, vector<4x128xbf16>, vector<128x128xf32> -> vector<128x128xf32>
    %262 = arith.addf %253, %261 : vector<128x128xf32>
    %c18_i32_206 = arith.constant 18 : i32
    %263 = arith.addi %1, %c18_i32_206 : i32
    %c0_207 = arith.constant 0 : index
    %264 = arith.index_cast %263 : i32 to index
    %c36_208 = arith.constant 36 : index
    %c0_209 = arith.constant 0 : index
    %265 = vector.load %arg2[%c0_207, %264, %c36_208, %c0_209] : memref<1x52x52x4xbf16, #tpu.memory_space<vmem>>, vector<1x8x16x4xbf16>
    %266 = vector.shape_cast %265 : vector<1x8x16x4xbf16> to vector<8x16x4xbf16>
    %267 = vector.shape_cast %266 : vector<8x16x4xbf16> to vector<128x4xbf16>
    %c5_210 = arith.constant 5 : index
    %c0_211 = arith.constant 0 : index
    %c0_212 = arith.constant 0 : index
    %268 = vector.load %arg6[%c5_210, %c0_211, %c0_212] : memref<9x4x128xbf16, #tpu.memory_space<vmem>>, vector<1x4x128xbf16>
    %269 = vector.shape_cast %268 : vector<1x4x128xbf16> to vector<4x128xbf16>
    %cst_213 = arith.constant dense<0.000000e+00> : vector<128x128xf32>
    %270 = tpu.matmul %267, %269, %cst_213 {dimension_numbers = #tpu.dot_dimension_numbers<[1], [0], [0], [1], [0, 0, 1, 1], [], []>} : vector<128x4xbf16>, vector<4x128xbf16>, vector<128x128xf32> -> vector<128x128xf32>
    %271 = arith.addf %262, %270 : vector<128x128xf32>
    %c36_i32 = arith.constant 36 : i32
    %272 = arith.addi %1, %c36_i32 : i32
    %c0_214 = arith.constant 0 : index
    %273 = arith.index_cast %272 : i32 to index
    %c0_215 = arith.constant 0 : index
    %c0_216 = arith.constant 0 : index
    %274 = vector.load %arg2[%c0_214, %273, %c0_215, %c0_216] : memref<1x52x52x4xbf16, #tpu.memory_space<vmem>>, vector<1x8x16x4xbf16>
    %275 = vector.shape_cast %274 : vector<1x8x16x4xbf16> to vector<8x16x4xbf16>
    %276 = vector.shape_cast %275 : vector<8x16x4xbf16> to vector<128x4xbf16>
    %c6_217 = arith.constant 6 : index
    %c0_218 = arith.constant 0 : index
    %c0_219 = arith.constant 0 : index
    %277 = vector.load %arg6[%c6_217, %c0_218, %c0_219] : memref<9x4x128xbf16, #tpu.memory_space<vmem>>, vector<1x4x128xbf16>
    %278 = vector.shape_cast %277 : vector<1x4x128xbf16> to vector<4x128xbf16>
    %cst_220 = arith.constant dense<0.000000e+00> : vector<128x128xf32>
    %279 = tpu.matmul %276, %278, %cst_220 {dimension_numbers = #tpu.dot_dimension_numbers<[1], [0], [0], [1], [0, 0, 1, 1], [], []>} : vector<128x4xbf16>, vector<4x128xbf16>, vector<128x128xf32> -> vector<128x128xf32>
    %280 = arith.addf %271, %279 : vector<128x128xf32>
    %c36_i32_221 = arith.constant 36 : i32
    %281 = arith.addi %1, %c36_i32_221 : i32
    %c0_222 = arith.constant 0 : index
    %282 = arith.index_cast %281 : i32 to index
    %c18_223 = arith.constant 18 : index
    %c0_224 = arith.constant 0 : index
    %283 = vector.load %arg2[%c0_222, %282, %c18_223, %c0_224] : memref<1x52x52x4xbf16, #tpu.memory_space<vmem>>, vector<1x8x16x4xbf16>
    %284 = vector.shape_cast %283 : vector<1x8x16x4xbf16> to vector<8x16x4xbf16>
    %285 = vector.shape_cast %284 : vector<8x16x4xbf16> to vector<128x4xbf16>
    %c7_225 = arith.constant 7 : index
    %c0_226 = arith.constant 0 : index
    %c0_227 = arith.constant 0 : index
    %286 = vector.load %arg6[%c7_225, %c0_226, %c0_227] : memref<9x4x128xbf16, #tpu.memory_space<vmem>>, vector<1x4x128xbf16>
    %287 = vector.shape_cast %286 : vector<1x4x128xbf16> to vector<4x128xbf16>
    %cst_228 = arith.constant dense<0.000000e+00> : vector<128x128xf32>
    %288 = tpu.matmul %285, %287, %cst_228 {dimension_numbers = #tpu.dot_dimension_numbers<[1], [0], [0], [1], [0, 0, 1, 1], [], []>} : vector<128x4xbf16>, vector<4x128xbf16>, vector<128x128xf32> -> vector<128x128xf32>
    %289 = arith.addf %280, %288 : vector<128x128xf32>
    %c36_i32_229 = arith.constant 36 : i32
    %290 = arith.addi %1, %c36_i32_229 : i32
    %c0_230 = arith.constant 0 : index
    %291 = arith.index_cast %290 : i32 to index
    %c36_231 = arith.constant 36 : index
    %c0_232 = arith.constant 0 : index
    %292 = vector.load %arg2[%c0_230, %291, %c36_231, %c0_232] : memref<1x52x52x4xbf16, #tpu.memory_space<vmem>>, vector<1x8x16x4xbf16>
    %293 = vector.shape_cast %292 : vector<1x8x16x4xbf16> to vector<8x16x4xbf16>
    %294 = vector.shape_cast %293 : vector<8x16x4xbf16> to vector<128x4xbf16>
    %c8_233 = arith.constant 8 : index
    %c0_234 = arith.constant 0 : index
    %c0_235 = arith.constant 0 : index
    %295 = vector.load %arg6[%c8_233, %c0_234, %c0_235] : memref<9x4x128xbf16, #tpu.memory_space<vmem>>, vector<1x4x128xbf16>
    %296 = vector.shape_cast %295 : vector<1x4x128xbf16> to vector<4x128xbf16>
    %cst_236 = arith.constant dense<0.000000e+00> : vector<128x128xf32>
    %297 = tpu.matmul %294, %296, %cst_236 {dimension_numbers = #tpu.dot_dimension_numbers<[1], [0], [0], [1], [0, 0, 1, 1], [], []>} : vector<128x4xbf16>, vector<4x128xbf16>, vector<128x128xf32> -> vector<128x128xf32>
    %298 = arith.addf %289, %297 : vector<128x128xf32>
    %c3_237 = arith.constant 3 : index
    %c0_238 = arith.constant 0 : index
    %c0_239 = arith.constant 0 : index
    %299 = vector.load %arg8[%c3_237, %c0_238, %c0_239] : memref<5x1x128xf32, #tpu.memory_space<vmem>>, vector<1x1x128xf32>
    %300 = vector.shape_cast %299 : vector<1x1x128xf32> to vector<1x128xf32>
    %301 = vector.broadcast %300 : vector<1x128xf32> to vector<128x128xf32>
    %302 = arith.mulf %298, %301 : vector<128x128xf32>
    %c3_240 = arith.constant 3 : index
    %c0_241 = arith.constant 0 : index
    %c0_242 = arith.constant 0 : index
    %303 = vector.load %arg9[%c3_240, %c0_241, %c0_242] : memref<5x1x128xf32, #tpu.memory_space<vmem>>, vector<1x1x128xf32>
    %304 = vector.shape_cast %303 : vector<1x1x128xf32> to vector<1x128xf32>
    %305 = vector.broadcast %304 : vector<1x128xf32> to vector<128x128xf32>
    %306 = arith.addf %302, %305 : vector<128x128xf32>
    %cst_243 = arith.constant 0.000000e+00 : f32
    %307 = vector.broadcast %cst_243 : f32 to vector<128x128xf32>
    %308 = arith.maximumf %306, %307 : vector<128x128xf32>
    %309 = arith.truncf %308 : vector<128x128xf32> to vector<128x128xbf16>
    %c3_244 = arith.constant 3 : index
    %c0_245 = arith.constant 0 : index
    %c0_246 = arith.constant 0 : index
    %310 = vector.load %arg7[%c3_244, %c0_245, %c0_246] : memref<4x128x128xbf16, #tpu.memory_space<vmem>>, vector<1x128x128xbf16>
    %311 = vector.shape_cast %310 : vector<1x128x128xbf16> to vector<128x128xbf16>
    %cst_247 = arith.constant dense<0.000000e+00> : vector<128x128xf32>
    %312 = tpu.matmul %309, %311, %cst_247 {dimension_numbers = #tpu.dot_dimension_numbers<[1], [0], [0], [1], [0, 0, 1, 1], [], []>} : vector<128x128xbf16>, vector<128x128xbf16>, vector<128x128xf32> -> vector<128x128xf32>
    %313 = arith.addf %216, %312 : vector<128x128xf32>
    %c0_248 = arith.constant 0 : index
    %c0_249 = arith.constant 0 : index
    %c0_250 = arith.constant 0 : index
    %314 = vector.load %arg10[%c0_248, %c0_249, %c0_250] : memref<1x1x128xf32, #tpu.memory_space<vmem>>, vector<1x1x128xf32>
    %315 = vector.shape_cast %314 : vector<1x1x128xf32> to vector<1x128xf32>
    %316 = vector.broadcast %315 : vector<1x128xf32> to vector<128x128xf32>
    %317 = arith.addf %313, %316 : vector<128x128xf32>
    %c4_251 = arith.constant 4 : index
    %c0_252 = arith.constant 0 : index
    %c0_253 = arith.constant 0 : index
    %318 = vector.load %arg8[%c4_251, %c0_252, %c0_253] : memref<5x1x128xf32, #tpu.memory_space<vmem>>, vector<1x1x128xf32>
    %319 = vector.shape_cast %318 : vector<1x1x128xf32> to vector<1x128xf32>
    %320 = vector.broadcast %319 : vector<1x128xf32> to vector<128x128xf32>
    %321 = arith.mulf %317, %320 : vector<128x128xf32>
    %c4_254 = arith.constant 4 : index
    %c0_255 = arith.constant 0 : index
    %c0_256 = arith.constant 0 : index
    %322 = vector.load %arg9[%c4_254, %c0_255, %c0_256] : memref<5x1x128xf32, #tpu.memory_space<vmem>>, vector<1x1x128xf32>
    %323 = vector.shape_cast %322 : vector<1x1x128xf32> to vector<1x128xf32>
    %324 = vector.broadcast %323 : vector<1x128xf32> to vector<128x128xf32>
    %325 = arith.addf %321, %324 : vector<128x128xf32>
    %cst_257 = arith.constant 0.000000e+00 : f32
    %326 = vector.broadcast %cst_257 : f32 to vector<128x128xf32>
    %327 = arith.maximumf %325, %326 : vector<128x128xf32>
    %328 = vector.shape_cast %327 : vector<128x128xf32> to vector<8x16x128xf32>
    %c0_258 = arith.constant 0 : index
    %c0_259 = arith.constant 0 : index
    %c0_260 = arith.constant 0 : index
    %c0_261 = arith.constant 0 : index
    %329 = vector.load %arg11[%c0_258, %c0_259, %c0_260, %c0_261] : memref<1x8x16x128xf32, #tpu.memory_space<vmem>>, vector<1x8x16x128xf32>
    %330 = vector.shape_cast %329 : vector<1x8x16x128xf32> to vector<8x16x128xf32>
    %331 = vector.shape_cast %328 : vector<8x16x128xf32> to vector<1x8x16x128xf32>
    tpu.vector_store %arg11[%c0_258, %c0_259, %c0_260, %c0_261], %331 {strides = array<i32>} : memref<1x8x16x128xf32, #tpu.memory_space<vmem>>, vector<1x8x16x128xf32>,
    return
  }
  func.func @transform_0(%arg0: i32, %arg1: i32) -> (i32, i32, i32, i32) {
    %c0_i32 = arith.constant 0 : i32
    %c0_i32_0 = arith.constant 0 : i32
    %c0_i32_1 = arith.constant 0 : i32
    %c0_i32_2 = arith.constant 0 : i32
    return %arg0, %c0_i32, %c0_i32_0, %c0_i32_1 : i32, i32, i32, i32
  }
  func.func @transform_1(%arg0: i32, %arg1: i32) -> (i32, i32) {
    %c0_i32 = arith.constant 0 : i32
    %c0_i32_0 = arith.constant 0 : i32
    %c0_i32_1 = arith.constant 0 : i32
    return %c0_i32, %c0_i32_0 : i32, i32
  }
  func.func @transform_2(%arg0: i32, %arg1: i32) -> (i32, i32, i32) {
    %c0_i32 = arith.constant 0 : i32
    %c0_i32_0 = arith.constant 0 : i32
    %c0_i32_1 = arith.constant 0 : i32
    %c0_i32_2 = arith.constant 0 : i32
    return %c0_i32, %c0_i32_0, %c0_i32_1 : i32, i32, i32
  }
  func.func @transform_3(%arg0: i32, %arg1: i32) -> (i32, i32, i32) {
    %c0_i32 = arith.constant 0 : i32
    %c0_i32_0 = arith.constant 0 : i32
    %c0_i32_1 = arith.constant 0 : i32
    %c0_i32_2 = arith.constant 0 : i32
    return %c0_i32, %c0_i32_0, %c0_i32_1 : i32, i32, i32
  }
  func.func @transform_4(%arg0: i32, %arg1: i32) -> (i32, i32, i32) {
    %c0_i32 = arith.constant 0 : i32
    %c0_i32_0 = arith.constant 0 : i32
    %c0_i32_1 = arith.constant 0 : i32
    %c0_i32_2 = arith.constant 0 : i32
    return %c0_i32, %c0_i32_0, %c0_i32_1 : i32, i32, i32
  }
  func.func @transform_5(%arg0: i32, %arg1: i32) -> (i32, i32, i32) {
    %c0_i32 = arith.constant 0 : i32
    %c0_i32_0 = arith.constant 0 : i32
    %c0_i32_1 = arith.constant 0 : i32
    %c0_i32_2 = arith.constant 0 : i32
    return %c0_i32, %c0_i32_0, %c0_i32_1 : i32, i32, i32
  }
  func.func @transform_6(%arg0: i32, %arg1: i32) -> (i32, i32, i32) {
    %c0_i32 = arith.constant 0 : i32
    %c0_i32_0 = arith.constant 0 : i32
    %c0_i32_1 = arith.constant 0 : i32
    %c0_i32_2 = arith.constant 0 : i32
    return %c0_i32, %c0_i32_0, %c0_i32_1 : i32, i32, i32
  }
  func.func @transform_7(%arg0: i32, %arg1: i32) -> (i32, i32, i32) {
    %c0_i32 = arith.constant 0 : i32
    %c0_i32_0 = arith.constant 0 : i32
    %c0_i32_1 = arith.constant 0 : i32
    %c0_i32_2 = arith.constant 0 : i32
    return %c0_i32, %c0_i32_0, %c0_i32_1 : i32, i32, i32
  }
  func.func @transform_8(%arg0: i32, %arg1: i32) -> (i32, i32, i32) {
    %c0_i32 = arith.constant 0 : i32
    %c0_i32_0 = arith.constant 0 : i32
    %c0_i32_1 = arith.constant 0 : i32
    return %arg0, %c0_i32, %c0_i32_0 : i32, i32, i32
  }
  func.func @transform_9(%arg0: i32, %arg1: i32) -> (i32, i32, i32, i32) {
    %c0_i32 = arith.constant 0 : i32
    %c0_i32_0 = arith.constant 0 : i32
    %c0_i32_1 = arith.constant 0 : i32
    return %arg0, %arg1, %c0_i32, %c0_i32_0 : i32, i32, i32, i32
  }
}

</mosaic_0001>

<llo_original>
// kernel: tpu_custom_call.1
$region0: #{tpu_custom_call.1}
  #allocation0 [shape = 'u32[]', space=smem, size = 0x4, offset = 0x4, fixed_abs, tag = 'smem constant byte address 0x4 - core index']
  #allocation1 [shape = 'u32[144,128]{1,0:T(1,128)}', space=vmem, size = 0x12000, scoped, tag = 'internal scratch']
  %s0 = inlined_call_operand.vmem [shape: bf16[2,52,52,4], index: 0, kind: input, shape index: {}]
  %s1 = inlined_call_operand.vmem [shape: bf16[4,128], index: 1, kind: input, shape index: {}]
  %s2 = inlined_call_operand.vmem [shape: bf16[9,4,128], index: 2, kind: input, shape index: {}]
  %s3 = inlined_call_operand.vmem [shape: bf16[9,4,128], index: 3, kind: input, shape index: {}]
  %s4 = inlined_call_operand.vmem [shape: bf16[9,4,128], index: 4, kind: input, shape index: {}]
  %s5 = inlined_call_operand.vmem [shape: bf16[4,128,128], index: 5, kind: input, shape index: {}]
  %s6 = inlined_call_operand.vmem [shape: f32[5,1,128], index: 6, kind: input, shape index: {}]
  %s7 = inlined_call_operand.vmem [shape: f32[5,1,128], index: 7, kind: input, shape index: {}]
  %s8 = inlined_call_operand.vmem [shape: f32[2,1,128], index: 8, kind: input, shape index: {}]
  %s9 = inlined_call_operand.hbm [shape: f32[2,16,16,128], index: 9, kind: output, shape index: {}]
  %s10 = sld [smem:[#allocation0]]
  $region69: #{tpu_custom_call.1} parent=0
    _
  %s12 = ssub.s32 1, %s10
  %s13 = scalar_select 0, %s12, %s10
  $region1: #{tpu_custom_call.1} parent=0
    #allocation2 [shape = 'u8[131072]{0}', space=vmem, size = 0x20000, scoped, tag = 'output window, operand 0']
    #allocation3 [shape = 's32[2]{0}', space=sflag, size = 0x8, scoped, tag = 'scoped memory for tpu_custom_call.1']
    %14 = vsyncpa [#allocation3], 0
    %s15 = scalar_lea.sflag [#allocation3], 1
    %16 = vsyncpa %s15, 0
    loop: start=0, step=1, limit=6
    $region2: #{tpu_custom_call.1} parent=1 // loop_pre_header
      _
    $region3: #{tpu_custom_call.1} parent=1 // loop_header
      %s18 = sphi 0, %s22
      %p19 = scmp.ge.s32.totalorder %s18, 6
      %s25 = sphi 0, %s37
      %s26 = sphi 0, %s33
      %s27 = sphi 0, %s25
      %s28 = sphi 0, %s26
      %s29 = sphi 0, %s27
      %s30 = sphi 0, %s28
      %s40 = sphi 0, %s42
      %s43 = sphi 0, %s40
      %s44 = sphi 0, %s43
      %s60 = sphi 0, %s44
      %s64 = sphi 0, %s64
      %s66 = sphi 0, %s64
      %s67 = sphi 0, %s66
      %s81 = sphi 0, %s67
      %s85 = sphi 0, %s85
      %s87 = sphi 0, %s85
      %s88 = sphi 0, %s87
      %s102 = sphi 0, %s88
      %s106 = sphi 0, %s106
      %s108 = sphi 0, %s106
      %s109 = sphi 0, %s108
      %s123 = sphi 0, %s109
      %s127 = sphi 0, %s127
      %s129 = sphi 0, %s127
      %s130 = sphi 0, %s129
      %s144 = sphi 0, %s130
      %s148 = sphi 0, %s148
      %s150 = sphi 0, %s148
      %s151 = sphi 0, %s150
      %s165 = sphi 0, %s151
      %s169 = sphi 0, %s169
      %s171 = sphi 0, %s169
      %s172 = sphi 0, %s171
      %s186 = sphi 0, %s172
      %s190 = sphi 0, %s190
      %s192 = sphi 0, %s190
      %s193 = sphi 0, %s192
      %s207 = sphi 0, %s193
      %s213 = sphi 0, %s215
      %s216 = sphi 0, %s213
      %s217 = sphi 0, %s216
      %s233 = sphi 0, %s217
      %s241 = sphi 0, %s243
      %s244 = sphi 0, %s241
      %s245 = sphi 0, %s244
      %s261 = sphi 0, %s245
    $region4: #{tpu_custom_call.1} parent=1 // loop_header_branch
      %21 = sbr.rel (%p19) target = $region8
    $region5: #{tpu_custom_call.1} parent=1 // loop_body
      %s23 = ssub.s32 %s18, 1
      %s24 = ssub.s32 %s18, 2
      %s31 = sadd.s32 1, %s26
      %p32 = scmp.ge.s32.totalorder %s31, 2
      %s33 = scalar_select %p32, 0, %s31
      %s34 = sadd.s32 1, %s25
      %s35 = scalar_select %p32, %s34, %s25
      %p36 = scmp.ge.s32.totalorder %s35, 2
      %s37 = scalar_select %p36, 0, %s35
      %s38 = ssub.s32 %s25, %s37
      %p39 = scmp.eq.s32.totalorder %s38, 0
      %s41 = sadd.s32 %s40, 1
      %s42 = scalar_select %p39, %s40, %s41
      %p45 = pneg %p39
      %p46 = scmp.eq.s32.totalorder %s18, 3
      %p47 = por %p45, %p46
      %p48 = scmp.ne.s32.totalorder %s40, %s43
      %p49 = scmp.eq.s32.totalorder %s18, 0
      %p50 = por %p48, %p49
      %p51 = scmp.ne.s32.totalorder %s40, %s43
      %p52 = scmp.eq.s32.totalorder %s23, 3
      %p53 = por %p51, %p52
      %p54 = scmp.ne.s32.totalorder %s43, %s44
      %p55 = scmp.eq.s32.totalorder %s23, 0
      %p56 = por %p54, %p55
      %p57 = scmp.ne.s32.totalorder %s43, %s44
      %p58 = scmp.eq.s32.totalorder %s24, 3
      %p59 = por %p57, %p58
      %p61 = scmp.ne.s32.totalorder %s44, %s60
      %p62 = scmp.eq.s32.totalorder %s24, 0
      %p63 = por %p61, %p62
      %s65 = sadd.s32 %s64, 1
      %p68 = scmp.eq.s32.totalorder %s18, 3
      %p69 = scmp.ne.s32.totalorder %s64, %s66
      %p70 = scmp.eq.s32.totalorder %s18, 0
      %p71 = por %p69, %p70
      %p72 = scmp.ne.s32.totalorder %s64, %s66
      %p73 = scmp.eq.s32.totalorder %s23, 3
      %p74 = por %p72, %p73
      %p75 = scmp.ne.s32.totalorder %s66, %s67
      %p76 = scmp.eq.s32.totalorder %s23, 0
      %p77 = por %p75, %p76
      %p78 = scmp.ne.s32.totalorder %s66, %s67
      %p79 = scmp.eq.s32.totalorder %s24, 3
      %p80 = por %p78, %p79
      %p82 = scmp.ne.s32.totalorder %s67, %s81
      %p83 = scmp.eq.s32.totalorder %s24, 0
      %p84 = por %p82, %p83
      %s86 = sadd.s32 %s85, 1
      %p89 = scmp.eq.s32.totalorder %s18, 3
      %p90 = scmp.ne.s32.totalorder %s85, %s87
      %p91 = scmp.eq.s32.totalorder %s18, 0
      %p92 = por %p90, %p91
      %p93 = scmp.ne.s32.totalorder %s85, %s87
      %p94 = scmp.eq.s32.totalorder %s23, 3
      %p95 = por %p93, %p94
      %p96 = scmp.ne.s32.totalorder %s87, %s88
      %p97 = scmp.eq.s32.totalorder %s23, 0
      %p98 = por %p96, %p97
      %p99 = scmp.ne.s32.totalorder %s87, %s88
      %p100 = scmp.eq.s32.totalorder %s24, 3
      %p101 = por %p99, %p100
      %p103 = scmp.ne.s32.totalorder %s88, %s102
      %p104 = scmp.eq.s32.totalorder %s24, 0
      %p105 = por %p103, %p104
      %s107 = sadd.s32 %s106, 1
      %p110 = scmp.eq.s32.totalorder %s18, 3
      %p111 = scmp.ne.s32.totalorder %s106, %s108
      %p112 = scmp.eq.s32.totalorder %s18, 0
      %p113 = por %p111, %p112
      %p114 = scmp.ne.s32.totalorder %s106, %s108
      %p115 = scmp.eq.s32.totalorder %s23, 3
      %p116 = por %p114, %p115
      %p117 = scmp.ne.s32.totalorder %s108, %s109
      %p118 = scmp.eq.s32.totalorder %s23, 0
      %p119 = por %p117, %p118
      %p120 = scmp.ne.s32.totalorder %s108, %s109
      %p121 = scmp.eq.s32.totalorder %s24, 3
      %p122 = por %p120, %p121
      %p124 = scmp.ne.s32.totalorder %s109, %s123
      %p125 = scmp.eq.s32.totalorder %s24, 0
      %p126 = por %p124, %p125
      %s128 = sadd.s32 %s127, 1
      %p131 = scmp.eq.s32.totalorder %s18, 3
      %p132 = scmp.ne.s32.totalorder %s127, %s129
      %p133 = scmp.eq.s32.totalorder %s18, 0
      %p134 = por %p132, %p133
      %p135 = scmp.ne.s32.totalorder %s127, %s129
      %p136 = scmp.eq.s32.totalorder %s23, 3
      %p137 = por %p135, %p136
      %p138 = scmp.ne.s32.totalorder %s129, %s130
      %p139 = scmp.eq.s32.totalorder %s23, 0
      %p140 = por %p138, %p139
      %p141 = scmp.ne.s32.totalorder %s129, %s130
      %p142 = scmp.eq.s32.totalorder %s24, 3
      %p143 = por %p141, %p142
      %p145 = scmp.ne.s32.totalorder %s130, %s144
      %p146 = scmp.eq.s32.totalorder %s24, 0
      %p147 = por %p145, %p146
      %s149 = sadd.s32 %s148, 1
      %p152 = scmp.eq.s32.totalorder %s18, 3
      %p153 = scmp.ne.s32.totalorder %s148, %s150
      %p154 = scmp.eq.s32.totalorder %s18, 0
      %p155 = por %p153, %p154
      %p156 = scmp.ne.s32.totalorder %s148, %s150
      %p157 = scmp.eq.s32.totalorder %s23, 3
      %p158 = por %p156, %p157
      %p159 = scmp.ne.s32.totalorder %s150, %s151
      %p160 = scmp.eq.s32.totalorder %s23, 0
      %p161 = por %p159, %p160
      %p162 = scmp.ne.s32.totalorder %s150, %s151
      %p163 = scmp.eq.s32.totalorder %s24, 3
      %p164 = por %p162, %p163
      %p166 = scmp.ne.s32.totalorder %s151, %s165
      %p167 = scmp.eq.s32.totalorder %s24, 0
      %p168 = por %p166, %p167
      %s170 = sadd.s32 %s169, 1
      %p173 = scmp.eq.s32.totalorder %s18, 3
      %p174 = scmp.ne.s32.totalorder %s169, %s171
      %p175 = scmp.eq.s32.totalorder %s18, 0
      %p176 = por %p174, %p175
      %p177 = scmp.ne.s32.totalorder %s169, %s171
      %p178 = scmp.eq.s32.totalorder %s23, 3
      %p179 = por %p177, %p178
      %p180 = scmp.ne.s32.totalorder %s171, %s172
      %p181 = scmp.eq.s32.totalorder %s23, 0
      %p182 = por %p180, %p181
      %p183 = scmp.ne.s32.totalorder %s171, %s172
      %p184 = scmp.eq.s32.totalorder %s24, 3
      %p185 = por %p183, %p184
      %p187 = scmp.ne.s32.totalorder %s172, %s186
      %p188 = scmp.eq.s32.totalorder %s24, 0
      %p189 = por %p187, %p188
      %s191 = sadd.s32 %s190, 1
      %p194 = scmp.eq.s32.totalorder %s18, 3
      %p195 = scmp.ne.s32.totalorder %s190, %s192
      %p196 = scmp.eq.s32.totalorder %s18, 0
      %p197 = por %p195, %p196
      %p198 = scmp.ne.s32.totalorder %s190, %s192
      %p199 = scmp.eq.s32.totalorder %s23, 3
      %p200 = por %p198, %p199
      %p201 = scmp.ne.s32.totalorder %s192, %s193
      %p202 = scmp.eq.s32.totalorder %s23, 0
      %p203 = por %p201, %p202
      %p204 = scmp.ne.s32.totalorder %s192, %s193
      %p205 = scmp.eq.s32.totalorder %s24, 3
      %p206 = por %p204, %p205
      %p208 = scmp.ne.s32.totalorder %s193, %s207
      %p209 = scmp.eq.s32.totalorder %s24, 0
      %p210 = por %p208, %p209
      %s211 = ssub.s32 %s25, %s37
      %p212 = scmp.eq.s32.totalorder %s211, 0
      %s214 = sadd.s32 %s213, 1
      %s215 = scalar_select %p212, %s213, %s214
      %p218 = pneg %p212
      %p219 = scmp.eq.s32.totalorder %s18, 3
      %p220 = por %p218, %p219
      %p221 = scmp.ne.s32.totalorder %s213, %s216
      %p222 = scmp.eq.s32.totalorder %s18, 0
      %p223 = por %p221, %p222
      %p224 = scmp.ne.s32.totalorder %s213, %s216
      %p225 = scmp.eq.s32.totalorder %s23, 3
      %p226 = por %p224, %p225
      %p227 = scmp.ne.s32.totalorder %s216, %s217
      %p228 = scmp.eq.s32.totalorder %s23, 0
      %p229 = por %p227, %p228
      %p230 = scmp.ne.s32.totalorder %s216, %s217
      %p231 = scmp.eq.s32.totalorder %s24, 3
      %p232 = por %p230, %p231
      %p234 = scmp.ne.s32.totalorder %s217, %s233
      %p235 = scmp.eq.s32.totalorder %s24, 0
      %p236 = por %p234, %p235
      %s237 = ssub.s32 %s25, %s37
      %s238 = ssub.s32 %s26, %s33
      %s239 = sor.u32 %s237, %s238
      %p240 = scmp.eq.s32.totalorder %s239, 0
      %s242 = sadd.s32 %s241, 1
      %s243 = scalar_select %p240, %s241, %s242
      %p246 = pneg %p240
      %p247 = scmp.eq.s32.totalorder %s18, 3
      %p248 = por %p246, %p247
      %p249 = scmp.ne.s32.totalorder %s241, %s244
      %p250 = scmp.eq.s32.totalorder %s18, 0
      %p251 = por %p249, %p250
      %p252 = scmp.ne.s32.totalorder %s241, %s244
      %p253 = scmp.eq.s32.totalorder %s23, 3
      %p254 = por %p252, %p253
      %p255 = scmp.ne.s32.totalorder %s244, %s245
      %p256 = scmp.eq.s32.totalorder %s23, 0
      %p257 = por %p255, %p256
      %p258 = scmp.ne.s32.totalorder %s244, %s245
      %p259 = scmp.eq.s32.totalorder %s24, 3
      %p260 = por %p258, %p259
      %p262 = scmp.ne.s32.totalorder %s245, %s261
      %p263 = scmp.eq.s32.totalorder %s24, 0
      %p264 = por %p262, %p263
      %p265 = scmp.le.s32.totalorder 1, %s18
      %p266 = scmp.lt.s32.totalorder %s18, 5
      %p267 = pnand %p265, %p266
      %p268 = pneg %p267
      // Predicated region
      $region9: #{tpu_custom_call.1} parent=5 // pred_check
        _
      $region10: #{tpu_custom_call.1} parent=5 // pred_check_branch
        %270 = sbr.rel (%p267) target = $region12
      $region11: #{tpu_custom_call.1} parent=5 // pred_region
        %s271 = ssub.s32 %s18, 1
        // Predicated region
        $region13: #{tpu_custom_call.1} parent=11 // pred_check
          %p272 = pneg %p77
        $region14: #{tpu_custom_call.1} parent=11 // pred_check_branch
          %274 = sbr.rel (%p272) target = $region16
        $region15: #{tpu_custom_call.1} parent=11 // pred_region
          _
        $region16: #{tpu_custom_call.1} parent=11 // pred_fallthru
          _
        // Predicated region
        $region17: #{tpu_custom_call.1} parent=11 // pred_check
          %p275 = pneg %p98
        $region18: #{tpu_custom_call.1} parent=11 // pred_check_branch
          %277 = sbr.rel (%p275) target = $region20
        $region19: #{tpu_custom_call.1} parent=11 // pred_region
          _
        $region20: #{tpu_custom_call.1} parent=11 // pred_fallthru
          _
        // Predicated region
        $region21: #{tpu_custom_call.1} parent=11 // pred_check
          %p278 = pneg %p119
        $region22: #{tpu_custom_call.1} parent=11 // pred_check_branch
          %280 = sbr.rel (%p278) target = $region24
        $region23: #{tpu_custom_call.1} parent=11 // pred_region
          _
        $region24: #{tpu_custom_call.1} parent=11 // pred_fallthru
          _
        // Predicated region
        $region25: #{tpu_custom_call.1} parent=11 // pred_check
          %p281 = pneg %p140
        $region26: #{tpu_custom_call.1} parent=11 // pred_check_branch
          %283 = sbr.rel (%p281) target = $region28
        $region27: #{tpu_custom_call.1} parent=11 // pred_region
          _
        $region28: #{tpu_custom_call.1} parent=11 // pred_fallthru
          _
        // Predicated region
        $region29: #{tpu_custom_call.1} parent=11 // pred_check
          %p284 = pneg %p161
        $region30: #{tpu_custom_call.1} parent=11 // pred_check_branch
          %286 = sbr.rel (%p284) target = $region32
        $region31: #{tpu_custom_call.1} parent=11 // pred_region
          _
        $region32: #{tpu_custom_call.1} parent=11 // pred_fallthru
          _
        // Predicated region
        $region33: #{tpu_custom_call.1} parent=11 // pred_check
          %p287 = pneg %p182
        $region34: #{tpu_custom_call.1} parent=11 // pred_check_branch
          %289 = sbr.rel (%p287) target = $region36
        $region35: #{tpu_custom_call.1} parent=11 // pred_region
          _
        $region36: #{tpu_custom_call.1} parent=11 // pred_fallthru
          _
        // Predicated region
        $region37: #{tpu_custom_call.1} parent=11 // pred_check
          %p290 = pneg %p203
        $region38: #{tpu_custom_call.1} parent=11 // pred_check_branch
          %292 = sbr.rel (%p290) target = $region40
        $region39: #{tpu_custom_call.1} parent=11 // pred_region
          _
        $region40: #{tpu_custom_call.1} parent=11 // pred_fallthru
          _
      $region12: #{tpu_custom_call.1} parent=5 // pred_fallthru
        _
      %p293 = scmp.lt.s32.totalorder %s18, 4
      // Predicated region
      $region41: #{tpu_custom_call.1} parent=5 // pred_check
        %p294 = pneg %p293
      $region42: #{tpu_custom_call.1} parent=5 // pred_check_branch
        %296 = sbr.rel (%p294) target = $region44
      $region43: #{tpu_custom_call.1} parent=5 // pred_region
        // Predicated region
        $region45: #{tpu_custom_call.1} parent=43 // pred_check
          %p297 = pneg %p50
        $region46: #{tpu_custom_call.1} parent=43 // pred_check_branch
          %299 = sbr.rel (%p297) target = $region48
        $region47: #{tpu_custom_call.1} parent=43 // pred_region
          %p300 = scmp.lt.s32.totalorder %s25, 1
          %s301 = scalar_select %p300, %s25, 1
          %s302 = smul.addr %s301, 364
          %s303 = smul.addr %s302, 4
          %s304 = scalar_lea.vmem %s0, %s303
        $region48: #{tpu_custom_call.1} parent=43 // pred_fallthru
          _
        // Predicated region
        $region49: #{tpu_custom_call.1} parent=43 // pred_check
          %p305 = pneg %p223
        $region50: #{tpu_custom_call.1} parent=43 // pred_check_branch
          %307 = sbr.rel (%p305) target = $region52
        $region51: #{tpu_custom_call.1} parent=43 // pred_region
          %p308 = scmp.lt.s32.totalorder %s25, 1
          %s309 = scalar_select %p308, %s25, 1
          %s310 = scalar_lea.vmem %s8, %s309
        $region52: #{tpu_custom_call.1} parent=43 // pred_fallthru
          _
      $region44: #{tpu_custom_call.1} parent=5 // pred_fallthru
        _
      %p311 = scmp.le.s32.totalorder 1, %s18
      %p312 = scmp.lt.s32.totalorder %s18, 5
      %p313 = pnand %p311, %p312
      %p314 = pneg %p313
      // Predicated region
      $region53: #{tpu_custom_call.1} parent=5 // pred_check
        _
      $region54: #{tpu_custom_call.1} parent=5 // pred_check_branch
        %316 = sbr.rel (%p313) target = $region56
      $region55: #{tpu_custom_call.1} parent=5 // pred_region
        %s317 = ssub.s32 %s18, 1
        %p318 = scmp.lt.s32.totalorder %s27, 1
        %s319 = scalar_select %p318, %s27, 1
        %s320 = smul.addr %s319, 364
        %s321 = smul.addr %s320, 4
        %s322 = scalar_lea.vmem %s0, %s321
        %p323 = pneg %p56
        %p324 = pneg %p53
        %p325 = pneg %p77
        %p326 = pneg %p74
        %p327 = pneg %p98
        %p328 = pneg %p95
        %p329 = pneg %p119
        %p330 = pneg %p116
        %p331 = pneg %p140
        %p332 = pneg %p137
        %p333 = pneg %p161
        %p334 = pneg %p158
        %p335 = pneg %p182
        %p336 = pneg %p179
        %p337 = pneg %p203
        %p338 = pneg %p200
        %p339 = scmp.lt.s32.totalorder %s27, 1
        %s340 = scalar_select %p339, %s27, 1
        %s341 = scalar_lea.vmem %s8, %s340
        %p342 = pneg %p229
        %p343 = pneg %p226
        %p344 = pneg %p257
        %p345 = pneg %p254
        %s346 = sand.u32 %s244, 1
        %s347 = scalar_lea.sflag [#allocation3], %s346
        %s348 = sand.u32 %s244, 1
        %s349 = smul.addr %s348, 128
        %s350 = scalar_lea.vmem [#allocation2], %s349
        %p351 = scmp.lt.s32.totalorder %s27, 1
        %s352 = scalar_select %p351, %s27, 1
        %s353 = smul.addr %s352, 364
        %s354 = smul.addr %s353, 4
        %s355 = scalar_lea.vmem %s0, %s354
        %p356 = scmp.lt.s32.totalorder %s27, 1
        %s357 = scalar_select %p356, %s27, 1
        %s358 = scalar_lea.vmem %s8, %s357
        %s359 = smul.u32 8, %s28
        %s361 = smul.u32 %s28, 8
        %s362 = sadd.s32 %s361, 18
        %s363 = smul.u32 %s362, 7
        %s364 = smul.addr %s363, 4
        %s365 = scalar_lea.vmem %s355, %s364
        %v366 = vld [vmem:[%s365 + $0x8] sm:$0xe]
        %v367 = vld [vmem:[%s365 + $0xc] sm:$0xf]
        %v368 = vld [vmem:[%s365 + $0x10] sm:$0x1]
        %v369 = vld [vmem:[%s365 + $0x24] sm:$0xe]
        %v370 = vld [vmem:[%s365 + $0x28] sm:$0xf]
        %v371 = vld [vmem:[%s365 + $0x2c] sm:$0x1]
        %v372 = vld [vmem:[%s365 + $0x40] sm:$0xe]
        %v373 = vld [vmem:[%s365 + $0x44] sm:$0xf]
        %v374 = vld [vmem:[%s365 + $0x48] sm:$0x1]
        %v375 = vld [vmem:[%s365 + $0x5c] sm:$0xe]
        %v376 = vld [vmem:[%s365 + $0x60] sm:$0xf]
        %v377 = vld [vmem:[%s365 + $0x64] sm:$0x1]
        %v378 = vld [vmem:[%s365 + $0x78] sm:$0xe]
        %v379 = vld [vmem:[%s365 + $0x7c] sm:$0xf]
        %v380 = vld [vmem:[%s365 + $0x80] sm:$0x1]
        %v381 = vld [vmem:[%s365 + $0x94] sm:$0xe]
        %v382 = vld [vmem:[%s365 + $0x98] sm:$0xf]
        %v383 = vld [vmem:[%s365 + $0x9c] sm:$0x1]
        %v384 = vld [vmem:[%s365 + $0xb0] sm:$0xe]
        %v385 = vld [vmem:[%s365 + $0xb4] sm:$0xf]
        %v386 = vld [vmem:[%s365 + $0xb8] sm:$0x1]
        %v387 = vld [vmem:[%s365 + $0xcc] sm:$0xe]
        %v388 = vld [vmem:[%s365 + $0xd0] sm:$0xf]
        %v389 = vld [vmem:[%s365 + $0xd4] sm:$0x1]
        %vm414 = vcmask 1042432
        %vm415 = vcmask 1046532
        %vm416 = vmor %vm414, %vm415
        %v417 = vrot.slane %v366, 5
        %v418 = vrot.slane %v417, 4
        %v419 = vrot.slane %v367, 5
        %v420 = vsel %vm416, %v418, %v419
        %v421 = vrot.slane %v419, 4
        %v422 = vrot.slane %v368, 5
        %v423 = vsel %vm416, %v421, %v422
        %v424 = vrot.slane %v369, 5
        %v425 = vrot.slane %v424, 4
        %v426 = vrot.slane %v370, 5
        %v427 = vsel %vm416, %v425, %v426
        %v428 = vrot.slane %v426, 4
        %v429 = vrot.slane %v371, 5
        %v430 = vsel %vm416, %v428, %v429
        %v431 = vrot.slane %v372, 5
        %v432 = vrot.slane %v431, 4
        %v433 = vrot.slane %v373, 5
        %v434 = vsel %vm416, %v432, %v433
        %v435 = vrot.slane %v433, 4
        %v436 = vrot.slane %v374, 5
        %v437 = vsel %vm416, %v435, %v436
        %v438 = vrot.slane %v375, 5
        %v439 = vrot.slane %v438, 4
        %v440 = vrot.slane %v376, 5
        %v441 = vsel %vm416, %v439, %v440
        %v442 = vrot.slane %v440, 4
        %v443 = vrot.slane %v377, 5
        %v444 = vsel %vm416, %v442, %v443
        %v445 = vrot.slane %v378, 5
        %v446 = vrot.slane %v445, 4
        %v447 = vrot.slane %v379, 5
        %v448 = vsel %vm416, %v446, %v447
        %v449 = vrot.slane %v447, 4
        %v450 = vrot.slane %v380, 5
        %v451 = vsel %vm416, %v449, %v450
        %v452 = vrot.slane %v381, 5
        %v453 = vrot.slane %v452, 4
        %v454 = vrot.slane %v382, 5
        %v455 = vsel %vm416, %v453, %v454
        %v456 = vrot.slane %v454, 4
        %v457 = vrot.slane %v383, 5
        %v458 = vsel %vm416, %v456, %v457
        %v459 = vrot.slane %v384, 5
        %v460 = vrot.slane %v459, 4
        %v461 = vrot.slane %v385, 5
        %v462 = vsel %vm416, %v460, %v461
        %v463 = vrot.slane %v461, 4
        %v464 = vrot.slane %v386, 5
        %v465 = vsel %vm416, %v463, %v464
        %v466 = vrot.slane %v387, 5
        %v467 = vrot.slane %v466, 4
        %v468 = vrot.slane %v388, 5
        %v469 = vsel %vm416, %v467, %v468
        %v470 = vrot.slane %v468, 4
        %v471 = vrot.slane %v389, 5
        %v472 = vsel %vm416, %v470, %v471
        %v473 = vld [vmem:[%s1] sm:$0x3]
        %v474 = vunpack.c.l.b16 %v420
        %v475 = vunpack.c.l.b16 %v423
        %v476 = vunpack.c.l.b16 %v427
        %v477 = vunpack.c.l.b16 %v430
        %v478 = vunpack.c.l.b16 %v434
        %v479 = vunpack.c.l.b16 %v437
        %v480 = vunpack.c.l.b16 %v441
        %v481 = vunpack.c.l.b16 %v444
        %v482 = vunpack.c.l.b16 %v448
        %v483 = vunpack.c.l.b16 %v451
        %v484 = vunpack.c.l.b16 %v455
        %v485 = vunpack.c.l.b16 %v458
        %v486 = vunpack.c.l.b16 %v462
        %v487 = vunpack.c.l.b16 %v465
        %v488 = vunpack.c.l.b16 %v469
        %v489 = vunpack.c.l.b16 %v472
        %v490 = vpack.c.b16 %v475, %v474
        %v491 = vpack.c.b16 %v477, %v476
        %v492 = vpack.c.b16 %v479, %v478
        %v493 = vpack.c.b16 %v481, %v480
        %v494 = vpack.c.b16 %v483, %v482
        %v495 = vpack.c.b16 %v485, %v484
        %v496 = vpack.c.b16 %v487, %v486
        %v497 = vpack.c.b16 %v489, %v488
        %vm498 = vcmask 31744
        %v500 = vsel %vm498, %v490, 0
        %v503 = vsel %vm498, %v491, 0
        %v506 = vsel %vm498, %v492, 0
        %v509 = vsel %vm498, %v493, 0
        %v512 = vsel %vm498, %v494, 0
        %v515 = vsel %vm498, %v495, 0
        %v518 = vsel %vm498, %v496, 0
        %v521 = vsel %vm498, %v497, 0
        %vm523 = vcmask 1041408
        %v525 = vsel %vm523, %v473, 0
        %527 = vmatprep.subr.bf16.mxu0 0
        %528 = vmatpush1.bf16.msra.mxu0 %v525
        %529 = vmatprep.subr.bf16.mxu0 0
        %530 = vmatpush1.bf16.msra.mxu0 0
        %531 = vmatprep.subr.bf16.mxu0 0
        %532 = vmatpush1.bf16.msra.mxu0 0
        %533 = vmatprep.subr.bf16.mxu0 0
        %534 = vmatpush1.bf16.msra.mxu0 0
        %535 = vmatprep.subr.bf16.mxu0 0
        %536 = vmatpush1.bf16.msra.mxu0 0
        %537 = vmatprep.subr.bf16.mxu0 0
        %538 = vmatpush1.bf16.msra.mxu0 0
        %539 = vmatprep.subr.bf16.mxu0 0
        %540 = vmatpush1.bf16.msra.mxu0 0
        %541 = vmatprep.subr.bf16.mxu0 0
        %542 = vmatpush1.bf16.msra.mxu0 0
        %543 = vmatprep.subr.bf16.mxu0 0
        %544 = vmatpush1.bf16.msra.mxu0 0
        %545 = vmatprep.subr.bf16.mxu0 0
        %546 = vmatpush1.bf16.msra.mxu0 0
        %547 = vmatprep.subr.bf16.mxu0 0
        %548 = vmatpush1.bf16.msra.mxu0 0
        %549 = vmatprep.subr.bf16.mxu0 0
        %550 = vmatpush1.bf16.msra.mxu0 0
        %551 = vmatprep.subr.bf16.mxu0 0
        %552 = vmatpush1.bf16.msra.mxu0 0
        %553 = vmatprep.subr.bf16.mxu0 0
        %554 = vmatpush1.bf16.msra.mxu0 0
        %555 = vmatprep.subr.bf16.mxu0 0
        %556 = vmatpush1.bf16.msra.mxu0 0
        %557 = vmatprep.subr.bf16.mxu0 0
        %558 = vmatpush1.bf16.msra.mxu0 0
        %559 = vmatprep.mubr.bf16.mxu0 0
        %560 = vmatmul.mubr.bf16.gmra.mrb[0].mxu0 %v500
        %v561 = vpop.f32.mrb[0].mxu0
        %v562 = vadd.f32 0.0, %v561
        %v563 = vpop.f32.mrb[0].mxu0
        %v564 = vpop.f32.mrb[0].mxu0
        %v565 = vadd.f32 0.0, %v564
        %v566 = vpop.f32.mrb[0].mxu0
        %567 = vmatprep.mubr.bf16.mxu0 0
        %568 = vmatmul.mubr.bf16.gmra.mrb[0].mxu0 %v503
        %v569 = vpop.f32.mrb[0].mxu0
        %v570 = vadd.f32 0.0, %v569
        %v571 = vpop.f32.mrb[0].mxu0
        %v572 = vpop.f32.mrb[0].mxu0
        %v573 = vadd.f32 0.0, %v572
        %v574 = vpop.f32.mrb[0].mxu0
        %575 = vmatprep.mubr.bf16.mxu0 0
        %576 = vmatmul.mubr.bf16.gmra.mrb[0].mxu0 %v506
        %v577 = vpop.f32.mrb[0].mxu0
        %v578 = vadd.f32 0.0, %v577
        %v579 = vpop.f32.mrb[0].mxu0
        %v580 = vpop.f32.mrb[0].mxu0
        %v581 = vadd.f32 0.0, %v580
        %v582 = vpop.f32.mrb[0].mxu0
        %583 = vmatprep.mubr.bf16.mxu0 0
        %584 = vmatmul.mubr.bf16.gmra.mrb[0].mxu0 %v509
        %v585 = vpop.f32.mrb[0].mxu0
        %v586 = vadd.f32 0.0, %v585
        %v587 = vpop.f32.mrb[0].mxu0
        %v588 = vpop.f32.mrb[0].mxu0
        %v589 = vadd.f32 0.0, %v588
        %v590 = vpop.f32.mrb[0].mxu0
        %591 = vmatprep.mubr.bf16.mxu0 0
        %592 = vmatmul.mubr.bf16.gmra.mrb[0].mxu0 %v512
        %v593 = vpop.f32.mrb[0].mxu0
        %v594 = vadd.f32 0.0, %v593
        %v595 = vpop.f32.mrb[0].mxu0
        %v596 = vpop.f32.mrb[0].mxu0
        %v597 = vadd.f32 0.0, %v596
        %v598 = vpop.f32.mrb[0].mxu0
        %599 = vmatprep.mubr.bf16.mxu0 0
        %600 = vmatmul.mubr.bf16.gmra.mrb[0].mxu0 %v515
        %v601 = vpop.f32.mrb[0].mxu0
        %v602 = vadd.f32 0.0, %v601
        %v603 = vpop.f32.mrb[0].mxu0
        %v604 = vpop.f32.mrb[0].mxu0
        %v605 = vadd.f32 0.0, %v604
        %v606 = vpop.f32.mrb[0].mxu0
        %607 = vmatprep.mubr.bf16.mxu0 0
        %608 = vmatmul.mubr.bf16.gmra.mrb[0].mxu0 %v518
        %v609 = vpop.f32.mrb[0].mxu0
        %v610 = vadd.f32 0.0, %v609
        %v611 = vpop.f32.mrb[0].mxu0
        %v612 = vpop.f32.mrb[0].mxu0
        %v613 = vadd.f32 0.0, %v612
        %v614 = vpop.f32.mrb[0].mxu0
        %615 = vmatprep.mubr.bf16.mxu0 0
        %616 = vmatmul.mubr.bf16.gmra.mrb[0].mxu0 %v521
        %v617 = vpop.f32.mrb[0].mxu0
        %v618 = vadd.f32 0.0, %v617
        %v619 = vpop.f32.mrb[0].mxu0
        %v620 = vpop.f32.mrb[0].mxu0
        %v621 = vadd.f32 0.0, %v620
        %v622 = vpop.f32.mrb[0].mxu0
        %623 = vdwg.mxu0
        %v624 = vld [vmem:[%s6] sm:$0x1]
        %v626 = vlaneseq
        %v627 = vshrl.u32 %v626, 7
        %v628 = vsub.s32 0, %v627
        %v629 = vrot.slane %v624, %v628
        %v631 = vmul.f32 %v562, %v629
        %v632 = vmul.f32 %v565, %v629
        %v633 = vmul.f32 %v570, %v629
        %v634 = vmul.f32 %v573, %v629
        %v635 = vmul.f32 %v578, %v629
        %v636 = vmul.f32 %v581, %v629
        %v637 = vmul.f32 %v586, %v629
        %v638 = vmul.f32 %v589, %v629
        %v639 = vmul.f32 %v594, %v629
        %v640 = vmul.f32 %v597, %v629
        %v641 = vmul.f32 %v602, %v629
        %v642 = vmul.f32 %v605, %v629
        %v643 = vmul.f32 %v610, %v629
        %v644 = vmul.f32 %v613, %v629
        %v645 = vmul.f32 %v618, %v629
        %v646 = vmul.f32 %v621, %v629
        %v647 = vld [vmem:[%s7] sm:$0x1]
        %v649 = vlaneseq
        %v650 = vshrl.u32 %v649, 7
        %v651 = vsub.s32 0, %v650
        %v652 = vrot.slane %v647, %v651
        %v654 = vadd.f32 %v631, %v652
        %v655 = vadd.f32 %v632, %v652
        %v656 = vadd.f32 %v633, %v652
        %v657 = vadd.f32 %v634, %v652
        %v658 = vadd.f32 %v635, %v652
        %v659 = vadd.f32 %v636, %v652
        %v660 = vadd.f32 %v637, %v652
        %v661 = vadd.f32 %v638, %v652
        %v662 = vadd.f32 %v639, %v652
        %v663 = vadd.f32 %v640, %v652
        %v664 = vadd.f32 %v641, %v652
        %v665 = vadd.f32 %v642, %v652
        %v666 = vadd.f32 %v643, %v652
        %v667 = vadd.f32 %v644, %v652
        %v668 = vadd.f32 %v645, %v652
        %v669 = vadd.f32 %v646, %v652
        %v670 = vmax.f32 %v654, 0.0
        %v671 = vmax.f32 %v655, 0.0
        %v672 = vmax.f32 %v656, 0.0
        %v673 = vmax.f32 %v657, 0.0
        %v674 = vmax.f32 %v658, 0.0
        %v675 = vmax.f32 %v659, 0.0
        %v676 = vmax.f32 %v660, 0.0
        %v677 = vmax.f32 %v661, 0.0
        %v678 = vmax.f32 %v662, 0.0
        %v679 = vmax.f32 %v663, 0.0
        %v680 = vmax.f32 %v664, 0.0
        %v681 = vmax.f32 %v665, 0.0
        %v682 = vmax.f32 %v666, 0.0
        %v683 = vmax.f32 %v667, 0.0
        %v684 = vmax.f32 %v668, 0.0
        %v685 = vmax.f32 %v669, 0.0
        %v686 = vpack.c.bf16 %v671, %v670
        %v687 = vpack.c.bf16 %v673, %v672
        %v688 = vpack.c.bf16 %v675, %v674
        %v689 = vpack.c.bf16 %v677, %v676
        %v690 = vpack.c.bf16 %v679, %v678
        %v691 = vpack.c.bf16 %v681, %v680
        %v692 = vpack.c.bf16 %v683, %v682
        %v693 = vpack.c.bf16 %v685, %v684
        %v694 = vld [vmem:[%s5] sm:$0xf]
        %v695 = vld [vmem:[%s5 + $0x4] sm:$0xf]
        %v696 = vld [vmem:[%s5 + $0x8] sm:$0xf]
        %v697 = vld [vmem:[%s5 + $0xc] sm:$0xf]
        %v698 = vld [vmem:[%s5 + $0x10] sm:$0xf]
        %v699 = vld [vmem:[%s5 + $0x14] sm:$0xf]
        %v700 = vld [vmem:[%s5 + $0x18] sm:$0xf]
        %v701 = vld [vmem:[%s5 + $0x1c] sm:$0xf]
        %v702 = vld [vmem:[%s5 + $0x20] sm:$0xf]
        %v703 = vld [vmem:[%s5 + $0x24] sm:$0xf]
        %v704 = vld [vmem:[%s5 + $0x28] sm:$0xf]
        %v705 = vld [vmem:[%s5 + $0x2c] sm:$0xf]
        %v706 = vld [vmem:[%s5 + $0x30] sm:$0xf]
        %v707 = vld [vmem:[%s5 + $0x34] sm:$0xf]
        %v708 = vld [vmem:[%s5 + $0x38] sm:$0xf]
        %v709 = vld [vmem:[%s5 + $0x3c] sm:$0xf]
        %s710 = sadd.s32 %s361, 12
        %s711 = smul.u32 %s710, 7
        %s712 = smul.addr %s711, 4
        %s713 = scalar_lea.vmem %s355, %s712
        %v714 = vld [vmem:[%s713 + $0x4] sm:$0xc]
        %v715 = vld [vmem:[%s713 + $0x8] sm:$0xf]
        %v716 = vld [vmem:[%s713 + $0xc] sm:$0x3]
        %v717 = vld [vmem:[%s713 + $0x20] sm:$0xc]
        %v718 = vld [vmem:[%s713 + $0x24] sm:$0xf]
        %v719 = vld [vmem:[%s713 + $0x28] sm:$0x3]
        %v720 = vld [vmem:[%s713 + $0x3c] sm:$0xc]
        %v721 = vld [vmem:[%s713 + $0x40] sm:$0xf]
        %v722 = vld [vmem:[%s713 + $0x44] sm:$0x3]
        %v723 = vld [vmem:[%s713 + $0x58] sm:$0xc]
        %v724 = vld [vmem:[%s713 + $0x5c] sm:$0xf]
        %v725 = vld [vmem:[%s713 + $0x60] sm:$0x3]
        %v726 = vld [vmem:[%s713 + $0x74] sm:$0xc]
        %v727 = vld [vmem:[%s713 + $0x78] sm:$0xf]
        %v728 = vld [vmem:[%s713 + $0x7c] sm:$0x3]
        %v729 = vld [vmem:[%s713 + $0x90] sm:$0xc]
        %v730 = vld [vmem:[%s713 + $0x94] sm:$0xf]
        %v731 = vld [vmem:[%s713 + $0x98] sm:$0x3]
        %v732 = vld [vmem:[%s713 + $0xac] sm:$0xc]
        %v733 = vld [vmem:[%s713 + $0xb0] sm:$0xf]
        %v734 = vld [vmem:[%s713 + $0xb4] sm:$0x3]
        %v735 = vld [vmem:[%s713 + $0xc8] sm:$0xc]
        %v736 = vld [vmem:[%s713 + $0xcc] sm:$0xf]
        %v737 = vld [vmem:[%s713 + $0xd0] sm:$0x3]
        %vm762 = vcmask 1041408
        %vm763 = vcmask 1045508
        %vm764 = vmor %vm762, %vm763
        %v765 = vrot.slane %v714, 6
        %v766 = vrot.slane %v765, 4
        %v767 = vrot.slane %v715, 6
        %v768 = vsel %vm764, %v766, %v767
        %v769 = vrot.slane %v767, 4
        %v770 = vrot.slane %v716, 6
        %v771 = vsel %vm764, %v769, %v770
        %v772 = vrot.slane %v717, 6
        %v773 = vrot.slane %v772, 4
        %v774 = vrot.slane %v718, 6
        %v775 = vsel %vm764, %v773, %v774
        %v776 = vrot.slane %v774, 4
        %v777 = vrot.slane %v719, 6
        %v778 = vsel %vm764, %v776, %v777
        %v779 = vrot.slane %v720, 6
        %v780 = vrot.slane %v779, 4
        %v781 = vrot.slane %v721, 6
        %v782 = vsel %vm764, %v780, %v781
        %v783 = vrot.slane %v781, 4
        %v784 = vrot.slane %v722, 6
        %v785 = vsel %vm764, %v783, %v784
        %v786 = vrot.slane %v723, 6
        %v787 = vrot.slane %v786, 4
        %v788 = vrot.slane %v724, 6
        %v789 = vsel %vm764, %v787, %v788
        %v790 = vrot.slane %v788, 4
        %v791 = vrot.slane %v725, 6
        %v792 = vsel %vm764, %v790, %v791
        %v793 = vrot.slane %v726, 6
        %v794 = vrot.slane %v793, 4
        %v795 = vrot.slane %v727, 6
        %v796 = vsel %vm764, %v794, %v795
        %v797 = vrot.slane %v795, 4
        %v798 = vrot.slane %v728, 6
        %v799 = vsel %vm764, %v797, %v798
        %v800 = vrot.slane %v729, 6
        %v801 = vrot.slane %v800, 4
        %v802 = vrot.slane %v730, 6
        %v803 = vsel %vm764, %v801, %v802
        %v804 = vrot.slane %v802, 4
        %v805 = vrot.slane %v731, 6
        %v806 = vsel %vm764, %v804, %v805
        %v807 = vrot.slane %v732, 6
        %v808 = vrot.slane %v807, 4
        %v809 = vrot.slane %v733, 6
        %v810 = vsel %vm764, %v808, %v809
        %v811 = vrot.slane %v809, 4
        %v812 = vrot.slane %v734, 6
        %v813 = vsel %vm764, %v811, %v812
        %v814 = vrot.slane %v735, 6
        %v815 = vrot.slane %v814, 4
        %v816 = vrot.slane %v736, 6
        %v817 = vsel %vm764, %v815, %v816
        %v818 = vrot.slane %v816, 4
        %v819 = vrot.slane %v737, 6
        %v820 = vsel %vm764, %v818, %v819
        %v821 = vld [vmem:[%s2] sm:$0x3]
        %v822 = vld [vmem:[%s713 + $0x8] sm:$0xe]
        %v823 = vld [vmem:[%s713 + $0xc] sm:$0xf]
        %v824 = vld [vmem:[%s713 + $0x10] sm:$0x1]
        %v825 = vld [vmem:[%s713 + $0x24] sm:$0xe]
        %v826 = vld [vmem:[%s713 + $0x28] sm:$0xf]
        %v827 = vld [vmem:[%s713 + $0x2c] sm:$0x1]
        %v828 = vld [vmem:[%s713 + $0x40] sm:$0xe]
        %v829 = vld [vmem:[%s713 + $0x44] sm:$0xf]
        %v830 = vld [vmem:[%s713 + $0x48] sm:$0x1]
        %v831 = vld [vmem:[%s713 + $0x5c] sm:$0xe]
        %v832 = vld [vmem:[%s713 + $0x60] sm:$0xf]
        %v833 = vld [vmem:[%s713 + $0x64] sm:$0x1]
        %v834 = vld [vmem:[%s713 + $0x78] sm:$0xe]
        %v835 = vld [vmem:[%s713 + $0x7c] sm:$0xf]
        %v836 = vld [vmem:[%s713 + $0x80] sm:$0x1]
        %v837 = vld [vmem:[%s713 + $0x94] sm:$0xe]
        %v838 = vld [vmem:[%s713 + $0x98] sm:$0xf]
        %v839 = vld [vmem:[%s713 + $0x9c] sm:$0x1]
        %v840 = vld [vmem:[%s713 + $0xb0] sm:$0xe]
        %v841 = vld [vmem:[%s713 + $0xb4] sm:$0xf]
        %v842 = vld [vmem:[%s713 + $0xb8] sm:$0x1]
        %v843 = vld [vmem:[%s713 + $0xcc] sm:$0xe]
        %v844 = vld [vmem:[%s713 + $0xd0] sm:$0xf]
        %v845 = vld [vmem:[%s713 + $0xd4] sm:$0x1]
        %v870 = vrot.slane %v822, 5
        %v871 = vrot.slane %v870, 4
        %v872 = vrot.slane %v823, 5
        %v873 = vsel %vm416, %v871, %v872
        %v874 = vrot.slane %v872, 4
        %v875 = vrot.slane %v824, 5
        %v876 = vsel %vm416, %v874, %v875
        %v877 = vrot.slane %v825, 5
        %v878 = vrot.slane %v877, 4
        %v879 = vrot.slane %v826, 5
        %v880 = vsel %vm416, %v878, %v879
        %v881 = vrot.slane %v879, 4
        %v882 = vrot.slane %v827, 5
        %v883 = vsel %vm416, %v881, %v882
        %v884 = vrot.slane %v828, 5
        %v885 = vrot.slane %v884, 4
        %v886 = vrot.slane %v829, 5
        %v887 = vsel %vm416, %v885, %v886
        %v888 = vrot.slane %v886, 4
        %v889 = vrot.slane %v830, 5
        %v890 = vsel %vm416, %v888, %v889
        %v891 = vrot.slane %v831, 5
        %v892 = vrot.slane %v891, 4
        %v893 = vrot.slane %v832, 5
        %v894 = vsel %vm416, %v892, %v893
        %v895 = vrot.slane %v893, 4
        %v896 = vrot.slane %v833, 5
        %v897 = vsel %vm416, %v895, %v896
        %v898 = vrot.slane %v834, 5
        %v899 = vrot.slane %v898, 4
        %v900 = vrot.slane %v835, 5
        %v901 = vsel %vm416, %v899, %v900
        %v902 = vrot.slane %v900, 4
        %v903 = vrot.slane %v836, 5
        %v904 = vsel %vm416, %v902, %v903
        %v905 = vrot.slane %v837, 5
        %v906 = vrot.slane %v905, 4
        %v907 = vrot.slane %v838, 5
        %v908 = vsel %vm416, %v906, %v907
        %v909 = vrot.slane %v907, 4
        %v910 = vrot.slane %v839, 5
        %v911 = vsel %vm416, %v909, %v910
        %v912 = vrot.slane %v840, 5
        %v913 = vrot.slane %v912, 4
        %v914 = vrot.slane %v841, 5
        %v915 = vsel %vm416, %v913, %v914
        %v916 = vrot.slane %v914, 4
        %v917 = vrot.slane %v842, 5
        %v918 = vsel %vm416, %v916, %v917
        %v919 = vrot.slane %v843, 5
        %v920 = vrot.slane %v919, 4
        %v921 = vrot.slane %v844, 5
        %v922 = vsel %vm416, %v920, %v921
        %v923 = vrot.slane %v921, 4
        %v924 = vrot.slane %v845, 5
        %v925 = vsel %vm416, %v923, %v924
        %s926 = scalar_lea.vmem %s2, 2
        %v927 = vld [vmem:[%s926] sm:$0x3]
        %v928 = vunpack.c.l.b16 %v873
        %v929 = vunpack.c.l.b16 %v876
        %v930 = vunpack.c.l.b16 %v880
        %v931 = vunpack.c.l.b16 %v883
        %v932 = vunpack.c.l.b16 %v887
        %v933 = vunpack.c.l.b16 %v890
        %v934 = vunpack.c.l.b16 %v894
        %v935 = vunpack.c.l.b16 %v897
        %v936 = vunpack.c.l.b16 %v901
        %v937 = vunpack.c.l.b16 %v904
        %v938 = vunpack.c.l.b16 %v908
        %v939 = vunpack.c.l.b16 %v911
        %v940 = vunpack.c.l.b16 %v915
        %v941 = vunpack.c.l.b16 %v918
        %v942 = vunpack.c.l.b16 %v922
        %v943 = vunpack.c.l.b16 %v925
        %v944 = vpack.c.b16 %v929, %v928
        %v945 = vpack.c.b16 %v931, %v930
        %v946 = vpack.c.b16 %v933, %v932
        %v947 = vpack.c.b16 %v935, %v934
        %v948 = vpack.c.b16 %v937, %v936
        %v949 = vpack.c.b16 %v939, %v938
        %v950 = vpack.c.b16 %v941, %v940
        %v951 = vpack.c.b16 %v943, %v942
        %v953 = vsel %vm498, %v944, 0
        %v956 = vsel %vm498, %v945, 0
        %v959 = vsel %vm498, %v946, 0
        %v962 = vsel %vm498, %v947, 0
        %v965 = vsel %vm498, %v948, 0
        %v968 = vsel %vm498, %v949, 0
        %v971 = vsel %vm498, %v950, 0
        %v974 = vsel %vm498, %v951, 0
        %v977 = vsel %vm523, %v927, 0
        %979 = vmatprep.subr.bf16.mxu0 0
        %980 = vmatpush1.bf16.msra.mxu0 %v977
        %981 = vmatprep.subr.bf16.mxu0 0
        %982 = vmatpush1.bf16.msra.mxu0 0
        %983 = vmatprep.subr.bf16.mxu0 0
        %984 = vmatpush1.bf16.msra.mxu0 0
        %985 = vmatprep.subr.bf16.mxu0 0
        %986 = vmatpush1.bf16.msra.mxu0 0
        %987 = vmatprep.subr.bf16.mxu0 0
        %988 = vmatpush1.bf16.msra.mxu0 0
        %989 = vmatprep.subr.bf16.mxu0 0
        %990 = vmatpush1.bf16.msra.mxu0 0
        %991 = vmatprep.subr.bf16.mxu0 0
        %992 = vmatpush1.bf16.msra.mxu0 0
        %993 = vmatprep.subr.bf16.mxu0 0
        %994 = vmatpush1.bf16.msra.mxu0 0
        %995 = vmatprep.subr.bf16.mxu0 0
        %996 = vmatpush1.bf16.msra.mxu0 0
        %997 = vmatprep.subr.bf16.mxu0 0
        %998 = vmatpush1.bf16.msra.mxu0 0
        %999 = vmatprep.subr.bf16.mxu0 0
        %1000 = vmatpush1.bf16.msra.mxu0 0
        %1001 = vmatprep.subr.bf16.mxu0 0
        %1002 = vmatpush1.bf16.msra.mxu0 0
        %1003 = vmatprep.subr.bf16.mxu0 0
        %1004 = vmatpush1.bf16.msra.mxu0 0
        %1005 = vmatprep.subr.bf16.mxu0 0
        %1006 = vmatpush1.bf16.msra.mxu0 0
        %1007 = vmatprep.subr.bf16.mxu0 0
        %1008 = vmatpush1.bf16.msra.mxu0 0
        %1009 = vmatprep.subr.bf16.mxu0 0
        %1010 = vmatpush1.bf16.msra.mxu0 0
        %1011 = vmatprep.mubr.bf16.mxu0 0
        %1012 = vmatmul.mubr.bf16.gmra.mrb[0].mxu0 %v953
        %v1013 = vpop.f32.mrb[0].mxu0
        %v1014 = vadd.f32 0.0, %v1013
        %v1015 = vpop.f32.mrb[0].mxu0
        %v1016 = vpop.f32.mrb[0].mxu0
        %v1017 = vadd.f32 0.0, %v1016
        %v1018 = vpop.f32.mrb[0].mxu0
        %1019 = vmatprep.mubr.bf16.mxu0 0
        %1020 = vmatmul.mubr.bf16.gmra.mrb[0].mxu0 %v956
        %v1021 = vpop.f32.mrb[0].mxu0
        %v1022 = vadd.f32 0.0, %v1021
        %v1023 = vpop.f32.mrb[0].mxu0
        %v1024 = vpop.f32.mrb[0].mxu0
        %v1025 = vadd.f32 0.0, %v1024
        %v1026 = vpop.f32.mrb[0].mxu0
        %1027 = vmatprep.mubr.bf16.mxu0 0
        %1028 = vmatmul.mubr.bf16.gmra.mrb[0].mxu0 %v959
        %v1029 = vpop.f32.mrb[0].mxu0
        %v1030 = vadd.f32 0.0, %v1029
        %v1031 = vpop.f32.mrb[0].mxu0
        %v1032 = vpop.f32.mrb[0].mxu0
        %v1033 = vadd.f32 0.0, %v1032
        %v1034 = vpop.f32.mrb[0].mxu0
        %1035 = vmatprep.mubr.bf16.mxu0 0
        %1036 = vmatmul.mubr.bf16.gmra.mrb[0].mxu0 %v962
        %v1037 = vpop.f32.mrb[0].mxu0
        %v1038 = vadd.f32 0.0, %v1037
        %v1039 = vpop.f32.mrb[0].mxu0
        %v1040 = vpop.f32.mrb[0].mxu0
        %v1041 = vadd.f32 0.0, %v1040
        %v1042 = vpop.f32.mrb[0].mxu0
        %1043 = vmatprep.mubr.bf16.mxu0 0
        %1044 = vmatmul.mubr.bf16.gmra.mrb[0].mxu0 %v965
        %v1045 = vpop.f32.mrb[0].mxu0
        %v1046 = vadd.f32 0.0, %v1045
        %v1047 = vpop.f32.mrb[0].mxu0
        %v1048 = vpop.f32.mrb[0].mxu0
        %v1049 = vadd.f32 0.0, %v1048
        %v1050 = vpop.f32.mrb[0].mxu0
        %1051 = vmatprep.mubr.bf16.mxu0 0
        %1052 = vmatmul.mubr.bf16.gmra.mrb[0].mxu0 %v968
        %v1053 = vpop.f32.mrb[0].mxu0
        %v1054 = vadd.f32 0.0, %v1053
        %v1055 = vpop.f32.mrb[0].mxu0
        %v1056 = vpop.f32.mrb[0].mxu0
        %v1057 = vadd.f32 0.0, %v1056
        %v1058 = vpop.f32.mrb[0].mxu0
        %1059 = vmatprep.mubr.bf16.mxu0 0
        %1060 = vmatmul.mubr.bf16.gmra.mrb[0].mxu0 %v971
        %v1061 = vpop.f32.mrb[0].mxu0
        %v1062 = vadd.f32 0.0, %v1061
        %v1063 = vpop.f32.mrb[0].mxu0
        %v1064 = vpop.f32.mrb[0].mxu0
        %v1065 = vadd.f32 0.0, %v1064
        %v1066 = vpop.f32.mrb[0].mxu0
        %1067 = vmatprep.mubr.bf16.mxu0 0
        %1068 = vmatmul.mubr.bf16.gmra.mrb[0].mxu0 %v974
        %v1069 = vpop.f32.mrb[0].mxu0
        %v1070 = vadd.f32 0.0, %v1069
        %v1071 = vpop.f32.mrb[0].mxu0
        %v1072 = vpop.f32.mrb[0].mxu0
        %v1073 = vadd.f32 0.0, %v1072
        %v1074 = vpop.f32.mrb[0].mxu0
        %1075 = vdwg.mxu0
        %v1076 = vunpack.c.l.b16 %v768
        %v1077 = vunpack.c.l.b16 %v771
        %v1078 = vunpack.c.l.b16 %v775
        %v1079 = vunpack.c.l.b16 %v778
        %v1080 = vunpack.c.l.b16 %v782
        %v1081 = vunpack.c.l.b16 %v785
        %v1082 = vunpack.c.l.b16 %v789
        %v1083 = vunpack.c.l.b16 %v792
        %v1084 = vunpack.c.l.b16 %v796
        %v1085 = vunpack.c.l.b16 %v799
        %v1086 = vunpack.c.l.b16 %v803
        %v1087 = vunpack.c.l.b16 %v806
        %v1088 = vunpack.c.l.b16 %v810
        %v1089 = vunpack.c.l.b16 %v813
        %v1090 = vunpack.c.l.b16 %v817
        %v1091 = vunpack.c.l.b16 %v820
        %v1092 = vpack.c.b16 %v1077, %v1076
        %v1093 = vpack.c.b16 %v1079, %v1078
        %v1094 = vpack.c.b16 %v1081, %v1080
        %v1095 = vpack.c.b16 %v1083, %v1082
        %v1096 = vpack.c.b16 %v1085, %v1084
        %v1097 = vpack.c.b16 %v1087, %v1086
        %v1098 = vpack.c.b16 %v1089, %v1088
        %v1099 = vpack.c.b16 %v1091, %v1090
        %v1101 = vsel %vm498, %v1092, 0
        %v1104 = vsel %vm498, %v1093, 0
        %v1107 = vsel %vm498, %v1094, 0
        %v1110 = vsel %vm498, %v1095, 0
        %v1113 = vsel %vm498, %v1096, 0
        %v1116 = vsel %vm498, %v1097, 0
        %v1119 = vsel %vm498, %v1098, 0
        %v1122 = vsel %vm498, %v1099, 0
        %v1125 = vsel %vm523, %v821, 0
        %1127 = vmatprep.subr.bf16.mxu0 0
        %1128 = vmatpush1.bf16.msra.mxu0 %v1125
        %1129 = vmatprep.subr.bf16.mxu0 0
        %1130 = vmatpush1.bf16.msra.mxu0 0
        %1131 = vmatprep.subr.bf16.mxu0 0
        %1132 = vmatpush1.bf16.msra.mxu0 0
        %1133 = vmatprep.subr.bf16.mxu0 0
        %1134 = vmatpush1.bf16.msra.mxu0 0
        %1135 = vmatprep.subr.bf16.mxu0 0
        %1136 = vmatpush1.bf16.msra.mxu0 0
        %1137 = vmatprep.subr.bf16.mxu0 0
        %1138 = vmatpush1.bf16.msra.mxu0 0
        %1139 = vmatprep.subr.bf16.mxu0 0
        %1140 = vmatpush1.bf16.msra.mxu0 0
        %1141 = vmatprep.subr.bf16.mxu0 0
        %1142 = vmatpush1.bf16.msra.mxu0 0
        %1143 = vmatprep.subr.bf16.mxu0 0
        %1144 = vmatpush1.bf16.msra.mxu0 0
        %1145 = vmatprep.subr.bf16.mxu0 0
        %1146 = vmatpush1.bf16.msra.mxu0 0
        %1147 = vmatprep.subr.bf16.mxu0 0
        %1148 = vmatpush1.bf16.msra.mxu0 0
        %1149 = vmatprep.subr.bf16.mxu0 0
        %1150 = vmatpush1.bf16.msra.mxu0 0
        %1151 = vmatprep.subr.bf16.mxu0 0
        %1152 = vmatpush1.bf16.msra.mxu0 0
        %1153 = vmatprep.subr.bf16.mxu0 0
        %1154 = vmatpush1.bf16.msra.mxu0 0
        %1155 = vmatprep.subr.bf16.mxu0 0
        %1156 = vmatpush1.bf16.msra.mxu0 0
        %1157 = vmatprep.subr.bf16.mxu0 0
        %1158 = vmatpush1.bf16.msra.mxu0 0
        %1159 = vmatprep.mubr.bf16.mxu0 0
        %1160 = vmatmul.mubr.bf16.gmra.mrb[0].mxu0 %v1101
        %v1161 = vpop.f32.mrb[0].mxu0
        %v1162 = vadd.f32 %v1014, %v1161
        %v1163 = vpop.f32.mrb[0].mxu0
        %v1164 = vpop.f32.mrb[0].mxu0
        %v1165 = vadd.f32 %v1017, %v1164
        %v1166 = vpop.f32.mrb[0].mxu0
        %1167 = vmatprep.mubr.bf16.mxu0 0
        %1168 = vmatmul.mubr.bf16.gmra.mrb[0].mxu0 %v1104
        %v1169 = vpop.f32.mrb[0].mxu0
        %v1170 = vadd.f32 %v1022, %v1169
        %v1171 = vpop.f32.mrb[0].mxu0
        %v1172 = vpop.f32.mrb[0].mxu0
        %v1173 = vadd.f32 %v1025, %v1172
        %v1174 = vpop.f32.mrb[0].mxu0
        %1175 = vmatprep.mubr.bf16.mxu0 0
        %1176 = vmatmul.mubr.bf16.gmra.mrb[0].mxu0 %v1107
        %v1177 = vpop.f32.mrb[0].mxu0
        %v1178 = vadd.f32 %v1030, %v1177
        %v1179 = vpop.f32.mrb[0].mxu0
        %v1180 = vpop.f32.mrb[0].mxu0
        %v1181 = vadd.f32 %v1033, %v1180
        %v1182 = vpop.f32.mrb[0].mxu0
        %1183 = vmatprep.mubr.bf16.mxu0 0
        %1184 = vmatmul.mubr.bf16.gmra.mrb[0].mxu0 %v1110
        %v1185 = vpop.f32.mrb[0].mxu0
        %v1186 = vadd.f32 %v1038, %v1185
        %v1187 = vpop.f32.mrb[0].mxu0
        %v1188 = vpop.f32.mrb[0].mxu0
        %v1189 = vadd.f32 %v1041, %v1188
        %v1190 = vpop.f32.mrb[0].mxu0
        %1191 = vmatprep.mubr.bf16.mxu0 0
        %1192 = vmatmul.mubr.bf16.gmra.mrb[0].mxu0 %v1113
        %v1193 = vpop.f32.mrb[0].mxu0
        %v1194 = vadd.f32 %v1046, %v1193
        %v1195 = vpop.f32.mrb[0].mxu0
        %v1196 = vpop.f32.mrb[0].mxu0
        %v1197 = vadd.f32 %v1049, %v1196
        %v1198 = vpop.f32.mrb[0].mxu0
        %1199 = vmatprep.mubr.bf16.mxu0 0
        %1200 = vmatmul.mubr.bf16.gmra.mrb[0].mxu0 %v1116
        %v1201 = vpop.f32.mrb[0].mxu0
        %v1202 = vadd.f32 %v1054, %v1201
        %v1203 = vpop.f32.mrb[0].mxu0
        %v1204 = vpop.f32.mrb[0].mxu0
        %v1205 = vadd.f32 %v1057, %v1204
        %v1206 = vpop.f32.mrb[0].mxu0
        %1207 = vmatprep.mubr.bf16.mxu0 0
        %1208 = vmatmul.mubr.bf16.gmra.mrb[0].mxu0 %v1119
        %v1209 = vpop.f32.mrb[0].mxu0
        %v1210 = vadd.f32 %v1062, %v1209
        %v1211 = vpop.f32.mrb[0].mxu0
        %v1212 = vpop.f32.mrb[0].mxu0
        %v1213 = vadd.f32 %v1065, %v1212
        %v1214 = vpop.f32.mrb[0].mxu0
        %1215 = vmatprep.mubr.bf16.mxu0 0
        %1216 = vmatmul.mubr.bf16.gmra.mrb[0].mxu0 %v1122
        %v1217 = vpop.f32.mrb[0].mxu0
        %v1218 = vadd.f32 %v1070, %v1217
        %v1219 = vpop.f32.mrb[0].mxu0
        %v1220 = vpop.f32.mrb[0].mxu0
        %v1221 = vadd.f32 %v1073, %v1220
        %v1222 = vpop.f32.mrb[0].mxu0
        %1223 = vdwg.mxu0
        %v1224 = vld [vmem:[%s713 + $0x10] sm:$0xf]
        %v1225 = vld [vmem:[%s713 + $0x2c] sm:$0xf]
        %v1226 = vld [vmem:[%s713 + $0x48] sm:$0xf]
        %v1227 = vld [vmem:[%s713 + $0x64] sm:$0xf]
        %v1228 = vld [vmem:[%s713 + $0x80] sm:$0xf]
        %v1229 = vld [vmem:[%s713 + $0x9c] sm:$0xf]
        %v1230 = vld [vmem:[%s713 + $0xb8] sm:$0xf]
        %v1231 = vld [vmem:[%s713 + $0xd4] sm:$0xf]
        %s1232 = scalar_lea.vmem %s2, 4
        %v1233 = vld [vmem:[%s1232] sm:$0x3]
        %v1242 = vunpack.c.l.b16 %v823
        %v1243 = vunpack.c.l.b16 %v1224
        %v1244 = vunpack.c.l.b16 %v826
        %v1245 = vunpack.c.l.b16 %v1225
        %v1246 = vunpack.c.l.b16 %v829
        %v1247 = vunpack.c.l.b16 %v1226
        %v1248 = vunpack.c.l.b16 %v832
        %v1249 = vunpack.c.l.b16 %v1227
        %v1250 = vunpack.c.l.b16 %v835
        %v1251 = vunpack.c.l.b16 %v1228
        %v1252 = vunpack.c.l.b16 %v838
        %v1253 = vunpack.c.l.b16 %v1229
        %v1254 = vunpack.c.l.b16 %v841
        %v1255 = vunpack.c.l.b16 %v1230
        %v1256 = vunpack.c.l.b16 %v844
        %v1257 = vunpack.c.l.b16 %v1231
        %v1258 = vpack.c.b16 %v1243, %v1242
        %v1259 = vpack.c.b16 %v1245, %v1244
        %v1260 = vpack.c.b16 %v1247, %v1246
        %v1261 = vpack.c.b16 %v1249, %v1248
        %v1262 = vpack.c.b16 %v1251, %v1250
        %v1263 = vpack.c.b16 %v1253, %v1252
        %v1264 = vpack.c.b16 %v1255, %v1254
        %v1265 = vpack.c.b16 %v1257, %v1256
        %v1267 = vsel %vm498, %v1258, 0
        %v1270 = vsel %vm498, %v1259, 0
        %v1273 = vsel %vm498, %v1260, 0
        %v1276 = vsel %vm498, %v1261, 0
        %v1279 = vsel %vm498, %v1262, 0
        %v1282 = vsel %vm498, %v1263, 0
        %v1285 = vsel %vm498, %v1264, 0
        %v1288 = vsel %vm498, %v1265, 0
        %v1291 = vsel %vm523, %v1233, 0
        %1293 = vmatprep.subr.bf16.mxu0 0
        %1294 = vmatpush1.bf16.msra.mxu0 %v1291
        %1295 = vmatprep.subr.bf16.mxu0 0
        %1296 = vmatpush1.bf16.msra.mxu0 0
        %1297 = vmatprep.subr.bf16.mxu0 0
        %1298 = vmatpush1.bf16.msra.mxu0 0
        %1299 = vmatprep.subr.bf16.mxu0 0
        %1300 = vmatpush1.bf16.msra.mxu0 0
        %1301 = vmatprep.subr.bf16.mxu0 0
        %1302 = vmatpush1.bf16.msra.mxu0 0
        %1303 = vmatprep.subr.bf16.mxu0 0
        %1304 = vmatpush1.bf16.msra.mxu0 0
        %1305 = vmatprep.subr.bf16.mxu0 0
        %1306 = vmatpush1.bf16.msra.mxu0 0
        %1307 = vmatprep.subr.bf16.mxu0 0
        %1308 = vmatpush1.bf16.msra.mxu0 0
        %1309 = vmatprep.subr.bf16.mxu0 0
        %1310 = vmatpush1.bf16.msra.mxu0 0
        %1311 = vmatprep.subr.bf16.mxu0 0
        %1312 = vmatpush1.bf16.msra.mxu0 0
        %1313 = vmatprep.subr.bf16.mxu0 0
        %1314 = vmatpush1.bf16.msra.mxu0 0
        %1315 = vmatprep.subr.bf16.mxu0 0
        %1316 = vmatpush1.bf16.msra.mxu0 0
        %1317 = vmatprep.subr.bf16.mxu0 0
        %1318 = vmatpush1.bf16.msra.mxu0 0
        %1319 = vmatprep.subr.bf16.mxu0 0
        %1320 = vmatpush1.bf16.msra.mxu0 0
        %1321 = vmatprep.subr.bf16.mxu0 0
        %1322 = vmatpush1.bf16.msra.mxu0 0
        %1323 = vmatprep.subr.bf16.mxu0 0
        %1324 = vmatpush1.bf16.msra.mxu0 0
        %1325 = vmatprep.mubr.bf16.mxu0 0
        %1326 = vmatmul.mubr.bf16.gmra.mrb[0].mxu0 %v1267
        %v1327 = vpop.f32.mrb[0].mxu0
        %v1328 = vadd.f32 0.0, %v1327
        %v1329 = vpop.f32.mrb[0].mxu0
        %v1330 = vpop.f32.mrb[0].mxu0
        %v1331 = vadd.f32 0.0, %v1330
        %v1332 = vpop.f32.mrb[0].mxu0
        %1333 = vmatprep.mubr.bf16.mxu0 0
        %1334 = vmatmul.mubr.bf16.gmra.mrb[0].mxu0 %v1270
        %v1335 = vpop.f32.mrb[0].mxu0
        %v1336 = vadd.f32 0.0, %v1335
        %v1337 = vpop.f32.mrb[0].mxu0
        %v1338 = vpop.f32.mrb[0].mxu0
        %v1339 = vadd.f32 0.0, %v1338
        %v1340 = vpop.f32.mrb[0].mxu0
        %1341 = vmatprep.mubr.bf16.mxu0 0
        %1342 = vmatmul.mubr.bf16.gmra.mrb[0].mxu0 %v1273
        %v1343 = vpop.f32.mrb[0].mxu0
        %v1344 = vadd.f32 0.0, %v1343
        %v1345 = vpop.f32.mrb[0].mxu0
        %v1346 = vpop.f32.mrb[0].mxu0
        %v1347 = vadd.f32 0.0, %v1346
        %v1348 = vpop.f32.mrb[0].mxu0
        %1349 = vmatprep.mubr.bf16.mxu0 0
        %1350 = vmatmul.mubr.bf16.gmra.mrb[0].mxu0 %v1276
        %v1351 = vpop.f32.mrb[0].mxu0
        %v1352 = vadd.f32 0.0, %v1351
        %v1353 = vpop.f32.mrb[0].mxu0
        %v1354 = vpop.f32.mrb[0].mxu0
        %v1355 = vadd.f32 0.0, %v1354
        %v1356 = vpop.f32.mrb[0].mxu0
        %1357 = vmatprep.mubr.bf16.mxu0 0
        %1358 = vmatmul.mubr.bf16.gmra.mrb[0].mxu0 %v1279
        %v1359 = vpop.f32.mrb[0].mxu0
        %v1360 = vadd.f32 0.0, %v1359
        %v1361 = vpop.f32.mrb[0].mxu0
        %v1362 = vpop.f32.mrb[0].mxu0
        %v1363 = vadd.f32 0.0, %v1362
        %v1364 = vpop.f32.mrb[0].mxu0
        %1365 = vmatprep.mubr.bf16.mxu0 0
        %1366 = vmatmul.mubr.bf16.gmra.mrb[0].mxu0 %v1282
        %v1367 = vpop.f32.mrb[0].mxu0
        %v1368 = vadd.f32 0.0, %v1367
        %v1369 = vpop.f32.mrb[0].mxu0
        %v1370 = vpop.f32.mrb[0].mxu0
        %v1371 = vadd.f32 0.0, %v1370
        %v1372 = vpop.f32.mrb[0].mxu0
        %1373 = vmatprep.mubr.bf16.mxu0 0
        %1374 = vmatmul.mubr.bf16.gmra.mrb[0].mxu0 %v1285
        %v1375 = vpop.f32.mrb[0].mxu0
        %v1376 = vadd.f32 0.0, %v1375
        %v1377 = vpop.f32.mrb[0].mxu0
        %v1378 = vpop.f32.mrb[0].mxu0
        %v1379 = vadd.f32 0.0, %v1378
        %v1380 = vpop.f32.mrb[0].mxu0
        %1381 = vmatprep.mubr.bf16.mxu0 0
        %1382 = vmatmul.mubr.bf16.gmra.mrb[0].mxu0 %v1288
        %v1383 = vpop.f32.mrb[0].mxu0
        %v1384 = vadd.f32 0.0, %v1383
        %v1385 = vpop.f32.mrb[0].mxu0
        %v1386 = vpop.f32.mrb[0].mxu0
        %v1387 = vadd.f32 0.0, %v1386
        %v1388 = vpop.f32.mrb[0].mxu0
        %1389 = vdwg.mxu0
        %v1390 = vadd.f32 %v1162, %v1328
        %v1391 = vadd.f32 %v1165, %v1331
        %v1392 = vadd.f32 %v1170, %v1336
        %v1393 = vadd.f32 %v1173, %v1339
        %v1394 = vadd.f32 %v1178, %v1344
        %v1395 = vadd.f32 %v1181, %v1347
        %v1396 = vadd.f32 %v1186, %v1352
        %v1397 = vadd.f32 %v1189, %v1355
        %v1398 = vadd.f32 %v1194, %v1360
        %v1399 = vadd.f32 %v1197, %v1363
        %v1400 = vadd.f32 %v1202, %v1368
        %v1401 = vadd.f32 %v1205, %v1371
        %v1402 = vadd.f32 %v1210, %v1376
        %v1403 = vadd.f32 %v1213, %v1379
        %v1404 = vadd.f32 %v1218, %v1384
        %v1405 = vadd.f32 %v1221, %v1387
        %v1406 = vld [vmem:[%s365 + $0x4] sm:$0xc]
        %v1407 = vld [vmem:[%s365 + $0x8] sm:$0xf]
        %v1408 = vld [vmem:[%s365 + $0xc] sm:$0x3]
        %v1409 = vld [vmem:[%s365 + $0x20] sm:$0xc]
        %v1410 = vld [vmem:[%s365 + $0x24] sm:$0xf]
        %v1411 = vld [vmem:[%s365 + $0x28] sm:$0x3]
        %v1412 = vld [vmem:[%s365 + $0x3c] sm:$0xc]
        %v1413 = vld [vmem:[%s365 + $0x40] sm:$0xf]
        %v1414 = vld [vmem:[%s365 + $0x44] sm:$0x3]
        %v1415 = vld [vmem:[%s365 + $0x58] sm:$0xc]
        %v1416 = vld [vmem:[%s365 + $0x5c] sm:$0xf]
        %v1417 = vld [vmem:[%s365 + $0x60] sm:$0x3]
        %v1418 = vld [vmem:[%s365 + $0x74] sm:$0xc]
        %v1419 = vld [vmem:[%s365 + $0x78] sm:$0xf]
        %v1420 = vld [vmem:[%s365 + $0x7c] sm:$0x3]
        %v1421 = vld [vmem:[%s365 + $0x90] sm:$0xc]
        %v1422 = vld [vmem:[%s365 + $0x94] sm:$0xf]
        %v1423 = vld [vmem:[%s365 + $0x98] sm:$0x3]
        %v1424 = vld [vmem:[%s365 + $0xac] sm:$0xc]
        %v1425 = vld [vmem:[%s365 + $0xb0] sm:$0xf]
        %v1426 = vld [vmem:[%s365 + $0xb4] sm:$0x3]
        %v1427 = vld [vmem:[%s365 + $0xc8] sm:$0xc]
        %v1428 = vld [vmem:[%s365 + $0xcc] sm:$0xf]
        %v1429 = vld [vmem:[%s365 + $0xd0] sm:$0x3]
        %v1454 = vrot.slane %v1406, 6
        %v1455 = vrot.slane %v1454, 4
        %v1456 = vrot.slane %v1407, 6
        %v1457 = vsel %vm764, %v1455, %v1456
        %v1458 = vrot.slane %v1456, 4
        %v1459 = vrot.slane %v1408, 6
        %v1460 = vsel %vm764, %v1458, %v1459
        %v1461 = vrot.slane %v1409, 6
        %v1462 = vrot.slane %v1461, 4
        %v1463 = vrot.slane %v1410, 6
        %v1464 = vsel %vm764, %v1462, %v1463
        %v1465 = vrot.slane %v1463, 4
        %v1466 = vrot.slane %v1411, 6
        %v1467 = vsel %vm764, %v1465, %v1466
        %v1468 = vrot.slane %v1412, 6
        %v1469 = vrot.slane %v1468, 4
        %v1470 = vrot.slane %v1413, 6
        %v1471 = vsel %vm764, %v1469, %v1470
        %v1472 = vrot.slane %v1470, 4
        %v1473 = vrot.slane %v1414, 6
        %v1474 = vsel %vm764, %v1472, %v1473
        %v1475 = vrot.slane %v1415, 6
        %v1476 = vrot.slane %v1475, 4
        %v1477 = vrot.slane %v1416, 6
        %v1478 = vsel %vm764, %v1476, %v1477
        %v1479 = vrot.slane %v1477, 4
        %v1480 = vrot.slane %v1417, 6
        %v1481 = vsel %vm764, %v1479, %v1480
        %v1482 = vrot.slane %v1418, 6
        %v1483 = vrot.slane %v1482, 4
        %v1484 = vrot.slane %v1419, 6
        %v1485 = vsel %vm764, %v1483, %v1484
        %v1486 = vrot.slane %v1484, 4
        %v1487 = vrot.slane %v1420, 6
        %v1488 = vsel %vm764, %v1486, %v1487
        %v1489 = vrot.slane %v1421, 6
        %v1490 = vrot.slane %v1489, 4
        %v1491 = vrot.slane %v1422, 6
        %v1492 = vsel %vm764, %v1490, %v1491
        %v1493 = vrot.slane %v1491, 4
        %v1494 = vrot.slane %v1423, 6
        %v1495 = vsel %vm764, %v1493, %v1494
        %v1496 = vrot.slane %v1424, 6
        %v1497 = vrot.slane %v1496, 4
        %v1498 = vrot.slane %v1425, 6
        %v1499 = vsel %vm764, %v1497, %v1498
        %v1500 = vrot.slane %v1498, 4
        %v1501 = vrot.slane %v1426, 6
        %v1502 = vsel %vm764, %v1500, %v1501
        %v1503 = vrot.slane %v1427, 6
        %v1504 = vrot.slane %v1503, 4
        %v1505 = vrot.slane %v1428, 6
        %v1506 = vsel %vm764, %v1504, %v1505
        %v1507 = vrot.slane %v1505, 4
        %v1508 = vrot.slane %v1429, 6
        %v1509 = vsel %vm764, %v1507, %v1508
        %s1510 = scalar_lea.vmem %s2, 6
        %v1511 = vld [vmem:[%s1510] sm:$0x3]
        %v1512 = vunpack.c.l.b16 %v1457
        %v1513 = vunpack.c.l.b16 %v1460
        %v1514 = vunpack.c.l.b16 %v1464
        %v1515 = vunpack.c.l.b16 %v1467
        %v1516 = vunpack.c.l.b16 %v1471
        %v1517 = vunpack.c.l.b16 %v1474
        %v1518 = vunpack.c.l.b16 %v1478
        %v1519 = vunpack.c.l.b16 %v1481
        %v1520 = vunpack.c.l.b16 %v1485
        %v1521 = vunpack.c.l.b16 %v1488
        %v1522 = vunpack.c.l.b16 %v1492
        %v1523 = vunpack.c.l.b16 %v1495
        %v1524 = vunpack.c.l.b16 %v1499
        %v1525 = vunpack.c.l.b16 %v1502
        %v1526 = vunpack.c.l.b16 %v1506
        %v1527 = vunpack.c.l.b16 %v1509
        %v1528 = vpack.c.b16 %v1513, %v1512
        %v1529 = vpack.c.b16 %v1515, %v1514
        %v1530 = vpack.c.b16 %v1517, %v1516
        %v1531 = vpack.c.b16 %v1519, %v1518
        %v1532 = vpack.c.b16 %v1521, %v1520
        %v1533 = vpack.c.b16 %v1523, %v1522
        %v1534 = vpack.c.b16 %v1525, %v1524
        %v1535 = vpack.c.b16 %v1527, %v1526
        %v1537 = vsel %vm498, %v1528, 0
        %v1540 = vsel %vm498, %v1529, 0
        %v1543 = vsel %vm498, %v1530, 0
        %v1546 = vsel %vm498, %v1531, 0
        %v1549 = vsel %vm498, %v1532, 0
        %v1552 = vsel %vm498, %v1533, 0
        %v1555 = vsel %vm498, %v1534, 0
        %v1558 = vsel %vm498, %v1535, 0
        %v1561 = vsel %vm523, %v1511, 0
        %1563 = vmatprep.subr.bf16.mxu0 0
        %1564 = vmatpush1.bf16.msra.mxu0 %v1561
        %1565 = vmatprep.subr.bf16.mxu0 0
        %1566 = vmatpush1.bf16.msra.mxu0 0
        %1567 = vmatprep.subr.bf16.mxu0 0
        %1568 = vmatpush1.bf16.msra.mxu0 0
        %1569 = vmatprep.subr.bf16.mxu0 0
        %1570 = vmatpush1.bf16.msra.mxu0 0
        %1571 = vmatprep.subr.bf16.mxu0 0
        %1572 = vmatpush1.bf16.msra.mxu0 0
        %1573 = vmatprep.subr.bf16.mxu0 0
        %1574 = vmatpush1.bf16.msra.mxu0 0
        %1575 = vmatprep.subr.bf16.mxu0 0
        %1576 = vmatpush1.bf16.msra.mxu0 0
        %1577 = vmatprep.subr.bf16.mxu0 0
        %1578 = vmatpush1.bf16.msra.mxu0 0
        %1579 = vmatprep.subr.bf16.mxu0 0
        %1580 = vmatpush1.bf16.msra.mxu0 0
        %1581 = vmatprep.subr.bf16.mxu0 0
        %1582 = vmatpush1.bf16.msra.mxu0 0
        %1583 = vmatprep.subr.bf16.mxu0 0
        %1584 = vmatpush1.bf16.msra.mxu0 0
        %1585 = vmatprep.subr.bf16.mxu0 0
        %1586 = vmatpush1.bf16.msra.mxu0 0
        %1587 = vmatprep.subr.bf16.mxu0 0
        %1588 = vmatpush1.bf16.msra.mxu0 0
        %1589 = vmatprep.subr.bf16.mxu0 0
        %1590 = vmatpush1.bf16.msra.mxu0 0
        %1591 = vmatprep.subr.bf16.mxu0 0
        %1592 = vmatpush1.bf16.msra.mxu0 0
        %1593 = vmatprep.subr.bf16.mxu0 0
        %1594 = vmatpush1.bf16.msra.mxu0 0
        %1595 = vmatprep.mubr.bf16.mxu0 0
        %1596 = vmatmul.mubr.bf16.gmra.mrb[0].mxu0 %v1537
        %v1597 = vpop.f32.mrb[0].mxu0
        %v1598 = vadd.f32 0.0, %v1597
        %v1599 = vpop.f32.mrb[0].mxu0
        %v1600 = vpop.f32.mrb[0].mxu0
        %v1601 = vadd.f32 0.0, %v1600
        %v1602 = vpop.f32.mrb[0].mxu0
        %1603 = vmatprep.mubr.bf16.mxu0 0
        %1604 = vmatmul.mubr.bf16.gmra.mrb[0].mxu0 %v1540
        %v1605 = vpop.f32.mrb[0].mxu0
        %v1606 = vadd.f32 0.0, %v1605
        %v1607 = vpop.f32.mrb[0].mxu0
        %v1608 = vpop.f32.mrb[0].mxu0
        %v1609 = vadd.f32 0.0, %v1608
        %v1610 = vpop.f32.mrb[0].mxu0
        %1611 = vmatprep.mubr.bf16.mxu0 0
        %1612 = vmatmul.mubr.bf16.gmra.mrb[0].mxu0 %v1543
        %v1613 = vpop.f32.mrb[0].mxu0
        %v1614 = vadd.f32 0.0, %v1613
        %v1615 = vpop.f32.mrb[0].mxu0
        %v1616 = vpop.f32.mrb[0].mxu0
        %v1617 = vadd.f32 0.0, %v1616
        %v1618 = vpop.f32.mrb[0].mxu0
        %1619 = vmatprep.mubr.bf16.mxu0 0
        %1620 = vmatmul.mubr.bf16.gmra.mrb[0].mxu0 %v1546
        %v1621 = vpop.f32.mrb[0].mxu0
        %v1622 = vadd.f32 0.0, %v1621
        %v1623 = vpop.f32.mrb[0].mxu0
        %v1624 = vpop.f32.mrb[0].mxu0
        %v1625 = vadd.f32 0.0, %v1624
        %v1626 = vpop.f32.mrb[0].mxu0
        %1627 = vmatprep.mubr.bf16.mxu0 0
        %1628 = vmatmul.mubr.bf16.gmra.mrb[0].mxu0 %v1549
        %v1629 = vpop.f32.mrb[0].mxu0
        %v1630 = vadd.f32 0.0, %v1629
        %v1631 = vpop.f32.mrb[0].mxu0
        %v1632 = vpop.f32.mrb[0].mxu0
        %v1633 = vadd.f32 0.0, %v1632
        %v1634 = vpop.f32.mrb[0].mxu0
        %1635 = vmatprep.mubr.bf16.mxu0 0
        %1636 = vmatmul.mubr.bf16.gmra.mrb[0].mxu0 %v1552
        %v1637 = vpop.f32.mrb[0].mxu0
        %v1638 = vadd.f32 0.0, %v1637
        %v1639 = vpop.f32.mrb[0].mxu0
        %v1640 = vpop.f32.mrb[0].mxu0
        %v1641 = vadd.f32 0.0, %v1640
        %v1642 = vpop.f32.mrb[0].mxu0
        %1643 = vmatprep.mubr.bf16.mxu0 0
        %1644 = vmatmul.mubr.bf16.gmra.mrb[0].mxu0 %v1555
        %v1645 = vpop.f32.mrb[0].mxu0
        %v1646 = vadd.f32 0.0, %v1645
        %v1647 = vpop.f32.mrb[0].mxu0
        %v1648 = vpop.f32.mrb[0].mxu0
        %v1649 = vadd.f32 0.0, %v1648
        %v1650 = vpop.f32.mrb[0].mxu0
        %1651 = vmatprep.mubr.bf16.mxu0 0
        %1652 = vmatmul.mubr.bf16.gmra.mrb[0].mxu0 %v1558
        %v1653 = vpop.f32.mrb[0].mxu0
        %v1654 = vadd.f32 0.0, %v1653
        %v1655 = vpop.f32.mrb[0].mxu0
        %v1656 = vpop.f32.mrb[0].mxu0
        %v1657 = vadd.f32 0.0, %v1656
        %v1658 = vpop.f32.mrb[0].mxu0
        %1659 = vdwg.mxu0
        %v1660 = vadd.f32 %v1390, %v1598
        %v1661 = vadd.f32 %v1391, %v1601
        %v1662 = vadd.f32 %v1392, %v1606
        %v1663 = vadd.f32 %v1393, %v1609
        %v1664 = vadd.f32 %v1394, %v1614
        %v1665 = vadd.f32 %v1395, %v1617
        %v1666 = vadd.f32 %v1396, %v1622
        %v1667 = vadd.f32 %v1397, %v1625
        %v1668 = vadd.f32 %v1398, %v1630
        %v1669 = vadd.f32 %v1399, %v1633
        %v1670 = vadd.f32 %v1400, %v1638
        %v1671 = vadd.f32 %v1401, %v1641
        %v1672 = vadd.f32 %v1402, %v1646
        %v1673 = vadd.f32 %v1403, %v1649
        %v1674 = vadd.f32 %v1404, %v1654
        %v1675 = vadd.f32 %v1405, %v1657
        %s1676 = scalar_lea.vmem %s2, 8
        %v1677 = vld [vmem:[%s1676] sm:$0x3]
        %v1679 = vsel %vm523, %v1677, 0
        %1681 = vmatprep.subr.bf16.mxu0 0
        %1682 = vmatpush1.bf16.msra.mxu0 %v1679
        %1683 = vmatprep.subr.bf16.mxu0 0
        %1684 = vmatpush1.bf16.msra.mxu0 0
        %1685 = vmatprep.subr.bf16.mxu0 0
        %1686 = vmatpush1.bf16.msra.mxu0 0
        %1687 = vmatprep.subr.bf16.mxu0 0
        %1688 = vmatpush1.bf16.msra.mxu0 0
        %1689 = vmatprep.subr.bf16.mxu0 0
        %1690 = vmatpush1.bf16.msra.mxu0 0
        %1691 = vmatprep.subr.bf16.mxu0 0
        %1692 = vmatpush1.bf16.msra.mxu0 0
        %1693 = vmatprep.subr.bf16.mxu0 0
        %1694 = vmatpush1.bf16.msra.mxu0 0
        %1695 = vmatprep.subr.bf16.mxu0 0
        %1696 = vmatpush1.bf16.msra.mxu0 0
        %1697 = vmatprep.subr.bf16.mxu0 0
        %1698 = vmatpush1.bf16.msra.mxu0 0
        %1699 = vmatprep.subr.bf16.mxu0 0
        %1700 = vmatpush1.bf16.msra.mxu0 0
        %1701 = vmatprep.subr.bf16.mxu0 0
        %1702 = vmatpush1.bf16.msra.mxu0 0
        %1703 = vmatprep.subr.bf16.mxu0 0
        %1704 = vmatpush1.bf16.msra.mxu0 0
        %1705 = vmatprep.subr.bf16.mxu0 0
        %1706 = vmatpush1.bf16.msra.mxu0 0
        %1707 = vmatprep.subr.bf16.mxu0 0
        %1708 = vmatpush1.bf16.msra.mxu0 0
        %1709 = vmatprep.subr.bf16.mxu0 0
        %1710 = vmatpush1.bf16.msra.mxu0 0
        %1711 = vmatprep.subr.bf16.mxu0 0
        %1712 = vmatpush1.bf16.msra.mxu0 0
        %1713 = vmatprep.mubr.bf16.mxu0 0
        %1714 = vmatmul.mubr.bf16.gmra.mrb[0].mxu0 %v500
        %v1715 = vpop.f32.mrb[0].mxu0
        %v1716 = vadd.f32 0.0, %v1715
        %v1717 = vpop.f32.mrb[0].mxu0
        %v1718 = vpop.f32.mrb[0].mxu0
        %v1719 = vadd.f32 0.0, %v1718
        %v1720 = vpop.f32.mrb[0].mxu0
        %1721 = vmatprep.mubr.bf16.mxu0 0
        %1722 = vmatmul.mubr.bf16.gmra.mrb[0].mxu0 %v503
        %v1723 = vpop.f32.mrb[0].mxu0
        %v1724 = vadd.f32 0.0, %v1723
        %v1725 = vpop.f32.mrb[0].mxu0
        %v1726 = vpop.f32.mrb[0].mxu0
        %v1727 = vadd.f32 0.0, %v1726
        %v1728 = vpop.f32.mrb[0].mxu0
        %1729 = vmatprep.mubr.bf16.mxu0 0
        %1730 = vmatmul.mubr.bf16.gmra.mrb[0].mxu0 %v506
        %v1731 = vpop.f32.mrb[0].mxu0
        %v1732 = vadd.f32 0.0, %v1731
        %v1733 = vpop.f32.mrb[0].mxu0
        %v1734 = vpop.f32.mrb[0].mxu0
        %v1735 = vadd.f32 0.0, %v1734
        %v1736 = vpop.f32.mrb[0].mxu0
        %1737 = vmatprep.mubr.bf16.mxu0 0
        %1738 = vmatmul.mubr.bf16.gmra.mrb[0].mxu0 %v509
        %v1739 = vpop.f32.mrb[0].mxu0
        %v1740 = vadd.f32 0.0, %v1739
        %v1741 = vpop.f32.mrb[0].mxu0
        %v1742 = vpop.f32.mrb[0].mxu0
        %v1743 = vadd.f32 0.0, %v1742
        %v1744 = vpop.f32.mrb[0].mxu0
        %1745 = vmatprep.mubr.bf16.mxu0 0
        %1746 = vmatmul.mubr.bf16.gmra.mrb[0].mxu0 %v512
        %v1747 = vpop.f32.mrb[0].mxu0
        %v1748 = vadd.f32 0.0, %v1747
        %v1749 = vpop.f32.mrb[0].mxu0
        %v1750 = vpop.f32.mrb[0].mxu0
        %v1751 = vadd.f32 0.0, %v1750
        %v1752 = vpop.f32.mrb[0].mxu0
        %1753 = vmatprep.mubr.bf16.mxu0 0
        %1754 = vmatmul.mubr.bf16.gmra.mrb[0].mxu0 %v515
        %v1755 = vpop.f32.mrb[0].mxu0
        %v1756 = vadd.f32 0.0, %v1755
        %v1757 = vpop.f32.mrb[0].mxu0
        %v1758 = vpop.f32.mrb[0].mxu0
        %v1759 = vadd.f32 0.0, %v1758
        %v1760 = vpop.f32.mrb[0].mxu0
        %1761 = vmatprep.mubr.bf16.mxu0 0
        %1762 = vmatmul.mubr.bf16.gmra.mrb[0].mxu0 %v518
        %v1763 = vpop.f32.mrb[0].mxu0
        %v1764 = vadd.f32 0.0, %v1763
        %v1765 = vpop.f32.mrb[0].mxu0
        %v1766 = vpop.f32.mrb[0].mxu0
        %v1767 = vadd.f32 0.0, %v1766
        %v1768 = vpop.f32.mrb[0].mxu0
        %1769 = vmatprep.mubr.bf16.mxu0 0
        %1770 = vmatmul.mubr.bf16.gmra.mrb[0].mxu0 %v521
        %v1771 = vpop.f32.mrb[0].mxu0
        %v1772 = vadd.f32 0.0, %v1771
        %v1773 = vpop.f32.mrb[0].mxu0
        %v1774 = vpop.f32.mrb[0].mxu0
        %v1775 = vadd.f32 0.0, %v1774
        %v1776 = vpop.f32.mrb[0].mxu0
        %1777 = vdwg.mxu0
        %v1778 = vadd.f32 %v1660, %v1716
        %v1779 = vadd.f32 %v1661, %v1719
        %v1780 = vadd.f32 %v1662, %v1724
        %v1781 = vadd.f32 %v1663, %v1727
        %v1782 = vadd.f32 %v1664, %v1732
        %v1783 = vadd.f32 %v1665, %v1735
        %v1784 = vadd.f32 %v1666, %v1740
        %v1785 = vadd.f32 %v1667, %v1743
        %v1786 = vadd.f32 %v1668, %v1748
        %v1787 = vadd.f32 %v1669, %v1751
        %v1788 = vadd.f32 %v1670, %v1756
        %v1789 = vadd.f32 %v1671, %v1759
        %v1790 = vadd.f32 %v1672, %v1764
        %v1791 = vadd.f32 %v1673, %v1767
        %v1792 = vadd.f32 %v1674, %v1772
        %v1793 = vadd.f32 %v1675, %v1775
        %v1794 = vld [vmem:[%s365 + $0x10] sm:$0xf]
        %v1795 = vld [vmem:[%s365 + $0x2c] sm:$0xf]
        %v1796 = vld [vmem:[%s365 + $0x48] sm:$0xf]
        %v1797 = vld [vmem:[%s365 + $0x64] sm:$0xf]
        %v1798 = vld [vmem:[%s365 + $0x80] sm:$0xf]
        %v1799 = vld [vmem:[%s365 + $0x9c] sm:$0xf]
        %v1800 = vld [vmem:[%s365 + $0xb8] sm:$0xf]
        %v1801 = vld [vmem:[%s365 + $0xd4] sm:$0xf]
        %s1802 = scalar_lea.vmem %s2, 10
        %v1803 = vld [vmem:[%s1802] sm:$0x3]
        %v1812 = vunpack.c.l.b16 %v367
        %v1813 = vunpack.c.l.b16 %v1794
        %v1814 = vunpack.c.l.b16 %v370
        %v1815 = vunpack.c.l.b16 %v1795
        %v1816 = vunpack.c.l.b16 %v373
        %v1817 = vunpack.c.l.b16 %v1796
        %v1818 = vunpack.c.l.b16 %v376
        %v1819 = vunpack.c.l.b16 %v1797
        %v1820 = vunpack.c.l.b16 %v379
        %v1821 = vunpack.c.l.b16 %v1798
        %v1822 = vunpack.c.l.b16 %v382
        %v1823 = vunpack.c.l.b16 %v1799
        %v1824 = vunpack.c.l.b16 %v385
        %v1825 = vunpack.c.l.b16 %v1800
        %v1826 = vunpack.c.l.b16 %v388
        %v1827 = vunpack.c.l.b16 %v1801
        %v1828 = vpack.c.b16 %v1813, %v1812
        %v1829 = vpack.c.b16 %v1815, %v1814
        %v1830 = vpack.c.b16 %v1817, %v1816
        %v1831 = vpack.c.b16 %v1819, %v1818
        %v1832 = vpack.c.b16 %v1821, %v1820
        %v1833 = vpack.c.b16 %v1823, %v1822
        %v1834 = vpack.c.b16 %v1825, %v1824
        %v1835 = vpack.c.b16 %v1827, %v1826
        %v1837 = vsel %vm498, %v1828, 0
        %v1840 = vsel %vm498, %v1829, 0
        %v1843 = vsel %vm498, %v1830, 0
        %v1846 = vsel %vm498, %v1831, 0
        %v1849 = vsel %vm498, %v1832, 0
        %v1852 = vsel %vm498, %v1833, 0
        %v1855 = vsel %vm498, %v1834, 0
        %v1858 = vsel %vm498, %v1835, 0
        %v1861 = vsel %vm523, %v1803, 0
        %1863 = vmatprep.subr.bf16.mxu0 0
        %1864 = vmatpush1.bf16.msra.mxu0 %v1861
        %1865 = vmatprep.subr.bf16.mxu0 0
        %1866 = vmatpush1.bf16.msra.mxu0 0
        %1867 = vmatprep.subr.bf16.mxu0 0
        %1868 = vmatpush1.bf16.msra.mxu0 0
        %1869 = vmatprep.subr.bf16.mxu0 0
        %1870 = vmatpush1.bf16.msra.mxu0 0
        %1871 = vmatprep.subr.bf16.mxu0 0
        %1872 = vmatpush1.bf16.msra.mxu0 0
        %1873 = vmatprep.subr.bf16.mxu0 0
        %1874 = vmatpush1.bf16.msra.mxu0 0
        %1875 = vmatprep.subr.bf16.mxu0 0
        %1876 = vmatpush1.bf16.msra.mxu0 0
        %1877 = vmatprep.subr.bf16.mxu0 0
        %1878 = vmatpush1.bf16.msra.mxu0 0
        %1879 = vmatprep.subr.bf16.mxu0 0
        %1880 = vmatpush1.bf16.msra.mxu0 0
        %1881 = vmatprep.subr.bf16.mxu0 0
        %1882 = vmatpush1.bf16.msra.mxu0 0
        %1883 = vmatprep.subr.bf16.mxu0 0
        %1884 = vmatpush1.bf16.msra.mxu0 0
        %1885 = vmatprep.subr.bf16.mxu0 0
        %1886 = vmatpush1.bf16.msra.mxu0 0
        %1887 = vmatprep.subr.bf16.mxu0 0
        %1888 = vmatpush1.bf16.msra.mxu0 0
        %1889 = vmatprep.subr.bf16.mxu0 0
        %1890 = vmatpush1.bf16.msra.mxu0 0
        %1891 = vmatprep.subr.bf16.mxu0 0
        %1892 = vmatpush1.bf16.msra.mxu0 0
        %1893 = vmatprep.subr.bf16.mxu0 0
        %1894 = vmatpush1.bf16.msra.mxu0 0
        %1895 = vmatprep.mubr.bf16.mxu0 0
        %1896 = vmatmul.mubr.bf16.gmra.mrb[0].mxu0 %v1837
        %v1897 = vpop.f32.mrb[0].mxu0
        %v1898 = vadd.f32 0.0, %v1897
        %v1899 = vpop.f32.mrb[0].mxu0
        %v1900 = vpop.f32.mrb[0].mxu0
        %v1901 = vadd.f32 0.0, %v1900
        %v1902 = vpop.f32.mrb[0].mxu0
        %1903 = vmatprep.mubr.bf16.mxu0 0
        %1904 = vmatmul.mubr.bf16.gmra.mrb[0].mxu0 %v1840
        %v1905 = vpop.f32.mrb[0].mxu0
        %v1906 = vadd.f32 0.0, %v1905
        %v1907 = vpop.f32.mrb[0].mxu0
        %v1908 = vpop.f32.mrb[0].mxu0
        %v1909 = vadd.f32 0.0, %v1908
        %v1910 = vpop.f32.mrb[0].mxu0
        %1911 = vmatprep.mubr.bf16.mxu0 0
        %1912 = vmatmul.mubr.bf16.gmra.mrb[0].mxu0 %v1843
        %v1913 = vpop.f32.mrb[0].mxu0
        %v1914 = vadd.f32 0.0, %v1913
        %v1915 = vpop.f32.mrb[0].mxu0
        %v1916 = vpop.f32.mrb[0].mxu0
        %v1917 = vadd.f32 0.0, %v1916
        %v1918 = vpop.f32.mrb[0].mxu0
        %1919 = vmatprep.mubr.bf16.mxu0 0
        %1920 = vmatmul.mubr.bf16.gmra.mrb[0].mxu0 %v1846
        %v1921 = vpop.f32.mrb[0].mxu0
        %v1922 = vadd.f32 0.0, %v1921
        %v1923 = vpop.f32.mrb[0].mxu0
        %v1924 = vpop.f32.mrb[0].mxu0
        %v1925 = vadd.f32 0.0, %v1924
        %v1926 = vpop.f32.mrb[0].mxu0
        %1927 = vmatprep.mubr.bf16.mxu0 0
        %1928 = vmatmul.mubr.bf16.gmra.mrb[0].mxu0 %v1849
        %v1929 = vpop.f32.mrb[0].mxu0
        %v1930 = vadd.f32 0.0, %v1929
        %v1931 = vpop.f32.mrb[0].mxu0
        %v1932 = vpop.f32.mrb[0].mxu0
        %v1933 = vadd.f32 0.0, %v1932
        %v1934 = vpop.f32.mrb[0].mxu0
        %1935 = vmatprep.mubr.bf16.mxu0 0
        %1936 = vmatmul.mubr.bf16.gmra.mrb[0].mxu0 %v1852
        %v1937 = vpop.f32.mrb[0].mxu0
        %v1938 = vadd.f32 0.0, %v1937
        %v1939 = vpop.f32.mrb[0].mxu0
        %v1940 = vpop.f32.mrb[0].mxu0
        %v1941 = vadd.f32 0.0, %v1940
        %v1942 = vpop.f32.mrb[0].mxu0
        %1943 = vmatprep.mubr.bf16.mxu0 0
        %1944 = vmatmul.mubr.bf16.gmra.mrb[0].mxu0 %v1855
        %v1945 = vpop.f32.mrb[0].mxu0
        %v1946 = vadd.f32 0.0, %v1945
        %v1947 = vpop.f32.mrb[0].mxu0
        %v1948 = vpop.f32.mrb[0].mxu0
        %v1949 = vadd.f32 0.0, %v1948
        %v1950 = vpop.f32.mrb[0].mxu0
        %1951 = vmatprep.mubr.bf16.mxu0 0
        %1952 = vmatmul.mubr.bf16.gmra.mrb[0].mxu0 %v1858
        %v1953 = vpop.f32.mrb[0].mxu0
        %v1954 = vadd.f32 0.0, %v1953
        %v1955 = vpop.f32.mrb[0].mxu0
        %v1956 = vpop.f32.mrb[0].mxu0
        %v1957 = vadd.f32 0.0, %v1956
        %v1958 = vpop.f32.mrb[0].mxu0
        %1959 = vdwg.mxu0
        %v1960 = vadd.f32 %v1778, %v1898
        %v1961 = vadd.f32 %v1779, %v1901
        %v1962 = vadd.f32 %v1780, %v1906
        %v1963 = vadd.f32 %v1781, %v1909
        %v1964 = vadd.f32 %v1782, %v1914
        %v1965 = vadd.f32 %v1783, %v1917
        %v1966 = vadd.f32 %v1784, %v1922
        %v1967 = vadd.f32 %v1785, %v1925
        %v1968 = vadd.f32 %v1786, %v1930
        %v1969 = vadd.f32 %v1787, %v1933
        %v1970 = vadd.f32 %v1788, %v1938
        %v1971 = vadd.f32 %v1789, %v1941
        %v1972 = vadd.f32 %v1790, %v1946
        %v1973 = vadd.f32 %v1791, %v1949
        %v1974 = vadd.f32 %v1792, %v1954
        %v1975 = vadd.f32 %v1793, %v1957
        %s1976 = sadd.s32 %s361, 24
        %s1977 = smul.u32 %s1976, 7
        %s1978 = smul.addr %s1977, 4
        %s1979 = scalar_lea.vmem %s355, %s1978
        %v1980 = vld [vmem:[%s1979 + $0x4] sm:$0xc]
        %v1981 = vld [vmem:[%s1979 + $0x8] sm:$0xf]
        %v1982 = vld [vmem:[%s1979 + $0xc] sm:$0x3]
        %v1983 = vld [vmem:[%s1979 + $0x20] sm:$0xc]
        %v1984 = vld [vmem:[%s1979 + $0x24] sm:$0xf]
        %v1985 = vld [vmem:[%s1979 + $0x28] sm:$0x3]
        %v1986 = vld [vmem:[%s1979 + $0x3c] sm:$0xc]
        %v1987 = vld [vmem:[%s1979 + $0x40] sm:$0xf]
        %v1988 = vld [vmem:[%s1979 + $0x44] sm:$0x3]
        %v1989 = vld [vmem:[%s1979 + $0x58] sm:$0xc]
        %v1990 = vld [vmem:[%s1979 + $0x5c] sm:$0xf]
        %v1991 = vld [vmem:[%s1979 + $0x60] sm:$0x3]
        %v1992 = vld [vmem:[%s1979 + $0x74] sm:$0xc]
        %v1993 = vld [vmem:[%s1979 + $0x78] sm:$0xf]
        %v1994 = vld [vmem:[%s1979 + $0x7c] sm:$0x3]
        %v1995 = vld [vmem:[%s1979 + $0x90] sm:$0xc]
        %v1996 = vld [vmem:[%s1979 + $0x94] sm:$0xf]
        %v1997 = vld [vmem:[%s1979 + $0x98] sm:$0x3]
        %v1998 = vld [vmem:[%s1979 + $0xac] sm:$0xc]
        %v1999 = vld [vmem:[%s1979 + $0xb0] sm:$0xf]
        %v2000 = vld [vmem:[%s1979 + $0xb4] sm:$0x3]
        %v2001 = vld [vmem:[%s1979 + $0xc8] sm:$0xc]
        %v2002 = vld [vmem:[%s1979 + $0xcc] sm:$0xf]
        %v2003 = vld [vmem:[%s1979 + $0xd0] sm:$0x3]
        %v2028 = vrot.slane %v1980, 6
        %v2029 = vrot.slane %v2028, 4
        %v2030 = vrot.slane %v1981, 6
        %v2031 = vsel %vm764, %v2029, %v2030
        %v2032 = vrot.slane %v2030, 4
        %v2033 = vrot.slane %v1982, 6
        %v2034 = vsel %vm764, %v2032, %v2033
        %v2035 = vrot.slane %v1983, 6
        %v2036 = vrot.slane %v2035, 4
        %v2037 = vrot.slane %v1984, 6
        %v2038 = vsel %vm764, %v2036, %v2037
        %v2039 = vrot.slane %v2037, 4
        %v2040 = vrot.slane %v1985, 6
        %v2041 = vsel %vm764, %v2039, %v2040
        %v2042 = vrot.slane %v1986, 6
        %v2043 = vrot.slane %v2042, 4
        %v2044 = vrot.slane %v1987, 6
        %v2045 = vsel %vm764, %v2043, %v2044
        %v2046 = vrot.slane %v2044, 4
        %v2047 = vrot.slane %v1988, 6
        %v2048 = vsel %vm764, %v2046, %v2047
        %v2049 = vrot.slane %v1989, 6
        %v2050 = vrot.slane %v2049, 4
        %v2051 = vrot.slane %v1990, 6
        %v2052 = vsel %vm764, %v2050, %v2051
        %v2053 = vrot.slane %v2051, 4
        %v2054 = vrot.slane %v1991, 6
        %v2055 = vsel %vm764, %v2053, %v2054
        %v2056 = vrot.slane %v1992, 6
        %v2057 = vrot.slane %v2056, 4
        %v2058 = vrot.slane %v1993, 6
        %v2059 = vsel %vm764, %v2057, %v2058
        %v2060 = vrot.slane %v2058, 4
        %v2061 = vrot.slane %v1994, 6
        %v2062 = vsel %vm764, %v2060, %v2061
        %v2063 = vrot.slane %v1995, 6
        %v2064 = vrot.slane %v2063, 4
        %v2065 = vrot.slane %v1996, 6
        %v2066 = vsel %vm764, %v2064, %v2065
        %v2067 = vrot.slane %v2065, 4
        %v2068 = vrot.slane %v1997, 6
        %v2069 = vsel %vm764, %v2067, %v2068
        %v2070 = vrot.slane %v1998, 6
        %v2071 = vrot.slane %v2070, 4
        %v2072 = vrot.slane %v1999, 6
        %v2073 = vsel %vm764, %v2071, %v2072
        %v2074 = vrot.slane %v2072, 4
        %v2075 = vrot.slane %v2000, 6
        %v2076 = vsel %vm764, %v2074, %v2075
        %v2077 = vrot.slane %v2001, 6
        %v2078 = vrot.slane %v2077, 4
        %v2079 = vrot.slane %v2002, 6
        %v2080 = vsel %vm764, %v2078, %v2079
        %v2081 = vrot.slane %v2079, 4
        %v2082 = vrot.slane %v2003, 6
        %v2083 = vsel %vm764, %v2081, %v2082
        %s2084 = scalar_lea.vmem %s2, 12
        %v2085 = vld [vmem:[%s2084] sm:$0x3]
        %v2086 = vunpack.c.l.b16 %v2031
        %v2087 = vunpack.c.l.b16 %v2034
        %v2088 = vunpack.c.l.b16 %v2038
        %v2089 = vunpack.c.l.b16 %v2041
        %v2090 = vunpack.c.l.b16 %v2045
        %v2091 = vunpack.c.l.b16 %v2048
        %v2092 = vunpack.c.l.b16 %v2052
        %v2093 = vunpack.c.l.b16 %v2055
        %v2094 = vunpack.c.l.b16 %v2059
        %v2095 = vunpack.c.l.b16 %v2062
        %v2096 = vunpack.c.l.b16 %v2066
        %v2097 = vunpack.c.l.b16 %v2069
        %v2098 = vunpack.c.l.b16 %v2073
        %v2099 = vunpack.c.l.b16 %v2076
        %v2100 = vunpack.c.l.b16 %v2080
        %v2101 = vunpack.c.l.b16 %v2083
        %v2102 = vpack.c.b16 %v2087, %v2086
        %v2103 = vpack.c.b16 %v2089, %v2088
        %v2104 = vpack.c.b16 %v2091, %v2090
        %v2105 = vpack.c.b16 %v2093, %v2092
        %v2106 = vpack.c.b16 %v2095, %v2094
        %v2107 = vpack.c.b16 %v2097, %v2096
        %v2108 = vpack.c.b16 %v2099, %v2098
        %v2109 = vpack.c.b16 %v2101, %v2100
        %v2111 = vsel %vm498, %v2102, 0
        %v2114 = vsel %vm498, %v2103, 0
        %v2117 = vsel %vm498, %v2104, 0
        %v2120 = vsel %vm498, %v2105, 0
        %v2123 = vsel %vm498, %v2106, 0
        %v2126 = vsel %vm498, %v2107, 0
        %v2129 = vsel %vm498, %v2108, 0
        %v2132 = vsel %vm498, %v2109, 0
        %v2135 = vsel %vm523, %v2085, 0
        %2137 = vmatprep.subr.bf16.mxu0 0
        %2138 = vmatpush1.bf16.msra.mxu0 %v2135
        %2139 = vmatprep.subr.bf16.mxu0 0
        %2140 = vmatpush1.bf16.msra.mxu0 0
        %2141 = vmatprep.subr.bf16.mxu0 0
        %2142 = vmatpush1.bf16.msra.mxu0 0
        %2143 = vmatprep.subr.bf16.mxu0 0
        %2144 = vmatpush1.bf16.msra.mxu0 0
        %2145 = vmatprep.subr.bf16.mxu0 0
        %2146 = vmatpush1.bf16.msra.mxu0 0
        %2147 = vmatprep.subr.bf16.mxu0 0
        %2148 = vmatpush1.bf16.msra.mxu0 0
        %2149 = vmatprep.subr.bf16.mxu0 0
        %2150 = vmatpush1.bf16.msra.mxu0 0
        %2151 = vmatprep.subr.bf16.mxu0 0
        %2152 = vmatpush1.bf16.msra.mxu0 0
        %2153 = vmatprep.subr.bf16.mxu0 0
        %2154 = vmatpush1.bf16.msra.mxu0 0
        %2155 = vmatprep.subr.bf16.mxu0 0
        %2156 = vmatpush1.bf16.msra.mxu0 0
        %2157 = vmatprep.subr.bf16.mxu0 0
        %2158 = vmatpush1.bf16.msra.mxu0 0
        %2159 = vmatprep.subr.bf16.mxu0 0
        %2160 = vmatpush1.bf16.msra.mxu0 0
        %2161 = vmatprep.subr.bf16.mxu0 0
        %2162 = vmatpush1.bf16.msra.mxu0 0
        %2163 = vmatprep.subr.bf16.mxu0 0
        %2164 = vmatpush1.bf16.msra.mxu0 0
        %2165 = vmatprep.subr.bf16.mxu0 0
        %2166 = vmatpush1.bf16.msra.mxu0 0
        %2167 = vmatprep.subr.bf16.mxu0 0
        %2168 = vmatpush1.bf16.msra.mxu0 0
        %2169 = vmatprep.mubr.bf16.mxu0 0
        %2170 = vmatmul.mubr.bf16.gmra.mrb[0].mxu0 %v2111
        %v2171 = vpop.f32.mrb[0].mxu0
        %v2172 = vadd.f32 0.0, %v2171
        %v2173 = vpop.f32.mrb[0].mxu0
        %v2174 = vpop.f32.mrb[0].mxu0
        %v2175 = vadd.f32 0.0, %v2174
        %v2176 = vpop.f32.mrb[0].mxu0
        %2177 = vmatprep.mubr.bf16.mxu0 0
        %2178 = vmatmul.mubr.bf16.gmra.mrb[0].mxu0 %v2114
        %v2179 = vpop.f32.mrb[0].mxu0
        %v2180 = vadd.f32 0.0, %v2179
        %v2181 = vpop.f32.mrb[0].mxu0
        %v2182 = vpop.f32.mrb[0].mxu0
        %v2183 = vadd.f32 0.0, %v2182
        %v2184 = vpop.f32.mrb[0].mxu0
        %2185 = vmatprep.mubr.bf16.mxu0 0
        %2186 = vmatmul.mubr.bf16.gmra.mrb[0].mxu0 %v2117
        %v2187 = vpop.f32.mrb[0].mxu0
        %v2188 = vadd.f32 0.0, %v2187
        %v2189 = vpop.f32.mrb[0].mxu0
        %v2190 = vpop.f32.mrb[0].mxu0
        %v2191 = vadd.f32 0.0, %v2190
        %v2192 = vpop.f32.mrb[0].mxu0
        %2193 = vmatprep.mubr.bf16.mxu0 0
        %2194 = vmatmul.mubr.bf16.gmra.mrb[0].mxu0 %v2120
        %v2195 = vpop.f32.mrb[0].mxu0
        %v2196 = vadd.f32 0.0, %v2195
        %v2197 = vpop.f32.mrb[0].mxu0
        %v2198 = vpop.f32.mrb[0].mxu0
        %v2199 = vadd.f32 0.0, %v2198
        %v2200 = vpop.f32.mrb[0].mxu0
        %2201 = vmatprep.mubr.bf16.mxu0 0
        %2202 = vmatmul.mubr.bf16.gmra.mrb[0].mxu0 %v2123
        %v2203 = vpop.f32.mrb[0].mxu0
        %v2204 = vadd.f32 0.0, %v2203
        %v2205 = vpop.f32.mrb[0].mxu0
        %v2206 = vpop.f32.mrb[0].mxu0
        %v2207 = vadd.f32 0.0, %v2206
        %v2208 = vpop.f32.mrb[0].mxu0
        %2209 = vmatprep.mubr.bf16.mxu0 0
        %2210 = vmatmul.mubr.bf16.gmra.mrb[0].mxu0 %v2126
        %v2211 = vpop.f32.mrb[0].mxu0
        %v2212 = vadd.f32 0.0, %v2211
        %v2213 = vpop.f32.mrb[0].mxu0
        %v2214 = vpop.f32.mrb[0].mxu0
        %v2215 = vadd.f32 0.0, %v2214
        %v2216 = vpop.f32.mrb[0].mxu0
        %2217 = vmatprep.mubr.bf16.mxu0 0
        %2218 = vmatmul.mubr.bf16.gmra.mrb[0].mxu0 %v2129
        %v2219 = vpop.f32.mrb[0].mxu0
        %v2220 = vadd.f32 0.0, %v2219
        %v2221 = vpop.f32.mrb[0].mxu0
        %v2222 = vpop.f32.mrb[0].mxu0
        %v2223 = vadd.f32 0.0, %v2222
        %v2224 = vpop.f32.mrb[0].mxu0
        %2225 = vmatprep.mubr.bf16.mxu0 0
        %2226 = vmatmul.mubr.bf16.gmra.mrb[0].mxu0 %v2132
        %v2227 = vpop.f32.mrb[0].mxu0
        %v2228 = vadd.f32 0.0, %v2227
        %v2229 = vpop.f32.mrb[0].mxu0
        %v2230 = vpop.f32.mrb[0].mxu0
        %v2231 = vadd.f32 0.0, %v2230
        %v2232 = vpop.f32.mrb[0].mxu0
        %2233 = vdwg.mxu0
        %v2234 = vadd.f32 %v1960, %v2172
        %v2235 = vadd.f32 %v1961, %v2175
        %v2236 = vadd.f32 %v1962, %v2180
        %v2237 = vadd.f32 %v1963, %v2183
        %v2238 = vadd.f32 %v1964, %v2188
        %v2239 = vadd.f32 %v1965, %v2191
        %v2240 = vadd.f32 %v1966, %v2196
        %v2241 = vadd.f32 %v1967, %v2199
        %v2242 = vadd.f32 %v1968, %v2204
        %v2243 = vadd.f32 %v1969, %v2207
        %v2244 = vadd.f32 %v1970, %v2212
        %v2245 = vadd.f32 %v1971, %v2215
        %v2246 = vadd.f32 %v1972, %v2220
        %v2247 = vadd.f32 %v1973, %v2223
        %v2248 = vadd.f32 %v1974, %v2228
        %v2249 = vadd.f32 %v1975, %v2231
        %v2250 = vld [vmem:[%s1979 + $0x8] sm:$0xe]
        %v2251 = vld [vmem:[%s1979 + $0xc] sm:$0xf]
        %v2252 = vld [vmem:[%s1979 + $0x10] sm:$0x1]
        %v2253 = vld [vmem:[%s1979 + $0x24] sm:$0xe]
        %v2254 = vld [vmem:[%s1979 + $0x28] sm:$0xf]
        %v2255 = vld [vmem:[%s1979 + $0x2c] sm:$0x1]
        %v2256 = vld [vmem:[%s1979 + $0x40] sm:$0xe]
        %v2257 = vld [vmem:[%s1979 + $0x44] sm:$0xf]
        %v2258 = vld [vmem:[%s1979 + $0x48] sm:$0x1]
        %v2259 = vld [vmem:[%s1979 + $0x5c] sm:$0xe]
        %v2260 = vld [vmem:[%s1979 + $0x60] sm:$0xf]
        %v2261 = vld [vmem:[%s1979 + $0x64] sm:$0x1]
        %v2262 = vld [vmem:[%s1979 + $0x78] sm:$0xe]
        %v2263 = vld [vmem:[%s1979 + $0x7c] sm:$0xf]
        %v2264 = vld [vmem:[%s1979 + $0x80] sm:$0x1]
        %v2265 = vld [vmem:[%s1979 + $0x94] sm:$0xe]
        %v2266 = vld [vmem:[%s1979 + $0x98] sm:$0xf]
        %v2267 = vld [vmem:[%s1979 + $0x9c] sm:$0x1]
        %v2268 = vld [vmem:[%s1979 + $0xb0] sm:$0xe]
        %v2269 = vld [vmem:[%s1979 + $0xb4] sm:$0xf]
        %v2270 = vld [vmem:[%s1979 + $0xb8] sm:$0x1]
        %v2271 = vld [vmem:[%s1979 + $0xcc] sm:$0xe]
        %v2272 = vld [vmem:[%s1979 + $0xd0] sm:$0xf]
        %v2273 = vld [vmem:[%s1979 + $0xd4] sm:$0x1]
        %v2298 = vrot.slane %v2250, 5
        %v2299 = vrot.slane %v2298, 4
        %v2300 = vrot.slane %v2251, 5
        %v2301 = vsel %vm416, %v2299, %v2300
        %v2302 = vrot.slane %v2300, 4
        %v2303 = vrot.slane %v2252, 5
        %v2304 = vsel %vm416, %v2302, %v2303
        %v2305 = vrot.slane %v2253, 5
        %v2306 = vrot.slane %v2305, 4
        %v2307 = vrot.slane %v2254, 5
        %v2308 = vsel %vm416, %v2306, %v2307
        %v2309 = vrot.slane %v2307, 4
        %v2310 = vrot.slane %v2255, 5
        %v2311 = vsel %vm416, %v2309, %v2310
        %v2312 = vrot.slane %v2256, 5
        %v2313 = vrot.slane %v2312, 4
        %v2314 = vrot.slane %v2257, 5
        %v2315 = vsel %vm416, %v2313, %v2314
        %v2316 = vrot.slane %v2314, 4
        %v2317 = vrot.slane %v2258, 5
        %v2318 = vsel %vm416, %v2316, %v2317
        %v2319 = vrot.slane %v2259, 5
        %v2320 = vrot.slane %v2319, 4
        %v2321 = vrot.slane %v2260, 5
        %v2322 = vsel %vm416, %v2320, %v2321
        %v2323 = vrot.slane %v2321, 4
        %v2324 = vrot.slane %v2261, 5
        %v2325 = vsel %vm416, %v2323, %v2324
        %v2326 = vrot.slane %v2262, 5
        %v2327 = vrot.slane %v2326, 4
        %v2328 = vrot.slane %v2263, 5
        %v2329 = vsel %vm416, %v2327, %v2328
        %v2330 = vrot.slane %v2328, 4
        %v2331 = vrot.slane %v2264, 5
        %v2332 = vsel %vm416, %v2330, %v2331
        %v2333 = vrot.slane %v2265, 5
        %v2334 = vrot.slane %v2333, 4
        %v2335 = vrot.slane %v2266, 5
        %v2336 = vsel %vm416, %v2334, %v2335
        %v2337 = vrot.slane %v2335, 4
        %v2338 = vrot.slane %v2267, 5
        %v2339 = vsel %vm416, %v2337, %v2338
        %v2340 = vrot.slane %v2268, 5
        %v2341 = vrot.slane %v2340, 4
        %v2342 = vrot.slane %v2269, 5
        %v2343 = vsel %vm416, %v2341, %v2342
        %v2344 = vrot.slane %v2342, 4
        %v2345 = vrot.slane %v2270, 5
        %v2346 = vsel %vm416, %v2344, %v2345
        %v2347 = vrot.slane %v2271, 5
        %v2348 = vrot.slane %v2347, 4
        %v2349 = vrot.slane %v2272, 5
        %v2350 = vsel %vm416, %v2348, %v2349
        %v2351 = vrot.slane %v2349, 4
        %v2352 = vrot.slane %v2273, 5
        %v2353 = vsel %vm416, %v2351, %v2352
        %s2354 = scalar_lea.vmem %s2, 14
        %v2355 = vld [vmem:[%s2354] sm:$0x3]
        %v2356 = vunpack.c.l.b16 %v2301
        %v2357 = vunpack.c.l.b16 %v2304
        %v2358 = vunpack.c.l.b16 %v2308
        %v2359 = vunpack.c.l.b16 %v2311
        %v2360 = vunpack.c.l.b16 %v2315
        %v2361 = vunpack.c.l.b16 %v2318
        %v2362 = vunpack.c.l.b16 %v2322
        %v2363 = vunpack.c.l.b16 %v2325
        %v2364 = vunpack.c.l.b16 %v2329
        %v2365 = vunpack.c.l.b16 %v2332
        %v2366 = vunpack.c.l.b16 %v2336
        %v2367 = vunpack.c.l.b16 %v2339
        %v2368 = vunpack.c.l.b16 %v2343
        %v2369 = vunpack.c.l.b16 %v2346
        %v2370 = vunpack.c.l.b16 %v2350
        %v2371 = vunpack.c.l.b16 %v2353
        %v2372 = vpack.c.b16 %v2357, %v2356
        %v2373 = vpack.c.b16 %v2359, %v2358
        %v2374 = vpack.c.b16 %v2361, %v2360
        %v2375 = vpack.c.b16 %v2363, %v2362
        %v2376 = vpack.c.b16 %v2365, %v2364
        %v2377 = vpack.c.b16 %v2367, %v2366
        %v2378 = vpack.c.b16 %v2369, %v2368
        %v2379 = vpack.c.b16 %v2371, %v2370
        %v2381 = vsel %vm498, %v2372, 0
        %v2384 = vsel %vm498, %v2373, 0
        %v2387 = vsel %vm498, %v2374, 0
        %v2390 = vsel %vm498, %v2375, 0
        %v2393 = vsel %vm498, %v2376, 0
        %v2396 = vsel %vm498, %v2377, 0
        %v2399 = vsel %vm498, %v2378, 0
        %v2402 = vsel %vm498, %v2379, 0
        %v2405 = vsel %vm523, %v2355, 0
        %2407 = vmatprep.subr.bf16.mxu0 0
        %2408 = vmatpush1.bf16.msra.mxu0 %v2405
        %2409 = vmatprep.subr.bf16.mxu0 0
        %2410 = vmatpush1.bf16.msra.mxu0 0
        %2411 = vmatprep.subr.bf16.mxu0 0
        %2412 = vmatpush1.bf16.msra.mxu0 0
        %2413 = vmatprep.subr.bf16.mxu0 0
        %2414 = vmatpush1.bf16.msra.mxu0 0
        %2415 = vmatprep.subr.bf16.mxu0 0
        %2416 = vmatpush1.bf16.msra.mxu0 0
        %2417 = vmatprep.subr.bf16.mxu0 0
        %2418 = vmatpush1.bf16.msra.mxu0 0
        %2419 = vmatprep.subr.bf16.mxu0 0
        %2420 = vmatpush1.bf16.msra.mxu0 0
        %2421 = vmatprep.subr.bf16.mxu0 0
        %2422 = vmatpush1.bf16.msra.mxu0 0
        %2423 = vmatprep.subr.bf16.mxu0 0
        %2424 = vmatpush1.bf16.msra.mxu0 0
        %2425 = vmatprep.subr.bf16.mxu0 0
        %2426 = vmatpush1.bf16.msra.mxu0 0
        %2427 = vmatprep.subr.bf16.mxu0 0
        %2428 = vmatpush1.bf16.msra.mxu0 0
        %2429 = vmatprep.subr.bf16.mxu0 0
        %2430 = vmatpush1.bf16.msra.mxu0 0
        %2431 = vmatprep.subr.bf16.mxu0 0
        %2432 = vmatpush1.bf16.msra.mxu0 0
        %2433 = vmatprep.subr.bf16.mxu0 0
        %2434 = vmatpush1.bf16.msra.mxu0 0
        %2435 = vmatprep.subr.bf16.mxu0 0
        %2436 = vmatpush1.bf16.msra.mxu0 0
        %2437 = vmatprep.subr.bf16.mxu0 0
        %2438 = vmatpush1.bf16.msra.mxu0 0
        %2439 = vmatprep.mubr.bf16.mxu0 0
        %2440 = vmatmul.mubr.bf16.gmra.mrb[0].mxu0 %v2381
        %v2441 = vpop.f32.mrb[0].mxu0
        %v2442 = vadd.f32 0.0, %v2441
        %v2443 = vpop.f32.mrb[0].mxu0
        %v2444 = vpop.f32.mrb[0].mxu0
        %v2445 = vadd.f32 0.0, %v2444
        %v2446 = vpop.f32.mrb[0].mxu0
        %2447 = vmatprep.mubr.bf16.mxu0 0
        %2448 = vmatmul.mubr.bf16.gmra.mrb[0].mxu0 %v2384
        %v2449 = vpop.f32.mrb[0].mxu0
        %v2450 = vadd.f32 0.0, %v2449
        %v2451 = vpop.f32.mrb[0].mxu0
        %v2452 = vpop.f32.mrb[0].mxu0
        %v2453 = vadd.f32 0.0, %v2452
        %v2454 = vpop.f32.mrb[0].mxu0
        %2455 = vmatprep.mubr.bf16.mxu0 0
        %2456 = vmatmul.mubr.bf16.gmra.mrb[0].mxu0 %v2387
        %v2457 = vpop.f32.mrb[0].mxu0
        %v2458 = vadd.f32 0.0, %v2457
        %v2459 = vpop.f32.mrb[0].mxu0
        %v2460 = vpop.f32.mrb[0].mxu0
        %v2461 = vadd.f32 0.0, %v2460
        %v2462 = vpop.f32.mrb[0].mxu0
        %2463 = vmatprep.mubr.bf16.mxu0 0
        %2464 = vmatmul.mubr.bf16.gmra.mrb[0].mxu0 %v2390
        %v2465 = vpop.f32.mrb[0].mxu0
        %v2466 = vadd.f32 0.0, %v2465
        %v2467 = vpop.f32.mrb[0].mxu0
        %v2468 = vpop.f32.mrb[0].mxu0
        %v2469 = vadd.f32 0.0, %v2468
        %v2470 = vpop.f32.mrb[0].mxu0
        %2471 = vmatprep.mubr.bf16.mxu0 0
        %2472 = vmatmul.mubr.bf16.gmra.mrb[0].mxu0 %v2393
        %v2473 = vpop.f32.mrb[0].mxu0
        %v2474 = vadd.f32 0.0, %v2473
        %v2475 = vpop.f32.mrb[0].mxu0
        %v2476 = vpop.f32.mrb[0].mxu0
        %v2477 = vadd.f32 0.0, %v2476
        %v2478 = vpop.f32.mrb[0].mxu0
        %2479 = vmatprep.mubr.bf16.mxu0 0
        %2480 = vmatmul.mubr.bf16.gmra.mrb[0].mxu0 %v2396
        %v2481 = vpop.f32.mrb[0].mxu0
        %v2482 = vadd.f32 0.0, %v2481
        %v2483 = vpop.f32.mrb[0].mxu0
        %v2484 = vpop.f32.mrb[0].mxu0
        %v2485 = vadd.f32 0.0, %v2484
        %v2486 = vpop.f32.mrb[0].mxu0
        %2487 = vmatprep.mubr.bf16.mxu0 0
        %2488 = vmatmul.mubr.bf16.gmra.mrb[0].mxu0 %v2399
        %v2489 = vpop.f32.mrb[0].mxu0
        %v2490 = vadd.f32 0.0, %v2489
        %v2491 = vpop.f32.mrb[0].mxu0
        %v2492 = vpop.f32.mrb[0].mxu0
        %v2493 = vadd.f32 0.0, %v2492
        %v2494 = vpop.f32.mrb[0].mxu0
        %2495 = vmatprep.mubr.bf16.mxu0 0
        %2496 = vmatmul.mubr.bf16.gmra.mrb[0].mxu0 %v2402
        %v2497 = vpop.f32.mrb[0].mxu0
        %v2498 = vadd.f32 0.0, %v2497
        %v2499 = vpop.f32.mrb[0].mxu0
        %v2500 = vpop.f32.mrb[0].mxu0
        %v2501 = vadd.f32 0.0, %v2500
        %v2502 = vpop.f32.mrb[0].mxu0
        %2503 = vdwg.mxu0
        %v2504 = vadd.f32 %v2234, %v2442
        %v2505 = vadd.f32 %v2235, %v2445
        %v2506 = vadd.f32 %v2236, %v2450
        %v2507 = vadd.f32 %v2237, %v2453
        %v2508 = vadd.f32 %v2238, %v2458
        %v2509 = vadd.f32 %v2239, %v2461
        %v2510 = vadd.f32 %v2240, %v2466
        %v2511 = vadd.f32 %v2241, %v2469
        %v2512 = vadd.f32 %v2242, %v2474
        %v2513 = vadd.f32 %v2243, %v2477
        %v2514 = vadd.f32 %v2244, %v2482
        %v2515 = vadd.f32 %v2245, %v2485
        %v2516 = vadd.f32 %v2246, %v2490
        %v2517 = vadd.f32 %v2247, %v2493
        %v2518 = vadd.f32 %v2248, %v2498
        %v2519 = vadd.f32 %v2249, %v2501
        %v2520 = vld [vmem:[%s1979 + $0x10] sm:$0xf]
        %v2521 = vld [vmem:[%s1979 + $0x2c] sm:$0xf]
        %v2522 = vld [vmem:[%s1979 + $0x48] sm:$0xf]
        %v2523 = vld [vmem:[%s1979 + $0x64] sm:$0xf]
        %v2524 = vld [vmem:[%s1979 + $0x80] sm:$0xf]
        %v2525 = vld [vmem:[%s1979 + $0x9c] sm:$0xf]
        %v2526 = vld [vmem:[%s1979 + $0xb8] sm:$0xf]
        %v2527 = vld [vmem:[%s1979 + $0xd4] sm:$0xf]
        %s2528 = scalar_lea.vmem %s2, 16
        %v2529 = vld [vmem:[%s2528] sm:$0x3]
        %v2538 = vunpack.c.l.b16 %v2251
        %v2539 = vunpack.c.l.b16 %v2520
        %v2540 = vunpack.c.l.b16 %v2254
        %v2541 = vunpack.c.l.b16 %v2521
        %v2542 = vunpack.c.l.b16 %v2257
        %v2543 = vunpack.c.l.b16 %v2522
        %v2544 = vunpack.c.l.b16 %v2260
        %v2545 = vunpack.c.l.b16 %v2523
        %v2546 = vunpack.c.l.b16 %v2263
        %v2547 = vunpack.c.l.b16 %v2524
        %v2548 = vunpack.c.l.b16 %v2266
        %v2549 = vunpack.c.l.b16 %v2525
        %v2550 = vunpack.c.l.b16 %v2269
        %v2551 = vunpack.c.l.b16 %v2526
        %v2552 = vunpack.c.l.b16 %v2272
        %v2553 = vunpack.c.l.b16 %v2527
        %v2554 = vpack.c.b16 %v2539, %v2538
        %v2555 = vpack.c.b16 %v2541, %v2540
        %v2556 = vpack.c.b16 %v2543, %v2542
        %v2557 = vpack.c.b16 %v2545, %v2544
        %v2558 = vpack.c.b16 %v2547, %v2546
        %v2559 = vpack.c.b16 %v2549, %v2548
        %v2560 = vpack.c.b16 %v2551, %v2550
        %v2561 = vpack.c.b16 %v2553, %v2552
        %v2563 = vsel %vm498, %v2554, 0
        %v2566 = vsel %vm498, %v2555, 0
        %v2569 = vsel %vm498, %v2556, 0
        %v2572 = vsel %vm498, %v2557, 0
        %v2575 = vsel %vm498, %v2558, 0
        %v2578 = vsel %vm498, %v2559, 0
        %v2581 = vsel %vm498, %v2560, 0
        %v2584 = vsel %vm498, %v2561, 0
        %v2587 = vsel %vm523, %v2529, 0
        %2589 = vmatprep.subr.bf16.mxu0 0
        %2590 = vmatpush1.bf16.msra.mxu0 %v2587
        %2591 = vmatprep.subr.bf16.mxu0 0
        %2592 = vmatpush1.bf16.msra.mxu0 0
        %2593 = vmatprep.subr.bf16.mxu0 0
        %2594 = vmatpush1.bf16.msra.mxu0 0
        %2595 = vmatprep.subr.bf16.mxu0 0
        %2596 = vmatpush1.bf16.msra.mxu0 0
        %2597 = vmatprep.subr.bf16.mxu0 0
        %2598 = vmatpush1.bf16.msra.mxu0 0
        %2599 = vmatprep.subr.bf16.mxu0 0
        %2600 = vmatpush1.bf16.msra.mxu0 0
        %2601 = vmatprep.subr.bf16.mxu0 0
        %2602 = vmatpush1.bf16.msra.mxu0 0
        %2603 = vmatprep.subr.bf16.mxu0 0
        %2604 = vmatpush1.bf16.msra.mxu0 0
        %2605 = vmatprep.subr.bf16.mxu0 0
        %2606 = vmatpush1.bf16.msra.mxu0 0
        %2607 = vmatprep.subr.bf16.mxu0 0
        %2608 = vmatpush1.bf16.msra.mxu0 0
        %2609 = vmatprep.subr.bf16.mxu0 0
        %2610 = vmatpush1.bf16.msra.mxu0 0
        %2611 = vmatprep.subr.bf16.mxu0 0
        %2612 = vmatpush1.bf16.msra.mxu0 0
        %2613 = vmatprep.subr.bf16.mxu0 0
        %2614 = vmatpush1.bf16.msra.mxu0 0
        %2615 = vmatprep.subr.bf16.mxu0 0
        %2616 = vmatpush1.bf16.msra.mxu0 0
        %2617 = vmatprep.subr.bf16.mxu0 0
        %2618 = vmatpush1.bf16.msra.mxu0 0
        %2619 = vmatprep.subr.bf16.mxu0 0
        %2620 = vmatpush1.bf16.msra.mxu0 0
        %2621 = vmatprep.mubr.bf16.mxu0 0
        %2622 = vmatmul.mubr.bf16.gmra.mrb[0].mxu0 %v2563
        %v2623 = vpop.f32.mrb[0].mxu0
        %v2624 = vadd.f32 0.0, %v2623
        %v2625 = vpop.f32.mrb[0].mxu0
        %v2626 = vpop.f32.mrb[0].mxu0
        %v2627 = vadd.f32 0.0, %v2626
        %v2628 = vpop.f32.mrb[0].mxu0
        %2629 = vmatprep.mubr.bf16.mxu0 0
        %2630 = vmatmul.mubr.bf16.gmra.mrb[0].mxu0 %v2566
        %v2631 = vpop.f32.mrb[0].mxu0
        %v2632 = vadd.f32 0.0, %v2631
        %v2633 = vpop.f32.mrb[0].mxu0
        %v2634 = vpop.f32.mrb[0].mxu0
        %v2635 = vadd.f32 0.0, %v2634
        %v2636 = vpop.f32.mrb[0].mxu0
        %2637 = vmatprep.mubr.bf16.mxu0 0
        %2638 = vmatmul.mubr.bf16.gmra.mrb[0].mxu0 %v2569
        %v2639 = vpop.f32.mrb[0].mxu0
        %v2640 = vadd.f32 0.0, %v2639
        %v2641 = vpop.f32.mrb[0].mxu0
        %v2642 = vpop.f32.mrb[0].mxu0
        %v2643 = vadd.f32 0.0, %v2642
        %v2644 = vpop.f32.mrb[0].mxu0
        %2645 = vmatprep.mubr.bf16.mxu0 0
        %2646 = vmatmul.mubr.bf16.gmra.mrb[0].mxu0 %v2572
        %v2647 = vpop.f32.mrb[0].mxu0
        %v2648 = vadd.f32 0.0, %v2647
        %v2649 = vpop.f32.mrb[0].mxu0
        %v2650 = vpop.f32.mrb[0].mxu0
        %v2651 = vadd.f32 0.0, %v2650
        %v2652 = vpop.f32.mrb[0].mxu0
        %2653 = vmatprep.mubr.bf16.mxu0 0
        %2654 = vmatmul.mubr.bf16.gmra.mrb[0].mxu0 %v2575
        %v2655 = vpop.f32.mrb[0].mxu0
        %v2656 = vadd.f32 0.0, %v2655
        %v2657 = vpop.f32.mrb[0].mxu0
        %v2658 = vpop.f32.mrb[0].mxu0
        %v2659 = vadd.f32 0.0, %v2658
        %v2660 = vpop.f32.mrb[0].mxu0
        %2661 = vmatprep.mubr.bf16.mxu0 0
        %2662 = vmatmul.mubr.bf16.gmra.mrb[0].mxu0 %v2578
        %v2663 = vpop.f32.mrb[0].mxu0
        %v2664 = vadd.f32 0.0, %v2663
        %v2665 = vpop.f32.mrb[0].mxu0
        %v2666 = vpop.f32.mrb[0].mxu0
        %v2667 = vadd.f32 0.0, %v2666
        %v2668 = vpop.f32.mrb[0].mxu0
        %2669 = vmatprep.mubr.bf16.mxu0 0
        %2670 = vmatmul.mubr.bf16.gmra.mrb[0].mxu0 %v2581
        %v2671 = vpop.f32.mrb[0].mxu0
        %v2672 = vadd.f32 0.0, %v2671
        %v2673 = vpop.f32.mrb[0].mxu0
        %v2674 = vpop.f32.mrb[0].mxu0
        %v2675 = vadd.f32 0.0, %v2674
        %v2676 = vpop.f32.mrb[0].mxu0
        %2677 = vmatprep.mubr.bf16.mxu0 0
        %2678 = vmatmul.mubr.bf16.gmra.mrb[0].mxu0 %v2584
        %v2679 = vpop.f32.mrb[0].mxu0
        %v2680 = vadd.f32 0.0, %v2679
        %v2681 = vpop.f32.mrb[0].mxu0
        %v2682 = vpop.f32.mrb[0].mxu0
        %v2683 = vadd.f32 0.0, %v2682
        %v2684 = vpop.f32.mrb[0].mxu0
        %2685 = vdwg.mxu0
        %v2686 = vadd.f32 %v2504, %v2624
        %v2687 = vadd.f32 %v2505, %v2627
        %v2688 = vadd.f32 %v2506, %v2632
        %v2689 = vadd.f32 %v2507, %v2635
        %v2690 = vadd.f32 %v2508, %v2640
        %v2691 = vadd.f32 %v2509, %v2643
        %v2692 = vadd.f32 %v2510, %v2648
        %v2693 = vadd.f32 %v2511, %v2651
        %v2694 = vadd.f32 %v2512, %v2656
        %v2695 = vadd.f32 %v2513, %v2659
        %v2696 = vadd.f32 %v2514, %v2664
        %v2697 = vadd.f32 %v2515, %v2667
        %v2698 = vadd.f32 %v2516, %v2672
        %v2699 = vadd.f32 %v2517, %v2675
        %v2700 = vadd.f32 %v2518, %v2680
        %v2701 = vadd.f32 %v2519, %v2683
        %s2702 = scalar_lea.vmem %s6, 1
        %v2703 = vld [vmem:[%s2702] sm:$0x1]
        %v2705 = vlaneseq
        %v2706 = vshrl.u32 %v2705, 7
        %v2707 = vsub.s32 0, %v2706
        %v2708 = vrot.slane %v2703, %v2707
        %v2710 = vmul.f32 %v2686, %v2708
        %v2711 = vmul.f32 %v2687, %v2708
        %v2712 = vmul.f32 %v2688, %v2708
        %v2713 = vmul.f32 %v2689, %v2708
        %v2714 = vmul.f32 %v2690, %v2708
        %v2715 = vmul.f32 %v2691, %v2708
        %v2716 = vmul.f32 %v2692, %v2708
        %v2717 = vmul.f32 %v2693, %v2708
        %v2718 = vmul.f32 %v2694, %v2708
        %v2719 = vmul.f32 %v2695, %v2708
        %v2720 = vmul.f32 %v2696, %v2708
        %v2721 = vmul.f32 %v2697, %v2708
        %v2722 = vmul.f32 %v2698, %v2708
        %v2723 = vmul.f32 %v2699, %v2708
        %v2724 = vmul.f32 %v2700, %v2708
        %v2725 = vmul.f32 %v2701, %v2708
        %s2726 = scalar_lea.vmem %s7, 1
        %v2727 = vld [vmem:[%s2726] sm:$0x1]
        %v2729 = vlaneseq
        %v2730 = vshrl.u32 %v2729, 7
        %v2731 = vsub.s32 0, %v2730
        %v2732 = vrot.slane %v2727, %v2731
        %v2734 = vadd.f32 %v2710, %v2732
        %v2735 = vadd.f32 %v2711, %v2732
        %v2736 = vadd.f32 %v2712, %v2732
        %v2737 = vadd.f32 %v2713, %v2732
        %v2738 = vadd.f32 %v2714, %v2732
        %v2739 = vadd.f32 %v2715, %v2732
        %v2740 = vadd.f32 %v2716, %v2732
        %v2741 = vadd.f32 %v2717, %v2732
        %v2742 = vadd.f32 %v2718, %v2732
        %v2743 = vadd.f32 %v2719, %v2732
        %v2744 = vadd.f32 %v2720, %v2732
        %v2745 = vadd.f32 %v2721, %v2732
        %v2746 = vadd.f32 %v2722, %v2732
        %v2747 = vadd.f32 %v2723, %v2732
        %v2748 = vadd.f32 %v2724, %v2732
        %v2749 = vadd.f32 %v2725, %v2732
        %v2750 = vmax.f32 %v2734, 0.0
        %v2751 = vmax.f32 %v2735, 0.0
        %v2752 = vmax.f32 %v2736, 0.0
        %v2753 = vmax.f32 %v2737, 0.0
        %v2754 = vmax.f32 %v2738, 0.0
        %v2755 = vmax.f32 %v2739, 0.0
        %v2756 = vmax.f32 %v2740, 0.0
        %v2757 = vmax.f32 %v2741, 0.0
        %v2758 = vmax.f32 %v2742, 0.0
        %v2759 = vmax.f32 %v2743, 0.0
        %v2760 = vmax.f32 %v2744, 0.0
        %v2761 = vmax.f32 %v2745, 0.0
        %v2762 = vmax.f32 %v2746, 0.0
        %v2763 = vmax.f32 %v2747, 0.0
        %v2764 = vmax.f32 %v2748, 0.0
        %v2765 = vmax.f32 %v2749, 0.0
        %v2766 = vpack.c.bf16 %v2751, %v2750
        %v2767 = vpack.c.bf16 %v2753, %v2752
        %v2768 = vpack.c.bf16 %v2755, %v2754
        %v2769 = vpack.c.bf16 %v2757, %v2756
        %v2770 = vpack.c.bf16 %v2759, %v2758
        %v2771 = vpack.c.bf16 %v2761, %v2760
        %v2772 = vpack.c.bf16 %v2763, %v2762
        %v2773 = vpack.c.bf16 %v2765, %v2764
        %s2774 = scalar_lea.vmem %s5, 64
        %v2775 = vld [vmem:[%s2774] sm:$0xf]
        %v2776 = vld [vmem:[%s2774 + $0x4] sm:$0xf]
        %v2777 = vld [vmem:[%s2774 + $0x8] sm:$0xf]
        %v2778 = vld [vmem:[%s2774 + $0xc] sm:$0xf]
        %v2779 = vld [vmem:[%s2774 + $0x10] sm:$0xf]
        %v2780 = vld [vmem:[%s2774 + $0x14] sm:$0xf]
        %v2781 = vld [vmem:[%s2774 + $0x18] sm:$0xf]
        %v2782 = vld [vmem:[%s2774 + $0x1c] sm:$0xf]
        %v2783 = vld [vmem:[%s2774 + $0x20] sm:$0xf]
        %v2784 = vld [vmem:[%s2774 + $0x24] sm:$0xf]
        %v2785 = vld [vmem:[%s2774 + $0x28] sm:$0xf]
        %v2786 = vld [vmem:[%s2774 + $0x2c] sm:$0xf]
        %v2787 = vld [vmem:[%s2774 + $0x30] sm:$0xf]
        %v2788 = vld [vmem:[%s2774 + $0x34] sm:$0xf]
        %v2789 = vld [vmem:[%s2774 + $0x38] sm:$0xf]
        %v2790 = vld [vmem:[%s2774 + $0x3c] sm:$0xf]
        %v2807 = vunpack.c.l.b16 %v2775
        %v2808 = vunpack.c.l.b16 %v2776
        %v2809 = vunpack.c.l.b16 %v2777
        %v2810 = vunpack.c.l.b16 %v2778
        %v2811 = vunpack.c.l.b16 %v2779
        %v2812 = vunpack.c.l.b16 %v2780
        %v2813 = vunpack.c.l.b16 %v2781
        %v2814 = vunpack.c.l.b16 %v2782
        %v2815 = vunpack.c.l.b16 %v2783
        %v2816 = vunpack.c.l.b16 %v2784
        %v2817 = vunpack.c.l.b16 %v2785
        %v2818 = vunpack.c.l.b16 %v2786
        %v2819 = vunpack.c.l.b16 %v2787
        %v2820 = vunpack.c.l.b16 %v2788
        %v2821 = vunpack.c.l.b16 %v2789
        %v2822 = vunpack.c.l.b16 %v2790
        %v2823 = vpack.c.b16 %v2808, %v2807
        %v2824 = vpack.c.b16 %v2810, %v2809
        %v2825 = vpack.c.b16 %v2812, %v2811
        %v2826 = vpack.c.b16 %v2814, %v2813
        %v2827 = vpack.c.b16 %v2816, %v2815
        %v2828 = vpack.c.b16 %v2818, %v2817
        %v2829 = vpack.c.b16 %v2820, %v2819
        %v2830 = vpack.c.b16 %v2822, %v2821
        %2839 = vmatprep.subr.bf16.mxu0 0
        %2840 = vmatpush1.bf16.msra.mxu0 %v2823
        %2841 = vmatprep.subr.bf16.mxu0 0
        %2842 = vmatpush1.bf16.msra.mxu0 %v2824
        %2843 = vmatprep.subr.bf16.mxu0 0
        %2844 = vmatpush1.bf16.msra.mxu0 %v2825
        %2845 = vmatprep.subr.bf16.mxu0 0
        %2846 = vmatpush1.bf16.msra.mxu0 %v2826
        %2847 = vmatprep.subr.bf16.mxu0 0
        %2848 = vmatpush1.bf16.msra.mxu0 %v2827
        %2849 = vmatprep.subr.bf16.mxu0 0
        %2850 = vmatpush1.bf16.msra.mxu0 %v2828
        %2851 = vmatprep.subr.bf16.mxu0 0
        %2852 = vmatpush1.bf16.msra.mxu0 %v2829
        %2853 = vmatprep.subr.bf16.mxu0 0
        %2854 = vmatpush1.bf16.msra.mxu0 %v2830
        %2855 = vmatprep.subr.bf16.mxu0 0
        %2856 = vmatpush1.bf16.msra.mxu0 0
        %2857 = vmatprep.subr.bf16.mxu0 0
        %2858 = vmatpush1.bf16.msra.mxu0 0
        %2859 = vmatprep.subr.bf16.mxu0 0
        %2860 = vmatpush1.bf16.msra.mxu0 0
        %2861 = vmatprep.subr.bf16.mxu0 0
        %2862 = vmatpush1.bf16.msra.mxu0 0
        %2863 = vmatprep.subr.bf16.mxu0 0
        %2864 = vmatpush1.bf16.msra.mxu0 0
        %2865 = vmatprep.subr.bf16.mxu0 0
        %2866 = vmatpush1.bf16.msra.mxu0 0
        %2867 = vmatprep.subr.bf16.mxu0 0
        %2868 = vmatpush1.bf16.msra.mxu0 0
        %2869 = vmatprep.subr.bf16.mxu0 0
        %2870 = vmatpush1.bf16.msra.mxu0 0
        %2871 = vmatprep.mubr.bf16.mxu0 0
        %2872 = vmatmul.mubr.bf16.gmra.mrb[0].mxu0 %v2766
        %v2873 = vpop.f32.mrb[0].mxu0
        %v2874 = vadd.f32 0.0, %v2873
        %v2875 = vpop.f32.mrb[0].mxu0
        %v2876 = vpop.f32.mrb[0].mxu0
        %v2877 = vadd.f32 0.0, %v2876
        %v2878 = vpop.f32.mrb[0].mxu0
        %2879 = vmatprep.mubr.bf16.mxu0 0
        %2880 = vmatmul.mubr.bf16.gmra.mrb[0].mxu0 %v2767
        %v2881 = vpop.f32.mrb[0].mxu0
        %v2882 = vadd.f32 0.0, %v2881
        %v2883 = vpop.f32.mrb[0].mxu0
        %v2884 = vpop.f32.mrb[0].mxu0
        %v2885 = vadd.f32 0.0, %v2884
        %v2886 = vpop.f32.mrb[0].mxu0
        %2887 = vmatprep.mubr.bf16.mxu0 0
        %2888 = vmatmul.mubr.bf16.gmra.mrb[0].mxu0 %v2768
        %v2889 = vpop.f32.mrb[0].mxu0
        %v2890 = vadd.f32 0.0, %v2889
        %v2891 = vpop.f32.mrb[0].mxu0
        %v2892 = vpop.f32.mrb[0].mxu0
        %v2893 = vadd.f32 0.0, %v2892
        %v2894 = vpop.f32.mrb[0].mxu0
        %2895 = vmatprep.mubr.bf16.mxu0 0
        %2896 = vmatmul.mubr.bf16.gmra.mrb[0].mxu0 %v2769
        %v2897 = vpop.f32.mrb[0].mxu0
        %v2898 = vadd.f32 0.0, %v2897
        %v2899 = vpop.f32.mrb[0].mxu0
        %v2900 = vpop.f32.mrb[0].mxu0
        %v2901 = vadd.f32 0.0, %v2900
        %v2902 = vpop.f32.mrb[0].mxu0
        %2903 = vmatprep.mubr.bf16.mxu0 0
        %2904 = vmatmul.mubr.bf16.gmra.mrb[0].mxu0 %v2770
        %v2905 = vpop.f32.mrb[0].mxu0
        %v2906 = vadd.f32 0.0, %v2905
        %v2907 = vpop.f32.mrb[0].mxu0
        %v2908 = vpop.f32.mrb[0].mxu0
        %v2909 = vadd.f32 0.0, %v2908
        %v2910 = vpop.f32.mrb[0].mxu0
        %2911 = vmatprep.mubr.bf16.mxu0 0
        %2912 = vmatmul.mubr.bf16.gmra.mrb[0].mxu0 %v2771
        %v2913 = vpop.f32.mrb[0].mxu0
        %v2914 = vadd.f32 0.0, %v2913
        %v2915 = vpop.f32.mrb[0].mxu0
        %v2916 = vpop.f32.mrb[0].mxu0
        %v2917 = vadd.f32 0.0, %v2916
        %v2918 = vpop.f32.mrb[0].mxu0
        %2919 = vmatprep.mubr.bf16.mxu0 0
        %2920 = vmatmul.mubr.bf16.gmra.mrb[0].mxu0 %v2772
        %v2921 = vpop.f32.mrb[0].mxu0
        %v2922 = vadd.f32 0.0, %v2921
        %v2923 = vpop.f32.mrb[0].mxu0
        %v2924 = vpop.f32.mrb[0].mxu0
        %v2925 = vadd.f32 0.0, %v2924
        %v2926 = vpop.f32.mrb[0].mxu0
        %2927 = vmatprep.mubr.bf16.mxu0 0
        %2928 = vmatmul.mubr.bf16.gmra.mrb[0].mxu0 %v2773
        %v2929 = vpop.f32.mrb[0].mxu0
        %v2930 = vadd.f32 0.0, %v2929
        %v2931 = vpop.f32.mrb[0].mxu0
        %v2932 = vpop.f32.mrb[0].mxu0
        %v2933 = vadd.f32 0.0, %v2932
        %v2934 = vpop.f32.mrb[0].mxu0
        %2935 = vdwg.mxu0
        %v2952 = vunpack.c.l.b16 %v694
        %v2953 = vunpack.c.l.b16 %v695
        %v2954 = vunpack.c.l.b16 %v696
        %v2955 = vunpack.c.l.b16 %v697
        %v2956 = vunpack.c.l.b16 %v698
        %v2957 = vunpack.c.l.b16 %v699
        %v2958 = vunpack.c.l.b16 %v700
        %v2959 = vunpack.c.l.b16 %v701
        %v2960 = vunpack.c.l.b16 %v702
        %v2961 = vunpack.c.l.b16 %v703
        %v2962 = vunpack.c.l.b16 %v704
        %v2963 = vunpack.c.l.b16 %v705
        %v2964 = vunpack.c.l.b16 %v706
        %v2965 = vunpack.c.l.b16 %v707
        %v2966 = vunpack.c.l.b16 %v708
        %v2967 = vunpack.c.l.b16 %v709
        %v2968 = vpack.c.b16 %v2953, %v2952
        %v2969 = vpack.c.b16 %v2955, %v2954
        %v2970 = vpack.c.b16 %v2957, %v2956
        %v2971 = vpack.c.b16 %v2959, %v2958
        %v2972 = vpack.c.b16 %v2961, %v2960
        %v2973 = vpack.c.b16 %v2963, %v2962
        %v2974 = vpack.c.b16 %v2965, %v2964
        %v2975 = vpack.c.b16 %v2967, %v2966
        %2984 = vmatprep.subr.bf16.mxu0 0
        %2985 = vmatpush1.bf16.msra.mxu0 %v2968
        %2986 = vmatprep.subr.bf16.mxu0 0
        %2987 = vmatpush1.bf16.msra.mxu0 %v2969
        %2988 = vmatprep.subr.bf16.mxu0 0
        %2989 = vmatpush1.bf16.msra.mxu0 %v2970
        %2990 = vmatprep.subr.bf16.mxu0 0
        %2991 = vmatpush1.bf16.msra.mxu0 %v2971
        %2992 = vmatprep.subr.bf16.mxu0 0
        %2993 = vmatpush1.bf16.msra.mxu0 %v2972
        %2994 = vmatprep.subr.bf16.mxu0 0
        %2995 = vmatpush1.bf16.msra.mxu0 %v2973
        %2996 = vmatprep.subr.bf16.mxu0 0
        %2997 = vmatpush1.bf16.msra.mxu0 %v2974
        %2998 = vmatprep.subr.bf16.mxu0 0
        %2999 = vmatpush1.bf16.msra.mxu0 %v2975
        %3000 = vmatprep.subr.bf16.mxu0 0
        %3001 = vmatpush1.bf16.msra.mxu0 0
        %3002 = vmatprep.subr.bf16.mxu0 0
        %3003 = vmatpush1.bf16.msra.mxu0 0
        %3004 = vmatprep.subr.bf16.mxu0 0
        %3005 = vmatpush1.bf16.msra.mxu0 0
        %3006 = vmatprep.subr.bf16.mxu0 0
        %3007 = vmatpush1.bf16.msra.mxu0 0
        %3008 = vmatprep.subr.bf16.mxu0 0
        %3009 = vmatpush1.bf16.msra.mxu0 0
        %3010 = vmatprep.subr.bf16.mxu0 0
        %3011 = vmatpush1.bf16.msra.mxu0 0
        %3012 = vmatprep.subr.bf16.mxu0 0
        %3013 = vmatpush1.bf16.msra.mxu0 0
        %3014 = vmatprep.subr.bf16.mxu0 0
        %3015 = vmatpush1.bf16.msra.mxu0 0
        %3016 = vmatprep.mubr.bf16.mxu0 0
        %3017 = vmatmul.mubr.bf16.gmra.mrb[0].mxu0 %v686
        %v3018 = vpop.f32.mrb[0].mxu0
        %v3019 = vadd.f32 %v2874, %v3018
        %v3020 = vpop.f32.mrb[0].mxu0
        %v3021 = vpop.f32.mrb[0].mxu0
        %v3022 = vadd.f32 %v2877, %v3021
        %v3023 = vpop.f32.mrb[0].mxu0
        %3024 = vmatprep.mubr.bf16.mxu0 0
        %3025 = vmatmul.mubr.bf16.gmra.mrb[0].mxu0 %v687
        %v3026 = vpop.f32.mrb[0].mxu0
        %v3027 = vadd.f32 %v2882, %v3026
        %v3028 = vpop.f32.mrb[0].mxu0
        %v3029 = vpop.f32.mrb[0].mxu0
        %v3030 = vadd.f32 %v2885, %v3029
        %v3031 = vpop.f32.mrb[0].mxu0
        %3032 = vmatprep.mubr.bf16.mxu0 0
        %3033 = vmatmul.mubr.bf16.gmra.mrb[0].mxu0 %v688
        %v3034 = vpop.f32.mrb[0].mxu0
        %v3035 = vadd.f32 %v2890, %v3034
        %v3036 = vpop.f32.mrb[0].mxu0
        %v3037 = vpop.f32.mrb[0].mxu0
        %v3038 = vadd.f32 %v2893, %v3037
        %v3039 = vpop.f32.mrb[0].mxu0
        %3040 = vmatprep.mubr.bf16.mxu0 0
        %3041 = vmatmul.mubr.bf16.gmra.mrb[0].mxu0 %v689
        %v3042 = vpop.f32.mrb[0].mxu0
        %v3043 = vadd.f32 %v2898, %v3042
        %v3044 = vpop.f32.mrb[0].mxu0
        %v3045 = vpop.f32.mrb[0].mxu0
        %v3046 = vadd.f32 %v2901, %v3045
        %v3047 = vpop.f32.mrb[0].mxu0
        %3048 = vmatprep.mubr.bf16.mxu0 0
        %3049 = vmatmul.mubr.bf16.gmra.mrb[0].mxu0 %v690
        %v3050 = vpop.f32.mrb[0].mxu0
        %v3051 = vadd.f32 %v2906, %v3050
        %v3052 = vpop.f32.mrb[0].mxu0
        %v3053 = vpop.f32.mrb[0].mxu0
        %v3054 = vadd.f32 %v2909, %v3053
        %v3055 = vpop.f32.mrb[0].mxu0
        %3056 = vmatprep.mubr.bf16.mxu0 0
        %3057 = vmatmul.mubr.bf16.gmra.mrb[0].mxu0 %v691
        %v3058 = vpop.f32.mrb[0].mxu0
        %v3059 = vadd.f32 %v2914, %v3058
        %v3060 = vpop.f32.mrb[0].mxu0
        %v3061 = vpop.f32.mrb[0].mxu0
        %v3062 = vadd.f32 %v2917, %v3061
        %v3063 = vpop.f32.mrb[0].mxu0
        %3064 = vmatprep.mubr.bf16.mxu0 0
        %3065 = vmatmul.mubr.bf16.gmra.mrb[0].mxu0 %v692
        %v3066 = vpop.f32.mrb[0].mxu0
        %v3067 = vadd.f32 %v2922, %v3066
        %v3068 = vpop.f32.mrb[0].mxu0
        %v3069 = vpop.f32.mrb[0].mxu0
        %v3070 = vadd.f32 %v2925, %v3069
        %v3071 = vpop.f32.mrb[0].mxu0
        %3072 = vmatprep.mubr.bf16.mxu0 0
        %3073 = vmatmul.mubr.bf16.gmra.mrb[0].mxu0 %v693
        %v3074 = vpop.f32.mrb[0].mxu0
        %v3075 = vadd.f32 %v2930, %v3074
        %v3076 = vpop.f32.mrb[0].mxu0
        %v3077 = vpop.f32.mrb[0].mxu0
        %v3078 = vadd.f32 %v2933, %v3077
        %v3079 = vpop.f32.mrb[0].mxu0
        %3080 = vdwg.mxu0
        %s3081 = sadd.s32 %s361, 6
        %s3082 = smul.u32 %s3081, 7
        %s3083 = smul.addr %s3082, 4
        %s3084 = scalar_lea.vmem %s355, %s3083
        %v3085 = vld [vmem:[%s3084] sm:$0x8]
        %v3086 = vld [vmem:[%s3084 + $0x4] sm:$0xf]
        %v3087 = vld [vmem:[%s3084 + $0x8] sm:$0x7]
        %v3088 = vld [vmem:[%s3084 + $0x1c] sm:$0x8]
        %v3089 = vld [vmem:[%s3084 + $0x20] sm:$0xf]
        %v3090 = vld [vmem:[%s3084 + $0x24] sm:$0x7]
        %v3091 = vld [vmem:[%s3084 + $0x38] sm:$0x8]
        %v3092 = vld [vmem:[%s3084 + $0x3c] sm:$0xf]
        %v3093 = vld [vmem:[%s3084 + $0x40] sm:$0x7]
        %v3094 = vld [vmem:[%s3084 + $0x54] sm:$0x8]
        %v3095 = vld [vmem:[%s3084 + $0x58] sm:$0xf]
        %v3096 = vld [vmem:[%s3084 + $0x5c] sm:$0x7]
        %v3097 = vld [vmem:[%s3084 + $0x70] sm:$0x8]
        %v3098 = vld [vmem:[%s3084 + $0x74] sm:$0xf]
        %v3099 = vld [vmem:[%s3084 + $0x78] sm:$0x7]
        %v3100 = vld [vmem:[%s3084 + $0x8c] sm:$0x8]
        %v3101 = vld [vmem:[%s3084 + $0x90] sm:$0xf]
        %v3102 = vld [vmem:[%s3084 + $0x94] sm:$0x7]
        %v3103 = vld [vmem:[%s3084 + $0xa8] sm:$0x8]
        %v3104 = vld [vmem:[%s3084 + $0xac] sm:$0xf]
        %v3105 = vld [vmem:[%s3084 + $0xb0] sm:$0x7]
        %v3106 = vld [vmem:[%s3084 + $0xc4] sm:$0x8]
        %v3107 = vld [vmem:[%s3084 + $0xc8] sm:$0xf]
        %v3108 = vld [vmem:[%s3084 + $0xcc] sm:$0x7]
        %vm3133 = vcmask 1040384
        %vm3134 = vcmask 1044484
        %vm3135 = vmor %vm3133, %vm3134
        %v3136 = vrot.slane %v3085, 7
        %v3137 = vrot.slane %v3136, 4
        %v3138 = vrot.slane %v3086, 7
        %v3139 = vsel %vm3135, %v3137, %v3138
        %v3140 = vrot.slane %v3138, 4
        %v3141 = vrot.slane %v3087, 7
        %v3142 = vsel %vm3135, %v3140, %v3141
        %v3143 = vrot.slane %v3088, 7
        %v3144 = vrot.slane %v3143, 4
        %v3145 = vrot.slane %v3089, 7
        %v3146 = vsel %vm3135, %v3144, %v3145
        %v3147 = vrot.slane %v3145, 4
        %v3148 = vrot.slane %v3090, 7
        %v3149 = vsel %vm3135, %v3147, %v3148
        %v3150 = vrot.slane %v3091, 7
        %v3151 = vrot.slane %v3150, 4
        %v3152 = vrot.slane %v3092, 7
        %v3153 = vsel %vm3135, %v3151, %v3152
        %v3154 = vrot.slane %v3152, 4
        %v3155 = vrot.slane %v3093, 7
        %v3156 = vsel %vm3135, %v3154, %v3155
        %v3157 = vrot.slane %v3094, 7
        %v3158 = vrot.slane %v3157, 4
        %v3159 = vrot.slane %v3095, 7
        %v3160 = vsel %vm3135, %v3158, %v3159
        %v3161 = vrot.slane %v3159, 4
        %v3162 = vrot.slane %v3096, 7
        %v3163 = vsel %vm3135, %v3161, %v3162
        %v3164 = vrot.slane %v3097, 7
        %v3165 = vrot.slane %v3164, 4
        %v3166 = vrot.slane %v3098, 7
        %v3167 = vsel %vm3135, %v3165, %v3166
        %v3168 = vrot.slane %v3166, 4
        %v3169 = vrot.slane %v3099, 7
        %v3170 = vsel %vm3135, %v3168, %v3169
        %v3171 = vrot.slane %v3100, 7
        %v3172 = vrot.slane %v3171, 4
        %v3173 = vrot.slane %v3101, 7
        %v3174 = vsel %vm3135, %v3172, %v3173
        %v3175 = vrot.slane %v3173, 4
        %v3176 = vrot.slane %v3102, 7
        %v3177 = vsel %vm3135, %v3175, %v3176
        %v3178 = vrot.slane %v3103, 7
        %v3179 = vrot.slane %v3178, 4
        %v3180 = vrot.slane %v3104, 7
        %v3181 = vsel %vm3135, %v3179, %v3180
        %v3182 = vrot.slane %v3180, 4
        %v3183 = vrot.slane %v3105, 7
        %v3184 = vsel %vm3135, %v3182, %v3183
        %v3185 = vrot.slane %v3106, 7
        %v3186 = vrot.slane %v3185, 4
        %v3187 = vrot.slane %v3107, 7
        %v3188 = vsel %vm3135, %v3186, %v3187
        %v3189 = vrot.slane %v3187, 4
        %v3190 = vrot.slane %v3108, 7
        %v3191 = vsel %vm3135, %v3189, %v3190
        %v3192 = vld [vmem:[%s3] sm:$0x3]
        %v3193 = vld [vmem:[%s3084 + $0x8] sm:$0xe]
        %v3194 = vld [vmem:[%s3084 + $0xc] sm:$0xf]
        %v3195 = vld [vmem:[%s3084 + $0x10] sm:$0x1]
        %v3196 = vld [vmem:[%s3084 + $0x24] sm:$0xe]
        %v3197 = vld [vmem:[%s3084 + $0x28] sm:$0xf]
        %v3198 = vld [vmem:[%s3084 + $0x2c] sm:$0x1]
        %v3199 = vld [vmem:[%s3084 + $0x40] sm:$0xe]
        %v3200 = vld [vmem:[%s3084 + $0x44] sm:$0xf]
        %v3201 = vld [vmem:[%s3084 + $0x48] sm:$0x1]
        %v3202 = vld [vmem:[%s3084 + $0x5c] sm:$0xe]
        %v3203 = vld [vmem:[%s3084 + $0x60] sm:$0xf]
        %v3204 = vld [vmem:[%s3084 + $0x64] sm:$0x1]
        %v3205 = vld [vmem:[%s3084 + $0x78] sm:$0xe]
        %v3206 = vld [vmem:[%s3084 + $0x7c] sm:$0xf]
        %v3207 = vld [vmem:[%s3084 + $0x80] sm:$0x1]
        %v3208 = vld [vmem:[%s3084 + $0x94] sm:$0xe]
        %v3209 = vld [vmem:[%s3084 + $0x98] sm:$0xf]
        %v3210 = vld [vmem:[%s3084 + $0x9c] sm:$0x1]
        %v3211 = vld [vmem:[%s3084 + $0xb0] sm:$0xe]
        %v3212 = vld [vmem:[%s3084 + $0xb4] sm:$0xf]
        %v3213 = vld [vmem:[%s3084 + $0xb8] sm:$0x1]
        %v3214 = vld [vmem:[%s3084 + $0xcc] sm:$0xe]
        %v3215 = vld [vmem:[%s3084 + $0xd0] sm:$0xf]
        %v3216 = vld [vmem:[%s3084 + $0xd4] sm:$0x1]
        %v3241 = vrot.slane %v3193, 5
        %v3242 = vrot.slane %v3241, 4
        %v3243 = vrot.slane %v3194, 5
        %v3244 = vsel %vm416, %v3242, %v3243
        %v3245 = vrot.slane %v3243, 4
        %v3246 = vrot.slane %v3195, 5
        %v3247 = vsel %vm416, %v3245, %v3246
        %v3248 = vrot.slane %v3196, 5
        %v3249 = vrot.slane %v3248, 4
        %v3250 = vrot.slane %v3197, 5
        %v3251 = vsel %vm416, %v3249, %v3250
        %v3252 = vrot.slane %v3250, 4
        %v3253 = vrot.slane %v3198, 5
        %v3254 = vsel %vm416, %v3252, %v3253
        %v3255 = vrot.slane %v3199, 5
        %v3256 = vrot.slane %v3255, 4
        %v3257 = vrot.slane %v3200, 5
        %v3258 = vsel %vm416, %v3256, %v3257
        %v3259 = vrot.slane %v3257, 4
        %v3260 = vrot.slane %v3201, 5
        %v3261 = vsel %vm416, %v3259, %v3260
        %v3262 = vrot.slane %v3202, 5
        %v3263 = vrot.slane %v3262, 4
        %v3264 = vrot.slane %v3203, 5
        %v3265 = vsel %vm416, %v3263, %v3264
        %v3266 = vrot.slane %v3264, 4
        %v3267 = vrot.slane %v3204, 5
        %v3268 = vsel %vm416, %v3266, %v3267
        %v3269 = vrot.slane %v3205, 5
        %v3270 = vrot.slane %v3269, 4
        %v3271 = vrot.slane %v3206, 5
        %v3272 = vsel %vm416, %v3270, %v3271
        %v3273 = vrot.slane %v3271, 4
        %v3274 = vrot.slane %v3207, 5
        %v3275 = vsel %vm416, %v3273, %v3274
        %v3276 = vrot.slane %v3208, 5
        %v3277 = vrot.slane %v3276, 4
        %v3278 = vrot.slane %v3209, 5
        %v3279 = vsel %vm416, %v3277, %v3278
        %v3280 = vrot.slane %v3278, 4
        %v3281 = vrot.slane %v3210, 5
        %v3282 = vsel %vm416, %v3280, %v3281
        %v3283 = vrot.slane %v3211, 5
        %v3284 = vrot.slane %v3283, 4
        %v3285 = vrot.slane %v3212, 5
        %v3286 = vsel %vm416, %v3284, %v3285
        %v3287 = vrot.slane %v3285, 4
        %v3288 = vrot.slane %v3213, 5
        %v3289 = vsel %vm416, %v3287, %v3288
        %v3290 = vrot.slane %v3214, 5
        %v3291 = vrot.slane %v3290, 4
        %v3292 = vrot.slane %v3215, 5
        %v3293 = vsel %vm416, %v3291, %v3292
        %v3294 = vrot.slane %v3292, 4
        %v3295 = vrot.slane %v3216, 5
        %v3296 = vsel %vm416, %v3294, %v3295
        %s3297 = scalar_lea.vmem %s3, 2
        %v3298 = vld [vmem:[%s3297] sm:$0x3]
        %v3299 = vunpack.c.l.b16 %v3244
        %v3300 = vunpack.c.l.b16 %v3247
        %v3301 = vunpack.c.l.b16 %v3251
        %v3302 = vunpack.c.l.b16 %v3254
        %v3303 = vunpack.c.l.b16 %v3258
        %v3304 = vunpack.c.l.b16 %v3261
        %v3305 = vunpack.c.l.b16 %v3265
        %v3306 = vunpack.c.l.b16 %v3268
        %v3307 = vunpack.c.l.b16 %v3272
        %v3308 = vunpack.c.l.b16 %v3275
        %v3309 = vunpack.c.l.b16 %v3279
        %v3310 = vunpack.c.l.b16 %v3282
        %v3311 = vunpack.c.l.b16 %v3286
        %v3312 = vunpack.c.l.b16 %v3289
        %v3313 = vunpack.c.l.b16 %v3293
        %v3314 = vunpack.c.l.b16 %v3296
        %v3315 = vpack.c.b16 %v3300, %v3299
        %v3316 = vpack.c.b16 %v3302, %v3301
        %v3317 = vpack.c.b16 %v3304, %v3303
        %v3318 = vpack.c.b16 %v3306, %v3305
        %v3319 = vpack.c.b16 %v3308, %v3307
        %v3320 = vpack.c.b16 %v3310, %v3309
        %v3321 = vpack.c.b16 %v3312, %v3311
        %v3322 = vpack.c.b16 %v3314, %v3313
        %v3324 = vsel %vm498, %v3315, 0
        %v3327 = vsel %vm498, %v3316, 0
        %v3330 = vsel %vm498, %v3317, 0
        %v3333 = vsel %vm498, %v3318, 0
        %v3336 = vsel %vm498, %v3319, 0
        %v3339 = vsel %vm498, %v3320, 0
        %v3342 = vsel %vm498, %v3321, 0
        %v3345 = vsel %vm498, %v3322, 0
        %v3348 = vsel %vm523, %v3298, 0
        %3350 = vmatprep.subr.bf16.mxu0 0
        %3351 = vmatpush1.bf16.msra.mxu0 %v3348
        %3352 = vmatprep.subr.bf16.mxu0 0
        %3353 = vmatpush1.bf16.msra.mxu0 0
        %3354 = vmatprep.subr.bf16.mxu0 0
        %3355 = vmatpush1.bf16.msra.mxu0 0
        %3356 = vmatprep.subr.bf16.mxu0 0
        %3357 = vmatpush1.bf16.msra.mxu0 0
        %3358 = vmatprep.subr.bf16.mxu0 0
        %3359 = vmatpush1.bf16.msra.mxu0 0
        %3360 = vmatprep.subr.bf16.mxu0 0
        %3361 = vmatpush1.bf16.msra.mxu0 0
        %3362 = vmatprep.subr.bf16.mxu0 0
        %3363 = vmatpush1.bf16.msra.mxu0 0
        %3364 = vmatprep.subr.bf16.mxu0 0
        %3365 = vmatpush1.bf16.msra.mxu0 0
        %3366 = vmatprep.subr.bf16.mxu0 0
        %3367 = vmatpush1.bf16.msra.mxu0 0
        %3368 = vmatprep.subr.bf16.mxu0 0
        %3369 = vmatpush1.bf16.msra.mxu0 0
        %3370 = vmatprep.subr.bf16.mxu0 0
        %3371 = vmatpush1.bf16.msra.mxu0 0
        %3372 = vmatprep.subr.bf16.mxu0 0
        %3373 = vmatpush1.bf16.msra.mxu0 0
        %3374 = vmatprep.subr.bf16.mxu0 0
        %3375 = vmatpush1.bf16.msra.mxu0 0
        %3376 = vmatprep.subr.bf16.mxu0 0
        %3377 = vmatpush1.bf16.msra.mxu0 0
        %3378 = vmatprep.subr.bf16.mxu0 0
        %3379 = vmatpush1.bf16.msra.mxu0 0
        %3380 = vmatprep.subr.bf16.mxu0 0
        %3381 = vmatpush1.bf16.msra.mxu0 0
        %3382 = vmatprep.mubr.bf16.mxu0 0
        %3383 = vmatmul.mubr.bf16.gmra.mrb[0].mxu0 %v3324
        %v3384 = vpop.f32.mrb[0].mxu0
        %v3385 = vadd.f32 0.0, %v3384
        %v3386 = vpop.f32.mrb[0].mxu0
        %v3387 = vpop.f32.mrb[0].mxu0
        %v3388 = vadd.f32 0.0, %v3387
        %v3389 = vpop.f32.mrb[0].mxu0
        %3390 = vmatprep.mubr.bf16.mxu0 0
        %3391 = vmatmul.mubr.bf16.gmra.mrb[0].mxu0 %v3327
        %v3392 = vpop.f32.mrb[0].mxu0
        %v3393 = vadd.f32 0.0, %v3392
        %v3394 = vpop.f32.mrb[0].mxu0
        %v3395 = vpop.f32.mrb[0].mxu0
        %v3396 = vadd.f32 0.0, %v3395
        %v3397 = vpop.f32.mrb[0].mxu0
        %3398 = vmatprep.mubr.bf16.mxu0 0
        %3399 = vmatmul.mubr.bf16.gmra.mrb[0].mxu0 %v3330
        %v3400 = vpop.f32.mrb[0].mxu0
        %v3401 = vadd.f32 0.0, %v3400
        %v3402 = vpop.f32.mrb[0].mxu0
        %v3403 = vpop.f32.mrb[0].mxu0
        %v3404 = vadd.f32 0.0, %v3403
        %v3405 = vpop.f32.mrb[0].mxu0
        %3406 = vmatprep.mubr.bf16.mxu0 0
        %3407 = vmatmul.mubr.bf16.gmra.mrb[0].mxu0 %v3333
        %v3408 = vpop.f32.mrb[0].mxu0
        %v3409 = vadd.f32 0.0, %v3408
        %v3410 = vpop.f32.mrb[0].mxu0
        %v3411 = vpop.f32.mrb[0].mxu0
        %v3412 = vadd.f32 0.0, %v3411
        %v3413 = vpop.f32.mrb[0].mxu0
        %3414 = vmatprep.mubr.bf16.mxu0 0
        %3415 = vmatmul.mubr.bf16.gmra.mrb[0].mxu0 %v3336
        %v3416 = vpop.f32.mrb[0].mxu0
        %v3417 = vadd.f32 0.0, %v3416
        %v3418 = vpop.f32.mrb[0].mxu0
        %v3419 = vpop.f32.mrb[0].mxu0
        %v3420 = vadd.f32 0.0, %v3419
        %v3421 = vpop.f32.mrb[0].mxu0
        %3422 = vmatprep.mubr.bf16.mxu0 0
        %3423 = vmatmul.mubr.bf16.gmra.mrb[0].mxu0 %v3339
        %v3424 = vpop.f32.mrb[0].mxu0
        %v3425 = vadd.f32 0.0, %v3424
        %v3426 = vpop.f32.mrb[0].mxu0
        %v3427 = vpop.f32.mrb[0].mxu0
        %v3428 = vadd.f32 0.0, %v3427
        %v3429 = vpop.f32.mrb[0].mxu0
        %3430 = vmatprep.mubr.bf16.mxu0 0
        %3431 = vmatmul.mubr.bf16.gmra.mrb[0].mxu0 %v3342
        %v3432 = vpop.f32.mrb[0].mxu0
        %v3433 = vadd.f32 0.0, %v3432
        %v3434 = vpop.f32.mrb[0].mxu0
        %v3435 = vpop.f32.mrb[0].mxu0
        %v3436 = vadd.f32 0.0, %v3435
        %v3437 = vpop.f32.mrb[0].mxu0
        %3438 = vmatprep.mubr.bf16.mxu0 0
        %3439 = vmatmul.mubr.bf16.gmra.mrb[0].mxu0 %v3345
        %v3440 = vpop.f32.mrb[0].mxu0
        %v3441 = vadd.f32 0.0, %v3440
        %v3442 = vpop.f32.mrb[0].mxu0
        %v3443 = vpop.f32.mrb[0].mxu0
        %v3444 = vadd.f32 0.0, %v3443
        %v3445 = vpop.f32.mrb[0].mxu0
        %3446 = vdwg.mxu0
        %v3447 = vunpack.c.l.b16 %v3139
        %v3448 = vunpack.c.l.b16 %v3142
        %v3449 = vunpack.c.l.b16 %v3146
        %v3450 = vunpack.c.l.b16 %v3149
        %v3451 = vunpack.c.l.b16 %v3153
        %v3452 = vunpack.c.l.b16 %v3156
        %v3453 = vunpack.c.l.b16 %v3160
        %v3454 = vunpack.c.l.b16 %v3163
        %v3455 = vunpack.c.l.b16 %v3167
        %v3456 = vunpack.c.l.b16 %v3170
        %v3457 = vunpack.c.l.b16 %v3174
        %v3458 = vunpack.c.l.b16 %v3177
        %v3459 = vunpack.c.l.b16 %v3181
        %v3460 = vunpack.c.l.b16 %v3184
        %v3461 = vunpack.c.l.b16 %v3188
        %v3462 = vunpack.c.l.b16 %v3191
        %v3463 = vpack.c.b16 %v3448, %v3447
        %v3464 = vpack.c.b16 %v3450, %v3449
        %v3465 = vpack.c.b16 %v3452, %v3451
        %v3466 = vpack.c.b16 %v3454, %v3453
        %v3467 = vpack.c.b16 %v3456, %v3455
        %v3468 = vpack.c.b16 %v3458, %v3457
        %v3469 = vpack.c.b16 %v3460, %v3459
        %v3470 = vpack.c.b16 %v3462, %v3461
        %v3472 = vsel %vm498, %v3463, 0
        %v3475 = vsel %vm498, %v3464, 0
        %v3478 = vsel %vm498, %v3465, 0
        %v3481 = vsel %vm498, %v3466, 0
        %v3484 = vsel %vm498, %v3467, 0
        %v3487 = vsel %vm498, %v3468, 0
        %v3490 = vsel %vm498, %v3469, 0
        %v3493 = vsel %vm498, %v3470, 0
        %v3496 = vsel %vm523, %v3192, 0
        %3498 = vmatprep.subr.bf16.mxu0 0
        %3499 = vmatpush1.bf16.msra.mxu0 %v3496
        %3500 = vmatprep.subr.bf16.mxu0 0
        %3501 = vmatpush1.bf16.msra.mxu0 0
        %3502 = vmatprep.subr.bf16.mxu0 0
        %3503 = vmatpush1.bf16.msra.mxu0 0
        %3504 = vmatprep.subr.bf16.mxu0 0
        %3505 = vmatpush1.bf16.msra.mxu0 0
        %3506 = vmatprep.subr.bf16.mxu0 0
        %3507 = vmatpush1.bf16.msra.mxu0 0
        %3508 = vmatprep.subr.bf16.mxu0 0
        %3509 = vmatpush1.bf16.msra.mxu0 0
        %3510 = vmatprep.subr.bf16.mxu0 0
        %3511 = vmatpush1.bf16.msra.mxu0 0
        %3512 = vmatprep.subr.bf16.mxu0 0
        %3513 = vmatpush1.bf16.msra.mxu0 0
        %3514 = vmatprep.subr.bf16.mxu0 0
        %3515 = vmatpush1.bf16.msra.mxu0 0
        %3516 = vmatprep.subr.bf16.mxu0 0
        %3517 = vmatpush1.bf16.msra.mxu0 0
        %3518 = vmatprep.subr.bf16.mxu0 0
        %3519 = vmatpush1.bf16.msra.mxu0 0
        %3520 = vmatprep.subr.bf16.mxu0 0
        %3521 = vmatpush1.bf16.msra.mxu0 0
        %3522 = vmatprep.subr.bf16.mxu0 0
        %3523 = vmatpush1.bf16.msra.mxu0 0
        %3524 = vmatprep.subr.bf16.mxu0 0
        %3525 = vmatpush1.bf16.msra.mxu0 0
        %3526 = vmatprep.subr.bf16.mxu0 0
        %3527 = vmatpush1.bf16.msra.mxu0 0
        %3528 = vmatprep.subr.bf16.mxu0 0
        %3529 = vmatpush1.bf16.msra.mxu0 0
        %3530 = vmatprep.mubr.bf16.mxu0 0
        %3531 = vmatmul.mubr.bf16.gmra.mrb[0].mxu0 %v3472
        %v3532 = vpop.f32.mrb[0].mxu0
        %v3533 = vadd.f32 %v3385, %v3532
        %v3534 = vpop.f32.mrb[0].mxu0
        %v3535 = vpop.f32.mrb[0].mxu0
        %v3536 = vadd.f32 %v3388, %v3535
        %v3537 = vpop.f32.mrb[0].mxu0
        %3538 = vmatprep.mubr.bf16.mxu0 0
        %3539 = vmatmul.mubr.bf16.gmra.mrb[0].mxu0 %v3475
        %v3540 = vpop.f32.mrb[0].mxu0
        %v3541 = vadd.f32 %v3393, %v3540
        %v3542 = vpop.f32.mrb[0].mxu0
        %v3543 = vpop.f32.mrb[0].mxu0
        %v3544 = vadd.f32 %v3396, %v3543
        %v3545 = vpop.f32.mrb[0].mxu0
        %3546 = vmatprep.mubr.bf16.mxu0 0
        %3547 = vmatmul.mubr.bf16.gmra.mrb[0].mxu0 %v3478
        %v3548 = vpop.f32.mrb[0].mxu0
        %v3549 = vadd.f32 %v3401, %v3548
        %v3550 = vpop.f32.mrb[0].mxu0
        %v3551 = vpop.f32.mrb[0].mxu0
        %v3552 = vadd.f32 %v3404, %v3551
        %v3553 = vpop.f32.mrb[0].mxu0
        %3554 = vmatprep.mubr.bf16.mxu0 0
        %3555 = vmatmul.mubr.bf16.gmra.mrb[0].mxu0 %v3481
        %v3556 = vpop.f32.mrb[0].mxu0
        %v3557 = vadd.f32 %v3409, %v3556
        %v3558 = vpop.f32.mrb[0].mxu0
        %v3559 = vpop.f32.mrb[0].mxu0
        %v3560 = vadd.f32 %v3412, %v3559
        %v3561 = vpop.f32.mrb[0].mxu0
        %3562 = vmatprep.mubr.bf16.mxu0 0
        %3563 = vmatmul.mubr.bf16.gmra.mrb[0].mxu0 %v3484
        %v3564 = vpop.f32.mrb[0].mxu0
        %v3565 = vadd.f32 %v3417, %v3564
        %v3566 = vpop.f32.mrb[0].mxu0
        %v3567 = vpop.f32.mrb[0].mxu0
        %v3568 = vadd.f32 %v3420, %v3567
        %v3569 = vpop.f32.mrb[0].mxu0
        %3570 = vmatprep.mubr.bf16.mxu0 0
        %3571 = vmatmul.mubr.bf16.gmra.mrb[0].mxu0 %v3487
        %v3572 = vpop.f32.mrb[0].mxu0
        %v3573 = vadd.f32 %v3425, %v3572
        %v3574 = vpop.f32.mrb[0].mxu0
        %v3575 = vpop.f32.mrb[0].mxu0
        %v3576 = vadd.f32 %v3428, %v3575
        %v3577 = vpop.f32.mrb[0].mxu0
        %3578 = vmatprep.mubr.bf16.mxu0 0
        %3579 = vmatmul.mubr.bf16.gmra.mrb[0].mxu0 %v3490
        %v3580 = vpop.f32.mrb[0].mxu0
        %v3581 = vadd.f32 %v3433, %v3580
        %v3582 = vpop.f32.mrb[0].mxu0
        %v3583 = vpop.f32.mrb[0].mxu0
        %v3584 = vadd.f32 %v3436, %v3583
        %v3585 = vpop.f32.mrb[0].mxu0
        %3586 = vmatprep.mubr.bf16.mxu0 0
        %3587 = vmatmul.mubr.bf16.gmra.mrb[0].mxu0 %v3493
        %v3588 = vpop.f32.mrb[0].mxu0
        %v3589 = vadd.f32 %v3441, %v3588
        %v3590 = vpop.f32.mrb[0].mxu0
        %v3591 = vpop.f32.mrb[0].mxu0
        %v3592 = vadd.f32 %v3444, %v3591
        %v3593 = vpop.f32.mrb[0].mxu0
        %3594 = vdwg.mxu0
        %v3595 = vld [vmem:[%s3084 + $0xc] sm:$0x8]
        %v3596 = vld [vmem:[%s3084 + $0x10] sm:$0xf]
        %v3597 = vld [vmem:[%s3084 + $0x14] sm:$0x7]
        %v3598 = vld [vmem:[%s3084 + $0x28] sm:$0x8]
        %v3599 = vld [vmem:[%s3084 + $0x2c] sm:$0xf]
        %v3600 = vld [vmem:[%s3084 + $0x30] sm:$0x7]
        %v3601 = vld [vmem:[%s3084 + $0x44] sm:$0x8]
        %v3602 = vld [vmem:[%s3084 + $0x48] sm:$0xf]
        %v3603 = vld [vmem:[%s3084 + $0x4c] sm:$0x7]
        %v3604 = vld [vmem:[%s3084 + $0x60] sm:$0x8]
        %v3605 = vld [vmem:[%s3084 + $0x64] sm:$0xf]
        %v3606 = vld [vmem:[%s3084 + $0x68] sm:$0x7]
        %v3607 = vld [vmem:[%s3084 + $0x7c] sm:$0x8]
        %v3608 = vld [vmem:[%s3084 + $0x80] sm:$0xf]
        %v3609 = vld [vmem:[%s3084 + $0x84] sm:$0x7]
        %v3610 = vld [vmem:[%s3084 + $0x98] sm:$0x8]
        %v3611 = vld [vmem:[%s3084 + $0x9c] sm:$0xf]
        %v3612 = vld [vmem:[%s3084 + $0xa0] sm:$0x7]
        %v3613 = vld [vmem:[%s3084 + $0xb4] sm:$0x8]
        %v3614 = vld [vmem:[%s3084 + $0xb8] sm:$0xf]
        %v3615 = vld [vmem:[%s3084 + $0xbc] sm:$0x7]
        %v3616 = vld [vmem:[%s3084 + $0xd0] sm:$0x8]
        %v3617 = vld [vmem:[%s3084 + $0xd4] sm:$0xf]
        %v3618 = vld [vmem:[%s3084 + $0xd8] sm:$0x7]
        %v3643 = vrot.slane %v3595, 7
        %v3644 = vrot.slane %v3643, 4
        %v3645 = vrot.slane %v3596, 7
        %v3646 = vsel %vm3135, %v3644, %v3645
        %v3647 = vrot.slane %v3645, 4
        %v3648 = vrot.slane %v3597, 7
        %v3649 = vsel %vm3135, %v3647, %v3648
        %v3650 = vrot.slane %v3598, 7
        %v3651 = vrot.slane %v3650, 4
        %v3652 = vrot.slane %v3599, 7
        %v3653 = vsel %vm3135, %v3651, %v3652
        %v3654 = vrot.slane %v3652, 4
        %v3655 = vrot.slane %v3600, 7
        %v3656 = vsel %vm3135, %v3654, %v3655
        %v3657 = vrot.slane %v3601, 7
        %v3658 = vrot.slane %v3657, 4
        %v3659 = vrot.slane %v3602, 7
        %v3660 = vsel %vm3135, %v3658, %v3659
        %v3661 = vrot.slane %v3659, 4
        %v3662 = vrot.slane %v3603, 7
        %v3663 = vsel %vm3135, %v3661, %v3662
        %v3664 = vrot.slane %v3604, 7
        %v3665 = vrot.slane %v3664, 4
        %v3666 = vrot.slane %v3605, 7
        %v3667 = vsel %vm3135, %v3665, %v3666
        %v3668 = vrot.slane %v3666, 4
        %v3669 = vrot.slane %v3606, 7
        %v3670 = vsel %vm3135, %v3668, %v3669
        %v3671 = vrot.slane %v3607, 7
        %v3672 = vrot.slane %v3671, 4
        %v3673 = vrot.slane %v3608, 7
        %v3674 = vsel %vm3135, %v3672, %v3673
        %v3675 = vrot.slane %v3673, 4
        %v3676 = vrot.slane %v3609, 7
        %v3677 = vsel %vm3135, %v3675, %v3676
        %v3678 = vrot.slane %v3610, 7
        %v3679 = vrot.slane %v3678, 4
        %v3680 = vrot.slane %v3611, 7
        %v3681 = vsel %vm3135, %v3679, %v3680
        %v3682 = vrot.slane %v3680, 4
        %v3683 = vrot.slane %v3612, 7
        %v3684 = vsel %vm3135, %v3682, %v3683
        %v3685 = vrot.slane %v3613, 7
        %v3686 = vrot.slane %v3685, 4
        %v3687 = vrot.slane %v3614, 7
        %v3688 = vsel %vm3135, %v3686, %v3687
        %v3689 = vrot.slane %v3687, 4
        %v3690 = vrot.slane %v3615, 7
        %v3691 = vsel %vm3135, %v3689, %v3690
        %v3692 = vrot.slane %v3616, 7
        %v3693 = vrot.slane %v3692, 4
        %v3694 = vrot.slane %v3617, 7
        %v3695 = vsel %vm3135, %v3693, %v3694
        %v3696 = vrot.slane %v3694, 4
        %v3697 = vrot.slane %v3618, 7
        %v3698 = vsel %vm3135, %v3696, %v3697
        %s3699 = scalar_lea.vmem %s3, 4
        %v3700 = vld [vmem:[%s3699] sm:$0x3]
        %v3701 = vunpack.c.l.b16 %v3646
        %v3702 = vunpack.c.l.b16 %v3649
        %v3703 = vunpack.c.l.b16 %v3653
        %v3704 = vunpack.c.l.b16 %v3656
        %v3705 = vunpack.c.l.b16 %v3660
        %v3706 = vunpack.c.l.b16 %v3663
        %v3707 = vunpack.c.l.b16 %v3667
        %v3708 = vunpack.c.l.b16 %v3670
        %v3709 = vunpack.c.l.b16 %v3674
        %v3710 = vunpack.c.l.b16 %v3677
        %v3711 = vunpack.c.l.b16 %v3681
        %v3712 = vunpack.c.l.b16 %v3684
        %v3713 = vunpack.c.l.b16 %v3688
        %v3714 = vunpack.c.l.b16 %v3691
        %v3715 = vunpack.c.l.b16 %v3695
        %v3716 = vunpack.c.l.b16 %v3698
        %v3717 = vpack.c.b16 %v3702, %v3701
        %v3718 = vpack.c.b16 %v3704, %v3703
        %v3719 = vpack.c.b16 %v3706, %v3705
        %v3720 = vpack.c.b16 %v3708, %v3707
        %v3721 = vpack.c.b16 %v3710, %v3709
        %v3722 = vpack.c.b16 %v3712, %v3711
        %v3723 = vpack.c.b16 %v3714, %v3713
        %v3724 = vpack.c.b16 %v3716, %v3715
        %v3726 = vsel %vm498, %v3717, 0
        %v3729 = vsel %vm498, %v3718, 0
        %v3732 = vsel %vm498, %v3719, 0
        %v3735 = vsel %vm498, %v3720, 0
        %v3738 = vsel %vm498, %v3721, 0
        %v3741 = vsel %vm498, %v3722, 0
        %v3744 = vsel %vm498, %v3723, 0
        %v3747 = vsel %vm498, %v3724, 0
        %v3750 = vsel %vm523, %v3700, 0
        %3752 = vmatprep.subr.bf16.mxu0 0
        %3753 = vmatpush1.bf16.msra.mxu0 %v3750
        %3754 = vmatprep.subr.bf16.mxu0 0
        %3755 = vmatpush1.bf16.msra.mxu0 0
        %3756 = vmatprep.subr.bf16.mxu0 0
        %3757 = vmatpush1.bf16.msra.mxu0 0
        %3758 = vmatprep.subr.bf16.mxu0 0
        %3759 = vmatpush1.bf16.msra.mxu0 0
        %3760 = vmatprep.subr.bf16.mxu0 0
        %3761 = vmatpush1.bf16.msra.mxu0 0
        %3762 = vmatprep.subr.bf16.mxu0 0
        %3763 = vmatpush1.bf16.msra.mxu0 0
        %3764 = vmatprep.subr.bf16.mxu0 0
        %3765 = vmatpush1.bf16.msra.mxu0 0
        %3766 = vmatprep.subr.bf16.mxu0 0
        %3767 = vmatpush1.bf16.msra.mxu0 0
        %3768 = vmatprep.subr.bf16.mxu0 0
        %3769 = vmatpush1.bf16.msra.mxu0 0
        %3770 = vmatprep.subr.bf16.mxu0 0
        %3771 = vmatpush1.bf16.msra.mxu0 0
        %3772 = vmatprep.subr.bf16.mxu0 0
        %3773 = vmatpush1.bf16.msra.mxu0 0
        %3774 = vmatprep.subr.bf16.mxu0 0
        %3775 = vmatpush1.bf16.msra.mxu0 0
        %3776 = vmatprep.subr.bf16.mxu0 0
        %3777 = vmatpush1.bf16.msra.mxu0 0
        %3778 = vmatprep.subr.bf16.mxu0 0
        %3779 = vmatpush1.bf16.msra.mxu0 0
        %3780 = vmatprep.subr.bf16.mxu0 0
        %3781 = vmatpush1.bf16.msra.mxu0 0
        %3782 = vmatprep.subr.bf16.mxu0 0
        %3783 = vmatpush1.bf16.msra.mxu0 0
        %3784 = vmatprep.mubr.bf16.mxu0 0
        %3785 = vmatmul.mubr.bf16.gmra.mrb[0].mxu0 %v3726
        %v3786 = vpop.f32.mrb[0].mxu0
        %v3787 = vadd.f32 0.0, %v3786
        %v3788 = vpop.f32.mrb[0].mxu0
        %v3789 = vpop.f32.mrb[0].mxu0
        %v3790 = vadd.f32 0.0, %v3789
        %v3791 = vpop.f32.mrb[0].mxu0
        %3792 = vmatprep.mubr.bf16.mxu0 0
        %3793 = vmatmul.mubr.bf16.gmra.mrb[0].mxu0 %v3729
        %v3794 = vpop.f32.mrb[0].mxu0
        %v3795 = vadd.f32 0.0, %v3794
        %v3796 = vpop.f32.mrb[0].mxu0
        %v3797 = vpop.f32.mrb[0].mxu0
        %v3798 = vadd.f32 0.0, %v3797
        %v3799 = vpop.f32.mrb[0].mxu0
        %3800 = vmatprep.mubr.bf16.mxu0 0
        %3801 = vmatmul.mubr.bf16.gmra.mrb[0].mxu0 %v3732
        %v3802 = vpop.f32.mrb[0].mxu0
        %v3803 = vadd.f32 0.0, %v3802
        %v3804 = vpop.f32.mrb[0].mxu0
        %v3805 = vpop.f32.mrb[0].mxu0
        %v3806 = vadd.f32 0.0, %v3805
        %v3807 = vpop.f32.mrb[0].mxu0
        %3808 = vmatprep.mubr.bf16.mxu0 0
        %3809 = vmatmul.mubr.bf16.gmra.mrb[0].mxu0 %v3735
        %v3810 = vpop.f32.mrb[0].mxu0
        %v3811 = vadd.f32 0.0, %v3810
        %v3812 = vpop.f32.mrb[0].mxu0
        %v3813 = vpop.f32.mrb[0].mxu0
        %v3814 = vadd.f32 0.0, %v3813
        %v3815 = vpop.f32.mrb[0].mxu0
        %3816 = vmatprep.mubr.bf16.mxu0 0
        %3817 = vmatmul.mubr.bf16.gmra.mrb[0].mxu0 %v3738
        %v3818 = vpop.f32.mrb[0].mxu0
        %v3819 = vadd.f32 0.0, %v3818
        %v3820 = vpop.f32.mrb[0].mxu0
        %v3821 = vpop.f32.mrb[0].mxu0
        %v3822 = vadd.f32 0.0, %v3821
        %v3823 = vpop.f32.mrb[0].mxu0
        %3824 = vmatprep.mubr.bf16.mxu0 0
        %3825 = vmatmul.mubr.bf16.gmra.mrb[0].mxu0 %v3741
        %v3826 = vpop.f32.mrb[0].mxu0
        %v3827 = vadd.f32 0.0, %v3826
        %v3828 = vpop.f32.mrb[0].mxu0
        %v3829 = vpop.f32.mrb[0].mxu0
        %v3830 = vadd.f32 0.0, %v3829
        %v3831 = vpop.f32.mrb[0].mxu0
        %3832 = vmatprep.mubr.bf16.mxu0 0
        %3833 = vmatmul.mubr.bf16.gmra.mrb[0].mxu0 %v3744
        %v3834 = vpop.f32.mrb[0].mxu0
        %v3835 = vadd.f32 0.0, %v3834
        %v3836 = vpop.f32.mrb[0].mxu0
        %v3837 = vpop.f32.mrb[0].mxu0
        %v3838 = vadd.f32 0.0, %v3837
        %v3839 = vpop.f32.mrb[0].mxu0
        %3840 = vmatprep.mubr.bf16.mxu0 0
        %3841 = vmatmul.mubr.bf16.gmra.mrb[0].mxu0 %v3747
        %v3842 = vpop.f32.mrb[0].mxu0
        %v3843 = vadd.f32 0.0, %v3842
        %v3844 = vpop.f32.mrb[0].mxu0
        %v3845 = vpop.f32.mrb[0].mxu0
        %v3846 = vadd.f32 0.0, %v3845
        %v3847 = vpop.f32.mrb[0].mxu0
        %3848 = vdwg.mxu0
        %v3849 = vadd.f32 %v3533, %v3787
        %v3850 = vadd.f32 %v3536, %v3790
        %v3851 = vadd.f32 %v3541, %v3795
        %v3852 = vadd.f32 %v3544, %v3798
        %v3853 = vadd.f32 %v3549, %v3803
        %v3854 = vadd.f32 %v3552, %v3806
        %v3855 = vadd.f32 %v3557, %v3811
        %v3856 = vadd.f32 %v3560, %v3814
        %v3857 = vadd.f32 %v3565, %v3819
        %v3858 = vadd.f32 %v3568, %v3822
        %v3859 = vadd.f32 %v3573, %v3827
        %v3860 = vadd.f32 %v3576, %v3830
        %v3861 = vadd.f32 %v3581, %v3835
        %v3862 = vadd.f32 %v3584, %v3838
        %v3863 = vadd.f32 %v3589, %v3843
        %v3864 = vadd.f32 %v3592, %v3846
        %v3865 = vld [vmem:[%s365] sm:$0x8]
        %v3866 = vld [vmem:[%s365 + $0x4] sm:$0xf]
        %v3867 = vld [vmem:[%s365 + $0x8] sm:$0x7]
        %v3868 = vld [vmem:[%s365 + $0x1c] sm:$0x8]
        %v3869 = vld [vmem:[%s365 + $0x20] sm:$0xf]
        %v3870 = vld [vmem:[%s365 + $0x24] sm:$0x7]
        %v3871 = vld [vmem:[%s365 + $0x38] sm:$0x8]
        %v3872 = vld [vmem:[%s365 + $0x3c] sm:$0xf]
        %v3873 = vld [vmem:[%s365 + $0x40] sm:$0x7]
        %v3874 = vld [vmem:[%s365 + $0x54] sm:$0x8]
        %v3875 = vld [vmem:[%s365 + $0x58] sm:$0xf]
        %v3876 = vld [vmem:[%s365 + $0x5c] sm:$0x7]
        %v3877 = vld [vmem:[%s365 + $0x70] sm:$0x8]
        %v3878 = vld [vmem:[%s365 + $0x74] sm:$0xf]
        %v3879 = vld [vmem:[%s365 + $0x78] sm:$0x7]
        %v3880 = vld [vmem:[%s365 + $0x8c] sm:$0x8]
        %v3881 = vld [vmem:[%s365 + $0x90] sm:$0xf]
        %v3882 = vld [vmem:[%s365 + $0x94] sm:$0x7]
        %v3883 = vld [vmem:[%s365 + $0xa8] sm:$0x8]
        %v3884 = vld [vmem:[%s365 + $0xac] sm:$0xf]
        %v3885 = vld [vmem:[%s365 + $0xb0] sm:$0x7]
        %v3886 = vld [vmem:[%s365 + $0xc4] sm:$0x8]
        %v3887 = vld [vmem:[%s365 + $0xc8] sm:$0xf]
        %v3888 = vld [vmem:[%s365 + $0xcc] sm:$0x7]
        %v3913 = vrot.slane %v3865, 7
        %v3914 = vrot.slane %v3913, 4
        %v3915 = vrot.slane %v3866, 7
        %v3916 = vsel %vm3135, %v3914, %v3915
        %v3917 = vrot.slane %v3915, 4
        %v3918 = vrot.slane %v3867, 7
        %v3919 = vsel %vm3135, %v3917, %v3918
        %v3920 = vrot.slane %v3868, 7
        %v3921 = vrot.slane %v3920, 4
        %v3922 = vrot.slane %v3869, 7
        %v3923 = vsel %vm3135, %v3921, %v3922
        %v3924 = vrot.slane %v3922, 4
        %v3925 = vrot.slane %v3870, 7
        %v3926 = vsel %vm3135, %v3924, %v3925
        %v3927 = vrot.slane %v3871, 7
        %v3928 = vrot.slane %v3927, 4
        %v3929 = vrot.slane %v3872, 7
        %v3930 = vsel %vm3135, %v3928, %v3929
        %v3931 = vrot.slane %v3929, 4
        %v3932 = vrot.slane %v3873, 7
        %v3933 = vsel %vm3135, %v3931, %v3932
        %v3934 = vrot.slane %v3874, 7
        %v3935 = vrot.slane %v3934, 4
        %v3936 = vrot.slane %v3875, 7
        %v3937 = vsel %vm3135, %v3935, %v3936
        %v3938 = vrot.slane %v3936, 4
        %v3939 = vrot.slane %v3876, 7
        %v3940 = vsel %vm3135, %v3938, %v3939
        %v3941 = vrot.slane %v3877, 7
        %v3942 = vrot.slane %v3941, 4
        %v3943 = vrot.slane %v3878, 7
        %v3944 = vsel %vm3135, %v3942, %v3943
        %v3945 = vrot.slane %v3943, 4
        %v3946 = vrot.slane %v3879, 7
        %v3947 = vsel %vm3135, %v3945, %v3946
        %v3948 = vrot.slane %v3880, 7
        %v3949 = vrot.slane %v3948, 4
        %v3950 = vrot.slane %v3881, 7
        %v3951 = vsel %vm3135, %v3949, %v3950
        %v3952 = vrot.slane %v3950, 4
        %v3953 = vrot.slane %v3882, 7
        %v3954 = vsel %vm3135, %v3952, %v3953
        %v3955 = vrot.slane %v3883, 7
        %v3956 = vrot.slane %v3955, 4
        %v3957 = vrot.slane %v3884, 7
        %v3958 = vsel %vm3135, %v3956, %v3957
        %v3959 = vrot.slane %v3957, 4
        %v3960 = vrot.slane %v3885, 7
        %v3961 = vsel %vm3135, %v3959, %v3960
        %v3962 = vrot.slane %v3886, 7
        %v3963 = vrot.slane %v3962, 4
        %v3964 = vrot.slane %v3887, 7
        %v3965 = vsel %vm3135, %v3963, %v3964
        %v3966 = vrot.slane %v3964, 4
        %v3967 = vrot.slane %v3888, 7
        %v3968 = vsel %vm3135, %v3966, %v3967
        %s3969 = scalar_lea.vmem %s3, 6
        %v3970 = vld [vmem:[%s3969] sm:$0x3]
        %v3971 = vunpack.c.l.b16 %v3916
        %v3972 = vunpack.c.l.b16 %v3919
        %v3973 = vunpack.c.l.b16 %v3923
        %v3974 = vunpack.c.l.b16 %v3926
        %v3975 = vunpack.c.l.b16 %v3930
        %v3976 = vunpack.c.l.b16 %v3933
        %v3977 = vunpack.c.l.b16 %v3937
        %v3978 = vunpack.c.l.b16 %v3940
        %v3979 = vunpack.c.l.b16 %v3944
        %v3980 = vunpack.c.l.b16 %v3947
        %v3981 = vunpack.c.l.b16 %v3951
        %v3982 = vunpack.c.l.b16 %v3954
        %v3983 = vunpack.c.l.b16 %v3958
        %v3984 = vunpack.c.l.b16 %v3961
        %v3985 = vunpack.c.l.b16 %v3965
        %v3986 = vunpack.c.l.b16 %v3968
        %v3987 = vpack.c.b16 %v3972, %v3971
        %v3988 = vpack.c.b16 %v3974, %v3973
        %v3989 = vpack.c.b16 %v3976, %v3975
        %v3990 = vpack.c.b16 %v3978, %v3977
        %v3991 = vpack.c.b16 %v3980, %v3979
        %v3992 = vpack.c.b16 %v3982, %v3981
        %v3993 = vpack.c.b16 %v3984, %v3983
        %v3994 = vpack.c.b16 %v3986, %v3985
        %v3996 = vsel %vm498, %v3987, 0
        %v3999 = vsel %vm498, %v3988, 0
        %v4002 = vsel %vm498, %v3989, 0
        %v4005 = vsel %vm498, %v3990, 0
        %v4008 = vsel %vm498, %v3991, 0
        %v4011 = vsel %vm498, %v3992, 0
        %v4014 = vsel %vm498, %v3993, 0
        %v4017 = vsel %vm498, %v3994, 0
        %v4020 = vsel %vm523, %v3970, 0
        %4022 = vmatprep.subr.bf16.mxu0 0
        %4023 = vmatpush1.bf16.msra.mxu0 %v4020
        %4024 = vmatprep.subr.bf16.mxu0 0
        %4025 = vmatpush1.bf16.msra.mxu0 0
        %4026 = vmatprep.subr.bf16.mxu0 0
        %4027 = vmatpush1.bf16.msra.mxu0 0
        %4028 = vmatprep.subr.bf16.mxu0 0
        %4029 = vmatpush1.bf16.msra.mxu0 0
        %4030 = vmatprep.subr.bf16.mxu0 0
        %4031 = vmatpush1.bf16.msra.mxu0 0
        %4032 = vmatprep.subr.bf16.mxu0 0
        %4033 = vmatpush1.bf16.msra.mxu0 0
        %4034 = vmatprep.subr.bf16.mxu0 0
        %4035 = vmatpush1.bf16.msra.mxu0 0
        %4036 = vmatprep.subr.bf16.mxu0 0
        %4037 = vmatpush1.bf16.msra.mxu0 0
        %4038 = vmatprep.subr.bf16.mxu0 0
        %4039 = vmatpush1.bf16.msra.mxu0 0
        %4040 = vmatprep.subr.bf16.mxu0 0
        %4041 = vmatpush1.bf16.msra.mxu0 0
        %4042 = vmatprep.subr.bf16.mxu0 0
        %4043 = vmatpush1.bf16.msra.mxu0 0
        %4044 = vmatprep.subr.bf16.mxu0 0
        %4045 = vmatpush1.bf16.msra.mxu0 0
        %4046 = vmatprep.subr.bf16.mxu0 0
        %4047 = vmatpush1.bf16.msra.mxu0 0
        %4048 = vmatprep.subr.bf16.mxu0 0
        %4049 = vmatpush1.bf16.msra.mxu0 0
        %4050 = vmatprep.subr.bf16.mxu0 0
        %4051 = vmatpush1.bf16.msra.mxu0 0
        %4052 = vmatprep.subr.bf16.mxu0 0
        %4053 = vmatpush1.bf16.msra.mxu0 0
        %4054 = vmatprep.mubr.bf16.mxu0 0
        %4055 = vmatmul.mubr.bf16.gmra.mrb[0].mxu0 %v3996
        %v4056 = vpop.f32.mrb[0].mxu0
        %v4057 = vadd.f32 0.0, %v4056
        %v4058 = vpop.f32.mrb[0].mxu0
        %v4059 = vpop.f32.mrb[0].mxu0
        %v4060 = vadd.f32 0.0, %v4059
        %v4061 = vpop.f32.mrb[0].mxu0
        %4062 = vmatprep.mubr.bf16.mxu0 0
        %4063 = vmatmul.mubr.bf16.gmra.mrb[0].mxu0 %v3999
        %v4064 = vpop.f32.mrb[0].mxu0
        %v4065 = vadd.f32 0.0, %v4064
        %v4066 = vpop.f32.mrb[0].mxu0
        %v4067 = vpop.f32.mrb[0].mxu0
        %v4068 = vadd.f32 0.0, %v4067
        %v4069 = vpop.f32.mrb[0].mxu0
        %4070 = vmatprep.mubr.bf16.mxu0 0
        %4071 = vmatmul.mubr.bf16.gmra.mrb[0].mxu0 %v4002
        %v4072 = vpop.f32.mrb[0].mxu0
        %v4073 = vadd.f32 0.0, %v4072
        %v4074 = vpop.f32.mrb[0].mxu0
        %v4075 = vpop.f32.mrb[0].mxu0
        %v4076 = vadd.f32 0.0, %v4075
        %v4077 = vpop.f32.mrb[0].mxu0
        %4078 = vmatprep.mubr.bf16.mxu0 0
        %4079 = vmatmul.mubr.bf16.gmra.mrb[0].mxu0 %v4005
        %v4080 = vpop.f32.mrb[0].mxu0
        %v4081 = vadd.f32 0.0, %v4080
        %v4082 = vpop.f32.mrb[0].mxu0
        %v4083 = vpop.f32.mrb[0].mxu0
        %v4084 = vadd.f32 0.0, %v4083
        %v4085 = vpop.f32.mrb[0].mxu0
        %4086 = vmatprep.mubr.bf16.mxu0 0
        %4087 = vmatmul.mubr.bf16.gmra.mrb[0].mxu0 %v4008
        %v4088 = vpop.f32.mrb[0].mxu0
        %v4089 = vadd.f32 0.0, %v4088
        %v4090 = vpop.f32.mrb[0].mxu0
        %v4091 = vpop.f32.mrb[0].mxu0
        %v4092 = vadd.f32 0.0, %v4091
        %v4093 = vpop.f32.mrb[0].mxu0
        %4094 = vmatprep.mubr.bf16.mxu0 0
        %4095 = vmatmul.mubr.bf16.gmra.mrb[0].mxu0 %v4011
        %v4096 = vpop.f32.mrb[0].mxu0
        %v4097 = vadd.f32 0.0, %v4096
        %v4098 = vpop.f32.mrb[0].mxu0
        %v4099 = vpop.f32.mrb[0].mxu0
        %v4100 = vadd.f32 0.0, %v4099
        %v4101 = vpop.f32.mrb[0].mxu0
        %4102 = vmatprep.mubr.bf16.mxu0 0
        %4103 = vmatmul.mubr.bf16.gmra.mrb[0].mxu0 %v4014
        %v4104 = vpop.f32.mrb[0].mxu0
        %v4105 = vadd.f32 0.0, %v4104
        %v4106 = vpop.f32.mrb[0].mxu0
        %v4107 = vpop.f32.mrb[0].mxu0
        %v4108 = vadd.f32 0.0, %v4107
        %v4109 = vpop.f32.mrb[0].mxu0
        %4110 = vmatprep.mubr.bf16.mxu0 0
        %4111 = vmatmul.mubr.bf16.gmra.mrb[0].mxu0 %v4017
        %v4112 = vpop.f32.mrb[0].mxu0
        %v4113 = vadd.f32 0.0, %v4112
        %v4114 = vpop.f32.mrb[0].mxu0
        %v4115 = vpop.f32.mrb[0].mxu0
        %v4116 = vadd.f32 0.0, %v4115
        %v4117 = vpop.f32.mrb[0].mxu0
        %4118 = vdwg.mxu0
        %v4119 = vadd.f32 %v3849, %v4057
        %v4120 = vadd.f32 %v3850, %v4060
        %v4121 = vadd.f32 %v3851, %v4065
        %v4122 = vadd.f32 %v3852, %v4068
        %v4123 = vadd.f32 %v3853, %v4073
        %v4124 = vadd.f32 %v3854, %v4076
        %v4125 = vadd.f32 %v3855, %v4081
        %v4126 = vadd.f32 %v3856, %v4084
        %v4127 = vadd.f32 %v3857, %v4089
        %v4128 = vadd.f32 %v3858, %v4092
        %v4129 = vadd.f32 %v3859, %v4097
        %v4130 = vadd.f32 %v3860, %v4100
        %v4131 = vadd.f32 %v3861, %v4105
        %v4132 = vadd.f32 %v3862, %v4108
        %v4133 = vadd.f32 %v3863, %v4113
        %v4134 = vadd.f32 %v3864, %v4116
        %s4135 = scalar_lea.vmem %s3, 8
        %v4136 = vld [vmem:[%s4135] sm:$0x3]
        %v4138 = vsel %vm523, %v4136, 0
        %4140 = vmatprep.subr.bf16.mxu0 0
        %4141 = vmatpush1.bf16.msra.mxu0 %v4138
        %4142 = vmatprep.subr.bf16.mxu0 0
        %4143 = vmatpush1.bf16.msra.mxu0 0
        %4144 = vmatprep.subr.bf16.mxu0 0
        %4145 = vmatpush1.bf16.msra.mxu0 0
        %4146 = vmatprep.subr.bf16.mxu0 0
        %4147 = vmatpush1.bf16.msra.mxu0 0
        %4148 = vmatprep.subr.bf16.mxu0 0
        %4149 = vmatpush1.bf16.msra.mxu0 0
        %4150 = vmatprep.subr.bf16.mxu0 0
        %4151 = vmatpush1.bf16.msra.mxu0 0
        %4152 = vmatprep.subr.bf16.mxu0 0
        %4153 = vmatpush1.bf16.msra.mxu0 0
        %4154 = vmatprep.subr.bf16.mxu0 0
        %4155 = vmatpush1.bf16.msra.mxu0 0
        %4156 = vmatprep.subr.bf16.mxu0 0
        %4157 = vmatpush1.bf16.msra.mxu0 0
        %4158 = vmatprep.subr.bf16.mxu0 0
        %4159 = vmatpush1.bf16.msra.mxu0 0
        %4160 = vmatprep.subr.bf16.mxu0 0
        %4161 = vmatpush1.bf16.msra.mxu0 0
        %4162 = vmatprep.subr.bf16.mxu0 0
        %4163 = vmatpush1.bf16.msra.mxu0 0
        %4164 = vmatprep.subr.bf16.mxu0 0
        %4165 = vmatpush1.bf16.msra.mxu0 0
        %4166 = vmatprep.subr.bf16.mxu0 0
        %4167 = vmatpush1.bf16.msra.mxu0 0
        %4168 = vmatprep.subr.bf16.mxu0 0
        %4169 = vmatpush1.bf16.msra.mxu0 0
        %4170 = vmatprep.subr.bf16.mxu0 0
        %4171 = vmatpush1.bf16.msra.mxu0 0
        %4172 = vmatprep.mubr.bf16.mxu0 0
        %4173 = vmatmul.mubr.bf16.gmra.mrb[0].mxu0 %v500
        %v4174 = vpop.f32.mrb[0].mxu0
        %v4175 = vadd.f32 0.0, %v4174
        %v4176 = vpop.f32.mrb[0].mxu0
        %v4177 = vpop.f32.mrb[0].mxu0
        %v4178 = vadd.f32 0.0, %v4177
        %v4179 = vpop.f32.mrb[0].mxu0
        %4180 = vmatprep.mubr.bf16.mxu0 0
        %4181 = vmatmul.mubr.bf16.gmra.mrb[0].mxu0 %v503
        %v4182 = vpop.f32.mrb[0].mxu0
        %v4183 = vadd.f32 0.0, %v4182
        %v4184 = vpop.f32.mrb[0].mxu0
        %v4185 = vpop.f32.mrb[0].mxu0
        %v4186 = vadd.f32 0.0, %v4185
        %v4187 = vpop.f32.mrb[0].mxu0
        %4188 = vmatprep.mubr.bf16.mxu0 0
        %4189 = vmatmul.mubr.bf16.gmra.mrb[0].mxu0 %v506
        %v4190 = vpop.f32.mrb[0].mxu0
        %v4191 = vadd.f32 0.0, %v4190
        %v4192 = vpop.f32.mrb[0].mxu0
        %v4193 = vpop.f32.mrb[0].mxu0
        %v4194 = vadd.f32 0.0, %v4193
        %v4195 = vpop.f32.mrb[0].mxu0
        %4196 = vmatprep.mubr.bf16.mxu0 0
        %4197 = vmatmul.mubr.bf16.gmra.mrb[0].mxu0 %v509
        %v4198 = vpop.f32.mrb[0].mxu0
        %v4199 = vadd.f32 0.0, %v4198
        %v4200 = vpop.f32.mrb[0].mxu0
        %v4201 = vpop.f32.mrb[0].mxu0
        %v4202 = vadd.f32 0.0, %v4201
        %v4203 = vpop.f32.mrb[0].mxu0
        %4204 = vmatprep.mubr.bf16.mxu0 0
        %4205 = vmatmul.mubr.bf16.gmra.mrb[0].mxu0 %v512
        %v4206 = vpop.f32.mrb[0].mxu0
        %v4207 = vadd.f32 0.0, %v4206
        %v4208 = vpop.f32.mrb[0].mxu0
        %v4209 = vpop.f32.mrb[0].mxu0
        %v4210 = vadd.f32 0.0, %v4209
        %v4211 = vpop.f32.mrb[0].mxu0
        %4212 = vmatprep.mubr.bf16.mxu0 0
        %4213 = vmatmul.mubr.bf16.gmra.mrb[0].mxu0 %v515
        %v4214 = vpop.f32.mrb[0].mxu0
        %v4215 = vadd.f32 0.0, %v4214
        %v4216 = vpop.f32.mrb[0].mxu0
        %v4217 = vpop.f32.mrb[0].mxu0
        %v4218 = vadd.f32 0.0, %v4217
        %v4219 = vpop.f32.mrb[0].mxu0
        %4220 = vmatprep.mubr.bf16.mxu0 0
        %4221 = vmatmul.mubr.bf16.gmra.mrb[0].mxu0 %v518
        %v4222 = vpop.f32.mrb[0].mxu0
        %v4223 = vadd.f32 0.0, %v4222
        %v4224 = vpop.f32.mrb[0].mxu0
        %v4225 = vpop.f32.mrb[0].mxu0
        %v4226 = vadd.f32 0.0, %v4225
        %v4227 = vpop.f32.mrb[0].mxu0
        %4228 = vmatprep.mubr.bf16.mxu0 0
        %4229 = vmatmul.mubr.bf16.gmra.mrb[0].mxu0 %v521
        %v4230 = vpop.f32.mrb[0].mxu0
        %v4231 = vadd.f32 0.0, %v4230
        %v4232 = vpop.f32.mrb[0].mxu0
        %v4233 = vpop.f32.mrb[0].mxu0
        %v4234 = vadd.f32 0.0, %v4233
        %v4235 = vpop.f32.mrb[0].mxu0
        %4236 = vdwg.mxu0
        %v4237 = vadd.f32 %v4119, %v4175
        %v4238 = vadd.f32 %v4120, %v4178
        %v4239 = vadd.f32 %v4121, %v4183
        %v4240 = vadd.f32 %v4122, %v4186
        %v4241 = vadd.f32 %v4123, %v4191
        %v4242 = vadd.f32 %v4124, %v4194
        %v4243 = vadd.f32 %v4125, %v4199
        %v4244 = vadd.f32 %v4126, %v4202
        %v4245 = vadd.f32 %v4127, %v4207
        %v4246 = vadd.f32 %v4128, %v4210
        %v4247 = vadd.f32 %v4129, %v4215
        %v4248 = vadd.f32 %v4130, %v4218
        %v4249 = vadd.f32 %v4131, %v4223
        %v4250 = vadd.f32 %v4132, %v4226
        %v4251 = vadd.f32 %v4133, %v4231
        %v4252 = vadd.f32 %v4134, %v4234
        %v4253 = vld [vmem:[%s365 + $0xc] sm:$0x8]
        %v4254 = vld [vmem:[%s365 + $0x10] sm:$0xf]
        %v4255 = vld [vmem:[%s365 + $0x14] sm:$0x7]
        %v4256 = vld [vmem:[%s365 + $0x28] sm:$0x8]
        %v4257 = vld [vmem:[%s365 + $0x2c] sm:$0xf]
        %v4258 = vld [vmem:[%s365 + $0x30] sm:$0x7]
        %v4259 = vld [vmem:[%s365 + $0x44] sm:$0x8]
        %v4260 = vld [vmem:[%s365 + $0x48] sm:$0xf]
        %v4261 = vld [vmem:[%s365 + $0x4c] sm:$0x7]
        %v4262 = vld [vmem:[%s365 + $0x60] sm:$0x8]
        %v4263 = vld [vmem:[%s365 + $0x64] sm:$0xf]
        %v4264 = vld [vmem:[%s365 + $0x68] sm:$0x7]
        %v4265 = vld [vmem:[%s365 + $0x7c] sm:$0x8]
        %v4266 = vld [vmem:[%s365 + $0x80] sm:$0xf]
        %v4267 = vld [vmem:[%s365 + $0x84] sm:$0x7]
        %v4268 = vld [vmem:[%s365 + $0x98] sm:$0x8]
        %v4269 = vld [vmem:[%s365 + $0x9c] sm:$0xf]
        %v4270 = vld [vmem:[%s365 + $0xa0] sm:$0x7]
        %v4271 = vld [vmem:[%s365 + $0xb4] sm:$0x8]
        %v4272 = vld [vmem:[%s365 + $0xb8] sm:$0xf]
        %v4273 = vld [vmem:[%s365 + $0xbc] sm:$0x7]
        %v4274 = vld [vmem:[%s365 + $0xd0] sm:$0x8]
        %v4275 = vld [vmem:[%s365 + $0xd4] sm:$0xf]
        %v4276 = vld [vmem:[%s365 + $0xd8] sm:$0x7]
        %v4301 = vrot.slane %v4253, 7
        %v4302 = vrot.slane %v4301, 4
        %v4303 = vrot.slane %v4254, 7
        %v4304 = vsel %vm3135, %v4302, %v4303
        %v4305 = vrot.slane %v4303, 4
        %v4306 = vrot.slane %v4255, 7
        %v4307 = vsel %vm3135, %v4305, %v4306
        %v4308 = vrot.slane %v4256, 7
        %v4309 = vrot.slane %v4308, 4
        %v4310 = vrot.slane %v4257, 7
        %v4311 = vsel %vm3135, %v4309, %v4310
        %v4312 = vrot.slane %v4310, 4
        %v4313 = vrot.slane %v4258, 7
        %v4314 = vsel %vm3135, %v4312, %v4313
        %v4315 = vrot.slane %v4259, 7
        %v4316 = vrot.slane %v4315, 4
        %v4317 = vrot.slane %v4260, 7
        %v4318 = vsel %vm3135, %v4316, %v4317
        %v4319 = vrot.slane %v4317, 4
        %v4320 = vrot.slane %v4261, 7
        %v4321 = vsel %vm3135, %v4319, %v4320
        %v4322 = vrot.slane %v4262, 7
        %v4323 = vrot.slane %v4322, 4
        %v4324 = vrot.slane %v4263, 7
        %v4325 = vsel %vm3135, %v4323, %v4324
        %v4326 = vrot.slane %v4324, 4
        %v4327 = vrot.slane %v4264, 7
        %v4328 = vsel %vm3135, %v4326, %v4327
        %v4329 = vrot.slane %v4265, 7
        %v4330 = vrot.slane %v4329, 4
        %v4331 = vrot.slane %v4266, 7
        %v4332 = vsel %vm3135, %v4330, %v4331
        %v4333 = vrot.slane %v4331, 4
        %v4334 = vrot.slane %v4267, 7
        %v4335 = vsel %vm3135, %v4333, %v4334
        %v4336 = vrot.slane %v4268, 7
        %v4337 = vrot.slane %v4336, 4
        %v4338 = vrot.slane %v4269, 7
        %v4339 = vsel %vm3135, %v4337, %v4338
        %v4340 = vrot.slane %v4338, 4
        %v4341 = vrot.slane %v4270, 7
        %v4342 = vsel %vm3135, %v4340, %v4341
        %v4343 = vrot.slane %v4271, 7
        %v4344 = vrot.slane %v4343, 4
        %v4345 = vrot.slane %v4272, 7
        %v4346 = vsel %vm3135, %v4344, %v4345
        %v4347 = vrot.slane %v4345, 4
        %v4348 = vrot.slane %v4273, 7
        %v4349 = vsel %vm3135, %v4347, %v4348
        %v4350 = vrot.slane %v4274, 7
        %v4351 = vrot.slane %v4350, 4
        %v4352 = vrot.slane %v4275, 7
        %v4353 = vsel %vm3135, %v4351, %v4352
        %v4354 = vrot.slane %v4352, 4
        %v4355 = vrot.slane %v4276, 7
        %v4356 = vsel %vm3135, %v4354, %v4355
        %s4357 = scalar_lea.vmem %s3, 10
        %v4358 = vld [vmem:[%s4357] sm:$0x3]
        %v4359 = vunpack.c.l.b16 %v4304
        %v4360 = vunpack.c.l.b16 %v4307
        %v4361 = vunpack.c.l.b16 %v4311
        %v4362 = vunpack.c.l.b16 %v4314
        %v4363 = vunpack.c.l.b16 %v4318
        %v4364 = vunpack.c.l.b16 %v4321
        %v4365 = vunpack.c.l.b16 %v4325
        %v4366 = vunpack.c.l.b16 %v4328
        %v4367 = vunpack.c.l.b16 %v4332
        %v4368 = vunpack.c.l.b16 %v4335
        %v4369 = vunpack.c.l.b16 %v4339
        %v4370 = vunpack.c.l.b16 %v4342
        %v4371 = vunpack.c.l.b16 %v4346
        %v4372 = vunpack.c.l.b16 %v4349
        %v4373 = vunpack.c.l.b16 %v4353
        %v4374 = vunpack.c.l.b16 %v4356
        %v4375 = vpack.c.b16 %v4360, %v4359
        %v4376 = vpack.c.b16 %v4362, %v4361
        %v4377 = vpack.c.b16 %v4364, %v4363
        %v4378 = vpack.c.b16 %v4366, %v4365
        %v4379 = vpack.c.b16 %v4368, %v4367
        %v4380 = vpack.c.b16 %v4370, %v4369
        %v4381 = vpack.c.b16 %v4372, %v4371
        %v4382 = vpack.c.b16 %v4374, %v4373
        %v4384 = vsel %vm498, %v4375, 0
        %v4387 = vsel %vm498, %v4376, 0
        %v4390 = vsel %vm498, %v4377, 0
        %v4393 = vsel %vm498, %v4378, 0
        %v4396 = vsel %vm498, %v4379, 0
        %v4399 = vsel %vm498, %v4380, 0
        %v4402 = vsel %vm498, %v4381, 0
        %v4405 = vsel %vm498, %v4382, 0
        %v4408 = vsel %vm523, %v4358, 0
        %4410 = vmatprep.subr.bf16.mxu0 0
        %4411 = vmatpush1.bf16.msra.mxu0 %v4408
        %4412 = vmatprep.subr.bf16.mxu0 0
        %4413 = vmatpush1.bf16.msra.mxu0 0
        %4414 = vmatprep.subr.bf16.mxu0 0
        %4415 = vmatpush1.bf16.msra.mxu0 0
        %4416 = vmatprep.subr.bf16.mxu0 0
        %4417 = vmatpush1.bf16.msra.mxu0 0
        %4418 = vmatprep.subr.bf16.mxu0 0
        %4419 = vmatpush1.bf16.msra.mxu0 0
        %4420 = vmatprep.subr.bf16.mxu0 0
        %4421 = vmatpush1.bf16.msra.mxu0 0
        %4422 = vmatprep.subr.bf16.mxu0 0
        %4423 = vmatpush1.bf16.msra.mxu0 0
        %4424 = vmatprep.subr.bf16.mxu0 0
        %4425 = vmatpush1.bf16.msra.mxu0 0
        %4426 = vmatprep.subr.bf16.mxu0 0
        %4427 = vmatpush1.bf16.msra.mxu0 0
        %4428 = vmatprep.subr.bf16.mxu0 0
        %4429 = vmatpush1.bf16.msra.mxu0 0
        %4430 = vmatprep.subr.bf16.mxu0 0
        %4431 = vmatpush1.bf16.msra.mxu0 0
        %4432 = vmatprep.subr.bf16.mxu0 0
        %4433 = vmatpush1.bf16.msra.mxu0 0
        %4434 = vmatprep.subr.bf16.mxu0 0
        %4435 = vmatpush1.bf16.msra.mxu0 0
        %4436 = vmatprep.subr.bf16.mxu0 0
        %4437 = vmatpush1.bf16.msra.mxu0 0
        %4438 = vmatprep.subr.bf16.mxu0 0
        %4439 = vmatpush1.bf16.msra.mxu0 0
        %4440 = vmatprep.subr.bf16.mxu0 0
        %4441 = vmatpush1.bf16.msra.mxu0 0
        %4442 = vmatprep.mubr.bf16.mxu0 0
        %4443 = vmatmul.mubr.bf16.gmra.mrb[0].mxu0 %v4384
        %v4444 = vpop.f32.mrb[0].mxu0
        %v4445 = vadd.f32 0.0, %v4444
        %v4446 = vpop.f32.mrb[0].mxu0
        %v4447 = vpop.f32.mrb[0].mxu0
        %v4448 = vadd.f32 0.0, %v4447
        %v4449 = vpop.f32.mrb[0].mxu0
        %4450 = vmatprep.mubr.bf16.mxu0 0
        %4451 = vmatmul.mubr.bf16.gmra.mrb[0].mxu0 %v4387
        %v4452 = vpop.f32.mrb[0].mxu0
        %v4453 = vadd.f32 0.0, %v4452
        %v4454 = vpop.f32.mrb[0].mxu0
        %v4455 = vpop.f32.mrb[0].mxu0
        %v4456 = vadd.f32 0.0, %v4455
        %v4457 = vpop.f32.mrb[0].mxu0
        %4458 = vmatprep.mubr.bf16.mxu0 0
        %4459 = vmatmul.mubr.bf16.gmra.mrb[0].mxu0 %v4390
        %v4460 = vpop.f32.mrb[0].mxu0
        %v4461 = vadd.f32 0.0, %v4460
        %v4462 = vpop.f32.mrb[0].mxu0
        %v4463 = vpop.f32.mrb[0].mxu0
        %v4464 = vadd.f32 0.0, %v4463
        %v4465 = vpop.f32.mrb[0].mxu0
        %4466 = vmatprep.mubr.bf16.mxu0 0
        %4467 = vmatmul.mubr.bf16.gmra.mrb[0].mxu0 %v4393
        %v4468 = vpop.f32.mrb[0].mxu0
        %v4469 = vadd.f32 0.0, %v4468
        %v4470 = vpop.f32.mrb[0].mxu0
        %v4471 = vpop.f32.mrb[0].mxu0
        %v4472 = vadd.f32 0.0, %v4471
        %v4473 = vpop.f32.mrb[0].mxu0
        %4474 = vmatprep.mubr.bf16.mxu0 0
        %4475 = vmatmul.mubr.bf16.gmra.mrb[0].mxu0 %v4396
        %v4476 = vpop.f32.mrb[0].mxu0
        %v4477 = vadd.f32 0.0, %v4476
        %v4478 = vpop.f32.mrb[0].mxu0
        %v4479 = vpop.f32.mrb[0].mxu0
        %v4480 = vadd.f32 0.0, %v4479
        %v4481 = vpop.f32.mrb[0].mxu0
        %4482 = vmatprep.mubr.bf16.mxu0 0
        %4483 = vmatmul.mubr.bf16.gmra.mrb[0].mxu0 %v4399
        %v4484 = vpop.f32.mrb[0].mxu0
        %v4485 = vadd.f32 0.0, %v4484
        %v4486 = vpop.f32.mrb[0].mxu0
        %v4487 = vpop.f32.mrb[0].mxu0
        %v4488 = vadd.f32 0.0, %v4487
        %v4489 = vpop.f32.mrb[0].mxu0
        %4490 = vmatprep.mubr.bf16.mxu0 0
        %4491 = vmatmul.mubr.bf16.gmra.mrb[0].mxu0 %v4402
        %v4492 = vpop.f32.mrb[0].mxu0
        %v4493 = vadd.f32 0.0, %v4492
        %v4494 = vpop.f32.mrb[0].mxu0
        %v4495 = vpop.f32.mrb[0].mxu0
        %v4496 = vadd.f32 0.0, %v4495
        %v4497 = vpop.f32.mrb[0].mxu0
        %4498 = vmatprep.mubr.bf16.mxu0 0
        %4499 = vmatmul.mubr.bf16.gmra.mrb[0].mxu0 %v4405
        %v4500 = vpop.f32.mrb[0].mxu0
        %v4501 = vadd.f32 0.0, %v4500
        %v4502 = vpop.f32.mrb[0].mxu0
        %v4503 = vpop.f32.mrb[0].mxu0
        %v4504 = vadd.f32 0.0, %v4503
        %v4505 = vpop.f32.mrb[0].mxu0
        %4506 = vdwg.mxu0
        %v4507 = vadd.f32 %v4237, %v4445
        %v4508 = vadd.f32 %v4238, %v4448
        %v4509 = vadd.f32 %v4239, %v4453
        %v4510 = vadd.f32 %v4240, %v4456
        %v4511 = vadd.f32 %v4241, %v4461
        %v4512 = vadd.f32 %v4242, %v4464
        %v4513 = vadd.f32 %v4243, %v4469
        %v4514 = vadd.f32 %v4244, %v4472
        %v4515 = vadd.f32 %v4245, %v4477
        %v4516 = vadd.f32 %v4246, %v4480
        %v4517 = vadd.f32 %v4247, %v4485
        %v4518 = vadd.f32 %v4248, %v4488
        %v4519 = vadd.f32 %v4249, %v4493
        %v4520 = vadd.f32 %v4250, %v4496
        %v4521 = vadd.f32 %v4251, %v4501
        %v4522 = vadd.f32 %v4252, %v4504
        %s4523 = sadd.s32 %s361, 30
        %s4524 = smul.u32 %s4523, 7
        %s4525 = smul.addr %s4524, 4
        %s4526 = scalar_lea.vmem %s355, %s4525
        %v4527 = vld [vmem:[%s4526] sm:$0x8]
        %v4528 = vld [vmem:[%s4526 + $0x4] sm:$0xf]
        %v4529 = vld [vmem:[%s4526 + $0x8] sm:$0x7]
        %v4530 = vld [vmem:[%s4526 + $0x1c] sm:$0x8]
        %v4531 = vld [vmem:[%s4526 + $0x20] sm:$0xf]
        %v4532 = vld [vmem:[%s4526 + $0x24] sm:$0x7]
        %v4533 = vld [vmem:[%s4526 + $0x38] sm:$0x8]
        %v4534 = vld [vmem:[%s4526 + $0x3c] sm:$0xf]
        %v4535 = vld [vmem:[%s4526 + $0x40] sm:$0x7]
        %v4536 = vld [vmem:[%s4526 + $0x54] sm:$0x8]
        %v4537 = vld [vmem:[%s4526 + $0x58] sm:$0xf]
        %v4538 = vld [vmem:[%s4526 + $0x5c] sm:$0x7]
        %v4539 = vld [vmem:[%s4526 + $0x70] sm:$0x8]
        %v4540 = vld [vmem:[%s4526 + $0x74] sm:$0xf]
        %v4541 = vld [vmem:[%s4526 + $0x78] sm:$0x7]
        %v4542 = vld [vmem:[%s4526 + $0x8c] sm:$0x8]
        %v4543 = vld [vmem:[%s4526 + $0x90] sm:$0xf]
        %v4544 = vld [vmem:[%s4526 + $0x94] sm:$0x7]
        %v4545 = vld [vmem:[%s4526 + $0xa8] sm:$0x8]
        %v4546 = vld [vmem:[%s4526 + $0xac] sm:$0xf]
        %v4547 = vld [vmem:[%s4526 + $0xb0] sm:$0x7]
        %v4548 = vld [vmem:[%s4526 + $0xc4] sm:$0x8]
        %v4549 = vld [vmem:[%s4526 + $0xc8] sm:$0xf]
        %v4550 = vld [vmem:[%s4526 + $0xcc] sm:$0x7]
        %v4575 = vrot.slane %v4527, 7
        %v4576 = vrot.slane %v4575, 4
        %v4577 = vrot.slane %v4528, 7
        %v4578 = vsel %vm3135, %v4576, %v4577
        %v4579 = vrot.slane %v4577, 4
        %v4580 = vrot.slane %v4529, 7
        %v4581 = vsel %vm3135, %v4579, %v4580
        %v4582 = vrot.slane %v4530, 7
        %v4583 = vrot.slane %v4582, 4
        %v4584 = vrot.slane %v4531, 7
        %v4585 = vsel %vm3135, %v4583, %v4584
        %v4586 = vrot.slane %v4584, 4
        %v4587 = vrot.slane %v4532, 7
        %v4588 = vsel %vm3135, %v4586, %v4587
        %v4589 = vrot.slane %v4533, 7
        %v4590 = vrot.slane %v4589, 4
        %v4591 = vrot.slane %v4534, 7
        %v4592 = vsel %vm3135, %v4590, %v4591
        %v4593 = vrot.slane %v4591, 4
        %v4594 = vrot.slane %v4535, 7
        %v4595 = vsel %vm3135, %v4593, %v4594
        %v4596 = vrot.slane %v4536, 7
        %v4597 = vrot.slane %v4596, 4
        %v4598 = vrot.slane %v4537, 7
        %v4599 = vsel %vm3135, %v4597, %v4598
        %v4600 = vrot.slane %v4598, 4
        %v4601 = vrot.slane %v4538, 7
        %v4602 = vsel %vm3135, %v4600, %v4601
        %v4603 = vrot.slane %v4539, 7
        %v4604 = vrot.slane %v4603, 4
        %v4605 = vrot.slane %v4540, 7
        %v4606 = vsel %vm3135, %v4604, %v4605
        %v4607 = vrot.slane %v4605, 4
        %v4608 = vrot.slane %v4541, 7
        %v4609 = vsel %vm3135, %v4607, %v4608
        %v4610 = vrot.slane %v4542, 7
        %v4611 = vrot.slane %v4610, 4
        %v4612 = vrot.slane %v4543, 7
        %v4613 = vsel %vm3135, %v4611, %v4612
        %v4614 = vrot.slane %v4612, 4
        %v4615 = vrot.slane %v4544, 7
        %v4616 = vsel %vm3135, %v4614, %v4615
        %v4617 = vrot.slane %v4545, 7
        %v4618 = vrot.slane %v4617, 4
        %v4619 = vrot.slane %v4546, 7
        %v4620 = vsel %vm3135, %v4618, %v4619
        %v4621 = vrot.slane %v4619, 4
        %v4622 = vrot.slane %v4547, 7
        %v4623 = vsel %vm3135, %v4621, %v4622
        %v4624 = vrot.slane %v4548, 7
        %v4625 = vrot.slane %v4624, 4
        %v4626 = vrot.slane %v4549, 7
        %v4627 = vsel %vm3135, %v4625, %v4626
        %v4628 = vrot.slane %v4626, 4
        %v4629 = vrot.slane %v4550, 7
        %v4630 = vsel %vm3135, %v4628, %v4629
        %s4631 = scalar_lea.vmem %s3, 12
        %v4632 = vld [vmem:[%s4631] sm:$0x3]
        %v4633 = vunpack.c.l.b16 %v4578
        %v4634 = vunpack.c.l.b16 %v4581
        %v4635 = vunpack.c.l.b16 %v4585
        %v4636 = vunpack.c.l.b16 %v4588
        %v4637 = vunpack.c.l.b16 %v4592
        %v4638 = vunpack.c.l.b16 %v4595
        %v4639 = vunpack.c.l.b16 %v4599
        %v4640 = vunpack.c.l.b16 %v4602
        %v4641 = vunpack.c.l.b16 %v4606
        %v4642 = vunpack.c.l.b16 %v4609
        %v4643 = vunpack.c.l.b16 %v4613
        %v4644 = vunpack.c.l.b16 %v4616
        %v4645 = vunpack.c.l.b16 %v4620
        %v4646 = vunpack.c.l.b16 %v4623
        %v4647 = vunpack.c.l.b16 %v4627
        %v4648 = vunpack.c.l.b16 %v4630
        %v4649 = vpack.c.b16 %v4634, %v4633
        %v4650 = vpack.c.b16 %v4636, %v4635
        %v4651 = vpack.c.b16 %v4638, %v4637
        %v4652 = vpack.c.b16 %v4640, %v4639
        %v4653 = vpack.c.b16 %v4642, %v4641
        %v4654 = vpack.c.b16 %v4644, %v4643
        %v4655 = vpack.c.b16 %v4646, %v4645
        %v4656 = vpack.c.b16 %v4648, %v4647
        %v4658 = vsel %vm498, %v4649, 0
        %v4661 = vsel %vm498, %v4650, 0
        %v4664 = vsel %vm498, %v4651, 0
        %v4667 = vsel %vm498, %v4652, 0
        %v4670 = vsel %vm498, %v4653, 0
        %v4673 = vsel %vm498, %v4654, 0
        %v4676 = vsel %vm498, %v4655, 0
        %v4679 = vsel %vm498, %v4656, 0
        %v4682 = vsel %vm523, %v4632, 0
        %4684 = vmatprep.subr.bf16.mxu0 0
        %4685 = vmatpush1.bf16.msra.mxu0 %v4682
        %4686 = vmatprep.subr.bf16.mxu0 0
        %4687 = vmatpush1.bf16.msra.mxu0 0
        %4688 = vmatprep.subr.bf16.mxu0 0
        %4689 = vmatpush1.bf16.msra.mxu0 0
        %4690 = vmatprep.subr.bf16.mxu0 0
        %4691 = vmatpush1.bf16.msra.mxu0 0
        %4692 = vmatprep.subr.bf16.mxu0 0
        %4693 = vmatpush1.bf16.msra.mxu0 0
        %4694 = vmatprep.subr.bf16.mxu0 0
        %4695 = vmatpush1.bf16.msra.mxu0 0
        %4696 = vmatprep.subr.bf16.mxu0 0
        %4697 = vmatpush1.bf16.msra.mxu0 0
        %4698 = vmatprep.subr.bf16.mxu0 0
        %4699 = vmatpush1.bf16.msra.mxu0 0
        %4700 = vmatprep.subr.bf16.mxu0 0
        %4701 = vmatpush1.bf16.msra.mxu0 0
        %4702 = vmatprep.subr.bf16.mxu0 0
        %4703 = vmatpush1.bf16.msra.mxu0 0
        %4704 = vmatprep.subr.bf16.mxu0 0
        %4705 = vmatpush1.bf16.msra.mxu0 0
        %4706 = vmatprep.subr.bf16.mxu0 0
        %4707 = vmatpush1.bf16.msra.mxu0 0
        %4708 = vmatprep.subr.bf16.mxu0 0
        %4709 = vmatpush1.bf16.msra.mxu0 0
        %4710 = vmatprep.subr.bf16.mxu0 0
        %4711 = vmatpush1.bf16.msra.mxu0 0
        %4712 = vmatprep.subr.bf16.mxu0 0
        %4713 = vmatpush1.bf16.msra.mxu0 0
        %4714 = vmatprep.subr.bf16.mxu0 0
        %4715 = vmatpush1.bf16.msra.mxu0 0
        %4716 = vmatprep.mubr.bf16.mxu0 0
        %4717 = vmatmul.mubr.bf16.gmra.mrb[0].mxu0 %v4658
        %v4718 = vpop.f32.mrb[0].mxu0
        %v4719 = vadd.f32 0.0, %v4718
        %v4720 = vpop.f32.mrb[0].mxu0
        %v4721 = vpop.f32.mrb[0].mxu0
        %v4722 = vadd.f32 0.0, %v4721
        %v4723 = vpop.f32.mrb[0].mxu0
        %4724 = vmatprep.mubr.bf16.mxu0 0
        %4725 = vmatmul.mubr.bf16.gmra.mrb[0].mxu0 %v4661
        %v4726 = vpop.f32.mrb[0].mxu0
        %v4727 = vadd.f32 0.0, %v4726
        %v4728 = vpop.f32.mrb[0].mxu0
        %v4729 = vpop.f32.mrb[0].mxu0
        %v4730 = vadd.f32 0.0, %v4729
        %v4731 = vpop.f32.mrb[0].mxu0
        %4732 = vmatprep.mubr.bf16.mxu0 0
        %4733 = vmatmul.mubr.bf16.gmra.mrb[0].mxu0 %v4664
        %v4734 = vpop.f32.mrb[0].mxu0
        %v4735 = vadd.f32 0.0, %v4734
        %v4736 = vpop.f32.mrb[0].mxu0
        %v4737 = vpop.f32.mrb[0].mxu0
        %v4738 = vadd.f32 0.0, %v4737
        %v4739 = vpop.f32.mrb[0].mxu0
        %4740 = vmatprep.mubr.bf16.mxu0 0
        %4741 = vmatmul.mubr.bf16.gmra.mrb[0].mxu0 %v4667
        %v4742 = vpop.f32.mrb[0].mxu0
        %v4743 = vadd.f32 0.0, %v4742
        %v4744 = vpop.f32.mrb[0].mxu0
        %v4745 = vpop.f32.mrb[0].mxu0
        %v4746 = vadd.f32 0.0, %v4745
        %v4747 = vpop.f32.mrb[0].mxu0
        %4748 = vmatprep.mubr.bf16.mxu0 0
        %4749 = vmatmul.mubr.bf16.gmra.mrb[0].mxu0 %v4670
        %v4750 = vpop.f32.mrb[0].mxu0
        %v4751 = vadd.f32 0.0, %v4750
        %v4752 = vpop.f32.mrb[0].mxu0
        %v4753 = vpop.f32.mrb[0].mxu0
        %v4754 = vadd.f32 0.0, %v4753
        %v4755 = vpop.f32.mrb[0].mxu0
        %4756 = vmatprep.mubr.bf16.mxu0 0
        %4757 = vmatmul.mubr.bf16.gmra.mrb[0].mxu0 %v4673
        %v4758 = vpop.f32.mrb[0].mxu0
        %v4759 = vadd.f32 0.0, %v4758
        %v4760 = vpop.f32.mrb[0].mxu0
        %v4761 = vpop.f32.mrb[0].mxu0
        %v4762 = vadd.f32 0.0, %v4761
        %v4763 = vpop.f32.mrb[0].mxu0
        %4764 = vmatprep.mubr.bf16.mxu0 0
        %4765 = vmatmul.mubr.bf16.gmra.mrb[0].mxu0 %v4676
        %v4766 = vpop.f32.mrb[0].mxu0
        %v4767 = vadd.f32 0.0, %v4766
        %v4768 = vpop.f32.mrb[0].mxu0
        %v4769 = vpop.f32.mrb[0].mxu0
        %v4770 = vadd.f32 0.0, %v4769
        %v4771 = vpop.f32.mrb[0].mxu0
        %4772 = vmatprep.mubr.bf16.mxu0 0
        %4773 = vmatmul.mubr.bf16.gmra.mrb[0].mxu0 %v4679
        %v4774 = vpop.f32.mrb[0].mxu0
        %v4775 = vadd.f32 0.0, %v4774
        %v4776 = vpop.f32.mrb[0].mxu0
        %v4777 = vpop.f32.mrb[0].mxu0
        %v4778 = vadd.f32 0.0, %v4777
        %v4779 = vpop.f32.mrb[0].mxu0
        %4780 = vdwg.mxu0
        %v4781 = vadd.f32 %v4507, %v4719
        %v4782 = vadd.f32 %v4508, %v4722
        %v4783 = vadd.f32 %v4509, %v4727
        %v4784 = vadd.f32 %v4510, %v4730
        %v4785 = vadd.f32 %v4511, %v4735
        %v4786 = vadd.f32 %v4512, %v4738
        %v4787 = vadd.f32 %v4513, %v4743
        %v4788 = vadd.f32 %v4514, %v4746
        %v4789 = vadd.f32 %v4515, %v4751
        %v4790 = vadd.f32 %v4516, %v4754
        %v4791 = vadd.f32 %v4517, %v4759
        %v4792 = vadd.f32 %v4518, %v4762
        %v4793 = vadd.f32 %v4519, %v4767
        %v4794 = vadd.f32 %v4520, %v4770
        %v4795 = vadd.f32 %v4521, %v4775
        %v4796 = vadd.f32 %v4522, %v4778
        %v4797 = vld [vmem:[%s4526 + $0x8] sm:$0xe]
        %v4798 = vld [vmem:[%s4526 + $0xc] sm:$0xf]
        %v4799 = vld [vmem:[%s4526 + $0x10] sm:$0x1]
        %v4800 = vld [vmem:[%s4526 + $0x24] sm:$0xe]
        %v4801 = vld [vmem:[%s4526 + $0x28] sm:$0xf]
        %v4802 = vld [vmem:[%s4526 + $0x2c] sm:$0x1]
        %v4803 = vld [vmem:[%s4526 + $0x40] sm:$0xe]
        %v4804 = vld [vmem:[%s4526 + $0x44] sm:$0xf]
        %v4805 = vld [vmem:[%s4526 + $0x48] sm:$0x1]
        %v4806 = vld [vmem:[%s4526 + $0x5c] sm:$0xe]
        %v4807 = vld [vmem:[%s4526 + $0x60] sm:$0xf]
        %v4808 = vld [vmem:[%s4526 + $0x64] sm:$0x1]
        %v4809 = vld [vmem:[%s4526 + $0x78] sm:$0xe]
        %v4810 = vld [vmem:[%s4526 + $0x7c] sm:$0xf]
        %v4811 = vld [vmem:[%s4526 + $0x80] sm:$0x1]
        %v4812 = vld [vmem:[%s4526 + $0x94] sm:$0xe]
        %v4813 = vld [vmem:[%s4526 + $0x98] sm:$0xf]
        %v4814 = vld [vmem:[%s4526 + $0x9c] sm:$0x1]
        %v4815 = vld [vmem:[%s4526 + $0xb0] sm:$0xe]
        %v4816 = vld [vmem:[%s4526 + $0xb4] sm:$0xf]
        %v4817 = vld [vmem:[%s4526 + $0xb8] sm:$0x1]
        %v4818 = vld [vmem:[%s4526 + $0xcc] sm:$0xe]
        %v4819 = vld [vmem:[%s4526 + $0xd0] sm:$0xf]
        %v4820 = vld [vmem:[%s4526 + $0xd4] sm:$0x1]
        %v4845 = vrot.slane %v4797, 5
        %v4846 = vrot.slane %v4845, 4
        %v4847 = vrot.slane %v4798, 5
        %v4848 = vsel %vm416, %v4846, %v4847
        %v4849 = vrot.slane %v4847, 4
        %v4850 = vrot.slane %v4799, 5
        %v4851 = vsel %vm416, %v4849, %v4850
        %v4852 = vrot.slane %v4800, 5
        %v4853 = vrot.slane %v4852, 4
        %v4854 = vrot.slane %v4801, 5
        %v4855 = vsel %vm416, %v4853, %v4854
        %v4856 = vrot.slane %v4854, 4
        %v4857 = vrot.slane %v4802, 5
        %v4858 = vsel %vm416, %v4856, %v4857
        %v4859 = vrot.slane %v4803, 5
        %v4860 = vrot.slane %v4859, 4
        %v4861 = vrot.slane %v4804, 5
        %v4862 = vsel %vm416, %v4860, %v4861
        %v4863 = vrot.slane %v4861, 4
        %v4864 = vrot.slane %v4805, 5
        %v4865 = vsel %vm416, %v4863, %v4864
        %v4866 = vrot.slane %v4806, 5
        %v4867 = vrot.slane %v4866, 4
        %v4868 = vrot.slane %v4807, 5
        %v4869 = vsel %vm416, %v4867, %v4868
        %v4870 = vrot.slane %v4868, 4
        %v4871 = vrot.slane %v4808, 5
        %v4872 = vsel %vm416, %v4870, %v4871
        %v4873 = vrot.slane %v4809, 5
        %v4874 = vrot.slane %v4873, 4
        %v4875 = vrot.slane %v4810, 5
        %v4876 = vsel %vm416, %v4874, %v4875
        %v4877 = vrot.slane %v4875, 4
        %v4878 = vrot.slane %v4811, 5
        %v4879 = vsel %vm416, %v4877, %v4878
        %v4880 = vrot.slane %v4812, 5
        %v4881 = vrot.slane %v4880, 4
        %v4882 = vrot.slane %v4813, 5
        %v4883 = vsel %vm416, %v4881, %v4882
        %v4884 = vrot.slane %v4882, 4
        %v4885 = vrot.slane %v4814, 5
        %v4886 = vsel %vm416, %v4884, %v4885
        %v4887 = vrot.slane %v4815, 5
        %v4888 = vrot.slane %v4887, 4
        %v4889 = vrot.slane %v4816, 5
        %v4890 = vsel %vm416, %v4888, %v4889
        %v4891 = vrot.slane %v4889, 4
        %v4892 = vrot.slane %v4817, 5
        %v4893 = vsel %vm416, %v4891, %v4892
        %v4894 = vrot.slane %v4818, 5
        %v4895 = vrot.slane %v4894, 4
        %v4896 = vrot.slane %v4819, 5
        %v4897 = vsel %vm416, %v4895, %v4896
        %v4898 = vrot.slane %v4896, 4
        %v4899 = vrot.slane %v4820, 5
        %v4900 = vsel %vm416, %v4898, %v4899
        %s4901 = scalar_lea.vmem %s3, 14
        %v4902 = vld [vmem:[%s4901] sm:$0x3]
        %v4903 = vunpack.c.l.b16 %v4848
        %v4904 = vunpack.c.l.b16 %v4851
        %v4905 = vunpack.c.l.b16 %v4855
        %v4906 = vunpack.c.l.b16 %v4858
        %v4907 = vunpack.c.l.b16 %v4862
        %v4908 = vunpack.c.l.b16 %v4865
        %v4909 = vunpack.c.l.b16 %v4869
        %v4910 = vunpack.c.l.b16 %v4872
        %v4911 = vunpack.c.l.b16 %v4876
        %v4912 = vunpack.c.l.b16 %v4879
        %v4913 = vunpack.c.l.b16 %v4883
        %v4914 = vunpack.c.l.b16 %v4886
        %v4915 = vunpack.c.l.b16 %v4890
        %v4916 = vunpack.c.l.b16 %v4893
        %v4917 = vunpack.c.l.b16 %v4897
        %v4918 = vunpack.c.l.b16 %v4900
        %v4919 = vpack.c.b16 %v4904, %v4903
        %v4920 = vpack.c.b16 %v4906, %v4905
        %v4921 = vpack.c.b16 %v4908, %v4907
        %v4922 = vpack.c.b16 %v4910, %v4909
        %v4923 = vpack.c.b16 %v4912, %v4911
        %v4924 = vpack.c.b16 %v4914, %v4913
        %v4925 = vpack.c.b16 %v4916, %v4915
        %v4926 = vpack.c.b16 %v4918, %v4917
        %v4928 = vsel %vm498, %v4919, 0
        %v4931 = vsel %vm498, %v4920, 0
        %v4934 = vsel %vm498, %v4921, 0
        %v4937 = vsel %vm498, %v4922, 0
        %v4940 = vsel %vm498, %v4923, 0
        %v4943 = vsel %vm498, %v4924, 0
        %v4946 = vsel %vm498, %v4925, 0
        %v4949 = vsel %vm498, %v4926, 0
        %v4952 = vsel %vm523, %v4902, 0
        %4954 = vmatprep.subr.bf16.mxu0 0
        %4955 = vmatpush1.bf16.msra.mxu0 %v4952
        %4956 = vmatprep.subr.bf16.mxu0 0
        %4957 = vmatpush1.bf16.msra.mxu0 0
        %4958 = vmatprep.subr.bf16.mxu0 0
        %4959 = vmatpush1.bf16.msra.mxu0 0
        %4960 = vmatprep.subr.bf16.mxu0 0
        %4961 = vmatpush1.bf16.msra.mxu0 0
        %4962 = vmatprep.subr.bf16.mxu0 0
        %4963 = vmatpush1.bf16.msra.mxu0 0
        %4964 = vmatprep.subr.bf16.mxu0 0
        %4965 = vmatpush1.bf16.msra.mxu0 0
        %4966 = vmatprep.subr.bf16.mxu0 0
        %4967 = vmatpush1.bf16.msra.mxu0 0
        %4968 = vmatprep.subr.bf16.mxu0 0
        %4969 = vmatpush1.bf16.msra.mxu0 0
        %4970 = vmatprep.subr.bf16.mxu0 0
        %4971 = vmatpush1.bf16.msra.mxu0 0
        %4972 = vmatprep.subr.bf16.mxu0 0
        %4973 = vmatpush1.bf16.msra.mxu0 0
        %4974 = vmatprep.subr.bf16.mxu0 0
        %4975 = vmatpush1.bf16.msra.mxu0 0
        %4976 = vmatprep.subr.bf16.mxu0 0
        %4977 = vmatpush1.bf16.msra.mxu0 0
        %4978 = vmatprep.subr.bf16.mxu0 0
        %4979 = vmatpush1.bf16.msra.mxu0 0
        %4980 = vmatprep.subr.bf16.mxu0 0
        %4981 = vmatpush1.bf16.msra.mxu0 0
        %4982 = vmatprep.subr.bf16.mxu0 0
        %4983 = vmatpush1.bf16.msra.mxu0 0
        %4984 = vmatprep.subr.bf16.mxu0 0
        %4985 = vmatpush1.bf16.msra.mxu0 0
        %4986 = vmatprep.mubr.bf16.mxu0 0
        %4987 = vmatmul.mubr.bf16.gmra.mrb[0].mxu0 %v4928
        %v4988 = vpop.f32.mrb[0].mxu0
        %v4989 = vadd.f32 0.0, %v4988
        %v4990 = vpop.f32.mrb[0].mxu0
        %v4991 = vpop.f32.mrb[0].mxu0
        %v4992 = vadd.f32 0.0, %v4991
        %v4993 = vpop.f32.mrb[0].mxu0
        %4994 = vmatprep.mubr.bf16.mxu0 0
        %4995 = vmatmul.mubr.bf16.gmra.mrb[0].mxu0 %v4931
        %v4996 = vpop.f32.mrb[0].mxu0
        %v4997 = vadd.f32 0.0, %v4996
        %v4998 = vpop.f32.mrb[0].mxu0
        %v4999 = vpop.f32.mrb[0].mxu0
        %v5000 = vadd.f32 0.0, %v4999
        %v5001 = vpop.f32.mrb[0].mxu0
        %5002 = vmatprep.mubr.bf16.mxu0 0
        %5003 = vmatmul.mubr.bf16.gmra.mrb[0].mxu0 %v4934
        %v5004 = vpop.f32.mrb[0].mxu0
        %v5005 = vadd.f32 0.0, %v5004
        %v5006 = vpop.f32.mrb[0].mxu0
        %v5007 = vpop.f32.mrb[0].mxu0
        %v5008 = vadd.f32 0.0, %v5007
        %v5009 = vpop.f32.mrb[0].mxu0
        %5010 = vmatprep.mubr.bf16.mxu0 0
        %5011 = vmatmul.mubr.bf16.gmra.mrb[0].mxu0 %v4937
        %v5012 = vpop.f32.mrb[0].mxu0
        %v5013 = vadd.f32 0.0, %v5012
        %v5014 = vpop.f32.mrb[0].mxu0
        %v5015 = vpop.f32.mrb[0].mxu0
        %v5016 = vadd.f32 0.0, %v5015
        %v5017 = vpop.f32.mrb[0].mxu0
        %5018 = vmatprep.mubr.bf16.mxu0 0
        %5019 = vmatmul.mubr.bf16.gmra.mrb[0].mxu0 %v4940
        %v5020 = vpop.f32.mrb[0].mxu0
        %v5021 = vadd.f32 0.0, %v5020
        %v5022 = vpop.f32.mrb[0].mxu0
        %v5023 = vpop.f32.mrb[0].mxu0
        %v5024 = vadd.f32 0.0, %v5023
        %v5025 = vpop.f32.mrb[0].mxu0
        %5026 = vmatprep.mubr.bf16.mxu0 0
        %5027 = vmatmul.mubr.bf16.gmra.mrb[0].mxu0 %v4943
        %v5028 = vpop.f32.mrb[0].mxu0
        %v5029 = vadd.f32 0.0, %v5028
        %v5030 = vpop.f32.mrb[0].mxu0
        %v5031 = vpop.f32.mrb[0].mxu0
        %v5032 = vadd.f32 0.0, %v5031
        %v5033 = vpop.f32.mrb[0].mxu0
        %5034 = vmatprep.mubr.bf16.mxu0 0
        %5035 = vmatmul.mubr.bf16.gmra.mrb[0].mxu0 %v4946
        %v5036 = vpop.f32.mrb[0].mxu0
        %v5037 = vadd.f32 0.0, %v5036
        %v5038 = vpop.f32.mrb[0].mxu0
        %v5039 = vpop.f32.mrb[0].mxu0
        %v5040 = vadd.f32 0.0, %v5039
        %v5041 = vpop.f32.mrb[0].mxu0
        %5042 = vmatprep.mubr.bf16.mxu0 0
        %5043 = vmatmul.mubr.bf16.gmra.mrb[0].mxu0 %v4949
        %v5044 = vpop.f32.mrb[0].mxu0
        %v5045 = vadd.f32 0.0, %v5044
        %v5046 = vpop.f32.mrb[0].mxu0
        %v5047 = vpop.f32.mrb[0].mxu0
        %v5048 = vadd.f32 0.0, %v5047
        %v5049 = vpop.f32.mrb[0].mxu0
        %5050 = vdwg.mxu0
        %v5051 = vadd.f32 %v4781, %v4989
        %v5052 = vadd.f32 %v4782, %v4992
        %v5053 = vadd.f32 %v4783, %v4997
        %v5054 = vadd.f32 %v4784, %v5000
        %v5055 = vadd.f32 %v4785, %v5005
        %v5056 = vadd.f32 %v4786, %v5008
        %v5057 = vadd.f32 %v4787, %v5013
        %v5058 = vadd.f32 %v4788, %v5016
        %v5059 = vadd.f32 %v4789, %v5021
        %v5060 = vadd.f32 %v4790, %v5024
        %v5061 = vadd.f32 %v4791, %v5029
        %v5062 = vadd.f32 %v4792, %v5032
        %v5063 = vadd.f32 %v4793, %v5037
        %v5064 = vadd.f32 %v4794, %v5040
        %v5065 = vadd.f32 %v4795, %v5045
        %v5066 = vadd.f32 %v4796, %v5048
        %v5067 = vld [vmem:[%s4526 + $0xc] sm:$0x8]
        %v5068 = vld [vmem:[%s4526 + $0x10] sm:$0xf]
        %v5069 = vld [vmem:[%s4526 + $0x14] sm:$0x7]
        %v5070 = vld [vmem:[%s4526 + $0x28] sm:$0x8]
        %v5071 = vld [vmem:[%s4526 + $0x2c] sm:$0xf]
        %v5072 = vld [vmem:[%s4526 + $0x30] sm:$0x7]
        %v5073 = vld [vmem:[%s4526 + $0x44] sm:$0x8]
        %v5074 = vld [vmem:[%s4526 + $0x48] sm:$0xf]
        %v5075 = vld [vmem:[%s4526 + $0x4c] sm:$0x7]
        %v5076 = vld [vmem:[%s4526 + $0x60] sm:$0x8]
        %v5077 = vld [vmem:[%s4526 + $0x64] sm:$0xf]
        %v5078 = vld [vmem:[%s4526 + $0x68] sm:$0x7]
        %v5079 = vld [vmem:[%s4526 + $0x7c] sm:$0x8]
        %v5080 = vld [vmem:[%s4526 + $0x80] sm:$0xf]
        %v5081 = vld [vmem:[%s4526 + $0x84] sm:$0x7]
        %v5082 = vld [vmem:[%s4526 + $0x98] sm:$0x8]
        %v5083 = vld [vmem:[%s4526 + $0x9c] sm:$0xf]
        %v5084 = vld [vmem:[%s4526 + $0xa0] sm:$0x7]
        %v5085 = vld [vmem:[%s4526 + $0xb4] sm:$0x8]
        %v5086 = vld [vmem:[%s4526 + $0xb8] sm:$0xf]
        %v5087 = vld [vmem:[%s4526 + $0xbc] sm:$0x7]
        %v5088 = vld [vmem:[%s4526 + $0xd0] sm:$0x8]
        %v5089 = vld [vmem:[%s4526 + $0xd4] sm:$0xf]
        %v5090 = vld [vmem:[%s4526 + $0xd8] sm:$0x7]
        %v5115 = vrot.slane %v5067, 7
        %v5116 = vrot.slane %v5115, 4
        %v5117 = vrot.slane %v5068, 7
        %v5118 = vsel %vm3135, %v5116, %v5117
        %v5119 = vrot.slane %v5117, 4
        %v5120 = vrot.slane %v5069, 7
        %v5121 = vsel %vm3135, %v5119, %v5120
        %v5122 = vrot.slane %v5070, 7
        %v5123 = vrot.slane %v5122, 4
        %v5124 = vrot.slane %v5071, 7
        %v5125 = vsel %vm3135, %v5123, %v5124
        %v5126 = vrot.slane %v5124, 4
        %v5127 = vrot.slane %v5072, 7
        %v5128 = vsel %vm3135, %v5126, %v5127
        %v5129 = vrot.slane %v5073, 7
        %v5130 = vrot.slane %v5129, 4
        %v5131 = vrot.slane %v5074, 7
        %v5132 = vsel %vm3135, %v5130, %v5131
        %v5133 = vrot.slane %v5131, 4
        %v5134 = vrot.slane %v5075, 7
        %v5135 = vsel %vm3135, %v5133, %v5134
        %v5136 = vrot.slane %v5076, 7
        %v5137 = vrot.slane %v5136, 4
        %v5138 = vrot.slane %v5077, 7
        %v5139 = vsel %vm3135, %v5137, %v5138
        %v5140 = vrot.slane %v5138, 4
        %v5141 = vrot.slane %v5078, 7
        %v5142 = vsel %vm3135, %v5140, %v5141
        %v5143 = vrot.slane %v5079, 7
        %v5144 = vrot.slane %v5143, 4
        %v5145 = vrot.slane %v5080, 7
        %v5146 = vsel %vm3135, %v5144, %v5145
        %v5147 = vrot.slane %v5145, 4
        %v5148 = vrot.slane %v5081, 7
        %v5149 = vsel %vm3135, %v5147, %v5148
        %v5150 = vrot.slane %v5082, 7
        %v5151 = vrot.slane %v5150, 4
        %v5152 = vrot.slane %v5083, 7
        %v5153 = vsel %vm3135, %v5151, %v5152
        %v5154 = vrot.slane %v5152, 4
        %v5155 = vrot.slane %v5084, 7
        %v5156 = vsel %vm3135, %v5154, %v5155
        %v5157 = vrot.slane %v5085, 7
        %v5158 = vrot.slane %v5157, 4
        %v5159 = vrot.slane %v5086, 7
        %v5160 = vsel %vm3135, %v5158, %v5159
        %v5161 = vrot.slane %v5159, 4
        %v5162 = vrot.slane %v5087, 7
        %v5163 = vsel %vm3135, %v5161, %v5162
        %v5164 = vrot.slane %v5088, 7
        %v5165 = vrot.slane %v5164, 4
        %v5166 = vrot.slane %v5089, 7
        %v5167 = vsel %vm3135, %v5165, %v5166
        %v5168 = vrot.slane %v5166, 4
        %v5169 = vrot.slane %v5090, 7
        %v5170 = vsel %vm3135, %v5168, %v5169
        %s5171 = scalar_lea.vmem %s3, 16
        %v5172 = vld [vmem:[%s5171] sm:$0x3]
        %v5173 = vunpack.c.l.b16 %v5118
        %v5174 = vunpack.c.l.b16 %v5121
        %v5175 = vunpack.c.l.b16 %v5125
        %v5176 = vunpack.c.l.b16 %v5128
        %v5177 = vunpack.c.l.b16 %v5132
        %v5178 = vunpack.c.l.b16 %v5135
        %v5179 = vunpack.c.l.b16 %v5139
        %v5180 = vunpack.c.l.b16 %v5142
        %v5181 = vunpack.c.l.b16 %v5146
        %v5182 = vunpack.c.l.b16 %v5149
        %v5183 = vunpack.c.l.b16 %v5153
        %v5184 = vunpack.c.l.b16 %v5156
        %v5185 = vunpack.c.l.b16 %v5160
        %v5186 = vunpack.c.l.b16 %v5163
        %v5187 = vunpack.c.l.b16 %v5167
        %v5188 = vunpack.c.l.b16 %v5170
        %v5189 = vpack.c.b16 %v5174, %v5173
        %v5190 = vpack.c.b16 %v5176, %v5175
        %v5191 = vpack.c.b16 %v5178, %v5177
        %v5192 = vpack.c.b16 %v5180, %v5179
        %v5193 = vpack.c.b16 %v5182, %v5181
        %v5194 = vpack.c.b16 %v5184, %v5183
        %v5195 = vpack.c.b16 %v5186, %v5185
        %v5196 = vpack.c.b16 %v5188, %v5187
        %v5198 = vsel %vm498, %v5189, 0
        %v5201 = vsel %vm498, %v5190, 0
        %v5204 = vsel %vm498, %v5191, 0
        %v5207 = vsel %vm498, %v5192, 0
        %v5210 = vsel %vm498, %v5193, 0
        %v5213 = vsel %vm498, %v5194, 0
        %v5216 = vsel %vm498, %v5195, 0
        %v5219 = vsel %vm498, %v5196, 0
        %v5222 = vsel %vm523, %v5172, 0
        %5224 = vmatprep.subr.bf16.mxu0 0
        %5225 = vmatpush1.bf16.msra.mxu0 %v5222
        %5226 = vmatprep.subr.bf16.mxu0 0
        %5227 = vmatpush1.bf16.msra.mxu0 0
        %5228 = vmatprep.subr.bf16.mxu0 0
        %5229 = vmatpush1.bf16.msra.mxu0 0
        %5230 = vmatprep.subr.bf16.mxu0 0
        %5231 = vmatpush1.bf16.msra.mxu0 0
        %5232 = vmatprep.subr.bf16.mxu0 0
        %5233 = vmatpush1.bf16.msra.mxu0 0
        %5234 = vmatprep.subr.bf16.mxu0 0
        %5235 = vmatpush1.bf16.msra.mxu0 0
        %5236 = vmatprep.subr.bf16.mxu0 0
        %5237 = vmatpush1.bf16.msra.mxu0 0
        %5238 = vmatprep.subr.bf16.mxu0 0
        %5239 = vmatpush1.bf16.msra.mxu0 0
        %5240 = vmatprep.subr.bf16.mxu0 0
        %5241 = vmatpush1.bf16.msra.mxu0 0
        %5242 = vmatprep.subr.bf16.mxu0 0
        %5243 = vmatpush1.bf16.msra.mxu0 0
        %5244 = vmatprep.subr.bf16.mxu0 0
        %5245 = vmatpush1.bf16.msra.mxu0 0
        %5246 = vmatprep.subr.bf16.mxu0 0
        %5247 = vmatpush1.bf16.msra.mxu0 0
        %5248 = vmatprep.subr.bf16.mxu0 0
        %5249 = vmatpush1.bf16.msra.mxu0 0
        %5250 = vmatprep.subr.bf16.mxu0 0
        %5251 = vmatpush1.bf16.msra.mxu0 0
        %5252 = vmatprep.subr.bf16.mxu0 0
        %5253 = vmatpush1.bf16.msra.mxu0 0
        %5254 = vmatprep.subr.bf16.mxu0 0
        %5255 = vmatpush1.bf16.msra.mxu0 0
        %5256 = vmatprep.mubr.bf16.mxu0 0
        %5257 = vmatmul.mubr.bf16.gmra.mrb[0].mxu0 %v5198
        %v5258 = vpop.f32.mrb[0].mxu0
        %v5259 = vadd.f32 0.0, %v5258
        %v5260 = vpop.f32.mrb[0].mxu0
        %v5261 = vpop.f32.mrb[0].mxu0
        %v5262 = vadd.f32 0.0, %v5261
        %v5263 = vpop.f32.mrb[0].mxu0
        %5264 = vmatprep.mubr.bf16.mxu0 0
        %5265 = vmatmul.mubr.bf16.gmra.mrb[0].mxu0 %v5201
        %v5266 = vpop.f32.mrb[0].mxu0
        %v5267 = vadd.f32 0.0, %v5266
        %v5268 = vpop.f32.mrb[0].mxu0
        %v5269 = vpop.f32.mrb[0].mxu0
        %v5270 = vadd.f32 0.0, %v5269
        %v5271 = vpop.f32.mrb[0].mxu0
        %5272 = vmatprep.mubr.bf16.mxu0 0
        %5273 = vmatmul.mubr.bf16.gmra.mrb[0].mxu0 %v5204
        %v5274 = vpop.f32.mrb[0].mxu0
        %v5275 = vadd.f32 0.0, %v5274
        %v5276 = vpop.f32.mrb[0].mxu0
        %v5277 = vpop.f32.mrb[0].mxu0
        %v5278 = vadd.f32 0.0, %v5277
        %v5279 = vpop.f32.mrb[0].mxu0
        %5280 = vmatprep.mubr.bf16.mxu0 0
        %5281 = vmatmul.mubr.bf16.gmra.mrb[0].mxu0 %v5207
        %v5282 = vpop.f32.mrb[0].mxu0
        %v5283 = vadd.f32 0.0, %v5282
        %v5284 = vpop.f32.mrb[0].mxu0
        %v5285 = vpop.f32.mrb[0].mxu0
        %v5286 = vadd.f32 0.0, %v5285
        %v5287 = vpop.f32.mrb[0].mxu0
        %5288 = vmatprep.mubr.bf16.mxu0 0
        %5289 = vmatmul.mubr.bf16.gmra.mrb[0].mxu0 %v5210
        %v5290 = vpop.f32.mrb[0].mxu0
        %v5291 = vadd.f32 0.0, %v5290
        %v5292 = vpop.f32.mrb[0].mxu0
        %v5293 = vpop.f32.mrb[0].mxu0
        %v5294 = vadd.f32 0.0, %v5293
        %v5295 = vpop.f32.mrb[0].mxu0
        %5296 = vmatprep.mubr.bf16.mxu0 0
        %5297 = vmatmul.mubr.bf16.gmra.mrb[0].mxu0 %v5213
        %v5298 = vpop.f32.mrb[0].mxu0
        %v5299 = vadd.f32 0.0, %v5298
        %v5300 = vpop.f32.mrb[0].mxu0
        %v5301 = vpop.f32.mrb[0].mxu0
        %v5302 = vadd.f32 0.0, %v5301
        %v5303 = vpop.f32.mrb[0].mxu0
        %5304 = vmatprep.mubr.bf16.mxu0 0
        %5305 = vmatmul.mubr.bf16.gmra.mrb[0].mxu0 %v5216
        %v5306 = vpop.f32.mrb[0].mxu0
        %v5307 = vadd.f32 0.0, %v5306
        %v5308 = vpop.f32.mrb[0].mxu0
        %v5309 = vpop.f32.mrb[0].mxu0
        %v5310 = vadd.f32 0.0, %v5309
        %v5311 = vpop.f32.mrb[0].mxu0
        %5312 = vmatprep.mubr.bf16.mxu0 0
        %5313 = vmatmul.mubr.bf16.gmra.mrb[0].mxu0 %v5219
        %v5314 = vpop.f32.mrb[0].mxu0
        %v5315 = vadd.f32 0.0, %v5314
        %v5316 = vpop.f32.mrb[0].mxu0
        %v5317 = vpop.f32.mrb[0].mxu0
        %v5318 = vadd.f32 0.0, %v5317
        %v5319 = vpop.f32.mrb[0].mxu0
        %5320 = vdwg.mxu0
        %v5321 = vadd.f32 %v5051, %v5259
        %v5322 = vadd.f32 %v5052, %v5262
        %v5323 = vadd.f32 %v5053, %v5267
        %v5324 = vadd.f32 %v5054, %v5270
        %v5325 = vadd.f32 %v5055, %v5275
        %v5326 = vadd.f32 %v5056, %v5278
        %v5327 = vadd.f32 %v5057, %v5283
        %v5328 = vadd.f32 %v5058, %v5286
        %v5329 = vadd.f32 %v5059, %v5291
        %v5330 = vadd.f32 %v5060, %v5294
        %v5331 = vadd.f32 %v5061, %v5299
        %v5332 = vadd.f32 %v5062, %v5302
        %v5333 = vadd.f32 %v5063, %v5307
        %v5334 = vadd.f32 %v5064, %v5310
        %v5335 = vadd.f32 %v5065, %v5315
        %v5336 = vadd.f32 %v5066, %v5318
        %s5337 = scalar_lea.vmem %s6, 2
        %v5338 = vld [vmem:[%s5337] sm:$0x1]
        %v5340 = vlaneseq
        %v5341 = vshrl.u32 %v5340, 7
        %v5342 = vsub.s32 0, %v5341
        %v5343 = vrot.slane %v5338, %v5342
        %v5345 = vmul.f32 %v5321, %v5343
        %v5346 = vmul.f32 %v5322, %v5343
        %v5347 = vmul.f32 %v5323, %v5343
        %v5348 = vmul.f32 %v5324, %v5343
        %v5349 = vmul.f32 %v5325, %v5343
        %v5350 = vmul.f32 %v5326, %v5343
        %v5351 = vmul.f32 %v5327, %v5343
        %v5352 = vmul.f32 %v5328, %v5343
        %v5353 = vmul.f32 %v5329, %v5343
        %v5354 = vmul.f32 %v5330, %v5343
        %v5355 = vmul.f32 %v5331, %v5343
        %v5356 = vmul.f32 %v5332, %v5343
        %v5357 = vmul.f32 %v5333, %v5343
        %v5358 = vmul.f32 %v5334, %v5343
        %v5359 = vmul.f32 %v5335, %v5343
        %v5360 = vmul.f32 %v5336, %v5343
        %s5361 = scalar_lea.vmem %s7, 2
        %v5362 = vld [vmem:[%s5361] sm:$0x1]
        %v5364 = vlaneseq
        %v5365 = vshrl.u32 %v5364, 7
        %v5366 = vsub.s32 0, %v5365
        %v5367 = vrot.slane %v5362, %v5366
        %v5369 = vadd.f32 %v5345, %v5367
        %v5370 = vadd.f32 %v5346, %v5367
        %v5371 = vadd.f32 %v5347, %v5367
        %v5372 = vadd.f32 %v5348, %v5367
        %v5373 = vadd.f32 %v5349, %v5367
        %v5374 = vadd.f32 %v5350, %v5367
        %v5375 = vadd.f32 %v5351, %v5367
        %v5376 = vadd.f32 %v5352, %v5367
        %v5377 = vadd.f32 %v5353, %v5367
        %v5378 = vadd.f32 %v5354, %v5367
        %v5379 = vadd.f32 %v5355, %v5367
        %v5380 = vadd.f32 %v5356, %v5367
        %v5381 = vadd.f32 %v5357, %v5367
        %v5382 = vadd.f32 %v5358, %v5367
        %v5383 = vadd.f32 %v5359, %v5367
        %v5384 = vadd.f32 %v5360, %v5367
        %v5385 = vmax.f32 %v5369, 0.0
        %v5386 = vmax.f32 %v5370, 0.0
        %v5387 = vmax.f32 %v5371, 0.0
        %v5388 = vmax.f32 %v5372, 0.0
        %v5389 = vmax.f32 %v5373, 0.0
        %v5390 = vmax.f32 %v5374, 0.0
        %v5391 = vmax.f32 %v5375, 0.0
        %v5392 = vmax.f32 %v5376, 0.0
        %v5393 = vmax.f32 %v5377, 0.0
        %v5394 = vmax.f32 %v5378, 0.0
        %v5395 = vmax.f32 %v5379, 0.0
        %v5396 = vmax.f32 %v5380, 0.0
        %v5397 = vmax.f32 %v5381, 0.0
        %v5398 = vmax.f32 %v5382, 0.0
        %v5399 = vmax.f32 %v5383, 0.0
        %v5400 = vmax.f32 %v5384, 0.0
        %v5401 = vpack.c.bf16 %v5386, %v5385
        %v5402 = vpack.c.bf16 %v5388, %v5387
        %v5403 = vpack.c.bf16 %v5390, %v5389
        %v5404 = vpack.c.bf16 %v5392, %v5391
        %v5405 = vpack.c.bf16 %v5394, %v5393
        %v5406 = vpack.c.bf16 %v5396, %v5395
        %v5407 = vpack.c.bf16 %v5398, %v5397
        %v5408 = vpack.c.bf16 %v5400, %v5399
        %s5409 = scalar_lea.vmem %s5, 128
        %v5410 = vld [vmem:[%s5409] sm:$0xf]
        %v5411 = vld [vmem:[%s5409 + $0x4] sm:$0xf]
        %v5412 = vld [vmem:[%s5409 + $0x8] sm:$0xf]
        %v5413 = vld [vmem:[%s5409 + $0xc] sm:$0xf]
        %v5414 = vld [vmem:[%s5409 + $0x10] sm:$0xf]
        %v5415 = vld [vmem:[%s5409 + $0x14] sm:$0xf]
        %v5416 = vld [vmem:[%s5409 + $0x18] sm:$0xf]
        %v5417 = vld [vmem:[%s5409 + $0x1c] sm:$0xf]
        %v5418 = vld [vmem:[%s5409 + $0x20] sm:$0xf]
        %v5419 = vld [vmem:[%s5409 + $0x24] sm:$0xf]
        %v5420 = vld [vmem:[%s5409 + $0x28] sm:$0xf]
        %v5421 = vld [vmem:[%s5409 + $0x2c] sm:$0xf]
        %v5422 = vld [vmem:[%s5409 + $0x30] sm:$0xf]
        %v5423 = vld [vmem:[%s5409 + $0x34] sm:$0xf]
        %v5424 = vld [vmem:[%s5409 + $0x38] sm:$0xf]
        %v5425 = vld [vmem:[%s5409 + $0x3c] sm:$0xf]
        %v5442 = vunpack.c.l.b16 %v5410
        %v5443 = vunpack.c.l.b16 %v5411
        %v5444 = vunpack.c.l.b16 %v5412
        %v5445 = vunpack.c.l.b16 %v5413
        %v5446 = vunpack.c.l.b16 %v5414
        %v5447 = vunpack.c.l.b16 %v5415
        %v5448 = vunpack.c.l.b16 %v5416
        %v5449 = vunpack.c.l.b16 %v5417
        %v5450 = vunpack.c.l.b16 %v5418
        %v5451 = vunpack.c.l.b16 %v5419
        %v5452 = vunpack.c.l.b16 %v5420
        %v5453 = vunpack.c.l.b16 %v5421
        %v5454 = vunpack.c.l.b16 %v5422
        %v5455 = vunpack.c.l.b16 %v5423
        %v5456 = vunpack.c.l.b16 %v5424
        %v5457 = vunpack.c.l.b16 %v5425
        %v5458 = vpack.c.b16 %v5443, %v5442
        %v5459 = vpack.c.b16 %v5445, %v5444
        %v5460 = vpack.c.b16 %v5447, %v5446
        %v5461 = vpack.c.b16 %v5449, %v5448
        %v5462 = vpack.c.b16 %v5451, %v5450
        %v5463 = vpack.c.b16 %v5453, %v5452
        %v5464 = vpack.c.b16 %v5455, %v5454
        %v5465 = vpack.c.b16 %v5457, %v5456
        %5474 = vmatprep.subr.bf16.mxu0 0
        %5475 = vmatpush1.bf16.msra.mxu0 %v5458
        %5476 = vmatprep.subr.bf16.mxu0 0
        %5477 = vmatpush1.bf16.msra.mxu0 %v5459
        %5478 = vmatprep.subr.bf16.mxu0 0
        %5479 = vmatpush1.bf16.msra.mxu0 %v5460
        %5480 = vmatprep.subr.bf16.mxu0 0
        %5481 = vmatpush1.bf16.msra.mxu0 %v5461
        %5482 = vmatprep.subr.bf16.mxu0 0
        %5483 = vmatpush1.bf16.msra.mxu0 %v5462
        %5484 = vmatprep.subr.bf16.mxu0 0
        %5485 = vmatpush1.bf16.msra.mxu0 %v5463
        %5486 = vmatprep.subr.bf16.mxu0 0
        %5487 = vmatpush1.bf16.msra.mxu0 %v5464
        %5488 = vmatprep.subr.bf16.mxu0 0
        %5489 = vmatpush1.bf16.msra.mxu0 %v5465
        %5490 = vmatprep.subr.bf16.mxu0 0
        %5491 = vmatpush1.bf16.msra.mxu0 0
        %5492 = vmatprep.subr.bf16.mxu0 0
        %5493 = vmatpush1.bf16.msra.mxu0 0
        %5494 = vmatprep.subr.bf16.mxu0 0
        %5495 = vmatpush1.bf16.msra.mxu0 0
        %5496 = vmatprep.subr.bf16.mxu0 0
        %5497 = vmatpush1.bf16.msra.mxu0 0
        %5498 = vmatprep.subr.bf16.mxu0 0
        %5499 = vmatpush1.bf16.msra.mxu0 0
        %5500 = vmatprep.subr.bf16.mxu0 0
        %5501 = vmatpush1.bf16.msra.mxu0 0
        %5502 = vmatprep.subr.bf16.mxu0 0
        %5503 = vmatpush1.bf16.msra.mxu0 0
        %5504 = vmatprep.subr.bf16.mxu0 0
        %5505 = vmatpush1.bf16.msra.mxu0 0
        %5506 = vmatprep.mubr.bf16.mxu0 0
        %5507 = vmatmul.mubr.bf16.gmra.mrb[0].mxu0 %v5401
        %v5508 = vpop.f32.mrb[0].mxu0
        %v5509 = vadd.f32 0.0, %v5508
        %v5510 = vpop.f32.mrb[0].mxu0
        %v5511 = vpop.f32.mrb[0].mxu0
        %v5512 = vadd.f32 0.0, %v5511
        %v5513 = vpop.f32.mrb[0].mxu0
        %5514 = vmatprep.mubr.bf16.mxu0 0
        %5515 = vmatmul.mubr.bf16.gmra.mrb[0].mxu0 %v5402
        %v5516 = vpop.f32.mrb[0].mxu0
        %v5517 = vadd.f32 0.0, %v5516
        %v5518 = vpop.f32.mrb[0].mxu0
        %v5519 = vpop.f32.mrb[0].mxu0
        %v5520 = vadd.f32 0.0, %v5519
        %v5521 = vpop.f32.mrb[0].mxu0
        %5522 = vmatprep.mubr.bf16.mxu0 0
        %5523 = vmatmul.mubr.bf16.gmra.mrb[0].mxu0 %v5403
        %v5524 = vpop.f32.mrb[0].mxu0
        %v5525 = vadd.f32 0.0, %v5524
        %v5526 = vpop.f32.mrb[0].mxu0
        %v5527 = vpop.f32.mrb[0].mxu0
        %v5528 = vadd.f32 0.0, %v5527
        %v5529 = vpop.f32.mrb[0].mxu0
        %5530 = vmatprep.mubr.bf16.mxu0 0
        %5531 = vmatmul.mubr.bf16.gmra.mrb[0].mxu0 %v5404
        %v5532 = vpop.f32.mrb[0].mxu0
        %v5533 = vadd.f32 0.0, %v5532
        %v5534 = vpop.f32.mrb[0].mxu0
        %v5535 = vpop.f32.mrb[0].mxu0
        %v5536 = vadd.f32 0.0, %v5535
        %v5537 = vpop.f32.mrb[0].mxu0
        %5538 = vmatprep.mubr.bf16.mxu0 0
        %5539 = vmatmul.mubr.bf16.gmra.mrb[0].mxu0 %v5405
        %v5540 = vpop.f32.mrb[0].mxu0
        %v5541 = vadd.f32 0.0, %v5540
        %v5542 = vpop.f32.mrb[0].mxu0
        %v5543 = vpop.f32.mrb[0].mxu0
        %v5544 = vadd.f32 0.0, %v5543
        %v5545 = vpop.f32.mrb[0].mxu0
        %5546 = vmatprep.mubr.bf16.mxu0 0
        %5547 = vmatmul.mubr.bf16.gmra.mrb[0].mxu0 %v5406
        %v5548 = vpop.f32.mrb[0].mxu0
        %v5549 = vadd.f32 0.0, %v5548
        %v5550 = vpop.f32.mrb[0].mxu0
        %v5551 = vpop.f32.mrb[0].mxu0
        %v5552 = vadd.f32 0.0, %v5551
        %v5553 = vpop.f32.mrb[0].mxu0
        %5554 = vmatprep.mubr.bf16.mxu0 0
        %5555 = vmatmul.mubr.bf16.gmra.mrb[0].mxu0 %v5407
        %v5556 = vpop.f32.mrb[0].mxu0
        %v5557 = vadd.f32 0.0, %v5556
        %v5558 = vpop.f32.mrb[0].mxu0
        %v5559 = vpop.f32.mrb[0].mxu0
        %v5560 = vadd.f32 0.0, %v5559
        %v5561 = vpop.f32.mrb[0].mxu0
        %5562 = vmatprep.mubr.bf16.mxu0 0
        %5563 = vmatmul.mubr.bf16.gmra.mrb[0].mxu0 %v5408
        %v5564 = vpop.f32.mrb[0].mxu0
        %v5565 = vadd.f32 0.0, %v5564
        %v5566 = vpop.f32.mrb[0].mxu0
        %v5567 = vpop.f32.mrb[0].mxu0
        %v5568 = vadd.f32 0.0, %v5567
        %v5569 = vpop.f32.mrb[0].mxu0
        %5570 = vdwg.mxu0
        %v5571 = vadd.f32 %v3019, %v5509
        %v5572 = vadd.f32 %v3022, %v5512
        %v5573 = vadd.f32 %v3027, %v5517
        %v5574 = vadd.f32 %v3030, %v5520
        %v5575 = vadd.f32 %v3035, %v5525
        %v5576 = vadd.f32 %v3038, %v5528
        %v5577 = vadd.f32 %v3043, %v5533
        %v5578 = vadd.f32 %v3046, %v5536
        %v5579 = vadd.f32 %v3051, %v5541
        %v5580 = vadd.f32 %v3054, %v5544
        %v5581 = vadd.f32 %v3059, %v5549
        %v5582 = vadd.f32 %v3062, %v5552
        %v5583 = vadd.f32 %v3067, %v5557
        %v5584 = vadd.f32 %v3070, %v5560
        %v5585 = vadd.f32 %v3075, %v5565
        %v5586 = vadd.f32 %v3078, %v5568
        %s5587 = smul.u32 %s361, 7
        %s5588 = smul.addr %s5587, 4
        %s5589 = scalar_lea.vmem %s355, %s5588
        %v5590 = vld [vmem:[%s5589] sm:$0xf]
        %v5591 = vld [vmem:[%s5589 + $0x4] sm:$0xf]
        %v5592 = vld [vmem:[%s5589 + $0x1c] sm:$0xf]
        %v5593 = vld [vmem:[%s5589 + $0x20] sm:$0xf]
        %v5594 = vld [vmem:[%s5589 + $0x38] sm:$0xf]
        %v5595 = vld [vmem:[%s5589 + $0x3c] sm:$0xf]
        %v5596 = vld [vmem:[%s5589 + $0x54] sm:$0xf]
        %v5597 = vld [vmem:[%s5589 + $0x58] sm:$0xf]
        %v5598 = vld [vmem:[%s5589 + $0x70] sm:$0xf]
        %v5599 = vld [vmem:[%s5589 + $0x74] sm:$0xf]
        %v5600 = vld [vmem:[%s5589 + $0x8c] sm:$0xf]
        %v5601 = vld [vmem:[%s5589 + $0x90] sm:$0xf]
        %v5602 = vld [vmem:[%s5589 + $0xa8] sm:$0xf]
        %v5603 = vld [vmem:[%s5589 + $0xac] sm:$0xf]
        %v5604 = vld [vmem:[%s5589 + $0xc4] sm:$0xf]
        %v5605 = vld [vmem:[%s5589 + $0xc8] sm:$0xf]
        %v5606 = vld [vmem:[%s4] sm:$0x3]
        %v5607 = vld [vmem:[%s5589 + $0x8] sm:$0xe]
        %v5608 = vld [vmem:[%s5589 + $0xc] sm:$0xf]
        %v5609 = vld [vmem:[%s5589 + $0x10] sm:$0x1]
        %v5610 = vld [vmem:[%s5589 + $0x24] sm:$0xe]
        %v5611 = vld [vmem:[%s5589 + $0x28] sm:$0xf]
        %v5612 = vld [vmem:[%s5589 + $0x2c] sm:$0x1]
        %v5613 = vld [vmem:[%s5589 + $0x40] sm:$0xe]
        %v5614 = vld [vmem:[%s5589 + $0x44] sm:$0xf]
        %v5615 = vld [vmem:[%s5589 + $0x48] sm:$0x1]
        %v5616 = vld [vmem:[%s5589 + $0x5c] sm:$0xe]
        %v5617 = vld [vmem:[%s5589 + $0x60] sm:$0xf]
        %v5618 = vld [vmem:[%s5589 + $0x64] sm:$0x1]
        %v5619 = vld [vmem:[%s5589 + $0x78] sm:$0xe]
        %v5620 = vld [vmem:[%s5589 + $0x7c] sm:$0xf]
        %v5621 = vld [vmem:[%s5589 + $0x80] sm:$0x1]
        %v5622 = vld [vmem:[%s5589 + $0x94] sm:$0xe]
        %v5623 = vld [vmem:[%s5589 + $0x98] sm:$0xf]
        %v5624 = vld [vmem:[%s5589 + $0x9c] sm:$0x1]
        %v5625 = vld [vmem:[%s5589 + $0xb0] sm:$0xe]
        %v5626 = vld [vmem:[%s5589 + $0xb4] sm:$0xf]
        %v5627 = vld [vmem:[%s5589 + $0xb8] sm:$0x1]
        %v5628 = vld [vmem:[%s5589 + $0xcc] sm:$0xe]
        %v5629 = vld [vmem:[%s5589 + $0xd0] sm:$0xf]
        %v5630 = vld [vmem:[%s5589 + $0xd4] sm:$0x1]
        %v5655 = vrot.slane %v5607, 5
        %v5656 = vrot.slane %v5655, 4
        %v5657 = vrot.slane %v5608, 5
        %v5658 = vsel %vm416, %v5656, %v5657
        %v5659 = vrot.slane %v5657, 4
        %v5660 = vrot.slane %v5609, 5
        %v5661 = vsel %vm416, %v5659, %v5660
        %v5662 = vrot.slane %v5610, 5
        %v5663 = vrot.slane %v5662, 4
        %v5664 = vrot.slane %v5611, 5
        %v5665 = vsel %vm416, %v5663, %v5664
        %v5666 = vrot.slane %v5664, 4
        %v5667 = vrot.slane %v5612, 5
        %v5668 = vsel %vm416, %v5666, %v5667
        %v5669 = vrot.slane %v5613, 5
        %v5670 = vrot.slane %v5669, 4
        %v5671 = vrot.slane %v5614, 5
        %v5672 = vsel %vm416, %v5670, %v5671
        %v5673 = vrot.slane %v5671, 4
        %v5674 = vrot.slane %v5615, 5
        %v5675 = vsel %vm416, %v5673, %v5674
        %v5676 = vrot.slane %v5616, 5
        %v5677 = vrot.slane %v5676, 4
        %v5678 = vrot.slane %v5617, 5
        %v5679 = vsel %vm416, %v5677, %v5678
        %v5680 = vrot.slane %v5678, 4
        %v5681 = vrot.slane %v5618, 5
        %v5682 = vsel %vm416, %v5680, %v5681
        %v5683 = vrot.slane %v5619, 5
        %v5684 = vrot.slane %v5683, 4
        %v5685 = vrot.slane %v5620, 5
        %v5686 = vsel %vm416, %v5684, %v5685
        %v5687 = vrot.slane %v5685, 4
        %v5688 = vrot.slane %v5621, 5
        %v5689 = vsel %vm416, %v5687, %v5688
        %v5690 = vrot.slane %v5622, 5
        %v5691 = vrot.slane %v5690, 4
        %v5692 = vrot.slane %v5623, 5
        %v5693 = vsel %vm416, %v5691, %v5692
        %v5694 = vrot.slane %v5692, 4
        %v5695 = vrot.slane %v5624, 5
        %v5696 = vsel %vm416, %v5694, %v5695
        %v5697 = vrot.slane %v5625, 5
        %v5698 = vrot.slane %v5697, 4
        %v5699 = vrot.slane %v5626, 5
        %v5700 = vsel %vm416, %v5698, %v5699
        %v5701 = vrot.slane %v5699, 4
        %v5702 = vrot.slane %v5627, 5
        %v5703 = vsel %vm416, %v5701, %v5702
        %v5704 = vrot.slane %v5628, 5
        %v5705 = vrot.slane %v5704, 4
        %v5706 = vrot.slane %v5629, 5
        %v5707 = vsel %vm416, %v5705, %v5706
        %v5708 = vrot.slane %v5706, 4
        %v5709 = vrot.slane %v5630, 5
        %v5710 = vsel %vm416, %v5708, %v5709
        %s5711 = scalar_lea.vmem %s4, 2
        %v5712 = vld [vmem:[%s5711] sm:$0x3]
        %v5713 = vunpack.c.l.b16 %v5658
        %v5714 = vunpack.c.l.b16 %v5661
        %v5715 = vunpack.c.l.b16 %v5665
        %v5716 = vunpack.c.l.b16 %v5668
        %v5717 = vunpack.c.l.b16 %v5672
        %v5718 = vunpack.c.l.b16 %v5675
        %v5719 = vunpack.c.l.b16 %v5679
        %v5720 = vunpack.c.l.b16 %v5682
        %v5721 = vunpack.c.l.b16 %v5686
        %v5722 = vunpack.c.l.b16 %v5689
        %v5723 = vunpack.c.l.b16 %v5693
        %v5724 = vunpack.c.l.b16 %v5696
        %v5725 = vunpack.c.l.b16 %v5700
        %v5726 = vunpack.c.l.b16 %v5703
        %v5727 = vunpack.c.l.b16 %v5707
        %v5728 = vunpack.c.l.b16 %v5710
        %v5729 = vpack.c.b16 %v5714, %v5713
        %v5730 = vpack.c.b16 %v5716, %v5715
        %v5731 = vpack.c.b16 %v5718, %v5717
        %v5732 = vpack.c.b16 %v5720, %v5719
        %v5733 = vpack.c.b16 %v5722, %v5721
        %v5734 = vpack.c.b16 %v5724, %v5723
        %v5735 = vpack.c.b16 %v5726, %v5725
        %v5736 = vpack.c.b16 %v5728, %v5727
        %v5738 = vsel %vm498, %v5729, 0
        %v5741 = vsel %vm498, %v5730, 0
        %v5744 = vsel %vm498, %v5731, 0
        %v5747 = vsel %vm498, %v5732, 0
        %v5750 = vsel %vm498, %v5733, 0
        %v5753 = vsel %vm498, %v5734, 0
        %v5756 = vsel %vm498, %v5735, 0
        %v5759 = vsel %vm498, %v5736, 0
        %v5762 = vsel %vm523, %v5712, 0
        %5764 = vmatprep.subr.bf16.mxu0 0
        %5765 = vmatpush1.bf16.msra.mxu0 %v5762
        %5766 = vmatprep.subr.bf16.mxu0 0
        %5767 = vmatpush1.bf16.msra.mxu0 0
        %5768 = vmatprep.subr.bf16.mxu0 0
        %5769 = vmatpush1.bf16.msra.mxu0 0
        %5770 = vmatprep.subr.bf16.mxu0 0
        %5771 = vmatpush1.bf16.msra.mxu0 0
        %5772 = vmatprep.subr.bf16.mxu0 0
        %5773 = vmatpush1.bf16.msra.mxu0 0
        %5774 = vmatprep.subr.bf16.mxu0 0
        %5775 = vmatpush1.bf16.msra.mxu0 0
        %5776 = vmatprep.subr.bf16.mxu0 0
        %5777 = vmatpush1.bf16.msra.mxu0 0
        %5778 = vmatprep.subr.bf16.mxu0 0
        %5779 = vmatpush1.bf16.msra.mxu0 0
        %5780 = vmatprep.subr.bf16.mxu0 0
        %5781 = vmatpush1.bf16.msra.mxu0 0
        %5782 = vmatprep.subr.bf16.mxu0 0
        %5783 = vmatpush1.bf16.msra.mxu0 0
        %5784 = vmatprep.subr.bf16.mxu0 0
        %5785 = vmatpush1.bf16.msra.mxu0 0
        %5786 = vmatprep.subr.bf16.mxu0 0
        %5787 = vmatpush1.bf16.msra.mxu0 0
        %5788 = vmatprep.subr.bf16.mxu0 0
        %5789 = vmatpush1.bf16.msra.mxu0 0
        %5790 = vmatprep.subr.bf16.mxu0 0
        %5791 = vmatpush1.bf16.msra.mxu0 0
        %5792 = vmatprep.subr.bf16.mxu0 0
        %5793 = vmatpush1.bf16.msra.mxu0 0
        %5794 = vmatprep.subr.bf16.mxu0 0
        %5795 = vmatpush1.bf16.msra.mxu0 0
        %5796 = vmatprep.mubr.bf16.mxu0 0
        %5797 = vmatmul.mubr.bf16.gmra.mrb[0].mxu0 %v5738
        %v5798 = vpop.f32.mrb[0].mxu0
        %v5799 = vadd.f32 0.0, %v5798
        %v5800 = vpop.f32.mrb[0].mxu0
        %v5801 = vpop.f32.mrb[0].mxu0
        %v5802 = vadd.f32 0.0, %v5801
        %v5803 = vpop.f32.mrb[0].mxu0
        %5804 = vmatprep.mubr.bf16.mxu0 0
        %5805 = vmatmul.mubr.bf16.gmra.mrb[0].mxu0 %v5741
        %v5806 = vpop.f32.mrb[0].mxu0
        %v5807 = vadd.f32 0.0, %v5806
        %v5808 = vpop.f32.mrb[0].mxu0
        %v5809 = vpop.f32.mrb[0].mxu0
        %v5810 = vadd.f32 0.0, %v5809
        %v5811 = vpop.f32.mrb[0].mxu0
        %5812 = vmatprep.mubr.bf16.mxu0 0
        %5813 = vmatmul.mubr.bf16.gmra.mrb[0].mxu0 %v5744
        %v5814 = vpop.f32.mrb[0].mxu0
        %v5815 = vadd.f32 0.0, %v5814
        %v5816 = vpop.f32.mrb[0].mxu0
        %v5817 = vpop.f32.mrb[0].mxu0
        %v5818 = vadd.f32 0.0, %v5817
        %v5819 = vpop.f32.mrb[0].mxu0
        %5820 = vmatprep.mubr.bf16.mxu0 0
        %5821 = vmatmul.mubr.bf16.gmra.mrb[0].mxu0 %v5747
        %v5822 = vpop.f32.mrb[0].mxu0
        %v5823 = vadd.f32 0.0, %v5822
        %v5824 = vpop.f32.mrb[0].mxu0
        %v5825 = vpop.f32.mrb[0].mxu0
        %v5826 = vadd.f32 0.0, %v5825
        %v5827 = vpop.f32.mrb[0].mxu0
        %5828 = vmatprep.mubr.bf16.mxu0 0
        %5829 = vmatmul.mubr.bf16.gmra.mrb[0].mxu0 %v5750
        %v5830 = vpop.f32.mrb[0].mxu0
        %v5831 = vadd.f32 0.0, %v5830
        %v5832 = vpop.f32.mrb[0].mxu0
        %v5833 = vpop.f32.mrb[0].mxu0
        %v5834 = vadd.f32 0.0, %v5833
        %v5835 = vpop.f32.mrb[0].mxu0
        %5836 = vmatprep.mubr.bf16.mxu0 0
        %5837 = vmatmul.mubr.bf16.gmra.mrb[0].mxu0 %v5753
        %v5838 = vpop.f32.mrb[0].mxu0
        %v5839 = vadd.f32 0.0, %v5838
        %v5840 = vpop.f32.mrb[0].mxu0
        %v5841 = vpop.f32.mrb[0].mxu0
        %v5842 = vadd.f32 0.0, %v5841
        %v5843 = vpop.f32.mrb[0].mxu0
        %5844 = vmatprep.mubr.bf16.mxu0 0
        %5845 = vmatmul.mubr.bf16.gmra.mrb[0].mxu0 %v5756
        %v5846 = vpop.f32.mrb[0].mxu0
        %v5847 = vadd.f32 0.0, %v5846
        %v5848 = vpop.f32.mrb[0].mxu0
        %v5849 = vpop.f32.mrb[0].mxu0
        %v5850 = vadd.f32 0.0, %v5849
        %v5851 = vpop.f32.mrb[0].mxu0
        %5852 = vmatprep.mubr.bf16.mxu0 0
        %5853 = vmatmul.mubr.bf16.gmra.mrb[0].mxu0 %v5759
        %v5854 = vpop.f32.mrb[0].mxu0
        %v5855 = vadd.f32 0.0, %v5854
        %v5856 = vpop.f32.mrb[0].mxu0
        %v5857 = vpop.f32.mrb[0].mxu0
        %v5858 = vadd.f32 0.0, %v5857
        %v5859 = vpop.f32.mrb[0].mxu0
        %5860 = vdwg.mxu0
        %v5877 = vunpack.c.l.b16 %v5590
        %v5878 = vunpack.c.l.b16 %v5591
        %v5879 = vunpack.c.l.b16 %v5592
        %v5880 = vunpack.c.l.b16 %v5593
        %v5881 = vunpack.c.l.b16 %v5594
        %v5882 = vunpack.c.l.b16 %v5595
        %v5883 = vunpack.c.l.b16 %v5596
        %v5884 = vunpack.c.l.b16 %v5597
        %v5885 = vunpack.c.l.b16 %v5598
        %v5886 = vunpack.c.l.b16 %v5599
        %v5887 = vunpack.c.l.b16 %v5600
        %v5888 = vunpack.c.l.b16 %v5601
        %v5889 = vunpack.c.l.b16 %v5602
        %v5890 = vunpack.c.l.b16 %v5603
        %v5891 = vunpack.c.l.b16 %v5604
        %v5892 = vunpack.c.l.b16 %v5605
        %v5893 = vpack.c.b16 %v5878, %v5877
        %v5894 = vpack.c.b16 %v5880, %v5879
        %v5895 = vpack.c.b16 %v5882, %v5881
        %v5896 = vpack.c.b16 %v5884, %v5883
        %v5897 = vpack.c.b16 %v5886, %v5885
        %v5898 = vpack.c.b16 %v5888, %v5887
        %v5899 = vpack.c.b16 %v5890, %v5889
        %v5900 = vpack.c.b16 %v5892, %v5891
        %v5902 = vsel %vm498, %v5893, 0
        %v5905 = vsel %vm498, %v5894, 0
        %v5908 = vsel %vm498, %v5895, 0
        %v5911 = vsel %vm498, %v5896, 0
        %v5914 = vsel %vm498, %v5897, 0
        %v5917 = vsel %vm498, %v5898, 0
        %v5920 = vsel %vm498, %v5899, 0
        %v5923 = vsel %vm498, %v5900, 0
        %v5926 = vsel %vm523, %v5606, 0
        %5928 = vmatprep.subr.bf16.mxu0 0
        %5929 = vmatpush1.bf16.msra.mxu0 %v5926
        %5930 = vmatprep.subr.bf16.mxu0 0
        %5931 = vmatpush1.bf16.msra.mxu0 0
        %5932 = vmatprep.subr.bf16.mxu0 0
        %5933 = vmatpush1.bf16.msra.mxu0 0
        %5934 = vmatprep.subr.bf16.mxu0 0
        %5935 = vmatpush1.bf16.msra.mxu0 0
        %5936 = vmatprep.subr.bf16.mxu0 0
        %5937 = vmatpush1.bf16.msra.mxu0 0
        %5938 = vmatprep.subr.bf16.mxu0 0
        %5939 = vmatpush1.bf16.msra.mxu0 0
        %5940 = vmatprep.subr.bf16.mxu0 0
        %5941 = vmatpush1.bf16.msra.mxu0 0
        %5942 = vmatprep.subr.bf16.mxu0 0
        %5943 = vmatpush1.bf16.msra.mxu0 0
        %5944 = vmatprep.subr.bf16.mxu0 0
        %5945 = vmatpush1.bf16.msra.mxu0 0
        %5946 = vmatprep.subr.bf16.mxu0 0
        %5947 = vmatpush1.bf16.msra.mxu0 0
        %5948 = vmatprep.subr.bf16.mxu0 0
        %5949 = vmatpush1.bf16.msra.mxu0 0
        %5950 = vmatprep.subr.bf16.mxu0 0
        %5951 = vmatpush1.bf16.msra.mxu0 0
        %5952 = vmatprep.subr.bf16.mxu0 0
        %5953 = vmatpush1.bf16.msra.mxu0 0
        %5954 = vmatprep.subr.bf16.mxu0 0
        %5955 = vmatpush1.bf16.msra.mxu0 0
        %5956 = vmatprep.subr.bf16.mxu0 0
        %5957 = vmatpush1.bf16.msra.mxu0 0
        %5958 = vmatprep.subr.bf16.mxu0 0
        %5959 = vmatpush1.bf16.msra.mxu0 0
        %5960 = vmatprep.mubr.bf16.mxu0 0
        %5961 = vmatmul.mubr.bf16.gmra.mrb[0].mxu0 %v5902
        %v5962 = vpop.f32.mrb[0].mxu0
        %v5963 = vadd.f32 %v5799, %v5962
        %v5964 = vpop.f32.mrb[0].mxu0
        %v5965 = vpop.f32.mrb[0].mxu0
        %v5966 = vadd.f32 %v5802, %v5965
        %v5967 = vpop.f32.mrb[0].mxu0
        %5968 = vmatprep.mubr.bf16.mxu0 0
        %5969 = vmatmul.mubr.bf16.gmra.mrb[0].mxu0 %v5905
        %v5970 = vpop.f32.mrb[0].mxu0
        %v5971 = vadd.f32 %v5807, %v5970
        %v5972 = vpop.f32.mrb[0].mxu0
        %v5973 = vpop.f32.mrb[0].mxu0
        %v5974 = vadd.f32 %v5810, %v5973
        %v5975 = vpop.f32.mrb[0].mxu0
        %5976 = vmatprep.mubr.bf16.mxu0 0
        %5977 = vmatmul.mubr.bf16.gmra.mrb[0].mxu0 %v5908
        %v5978 = vpop.f32.mrb[0].mxu0
        %v5979 = vadd.f32 %v5815, %v5978
        %v5980 = vpop.f32.mrb[0].mxu0
        %v5981 = vpop.f32.mrb[0].mxu0
        %v5982 = vadd.f32 %v5818, %v5981
        %v5983 = vpop.f32.mrb[0].mxu0
        %5984 = vmatprep.mubr.bf16.mxu0 0
        %5985 = vmatmul.mubr.bf16.gmra.mrb[0].mxu0 %v5911
        %v5986 = vpop.f32.mrb[0].mxu0
        %v5987 = vadd.f32 %v5823, %v5986
        %v5988 = vpop.f32.mrb[0].mxu0
        %v5989 = vpop.f32.mrb[0].mxu0
        %v5990 = vadd.f32 %v5826, %v5989
        %v5991 = vpop.f32.mrb[0].mxu0
        %5992 = vmatprep.mubr.bf16.mxu0 0
        %5993 = vmatmul.mubr.bf16.gmra.mrb[0].mxu0 %v5914
        %v5994 = vpop.f32.mrb[0].mxu0
        %v5995 = vadd.f32 %v5831, %v5994
        %v5996 = vpop.f32.mrb[0].mxu0
        %v5997 = vpop.f32.mrb[0].mxu0
        %v5998 = vadd.f32 %v5834, %v5997
        %v5999 = vpop.f32.mrb[0].mxu0
        %6000 = vmatprep.mubr.bf16.mxu0 0
        %6001 = vmatmul.mubr.bf16.gmra.mrb[0].mxu0 %v5917
        %v6002 = vpop.f32.mrb[0].mxu0
        %v6003 = vadd.f32 %v5839, %v6002
        %v6004 = vpop.f32.mrb[0].mxu0
        %v6005 = vpop.f32.mrb[0].mxu0
        %v6006 = vadd.f32 %v5842, %v6005
        %v6007 = vpop.f32.mrb[0].mxu0
        %6008 = vmatprep.mubr.bf16.mxu0 0
        %6009 = vmatmul.mubr.bf16.gmra.mrb[0].mxu0 %v5920
        %v6010 = vpop.f32.mrb[0].mxu0
        %v6011 = vadd.f32 %v5847, %v6010
        %v6012 = vpop.f32.mrb[0].mxu0
        %v6013 = vpop.f32.mrb[0].mxu0
        %v6014 = vadd.f32 %v5850, %v6013
        %v6015 = vpop.f32.mrb[0].mxu0
        %6016 = vmatprep.mubr.bf16.mxu0 0
        %6017 = vmatmul.mubr.bf16.gmra.mrb[0].mxu0 %v5923
        %v6018 = vpop.f32.mrb[0].mxu0
        %v6019 = vadd.f32 %v5855, %v6018
        %v6020 = vpop.f32.mrb[0].mxu0
        %v6021 = vpop.f32.mrb[0].mxu0
        %v6022 = vadd.f32 %v5858, %v6021
        %v6023 = vpop.f32.mrb[0].mxu0
        %6024 = vdwg.mxu0
        %v6025 = vld [vmem:[%s5589 + $0x10] sm:$0xc]
        %v6026 = vld [vmem:[%s5589 + $0x14] sm:$0xf]
        %v6027 = vld [vmem:[%s5589 + $0x18] sm:$0x3]
        %v6028 = vld [vmem:[%s5589 + $0x2c] sm:$0xc]
        %v6029 = vld [vmem:[%s5589 + $0x30] sm:$0xf]
        %v6030 = vld [vmem:[%s5589 + $0x34] sm:$0x3]
        %v6031 = vld [vmem:[%s5589 + $0x48] sm:$0xc]
        %v6032 = vld [vmem:[%s5589 + $0x4c] sm:$0xf]
        %v6033 = vld [vmem:[%s5589 + $0x50] sm:$0x3]
        %v6034 = vld [vmem:[%s5589 + $0x64] sm:$0xc]
        %v6035 = vld [vmem:[%s5589 + $0x68] sm:$0xf]
        %v6036 = vld [vmem:[%s5589 + $0x6c] sm:$0x3]
        %v6037 = vld [vmem:[%s5589 + $0x80] sm:$0xc]
        %v6038 = vld [vmem:[%s5589 + $0x84] sm:$0xf]
        %v6039 = vld [vmem:[%s5589 + $0x88] sm:$0x3]
        %v6040 = vld [vmem:[%s5589 + $0x9c] sm:$0xc]
        %v6041 = vld [vmem:[%s5589 + $0xa0] sm:$0xf]
        %v6042 = vld [vmem:[%s5589 + $0xa4] sm:$0x3]
        %v6043 = vld [vmem:[%s5589 + $0xb8] sm:$0xc]
        %v6044 = vld [vmem:[%s5589 + $0xbc] sm:$0xf]
        %v6045 = vld [vmem:[%s5589 + $0xc0] sm:$0x3]
        %v6046 = vld [vmem:[%s5589 + $0xd4] sm:$0xc]
        %v6047 = vld [vmem:[%s5589 + $0xd8] sm:$0xf]
        %v6048 = vld [vmem:[%s5589 + $0xdc] sm:$0x3]
        %v6073 = vrot.slane %v6025, 6
        %v6074 = vrot.slane %v6073, 4
        %v6075 = vrot.slane %v6026, 6
        %v6076 = vsel %vm764, %v6074, %v6075
        %v6077 = vrot.slane %v6075, 4
        %v6078 = vrot.slane %v6027, 6
        %v6079 = vsel %vm764, %v6077, %v6078
        %v6080 = vrot.slane %v6028, 6
        %v6081 = vrot.slane %v6080, 4
        %v6082 = vrot.slane %v6029, 6
        %v6083 = vsel %vm764, %v6081, %v6082
        %v6084 = vrot.slane %v6082, 4
        %v6085 = vrot.slane %v6030, 6
        %v6086 = vsel %vm764, %v6084, %v6085
        %v6087 = vrot.slane %v6031, 6
        %v6088 = vrot.slane %v6087, 4
        %v6089 = vrot.slane %v6032, 6
        %v6090 = vsel %vm764, %v6088, %v6089
        %v6091 = vrot.slane %v6089, 4
        %v6092 = vrot.slane %v6033, 6
        %v6093 = vsel %vm764, %v6091, %v6092
        %v6094 = vrot.slane %v6034, 6
        %v6095 = vrot.slane %v6094, 4
        %v6096 = vrot.slane %v6035, 6
        %v6097 = vsel %vm764, %v6095, %v6096
        %v6098 = vrot.slane %v6096, 4
        %v6099 = vrot.slane %v6036, 6
        %v6100 = vsel %vm764, %v6098, %v6099
        %v6101 = vrot.slane %v6037, 6
        %v6102 = vrot.slane %v6101, 4
        %v6103 = vrot.slane %v6038, 6
        %v6104 = vsel %vm764, %v6102, %v6103
        %v6105 = vrot.slane %v6103, 4
        %v6106 = vrot.slane %v6039, 6
        %v6107 = vsel %vm764, %v6105, %v6106
        %v6108 = vrot.slane %v6040, 6
        %v6109 = vrot.slane %v6108, 4
        %v6110 = vrot.slane %v6041, 6
        %v6111 = vsel %vm764, %v6109, %v6110
        %v6112 = vrot.slane %v6110, 4
        %v6113 = vrot.slane %v6042, 6
        %v6114 = vsel %vm764, %v6112, %v6113
        %v6115 = vrot.slane %v6043, 6
        %v6116 = vrot.slane %v6115, 4
        %v6117 = vrot.slane %v6044, 6
        %v6118 = vsel %vm764, %v6116, %v6117
        %v6119 = vrot.slane %v6117, 4
        %v6120 = vrot.slane %v6045, 6
        %v6121 = vsel %vm764, %v6119, %v6120
        %v6122 = vrot.slane %v6046, 6
        %v6123 = vrot.slane %v6122, 4
        %v6124 = vrot.slane %v6047, 6
        %v6125 = vsel %vm764, %v6123, %v6124
        %v6126 = vrot.slane %v6124, 4
        %v6127 = vrot.slane %v6048, 6
        %v6128 = vsel %vm764, %v6126, %v6127
        %s6129 = scalar_lea.vmem %s4, 4
        %v6130 = vld [vmem:[%s6129] sm:$0x3]
        %v6131 = vunpack.c.l.b16 %v6076
        %v6132 = vunpack.c.l.b16 %v6079
        %v6133 = vunpack.c.l.b16 %v6083
        %v6134 = vunpack.c.l.b16 %v6086
        %v6135 = vunpack.c.l.b16 %v6090
        %v6136 = vunpack.c.l.b16 %v6093
        %v6137 = vunpack.c.l.b16 %v6097
        %v6138 = vunpack.c.l.b16 %v6100
        %v6139 = vunpack.c.l.b16 %v6104
        %v6140 = vunpack.c.l.b16 %v6107
        %v6141 = vunpack.c.l.b16 %v6111
        %v6142 = vunpack.c.l.b16 %v6114
        %v6143 = vunpack.c.l.b16 %v6118
        %v6144 = vunpack.c.l.b16 %v6121
        %v6145 = vunpack.c.l.b16 %v6125
        %v6146 = vunpack.c.l.b16 %v6128
        %v6147 = vpack.c.b16 %v6132, %v6131
        %v6148 = vpack.c.b16 %v6134, %v6133
        %v6149 = vpack.c.b16 %v6136, %v6135
        %v6150 = vpack.c.b16 %v6138, %v6137
        %v6151 = vpack.c.b16 %v6140, %v6139
        %v6152 = vpack.c.b16 %v6142, %v6141
        %v6153 = vpack.c.b16 %v6144, %v6143
        %v6154 = vpack.c.b16 %v6146, %v6145
        %v6156 = vsel %vm498, %v6147, 0
        %v6159 = vsel %vm498, %v6148, 0
        %v6162 = vsel %vm498, %v6149, 0
        %v6165 = vsel %vm498, %v6150, 0
        %v6168 = vsel %vm498, %v6151, 0
        %v6171 = vsel %vm498, %v6152, 0
        %v6174 = vsel %vm498, %v6153, 0
        %v6177 = vsel %vm498, %v6154, 0
        %v6180 = vsel %vm523, %v6130, 0
        %6182 = vmatprep.subr.bf16.mxu0 0
        %6183 = vmatpush1.bf16.msra.mxu0 %v6180
        %6184 = vmatprep.subr.bf16.mxu0 0
        %6185 = vmatpush1.bf16.msra.mxu0 0
        %6186 = vmatprep.subr.bf16.mxu0 0
        %6187 = vmatpush1.bf16.msra.mxu0 0
        %6188 = vmatprep.subr.bf16.mxu0 0
        %6189 = vmatpush1.bf16.msra.mxu0 0
        %6190 = vmatprep.subr.bf16.mxu0 0
        %6191 = vmatpush1.bf16.msra.mxu0 0
        %6192 = vmatprep.subr.bf16.mxu0 0
        %6193 = vmatpush1.bf16.msra.mxu0 0
        %6194 = vmatprep.subr.bf16.mxu0 0
        %6195 = vmatpush1.bf16.msra.mxu0 0
        %6196 = vmatprep.subr.bf16.mxu0 0
        %6197 = vmatpush1.bf16.msra.mxu0 0
        %6198 = vmatprep.subr.bf16.mxu0 0
        %6199 = vmatpush1.bf16.msra.mxu0 0
        %6200 = vmatprep.subr.bf16.mxu0 0
        %6201 = vmatpush1.bf16.msra.mxu0 0
        %6202 = vmatprep.subr.bf16.mxu0 0
        %6203 = vmatpush1.bf16.msra.mxu0 0
        %6204 = vmatprep.subr.bf16.mxu0 0
        %6205 = vmatpush1.bf16.msra.mxu0 0
        %6206 = vmatprep.subr.bf16.mxu0 0
        %6207 = vmatpush1.bf16.msra.mxu0 0
        %6208 = vmatprep.subr.bf16.mxu0 0
        %6209 = vmatpush1.bf16.msra.mxu0 0
        %6210 = vmatprep.subr.bf16.mxu0 0
        %6211 = vmatpush1.bf16.msra.mxu0 0
        %6212 = vmatprep.subr.bf16.mxu0 0
        %6213 = vmatpush1.bf16.msra.mxu0 0
        %6214 = vmatprep.mubr.bf16.mxu0 0
        %6215 = vmatmul.mubr.bf16.gmra.mrb[0].mxu0 %v6156
        %v6216 = vpop.f32.mrb[0].mxu0
        %v6217 = vadd.f32 0.0, %v6216
        %v6218 = vpop.f32.mrb[0].mxu0
        %v6219 = vpop.f32.mrb[0].mxu0
        %v6220 = vadd.f32 0.0, %v6219
        %v6221 = vpop.f32.mrb[0].mxu0
        %6222 = vmatprep.mubr.bf16.mxu0 0
        %6223 = vmatmul.mubr.bf16.gmra.mrb[0].mxu0 %v6159
        %v6224 = vpop.f32.mrb[0].mxu0
        %v6225 = vadd.f32 0.0, %v6224
        %v6226 = vpop.f32.mrb[0].mxu0
        %v6227 = vpop.f32.mrb[0].mxu0
        %v6228 = vadd.f32 0.0, %v6227
        %v6229 = vpop.f32.mrb[0].mxu0
        %6230 = vmatprep.mubr.bf16.mxu0 0
        %6231 = vmatmul.mubr.bf16.gmra.mrb[0].mxu0 %v6162
        %v6232 = vpop.f32.mrb[0].mxu0
        %v6233 = vadd.f32 0.0, %v6232
        %v6234 = vpop.f32.mrb[0].mxu0
        %v6235 = vpop.f32.mrb[0].mxu0
        %v6236 = vadd.f32 0.0, %v6235
        %v6237 = vpop.f32.mrb[0].mxu0
        %6238 = vmatprep.mubr.bf16.mxu0 0
        %6239 = vmatmul.mubr.bf16.gmra.mrb[0].mxu0 %v6165
        %v6240 = vpop.f32.mrb[0].mxu0
        %v6241 = vadd.f32 0.0, %v6240
        %v6242 = vpop.f32.mrb[0].mxu0
        %v6243 = vpop.f32.mrb[0].mxu0
        %v6244 = vadd.f32 0.0, %v6243
        %v6245 = vpop.f32.mrb[0].mxu0
        %6246 = vmatprep.mubr.bf16.mxu0 0
        %6247 = vmatmul.mubr.bf16.gmra.mrb[0].mxu0 %v6168
        %v6248 = vpop.f32.mrb[0].mxu0
        %v6249 = vadd.f32 0.0, %v6248
        %v6250 = vpop.f32.mrb[0].mxu0
        %v6251 = vpop.f32.mrb[0].mxu0
        %v6252 = vadd.f32 0.0, %v6251
        %v6253 = vpop.f32.mrb[0].mxu0
        %6254 = vmatprep.mubr.bf16.mxu0 0
        %6255 = vmatmul.mubr.bf16.gmra.mrb[0].mxu0 %v6171
        %v6256 = vpop.f32.mrb[0].mxu0
        %v6257 = vadd.f32 0.0, %v6256
        %v6258 = vpop.f32.mrb[0].mxu0
        %v6259 = vpop.f32.mrb[0].mxu0
        %v6260 = vadd.f32 0.0, %v6259
        %v6261 = vpop.f32.mrb[0].mxu0
        %6262 = vmatprep.mubr.bf16.mxu0 0
        %6263 = vmatmul.mubr.bf16.gmra.mrb[0].mxu0 %v6174
        %v6264 = vpop.f32.mrb[0].mxu0
        %v6265 = vadd.f32 0.0, %v6264
        %v6266 = vpop.f32.mrb[0].mxu0
        %v6267 = vpop.f32.mrb[0].mxu0
        %v6268 = vadd.f32 0.0, %v6267
        %v6269 = vpop.f32.mrb[0].mxu0
        %6270 = vmatprep.mubr.bf16.mxu0 0
        %6271 = vmatmul.mubr.bf16.gmra.mrb[0].mxu0 %v6177
        %v6272 = vpop.f32.mrb[0].mxu0
        %v6273 = vadd.f32 0.0, %v6272
        %v6274 = vpop.f32.mrb[0].mxu0
        %v6275 = vpop.f32.mrb[0].mxu0
        %v6276 = vadd.f32 0.0, %v6275
        %v6277 = vpop.f32.mrb[0].mxu0
        %6278 = vdwg.mxu0
        %v6279 = vadd.f32 %v5963, %v6217
        %v6280 = vadd.f32 %v5966, %v6220
        %v6281 = vadd.f32 %v5971, %v6225
        %v6282 = vadd.f32 %v5974, %v6228
        %v6283 = vadd.f32 %v5979, %v6233
        %v6284 = vadd.f32 %v5982, %v6236
        %v6285 = vadd.f32 %v5987, %v6241
        %v6286 = vadd.f32 %v5990, %v6244
        %v6287 = vadd.f32 %v5995, %v6249
        %v6288 = vadd.f32 %v5998, %v6252
        %v6289 = vadd.f32 %v6003, %v6257
        %v6290 = vadd.f32 %v6006, %v6260
        %v6291 = vadd.f32 %v6011, %v6265
        %v6292 = vadd.f32 %v6014, %v6268
        %v6293 = vadd.f32 %v6019, %v6273
        %v6294 = vadd.f32 %v6022, %v6276
        %v6295 = vld [vmem:[%s365] sm:$0xf]
        %v6296 = vld [vmem:[%s365 + $0x4] sm:$0xf]
        %v6297 = vld [vmem:[%s365 + $0x1c] sm:$0xf]
        %v6298 = vld [vmem:[%s365 + $0x20] sm:$0xf]
        %v6299 = vld [vmem:[%s365 + $0x38] sm:$0xf]
        %v6300 = vld [vmem:[%s365 + $0x3c] sm:$0xf]
        %v6301 = vld [vmem:[%s365 + $0x54] sm:$0xf]
        %v6302 = vld [vmem:[%s365 + $0x58] sm:$0xf]
        %v6303 = vld [vmem:[%s365 + $0x70] sm:$0xf]
        %v6304 = vld [vmem:[%s365 + $0x74] sm:$0xf]
        %v6305 = vld [vmem:[%s365 + $0x8c] sm:$0xf]
        %v6306 = vld [vmem:[%s365 + $0x90] sm:$0xf]
        %v6307 = vld [vmem:[%s365 + $0xa8] sm:$0xf]
        %v6308 = vld [vmem:[%s365 + $0xac] sm:$0xf]
        %v6309 = vld [vmem:[%s365 + $0xc4] sm:$0xf]
        %v6310 = vld [vmem:[%s365 + $0xc8] sm:$0xf]
        %s6311 = scalar_lea.vmem %s4, 6
        %v6312 = vld [vmem:[%s6311] sm:$0x3]
        %v6329 = vunpack.c.l.b16 %v6295
        %v6330 = vunpack.c.l.b16 %v6296
        %v6331 = vunpack.c.l.b16 %v6297
        %v6332 = vunpack.c.l.b16 %v6298
        %v6333 = vunpack.c.l.b16 %v6299
        %v6334 = vunpack.c.l.b16 %v6300
        %v6335 = vunpack.c.l.b16 %v6301
        %v6336 = vunpack.c.l.b16 %v6302
        %v6337 = vunpack.c.l.b16 %v6303
        %v6338 = vunpack.c.l.b16 %v6304
        %v6339 = vunpack.c.l.b16 %v6305
        %v6340 = vunpack.c.l.b16 %v6306
        %v6341 = vunpack.c.l.b16 %v6307
        %v6342 = vunpack.c.l.b16 %v6308
        %v6343 = vunpack.c.l.b16 %v6309
        %v6344 = vunpack.c.l.b16 %v6310
        %v6345 = vpack.c.b16 %v6330, %v6329
        %v6346 = vpack.c.b16 %v6332, %v6331
        %v6347 = vpack.c.b16 %v6334, %v6333
        %v6348 = vpack.c.b16 %v6336, %v6335
        %v6349 = vpack.c.b16 %v6338, %v6337
        %v6350 = vpack.c.b16 %v6340, %v6339
        %v6351 = vpack.c.b16 %v6342, %v6341
        %v6352 = vpack.c.b16 %v6344, %v6343
        %v6354 = vsel %vm498, %v6345, 0
        %v6357 = vsel %vm498, %v6346, 0
        %v6360 = vsel %vm498, %v6347, 0
        %v6363 = vsel %vm498, %v6348, 0
        %v6366 = vsel %vm498, %v6349, 0
        %v6369 = vsel %vm498, %v6350, 0
        %v6372 = vsel %vm498, %v6351, 0
        %v6375 = vsel %vm498, %v6352, 0
        %v6378 = vsel %vm523, %v6312, 0
        %6380 = vmatprep.subr.bf16.mxu0 0
        %6381 = vmatpush1.bf16.msra.mxu0 %v6378
        %6382 = vmatprep.subr.bf16.mxu0 0
        %6383 = vmatpush1.bf16.msra.mxu0 0
        %6384 = vmatprep.subr.bf16.mxu0 0
        %6385 = vmatpush1.bf16.msra.mxu0 0
        %6386 = vmatprep.subr.bf16.mxu0 0
        %6387 = vmatpush1.bf16.msra.mxu0 0
        %6388 = vmatprep.subr.bf16.mxu0 0
        %6389 = vmatpush1.bf16.msra.mxu0 0
        %6390 = vmatprep.subr.bf16.mxu0 0
        %6391 = vmatpush1.bf16.msra.mxu0 0
        %6392 = vmatprep.subr.bf16.mxu0 0
        %6393 = vmatpush1.bf16.msra.mxu0 0
        %6394 = vmatprep.subr.bf16.mxu0 0
        %6395 = vmatpush1.bf16.msra.mxu0 0
        %6396 = vmatprep.subr.bf16.mxu0 0
        %6397 = vmatpush1.bf16.msra.mxu0 0
        %6398 = vmatprep.subr.bf16.mxu0 0
        %6399 = vmatpush1.bf16.msra.mxu0 0
        %6400 = vmatprep.subr.bf16.mxu0 0
        %6401 = vmatpush1.bf16.msra.mxu0 0
        %6402 = vmatprep.subr.bf16.mxu0 0
        %6403 = vmatpush1.bf16.msra.mxu0 0
        %6404 = vmatprep.subr.bf16.mxu0 0
        %6405 = vmatpush1.bf16.msra.mxu0 0
        %6406 = vmatprep.subr.bf16.mxu0 0
        %6407 = vmatpush1.bf16.msra.mxu0 0
        %6408 = vmatprep.subr.bf16.mxu0 0
        %6409 = vmatpush1.bf16.msra.mxu0 0
        %6410 = vmatprep.subr.bf16.mxu0 0
        %6411 = vmatpush1.bf16.msra.mxu0 0
        %6412 = vmatprep.mubr.bf16.mxu0 0
        %6413 = vmatmul.mubr.bf16.gmra.mrb[0].mxu0 %v6354
        %v6414 = vpop.f32.mrb[0].mxu0
        %v6415 = vadd.f32 0.0, %v6414
        %v6416 = vpop.f32.mrb[0].mxu0
        %v6417 = vpop.f32.mrb[0].mxu0
        %v6418 = vadd.f32 0.0, %v6417
        %v6419 = vpop.f32.mrb[0].mxu0
        %6420 = vmatprep.mubr.bf16.mxu0 0
        %6421 = vmatmul.mubr.bf16.gmra.mrb[0].mxu0 %v6357
        %v6422 = vpop.f32.mrb[0].mxu0
        %v6423 = vadd.f32 0.0, %v6422
        %v6424 = vpop.f32.mrb[0].mxu0
        %v6425 = vpop.f32.mrb[0].mxu0
        %v6426 = vadd.f32 0.0, %v6425
        %v6427 = vpop.f32.mrb[0].mxu0
        %6428 = vmatprep.mubr.bf16.mxu0 0
        %6429 = vmatmul.mubr.bf16.gmra.mrb[0].mxu0 %v6360
        %v6430 = vpop.f32.mrb[0].mxu0
        %v6431 = vadd.f32 0.0, %v6430
        %v6432 = vpop.f32.mrb[0].mxu0
        %v6433 = vpop.f32.mrb[0].mxu0
        %v6434 = vadd.f32 0.0, %v6433
        %v6435 = vpop.f32.mrb[0].mxu0
        %6436 = vmatprep.mubr.bf16.mxu0 0
        %6437 = vmatmul.mubr.bf16.gmra.mrb[0].mxu0 %v6363
        %v6438 = vpop.f32.mrb[0].mxu0
        %v6439 = vadd.f32 0.0, %v6438
        %v6440 = vpop.f32.mrb[0].mxu0
        %v6441 = vpop.f32.mrb[0].mxu0
        %v6442 = vadd.f32 0.0, %v6441
        %v6443 = vpop.f32.mrb[0].mxu0
        %6444 = vmatprep.mubr.bf16.mxu0 0
        %6445 = vmatmul.mubr.bf16.gmra.mrb[0].mxu0 %v6366
        %v6446 = vpop.f32.mrb[0].mxu0
        %v6447 = vadd.f32 0.0, %v6446
        %v6448 = vpop.f32.mrb[0].mxu0
        %v6449 = vpop.f32.mrb[0].mxu0
        %v6450 = vadd.f32 0.0, %v6449
        %v6451 = vpop.f32.mrb[0].mxu0
        %6452 = vmatprep.mubr.bf16.mxu0 0
        %6453 = vmatmul.mubr.bf16.gmra.mrb[0].mxu0 %v6369
        %v6454 = vpop.f32.mrb[0].mxu0
        %v6455 = vadd.f32 0.0, %v6454
        %v6456 = vpop.f32.mrb[0].mxu0
        %v6457 = vpop.f32.mrb[0].mxu0
        %v6458 = vadd.f32 0.0, %v6457
        %v6459 = vpop.f32.mrb[0].mxu0
        %6460 = vmatprep.mubr.bf16.mxu0 0
        %6461 = vmatmul.mubr.bf16.gmra.mrb[0].mxu0 %v6372
        %v6462 = vpop.f32.mrb[0].mxu0
        %v6463 = vadd.f32 0.0, %v6462
        %v6464 = vpop.f32.mrb[0].mxu0
        %v6465 = vpop.f32.mrb[0].mxu0
        %v6466 = vadd.f32 0.0, %v6465
        %v6467 = vpop.f32.mrb[0].mxu0
        %6468 = vmatprep.mubr.bf16.mxu0 0
        %6469 = vmatmul.mubr.bf16.gmra.mrb[0].mxu0 %v6375
        %v6470 = vpop.f32.mrb[0].mxu0
        %v6471 = vadd.f32 0.0, %v6470
        %v6472 = vpop.f32.mrb[0].mxu0
        %v6473 = vpop.f32.mrb[0].mxu0
        %v6474 = vadd.f32 0.0, %v6473
        %v6475 = vpop.f32.mrb[0].mxu0
        %6476 = vdwg.mxu0
        %v6477 = vadd.f32 %v6279, %v6415
        %v6478 = vadd.f32 %v6280, %v6418
        %v6479 = vadd.f32 %v6281, %v6423
        %v6480 = vadd.f32 %v6282, %v6426
        %v6481 = vadd.f32 %v6283, %v6431
        %v6482 = vadd.f32 %v6284, %v6434
        %v6483 = vadd.f32 %v6285, %v6439
        %v6484 = vadd.f32 %v6286, %v6442
        %v6485 = vadd.f32 %v6287, %v6447
        %v6486 = vadd.f32 %v6288, %v6450
        %v6487 = vadd.f32 %v6289, %v6455
        %v6488 = vadd.f32 %v6290, %v6458
        %v6489 = vadd.f32 %v6291, %v6463
        %v6490 = vadd.f32 %v6292, %v6466
        %v6491 = vadd.f32 %v6293, %v6471
        %v6492 = vadd.f32 %v6294, %v6474
        %s6493 = scalar_lea.vmem %s4, 8
        %v6494 = vld [vmem:[%s6493] sm:$0x3]
        %v6496 = vsel %vm523, %v6494, 0
        %6498 = vmatprep.subr.bf16.mxu0 0
        %6499 = vmatpush1.bf16.msra.mxu0 %v6496
        %6500 = vmatprep.subr.bf16.mxu0 0
        %6501 = vmatpush1.bf16.msra.mxu0 0
        %6502 = vmatprep.subr.bf16.mxu0 0
        %6503 = vmatpush1.bf16.msra.mxu0 0
        %6504 = vmatprep.subr.bf16.mxu0 0
        %6505 = vmatpush1.bf16.msra.mxu0 0
        %6506 = vmatprep.subr.bf16.mxu0 0
        %6507 = vmatpush1.bf16.msra.mxu0 0
        %6508 = vmatprep.subr.bf16.mxu0 0
        %6509 = vmatpush1.bf16.msra.mxu0 0
        %6510 = vmatprep.subr.bf16.mxu0 0
        %6511 = vmatpush1.bf16.msra.mxu0 0
        %6512 = vmatprep.subr.bf16.mxu0 0
        %6513 = vmatpush1.bf16.msra.mxu0 0
        %6514 = vmatprep.subr.bf16.mxu0 0
        %6515 = vmatpush1.bf16.msra.mxu0 0
        %6516 = vmatprep.subr.bf16.mxu0 0
        %6517 = vmatpush1.bf16.msra.mxu0 0
        %6518 = vmatprep.subr.bf16.mxu0 0
        %6519 = vmatpush1.bf16.msra.mxu0 0
        %6520 = vmatprep.subr.bf16.mxu0 0
        %6521 = vmatpush1.bf16.msra.mxu0 0
        %6522 = vmatprep.subr.bf16.mxu0 0
        %6523 = vmatpush1.bf16.msra.mxu0 0
        %6524 = vmatprep.subr.bf16.mxu0 0
        %6525 = vmatpush1.bf16.msra.mxu0 0
        %6526 = vmatprep.subr.bf16.mxu0 0
        %6527 = vmatpush1.bf16.msra.mxu0 0
        %6528 = vmatprep.subr.bf16.mxu0 0
        %6529 = vmatpush1.bf16.msra.mxu0 0
        %6530 = vmatprep.mubr.bf16.mxu0 0
        %6531 = vmatmul.mubr.bf16.gmra.mrb[0].mxu0 %v500
        %v6532 = vpop.f32.mrb[0].mxu0
        %v6533 = vadd.f32 0.0, %v6532
        %v6534 = vpop.f32.mrb[0].mxu0
        %v6535 = vpop.f32.mrb[0].mxu0
        %v6536 = vadd.f32 0.0, %v6535
        %v6537 = vpop.f32.mrb[0].mxu0
        %6538 = vmatprep.mubr.bf16.mxu0 0
        %6539 = vmatmul.mubr.bf16.gmra.mrb[0].mxu0 %v503
        %v6540 = vpop.f32.mrb[0].mxu0
        %v6541 = vadd.f32 0.0, %v6540
        %v6542 = vpop.f32.mrb[0].mxu0
        %v6543 = vpop.f32.mrb[0].mxu0
        %v6544 = vadd.f32 0.0, %v6543
        %v6545 = vpop.f32.mrb[0].mxu0
        %6546 = vmatprep.mubr.bf16.mxu0 0
        %6547 = vmatmul.mubr.bf16.gmra.mrb[0].mxu0 %v506
        %v6548 = vpop.f32.mrb[0].mxu0
        %v6549 = vadd.f32 0.0, %v6548
        %v6550 = vpop.f32.mrb[0].mxu0
        %v6551 = vpop.f32.mrb[0].mxu0
        %v6552 = vadd.f32 0.0, %v6551
        %v6553 = vpop.f32.mrb[0].mxu0
        %6554 = vmatprep.mubr.bf16.mxu0 0
        %6555 = vmatmul.mubr.bf16.gmra.mrb[0].mxu0 %v509
        %v6556 = vpop.f32.mrb[0].mxu0
        %v6557 = vadd.f32 0.0, %v6556
        %v6558 = vpop.f32.mrb[0].mxu0
        %v6559 = vpop.f32.mrb[0].mxu0
        %v6560 = vadd.f32 0.0, %v6559
        %v6561 = vpop.f32.mrb[0].mxu0
        %6562 = vmatprep.mubr.bf16.mxu0 0
        %6563 = vmatmul.mubr.bf16.gmra.mrb[0].mxu0 %v512
        %v6564 = vpop.f32.mrb[0].mxu0
        %v6565 = vadd.f32 0.0, %v6564
        %v6566 = vpop.f32.mrb[0].mxu0
        %v6567 = vpop.f32.mrb[0].mxu0
        %v6568 = vadd.f32 0.0, %v6567
        %v6569 = vpop.f32.mrb[0].mxu0
        %6570 = vmatprep.mubr.bf16.mxu0 0
        %6571 = vmatmul.mubr.bf16.gmra.mrb[0].mxu0 %v515
        %v6572 = vpop.f32.mrb[0].mxu0
        %v6573 = vadd.f32 0.0, %v6572
        %v6574 = vpop.f32.mrb[0].mxu0
        %v6575 = vpop.f32.mrb[0].mxu0
        %v6576 = vadd.f32 0.0, %v6575
        %v6577 = vpop.f32.mrb[0].mxu0
        %6578 = vmatprep.mubr.bf16.mxu0 0
        %6579 = vmatmul.mubr.bf16.gmra.mrb[0].mxu0 %v518
        %v6580 = vpop.f32.mrb[0].mxu0
        %v6581 = vadd.f32 0.0, %v6580
        %v6582 = vpop.f32.mrb[0].mxu0
        %v6583 = vpop.f32.mrb[0].mxu0
        %v6584 = vadd.f32 0.0, %v6583
        %v6585 = vpop.f32.mrb[0].mxu0
        %6586 = vmatprep.mubr.bf16.mxu0 0
        %6587 = vmatmul.mubr.bf16.gmra.mrb[0].mxu0 %v521
        %v6588 = vpop.f32.mrb[0].mxu0
        %v6589 = vadd.f32 0.0, %v6588
        %v6590 = vpop.f32.mrb[0].mxu0
        %v6591 = vpop.f32.mrb[0].mxu0
        %v6592 = vadd.f32 0.0, %v6591
        %v6593 = vpop.f32.mrb[0].mxu0
        %6594 = vdwg.mxu0
        %v6595 = vadd.f32 %v6477, %v6533
        %v6596 = vadd.f32 %v6478, %v6536
        %v6597 = vadd.f32 %v6479, %v6541
        %v6598 = vadd.f32 %v6480, %v6544
        %v6599 = vadd.f32 %v6481, %v6549
        %v6600 = vadd.f32 %v6482, %v6552
        %v6601 = vadd.f32 %v6483, %v6557
        %v6602 = vadd.f32 %v6484, %v6560
        %v6603 = vadd.f32 %v6485, %v6565
        %v6604 = vadd.f32 %v6486, %v6568
        %v6605 = vadd.f32 %v6487, %v6573
        %v6606 = vadd.f32 %v6488, %v6576
        %v6607 = vadd.f32 %v6489, %v6581
        %v6608 = vadd.f32 %v6490, %v6584
        %v6609 = vadd.f32 %v6491, %v6589
        %v6610 = vadd.f32 %v6492, %v6592
        %v6611 = vld [vmem:[%s365 + $0x10] sm:$0xc]
        %v6612 = vld [vmem:[%s365 + $0x14] sm:$0xf]
        %v6613 = vld [vmem:[%s365 + $0x18] sm:$0x3]
        %v6614 = vld [vmem:[%s365 + $0x2c] sm:$0xc]
        %v6615 = vld [vmem:[%s365 + $0x30] sm:$0xf]
        %v6616 = vld [vmem:[%s365 + $0x34] sm:$0x3]
        %v6617 = vld [vmem:[%s365 + $0x48] sm:$0xc]
        %v6618 = vld [vmem:[%s365 + $0x4c] sm:$0xf]
        %v6619 = vld [vmem:[%s365 + $0x50] sm:$0x3]
        %v6620 = vld [vmem:[%s365 + $0x64] sm:$0xc]
        %v6621 = vld [vmem:[%s365 + $0x68] sm:$0xf]
        %v6622 = vld [vmem:[%s365 + $0x6c] sm:$0x3]
        %v6623 = vld [vmem:[%s365 + $0x80] sm:$0xc]
        %v6624 = vld [vmem:[%s365 + $0x84] sm:$0xf]
        %v6625 = vld [vmem:[%s365 + $0x88] sm:$0x3]
        %v6626 = vld [vmem:[%s365 + $0x9c] sm:$0xc]
        %v6627 = vld [vmem:[%s365 + $0xa0] sm:$0xf]
        %v6628 = vld [vmem:[%s365 + $0xa4] sm:$0x3]
        %v6629 = vld [vmem:[%s365 + $0xb8] sm:$0xc]
        %v6630 = vld [vmem:[%s365 + $0xbc] sm:$0xf]
        %v6631 = vld [vmem:[%s365 + $0xc0] sm:$0x3]
        %v6632 = vld [vmem:[%s365 + $0xd4] sm:$0xc]
        %v6633 = vld [vmem:[%s365 + $0xd8] sm:$0xf]
        %v6634 = vld [vmem:[%s365 + $0xdc] sm:$0x3]
        %v6659 = vrot.slane %v6611, 6
        %v6660 = vrot.slane %v6659, 4
        %v6661 = vrot.slane %v6612, 6
        %v6662 = vsel %vm764, %v6660, %v6661
        %v6663 = vrot.slane %v6661, 4
        %v6664 = vrot.slane %v6613, 6
        %v6665 = vsel %vm764, %v6663, %v6664
        %v6666 = vrot.slane %v6614, 6
        %v6667 = vrot.slane %v6666, 4
        %v6668 = vrot.slane %v6615, 6
        %v6669 = vsel %vm764, %v6667, %v6668
        %v6670 = vrot.slane %v6668, 4
        %v6671 = vrot.slane %v6616, 6
        %v6672 = vsel %vm764, %v6670, %v6671
        %v6673 = vrot.slane %v6617, 6
        %v6674 = vrot.slane %v6673, 4
        %v6675 = vrot.slane %v6618, 6
        %v6676 = vsel %vm764, %v6674, %v6675
        %v6677 = vrot.slane %v6675, 4
        %v6678 = vrot.slane %v6619, 6
        %v6679 = vsel %vm764, %v6677, %v6678
        %v6680 = vrot.slane %v6620, 6
        %v6681 = vrot.slane %v6680, 4
        %v6682 = vrot.slane %v6621, 6
        %v6683 = vsel %vm764, %v6681, %v6682
        %v6684 = vrot.slane %v6682, 4
        %v6685 = vrot.slane %v6622, 6
        %v6686 = vsel %vm764, %v6684, %v6685
        %v6687 = vrot.slane %v6623, 6
        %v6688 = vrot.slane %v6687, 4
        %v6689 = vrot.slane %v6624, 6
        %v6690 = vsel %vm764, %v6688, %v6689
        %v6691 = vrot.slane %v6689, 4
        %v6692 = vrot.slane %v6625, 6
        %v6693 = vsel %vm764, %v6691, %v6692
        %v6694 = vrot.slane %v6626, 6
        %v6695 = vrot.slane %v6694, 4
        %v6696 = vrot.slane %v6627, 6
        %v6697 = vsel %vm764, %v6695, %v6696
        %v6698 = vrot.slane %v6696, 4
        %v6699 = vrot.slane %v6628, 6
        %v6700 = vsel %vm764, %v6698, %v6699
        %v6701 = vrot.slane %v6629, 6
        %v6702 = vrot.slane %v6701, 4
        %v6703 = vrot.slane %v6630, 6
        %v6704 = vsel %vm764, %v6702, %v6703
        %v6705 = vrot.slane %v6703, 4
        %v6706 = vrot.slane %v6631, 6
        %v6707 = vsel %vm764, %v6705, %v6706
        %v6708 = vrot.slane %v6632, 6
        %v6709 = vrot.slane %v6708, 4
        %v6710 = vrot.slane %v6633, 6
        %v6711 = vsel %vm764, %v6709, %v6710
        %v6712 = vrot.slane %v6710, 4
        %v6713 = vrot.slane %v6634, 6
        %v6714 = vsel %vm764, %v6712, %v6713
        %s6715 = scalar_lea.vmem %s4, 10
        %v6716 = vld [vmem:[%s6715] sm:$0x3]
        %v6717 = vunpack.c.l.b16 %v6662
        %v6718 = vunpack.c.l.b16 %v6665
        %v6719 = vunpack.c.l.b16 %v6669
        %v6720 = vunpack.c.l.b16 %v6672
        %v6721 = vunpack.c.l.b16 %v6676
        %v6722 = vunpack.c.l.b16 %v6679
        %v6723 = vunpack.c.l.b16 %v6683
        %v6724 = vunpack.c.l.b16 %v6686
        %v6725 = vunpack.c.l.b16 %v6690
        %v6726 = vunpack.c.l.b16 %v6693
        %v6727 = vunpack.c.l.b16 %v6697
        %v6728 = vunpack.c.l.b16 %v6700
        %v6729 = vunpack.c.l.b16 %v6704
        %v6730 = vunpack.c.l.b16 %v6707
        %v6731 = vunpack.c.l.b16 %v6711
        %v6732 = vunpack.c.l.b16 %v6714
        %v6733 = vpack.c.b16 %v6718, %v6717
        %v6734 = vpack.c.b16 %v6720, %v6719
        %v6735 = vpack.c.b16 %v6722, %v6721
        %v6736 = vpack.c.b16 %v6724, %v6723
        %v6737 = vpack.c.b16 %v6726, %v6725
        %v6738 = vpack.c.b16 %v6728, %v6727
        %v6739 = vpack.c.b16 %v6730, %v6729
        %v6740 = vpack.c.b16 %v6732, %v6731
        %v6742 = vsel %vm498, %v6733, 0
        %v6745 = vsel %vm498, %v6734, 0
        %v6748 = vsel %vm498, %v6735, 0
        %v6751 = vsel %vm498, %v6736, 0
        %v6754 = vsel %vm498, %v6737, 0
        %v6757 = vsel %vm498, %v6738, 0
        %v6760 = vsel %vm498, %v6739, 0
        %v6763 = vsel %vm498, %v6740, 0
        %v6766 = vsel %vm523, %v6716, 0
        %6768 = vmatprep.subr.bf16.mxu0 0
        %6769 = vmatpush1.bf16.msra.mxu0 %v6766
        %6770 = vmatprep.subr.bf16.mxu0 0
        %6771 = vmatpush1.bf16.msra.mxu0 0
        %6772 = vmatprep.subr.bf16.mxu0 0
        %6773 = vmatpush1.bf16.msra.mxu0 0
        %6774 = vmatprep.subr.bf16.mxu0 0
        %6775 = vmatpush1.bf16.msra.mxu0 0
        %6776 = vmatprep.subr.bf16.mxu0 0
        %6777 = vmatpush1.bf16.msra.mxu0 0
        %6778 = vmatprep.subr.bf16.mxu0 0
        %6779 = vmatpush1.bf16.msra.mxu0 0
        %6780 = vmatprep.subr.bf16.mxu0 0
        %6781 = vmatpush1.bf16.msra.mxu0 0
        %6782 = vmatprep.subr.bf16.mxu0 0
        %6783 = vmatpush1.bf16.msra.mxu0 0
        %6784 = vmatprep.subr.bf16.mxu0 0
        %6785 = vmatpush1.bf16.msra.mxu0 0
        %6786 = vmatprep.subr.bf16.mxu0 0
        %6787 = vmatpush1.bf16.msra.mxu0 0
        %6788 = vmatprep.subr.bf16.mxu0 0
        %6789 = vmatpush1.bf16.msra.mxu0 0
        %6790 = vmatprep.subr.bf16.mxu0 0
        %6791 = vmatpush1.bf16.msra.mxu0 0
        %6792 = vmatprep.subr.bf16.mxu0 0
        %6793 = vmatpush1.bf16.msra.mxu0 0
        %6794 = vmatprep.subr.bf16.mxu0 0
        %6795 = vmatpush1.bf16.msra.mxu0 0
        %6796 = vmatprep.subr.bf16.mxu0 0
        %6797 = vmatpush1.bf16.msra.mxu0 0
        %6798 = vmatprep.subr.bf16.mxu0 0
        %6799 = vmatpush1.bf16.msra.mxu0 0
        %6800 = vmatprep.mubr.bf16.mxu0 0
        %6801 = vmatmul.mubr.bf16.gmra.mrb[0].mxu0 %v6742
        %v6802 = vpop.f32.mrb[0].mxu0
        %v6803 = vadd.f32 0.0, %v6802
        %v6804 = vpop.f32.mrb[0].mxu0
        %v6805 = vpop.f32.mrb[0].mxu0
        %v6806 = vadd.f32 0.0, %v6805
        %v6807 = vpop.f32.mrb[0].mxu0
        %6808 = vmatprep.mubr.bf16.mxu0 0
        %6809 = vmatmul.mubr.bf16.gmra.mrb[0].mxu0 %v6745
        %v6810 = vpop.f32.mrb[0].mxu0
        %v6811 = vadd.f32 0.0, %v6810
        %v6812 = vpop.f32.mrb[0].mxu0
        %v6813 = vpop.f32.mrb[0].mxu0
        %v6814 = vadd.f32 0.0, %v6813
        %v6815 = vpop.f32.mrb[0].mxu0
        %6816 = vmatprep.mubr.bf16.mxu0 0
        %6817 = vmatmul.mubr.bf16.gmra.mrb[0].mxu0 %v6748
        %v6818 = vpop.f32.mrb[0].mxu0
        %v6819 = vadd.f32 0.0, %v6818
        %v6820 = vpop.f32.mrb[0].mxu0
        %v6821 = vpop.f32.mrb[0].mxu0
        %v6822 = vadd.f32 0.0, %v6821
        %v6823 = vpop.f32.mrb[0].mxu0
        %6824 = vmatprep.mubr.bf16.mxu0 0
        %6825 = vmatmul.mubr.bf16.gmra.mrb[0].mxu0 %v6751
        %v6826 = vpop.f32.mrb[0].mxu0
        %v6827 = vadd.f32 0.0, %v6826
        %v6828 = vpop.f32.mrb[0].mxu0
        %v6829 = vpop.f32.mrb[0].mxu0
        %v6830 = vadd.f32 0.0, %v6829
        %v6831 = vpop.f32.mrb[0].mxu0
        %6832 = vmatprep.mubr.bf16.mxu0 0
        %6833 = vmatmul.mubr.bf16.gmra.mrb[0].mxu0 %v6754
        %v6834 = vpop.f32.mrb[0].mxu0
        %v6835 = vadd.f32 0.0, %v6834
        %v6836 = vpop.f32.mrb[0].mxu0
        %v6837 = vpop.f32.mrb[0].mxu0
        %v6838 = vadd.f32 0.0, %v6837
        %v6839 = vpop.f32.mrb[0].mxu0
        %6840 = vmatprep.mubr.bf16.mxu0 0
        %6841 = vmatmul.mubr.bf16.gmra.mrb[0].mxu0 %v6757
        %v6842 = vpop.f32.mrb[0].mxu0
        %v6843 = vadd.f32 0.0, %v6842
        %v6844 = vpop.f32.mrb[0].mxu0
        %v6845 = vpop.f32.mrb[0].mxu0
        %v6846 = vadd.f32 0.0, %v6845
        %v6847 = vpop.f32.mrb[0].mxu0
        %6848 = vmatprep.mubr.bf16.mxu0 0
        %6849 = vmatmul.mubr.bf16.gmra.mrb[0].mxu0 %v6760
        %v6850 = vpop.f32.mrb[0].mxu0
        %v6851 = vadd.f32 0.0, %v6850
        %v6852 = vpop.f32.mrb[0].mxu0
        %v6853 = vpop.f32.mrb[0].mxu0
        %v6854 = vadd.f32 0.0, %v6853
        %v6855 = vpop.f32.mrb[0].mxu0
        %6856 = vmatprep.mubr.bf16.mxu0 0
        %6857 = vmatmul.mubr.bf16.gmra.mrb[0].mxu0 %v6763
        %v6858 = vpop.f32.mrb[0].mxu0
        %v6859 = vadd.f32 0.0, %v6858
        %v6860 = vpop.f32.mrb[0].mxu0
        %v6861 = vpop.f32.mrb[0].mxu0
        %v6862 = vadd.f32 0.0, %v6861
        %v6863 = vpop.f32.mrb[0].mxu0
        %6864 = vdwg.mxu0
        %v6865 = vadd.f32 %v6595, %v6803
        %v6866 = vadd.f32 %v6596, %v6806
        %v6867 = vadd.f32 %v6597, %v6811
        %v6868 = vadd.f32 %v6598, %v6814
        %v6869 = vadd.f32 %v6599, %v6819
        %v6870 = vadd.f32 %v6600, %v6822
        %v6871 = vadd.f32 %v6601, %v6827
        %v6872 = vadd.f32 %v6602, %v6830
        %v6873 = vadd.f32 %v6603, %v6835
        %v6874 = vadd.f32 %v6604, %v6838
        %v6875 = vadd.f32 %v6605, %v6843
        %v6876 = vadd.f32 %v6606, %v6846
        %v6877 = vadd.f32 %v6607, %v6851
        %v6878 = vadd.f32 %v6608, %v6854
        %v6879 = vadd.f32 %v6609, %v6859
        %v6880 = vadd.f32 %v6610, %v6862
        %s6881 = sadd.s32 %s361, 36
        %s6882 = smul.u32 %s6881, 7
        %s6883 = smul.addr %s6882, 4
        %s6884 = scalar_lea.vmem %s355, %s6883
        %v6885 = vld [vmem:[%s6884] sm:$0xf]
        %v6886 = vld [vmem:[%s6884 + $0x4] sm:$0xf]
        %v6887 = vld [vmem:[%s6884 + $0x1c] sm:$0xf]
        %v6888 = vld [vmem:[%s6884 + $0x20] sm:$0xf]
        %v6889 = vld [vmem:[%s6884 + $0x38] sm:$0xf]
        %v6890 = vld [vmem:[%s6884 + $0x3c] sm:$0xf]
        %v6891 = vld [vmem:[%s6884 + $0x54] sm:$0xf]
        %v6892 = vld [vmem:[%s6884 + $0x58] sm:$0xf]
        %v6893 = vld [vmem:[%s6884 + $0x70] sm:$0xf]
        %v6894 = vld [vmem:[%s6884 + $0x74] sm:$0xf]
        %v6895 = vld [vmem:[%s6884 + $0x8c] sm:$0xf]
        %v6896 = vld [vmem:[%s6884 + $0x90] sm:$0xf]
        %v6897 = vld [vmem:[%s6884 + $0xa8] sm:$0xf]
        %v6898 = vld [vmem:[%s6884 + $0xac] sm:$0xf]
        %v6899 = vld [vmem:[%s6884 + $0xc4] sm:$0xf]
        %v6900 = vld [vmem:[%s6884 + $0xc8] sm:$0xf]
        %s6901 = scalar_lea.vmem %s4, 12
        %v6902 = vld [vmem:[%s6901] sm:$0x3]
        %v6919 = vunpack.c.l.b16 %v6885
        %v6920 = vunpack.c.l.b16 %v6886
        %v6921 = vunpack.c.l.b16 %v6887
        %v6922 = vunpack.c.l.b16 %v6888
        %v6923 = vunpack.c.l.b16 %v6889
        %v6924 = vunpack.c.l.b16 %v6890
        %v6925 = vunpack.c.l.b16 %v6891
        %v6926 = vunpack.c.l.b16 %v6892
        %v6927 = vunpack.c.l.b16 %v6893
        %v6928 = vunpack.c.l.b16 %v6894
        %v6929 = vunpack.c.l.b16 %v6895
        %v6930 = vunpack.c.l.b16 %v6896
        %v6931 = vunpack.c.l.b16 %v6897
        %v6932 = vunpack.c.l.b16 %v6898
        %v6933 = vunpack.c.l.b16 %v6899
        %v6934 = vunpack.c.l.b16 %v6900
        %v6935 = vpack.c.b16 %v6920, %v6919
        %v6936 = vpack.c.b16 %v6922, %v6921
        %v6937 = vpack.c.b16 %v6924, %v6923
        %v6938 = vpack.c.b16 %v6926, %v6925
        %v6939 = vpack.c.b16 %v6928, %v6927
        %v6940 = vpack.c.b16 %v6930, %v6929
        %v6941 = vpack.c.b16 %v6932, %v6931
        %v6942 = vpack.c.b16 %v6934, %v6933
        %v6944 = vsel %vm498, %v6935, 0
        %v6947 = vsel %vm498, %v6936, 0
        %v6950 = vsel %vm498, %v6937, 0
        %v6953 = vsel %vm498, %v6938, 0
        %v6956 = vsel %vm498, %v6939, 0
        %v6959 = vsel %vm498, %v6940, 0
        %v6962 = vsel %vm498, %v6941, 0
        %v6965 = vsel %vm498, %v6942, 0
        %v6968 = vsel %vm523, %v6902, 0
        %6970 = vmatprep.subr.bf16.mxu0 0
        %6971 = vmatpush1.bf16.msra.mxu0 %v6968
        %6972 = vmatprep.subr.bf16.mxu0 0
        %6973 = vmatpush1.bf16.msra.mxu0 0
        %6974 = vmatprep.subr.bf16.mxu0 0
        %6975 = vmatpush1.bf16.msra.mxu0 0
        %6976 = vmatprep.subr.bf16.mxu0 0
        %6977 = vmatpush1.bf16.msra.mxu0 0
        %6978 = vmatprep.subr.bf16.mxu0 0
        %6979 = vmatpush1.bf16.msra.mxu0 0
        %6980 = vmatprep.subr.bf16.mxu0 0
        %6981 = vmatpush1.bf16.msra.mxu0 0
        %6982 = vmatprep.subr.bf16.mxu0 0
        %6983 = vmatpush1.bf16.msra.mxu0 0
        %6984 = vmatprep.subr.bf16.mxu0 0
        %6985 = vmatpush1.bf16.msra.mxu0 0
        %6986 = vmatprep.subr.bf16.mxu0 0
        %6987 = vmatpush1.bf16.msra.mxu0 0
        %6988 = vmatprep.subr.bf16.mxu0 0
        %6989 = vmatpush1.bf16.msra.mxu0 0
        %6990 = vmatprep.subr.bf16.mxu0 0
        %6991 = vmatpush1.bf16.msra.mxu0 0
        %6992 = vmatprep.subr.bf16.mxu0 0
        %6993 = vmatpush1.bf16.msra.mxu0 0
        %6994 = vmatprep.subr.bf16.mxu0 0
        %6995 = vmatpush1.bf16.msra.mxu0 0
        %6996 = vmatprep.subr.bf16.mxu0 0
        %6997 = vmatpush1.bf16.msra.mxu0 0
        %6998 = vmatprep.subr.bf16.mxu0 0
        %6999 = vmatpush1.bf16.msra.mxu0 0
        %7000 = vmatprep.subr.bf16.mxu0 0
        %7001 = vmatpush1.bf16.msra.mxu0 0
        %7002 = vmatprep.mubr.bf16.mxu0 0
        %7003 = vmatmul.mubr.bf16.gmra.mrb[0].mxu0 %v6944
        %v7004 = vpop.f32.mrb[0].mxu0
        %v7005 = vadd.f32 0.0, %v7004
        %v7006 = vpop.f32.mrb[0].mxu0
        %v7007 = vpop.f32.mrb[0].mxu0
        %v7008 = vadd.f32 0.0, %v7007
        %v7009 = vpop.f32.mrb[0].mxu0
        %7010 = vmatprep.mubr.bf16.mxu0 0
        %7011 = vmatmul.mubr.bf16.gmra.mrb[0].mxu0 %v6947
        %v7012 = vpop.f32.mrb[0].mxu0
        %v7013 = vadd.f32 0.0, %v7012
        %v7014 = vpop.f32.mrb[0].mxu0
        %v7015 = vpop.f32.mrb[0].mxu0
        %v7016 = vadd.f32 0.0, %v7015
        %v7017 = vpop.f32.mrb[0].mxu0
        %7018 = vmatprep.mubr.bf16.mxu0 0
        %7019 = vmatmul.mubr.bf16.gmra.mrb[0].mxu0 %v6950
        %v7020 = vpop.f32.mrb[0].mxu0
        %v7021 = vadd.f32 0.0, %v7020
        %v7022 = vpop.f32.mrb[0].mxu0
        %v7023 = vpop.f32.mrb[0].mxu0
        %v7024 = vadd.f32 0.0, %v7023
        %v7025 = vpop.f32.mrb[0].mxu0
        %7026 = vmatprep.mubr.bf16.mxu0 0
        %7027 = vmatmul.mubr.bf16.gmra.mrb[0].mxu0 %v6953
        %v7028 = vpop.f32.mrb[0].mxu0
        %v7029 = vadd.f32 0.0, %v7028
        %v7030 = vpop.f32.mrb[0].mxu0
        %v7031 = vpop.f32.mrb[0].mxu0
        %v7032 = vadd.f32 0.0, %v7031
        %v7033 = vpop.f32.mrb[0].mxu0
        %7034 = vmatprep.mubr.bf16.mxu0 0
        %7035 = vmatmul.mubr.bf16.gmra.mrb[0].mxu0 %v6956
        %v7036 = vpop.f32.mrb[0].mxu0
        %v7037 = vadd.f32 0.0, %v7036
        %v7038 = vpop.f32.mrb[0].mxu0
        %v7039 = vpop.f32.mrb[0].mxu0
        %v7040 = vadd.f32 0.0, %v7039
        %v7041 = vpop.f32.mrb[0].mxu0
        %7042 = vmatprep.mubr.bf16.mxu0 0
        %7043 = vmatmul.mubr.bf16.gmra.mrb[0].mxu0 %v6959
        %v7044 = vpop.f32.mrb[0].mxu0
        %v7045 = vadd.f32 0.0, %v7044
        %v7046 = vpop.f32.mrb[0].mxu0
        %v7047 = vpop.f32.mrb[0].mxu0
        %v7048 = vadd.f32 0.0, %v7047
        %v7049 = vpop.f32.mrb[0].mxu0
        %7050 = vmatprep.mubr.bf16.mxu0 0
        %7051 = vmatmul.mubr.bf16.gmra.mrb[0].mxu0 %v6962
        %v7052 = vpop.f32.mrb[0].mxu0
        %v7053 = vadd.f32 0.0, %v7052
        %v7054 = vpop.f32.mrb[0].mxu0
        %v7055 = vpop.f32.mrb[0].mxu0
        %v7056 = vadd.f32 0.0, %v7055
        %v7057 = vpop.f32.mrb[0].mxu0
        %7058 = vmatprep.mubr.bf16.mxu0 0
        %7059 = vmatmul.mubr.bf16.gmra.mrb[0].mxu0 %v6965
        %v7060 = vpop.f32.mrb[0].mxu0
        %v7061 = vadd.f32 0.0, %v7060
        %v7062 = vpop.f32.mrb[0].mxu0
        %v7063 = vpop.f32.mrb[0].mxu0
        %v7064 = vadd.f32 0.0, %v7063
        %v7065 = vpop.f32.mrb[0].mxu0
        %7066 = vdwg.mxu0
        %v7067 = vadd.f32 %v6865, %v7005
        %v7068 = vadd.f32 %v6866, %v7008
        %v7069 = vadd.f32 %v6867, %v7013
        %v7070 = vadd.f32 %v6868, %v7016
        %v7071 = vadd.f32 %v6869, %v7021
        %v7072 = vadd.f32 %v6870, %v7024
        %v7073 = vadd.f32 %v6871, %v7029
        %v7074 = vadd.f32 %v6872, %v7032
        %v7075 = vadd.f32 %v6873, %v7037
        %v7076 = vadd.f32 %v6874, %v7040
        %v7077 = vadd.f32 %v6875, %v7045
        %v7078 = vadd.f32 %v6876, %v7048
        %v7079 = vadd.f32 %v6877, %v7053
        %v7080 = vadd.f32 %v6878, %v7056
        %v7081 = vadd.f32 %v6879, %v7061
        %v7082 = vadd.f32 %v6880, %v7064
        %v7083 = vld [vmem:[%s6884 + $0x8] sm:$0xe]
        %v7084 = vld [vmem:[%s6884 + $0xc] sm:$0xf]
        %v7085 = vld [vmem:[%s6884 + $0x10] sm:$0x1]
        %v7086 = vld [vmem:[%s6884 + $0x24] sm:$0xe]
        %v7087 = vld [vmem:[%s6884 + $0x28] sm:$0xf]
        %v7088 = vld [vmem:[%s6884 + $0x2c] sm:$0x1]
        %v7089 = vld [vmem:[%s6884 + $0x40] sm:$0xe]
        %v7090 = vld [vmem:[%s6884 + $0x44] sm:$0xf]
        %v7091 = vld [vmem:[%s6884 + $0x48] sm:$0x1]
        %v7092 = vld [vmem:[%s6884 + $0x5c] sm:$0xe]
        %v7093 = vld [vmem:[%s6884 + $0x60] sm:$0xf]
        %v7094 = vld [vmem:[%s6884 + $0x64] sm:$0x1]
        %v7095 = vld [vmem:[%s6884 + $0x78] sm:$0xe]
        %v7096 = vld [vmem:[%s6884 + $0x7c] sm:$0xf]
        %v7097 = vld [vmem:[%s6884 + $0x80] sm:$0x1]
        %v7098 = vld [vmem:[%s6884 + $0x94] sm:$0xe]
        %v7099 = vld [vmem:[%s6884 + $0x98] sm:$0xf]
        %v7100 = vld [vmem:[%s6884 + $0x9c] sm:$0x1]
        %v7101 = vld [vmem:[%s6884 + $0xb0] sm:$0xe]
        %v7102 = vld [vmem:[%s6884 + $0xb4] sm:$0xf]
        %v7103 = vld [vmem:[%s6884 + $0xb8] sm:$0x1]
        %v7104 = vld [vmem:[%s6884 + $0xcc] sm:$0xe]
        %v7105 = vld [vmem:[%s6884 + $0xd0] sm:$0xf]
        %v7106 = vld [vmem:[%s6884 + $0xd4] sm:$0x1]
        %v7131 = vrot.slane %v7083, 5
        %v7132 = vrot.slane %v7131, 4
        %v7133 = vrot.slane %v7084, 5
        %v7134 = vsel %vm416, %v7132, %v7133
        %v7135 = vrot.slane %v7133, 4
        %v7136 = vrot.slane %v7085, 5
        %v7137 = vsel %vm416, %v7135, %v7136
        %v7138 = vrot.slane %v7086, 5
        %v7139 = vrot.slane %v7138, 4
        %v7140 = vrot.slane %v7087, 5
        %v7141 = vsel %vm416, %v7139, %v7140
        %v7142 = vrot.slane %v7140, 4
        %v7143 = vrot.slane %v7088, 5
        %v7144 = vsel %vm416, %v7142, %v7143
        %v7145 = vrot.slane %v7089, 5
        %v7146 = vrot.slane %v7145, 4
        %v7147 = vrot.slane %v7090, 5
        %v7148 = vsel %vm416, %v7146, %v7147
        %v7149 = vrot.slane %v7147, 4
        %v7150 = vrot.slane %v7091, 5
        %v7151 = vsel %vm416, %v7149, %v7150
        %v7152 = vrot.slane %v7092, 5
        %v7153 = vrot.slane %v7152, 4
        %v7154 = vrot.slane %v7093, 5
        %v7155 = vsel %vm416, %v7153, %v7154
        %v7156 = vrot.slane %v7154, 4
        %v7157 = vrot.slane %v7094, 5
        %v7158 = vsel %vm416, %v7156, %v7157
        %v7159 = vrot.slane %v7095, 5
        %v7160 = vrot.slane %v7159, 4
        %v7161 = vrot.slane %v7096, 5
        %v7162 = vsel %vm416, %v7160, %v7161
        %v7163 = vrot.slane %v7161, 4
        %v7164 = vrot.slane %v7097, 5
        %v7165 = vsel %vm416, %v7163, %v7164
        %v7166 = vrot.slane %v7098, 5
        %v7167 = vrot.slane %v7166, 4
        %v7168 = vrot.slane %v7099, 5
        %v7169 = vsel %vm416, %v7167, %v7168
        %v7170 = vrot.slane %v7168, 4
        %v7171 = vrot.slane %v7100, 5
        %v7172 = vsel %vm416, %v7170, %v7171
        %v7173 = vrot.slane %v7101, 5
        %v7174 = vrot.slane %v7173, 4
        %v7175 = vrot.slane %v7102, 5
        %v7176 = vsel %vm416, %v7174, %v7175
        %v7177 = vrot.slane %v7175, 4
        %v7178 = vrot.slane %v7103, 5
        %v7179 = vsel %vm416, %v7177, %v7178
        %v7180 = vrot.slane %v7104, 5
        %v7181 = vrot.slane %v7180, 4
        %v7182 = vrot.slane %v7105, 5
        %v7183 = vsel %vm416, %v7181, %v7182
        %v7184 = vrot.slane %v7182, 4
        %v7185 = vrot.slane %v7106, 5
        %v7186 = vsel %vm416, %v7184, %v7185
        %s7187 = scalar_lea.vmem %s4, 14
        %v7188 = vld [vmem:[%s7187] sm:$0x3]
        %v7189 = vunpack.c.l.b16 %v7134
        %v7190 = vunpack.c.l.b16 %v7137
        %v7191 = vunpack.c.l.b16 %v7141
        %v7192 = vunpack.c.l.b16 %v7144
        %v7193 = vunpack.c.l.b16 %v7148
        %v7194 = vunpack.c.l.b16 %v7151
        %v7195 = vunpack.c.l.b16 %v7155
        %v7196 = vunpack.c.l.b16 %v7158
        %v7197 = vunpack.c.l.b16 %v7162
        %v7198 = vunpack.c.l.b16 %v7165
        %v7199 = vunpack.c.l.b16 %v7169
        %v7200 = vunpack.c.l.b16 %v7172
        %v7201 = vunpack.c.l.b16 %v7176
        %v7202 = vunpack.c.l.b16 %v7179
        %v7203 = vunpack.c.l.b16 %v7183
        %v7204 = vunpack.c.l.b16 %v7186
        %v7205 = vpack.c.b16 %v7190, %v7189
        %v7206 = vpack.c.b16 %v7192, %v7191
        %v7207 = vpack.c.b16 %v7194, %v7193
        %v7208 = vpack.c.b16 %v7196, %v7195
        %v7209 = vpack.c.b16 %v7198, %v7197
        %v7210 = vpack.c.b16 %v7200, %v7199
        %v7211 = vpack.c.b16 %v7202, %v7201
        %v7212 = vpack.c.b16 %v7204, %v7203
        %v7214 = vsel %vm498, %v7205, 0
        %v7217 = vsel %vm498, %v7206, 0
        %v7220 = vsel %vm498, %v7207, 0
        %v7223 = vsel %vm498, %v7208, 0
        %v7226 = vsel %vm498, %v7209, 0
        %v7229 = vsel %vm498, %v7210, 0
        %v7232 = vsel %vm498, %v7211, 0
        %v7235 = vsel %vm498, %v7212, 0
        %v7238 = vsel %vm523, %v7188, 0
        %7240 = vmatprep.subr.bf16.mxu0 0
        %7241 = vmatpush1.bf16.msra.mxu0 %v7238
        %7242 = vmatprep.subr.bf16.mxu0 0
        %7243 = vmatpush1.bf16.msra.mxu0 0
        %7244 = vmatprep.subr.bf16.mxu0 0
        %7245 = vmatpush1.bf16.msra.mxu0 0
        %7246 = vmatprep.subr.bf16.mxu0 0
        %7247 = vmatpush1.bf16.msra.mxu0 0
        %7248 = vmatprep.subr.bf16.mxu0 0
        %7249 = vmatpush1.bf16.msra.mxu0 0
        %7250 = vmatprep.subr.bf16.mxu0 0
        %7251 = vmatpush1.bf16.msra.mxu0 0
        %7252 = vmatprep.subr.bf16.mxu0 0
        %7253 = vmatpush1.bf16.msra.mxu0 0
        %7254 = vmatprep.subr.bf16.mxu0 0
        %7255 = vmatpush1.bf16.msra.mxu0 0
        %7256 = vmatprep.subr.bf16.mxu0 0
        %7257 = vmatpush1.bf16.msra.mxu0 0
        %7258 = vmatprep.subr.bf16.mxu0 0
        %7259 = vmatpush1.bf16.msra.mxu0 0
        %7260 = vmatprep.subr.bf16.mxu0 0
        %7261 = vmatpush1.bf16.msra.mxu0 0
        %7262 = vmatprep.subr.bf16.mxu0 0
        %7263 = vmatpush1.bf16.msra.mxu0 0
        %7264 = vmatprep.subr.bf16.mxu0 0
        %7265 = vmatpush1.bf16.msra.mxu0 0
        %7266 = vmatprep.subr.bf16.mxu0 0
        %7267 = vmatpush1.bf16.msra.mxu0 0
        %7268 = vmatprep.subr.bf16.mxu0 0
        %7269 = vmatpush1.bf16.msra.mxu0 0
        %7270 = vmatprep.subr.bf16.mxu0 0
        %7271 = vmatpush1.bf16.msra.mxu0 0
        %7272 = vmatprep.mubr.bf16.mxu0 0
        %7273 = vmatmul.mubr.bf16.gmra.mrb[0].mxu0 %v7214
        %v7274 = vpop.f32.mrb[0].mxu0
        %v7275 = vadd.f32 0.0, %v7274
        %v7276 = vpop.f32.mrb[0].mxu0
        %v7277 = vpop.f32.mrb[0].mxu0
        %v7278 = vadd.f32 0.0, %v7277
        %v7279 = vpop.f32.mrb[0].mxu0
        %7280 = vmatprep.mubr.bf16.mxu0 0
        %7281 = vmatmul.mubr.bf16.gmra.mrb[0].mxu0 %v7217
        %v7282 = vpop.f32.mrb[0].mxu0
        %v7283 = vadd.f32 0.0, %v7282
        %v7284 = vpop.f32.mrb[0].mxu0
        %v7285 = vpop.f32.mrb[0].mxu0
        %v7286 = vadd.f32 0.0, %v7285
        %v7287 = vpop.f32.mrb[0].mxu0
        %7288 = vmatprep.mubr.bf16.mxu0 0
        %7289 = vmatmul.mubr.bf16.gmra.mrb[0].mxu0 %v7220
        %v7290 = vpop.f32.mrb[0].mxu0
        %v7291 = vadd.f32 0.0, %v7290
        %v7292 = vpop.f32.mrb[0].mxu0
        %v7293 = vpop.f32.mrb[0].mxu0
        %v7294 = vadd.f32 0.0, %v7293
        %v7295 = vpop.f32.mrb[0].mxu0
        %7296 = vmatprep.mubr.bf16.mxu0 0
        %7297 = vmatmul.mubr.bf16.gmra.mrb[0].mxu0 %v7223
        %v7298 = vpop.f32.mrb[0].mxu0
        %v7299 = vadd.f32 0.0, %v7298
        %v7300 = vpop.f32.mrb[0].mxu0
        %v7301 = vpop.f32.mrb[0].mxu0
        %v7302 = vadd.f32 0.0, %v7301
        %v7303 = vpop.f32.mrb[0].mxu0
        %7304 = vmatprep.mubr.bf16.mxu0 0
        %7305 = vmatmul.mubr.bf16.gmra.mrb[0].mxu0 %v7226
        %v7306 = vpop.f32.mrb[0].mxu0
        %v7307 = vadd.f32 0.0, %v7306
        %v7308 = vpop.f32.mrb[0].mxu0
        %v7309 = vpop.f32.mrb[0].mxu0
        %v7310 = vadd.f32 0.0, %v7309
        %v7311 = vpop.f32.mrb[0].mxu0
        %7312 = vmatprep.mubr.bf16.mxu0 0
        %7313 = vmatmul.mubr.bf16.gmra.mrb[0].mxu0 %v7229
        %v7314 = vpop.f32.mrb[0].mxu0
        %v7315 = vadd.f32 0.0, %v7314
        %v7316 = vpop.f32.mrb[0].mxu0
        %v7317 = vpop.f32.mrb[0].mxu0
        %v7318 = vadd.f32 0.0, %v7317
        %v7319 = vpop.f32.mrb[0].mxu0
        %7320 = vmatprep.mubr.bf16.mxu0 0
        %7321 = vmatmul.mubr.bf16.gmra.mrb[0].mxu0 %v7232
        %v7322 = vpop.f32.mrb[0].mxu0
        %v7323 = vadd.f32 0.0, %v7322
        %v7324 = vpop.f32.mrb[0].mxu0
        %v7325 = vpop.f32.mrb[0].mxu0
        %v7326 = vadd.f32 0.0, %v7325
        %v7327 = vpop.f32.mrb[0].mxu0
        %7328 = vmatprep.mubr.bf16.mxu0 0
        %7329 = vmatmul.mubr.bf16.gmra.mrb[0].mxu0 %v7235
        %v7330 = vpop.f32.mrb[0].mxu0
        %v7331 = vadd.f32 0.0, %v7330
        %v7332 = vpop.f32.mrb[0].mxu0
        %v7333 = vpop.f32.mrb[0].mxu0
        %v7334 = vadd.f32 0.0, %v7333
        %v7335 = vpop.f32.mrb[0].mxu0
        %7336 = vdwg.mxu0
        %v7337 = vadd.f32 %v7067, %v7275
        %v7338 = vadd.f32 %v7068, %v7278
        %v7339 = vadd.f32 %v7069, %v7283
        %v7340 = vadd.f32 %v7070, %v7286
        %v7341 = vadd.f32 %v7071, %v7291
        %v7342 = vadd.f32 %v7072, %v7294
        %v7343 = vadd.f32 %v7073, %v7299
        %v7344 = vadd.f32 %v7074, %v7302
        %v7345 = vadd.f32 %v7075, %v7307
        %v7346 = vadd.f32 %v7076, %v7310
        %v7347 = vadd.f32 %v7077, %v7315
        %v7348 = vadd.f32 %v7078, %v7318
        %v7349 = vadd.f32 %v7079, %v7323
        %v7350 = vadd.f32 %v7080, %v7326
        %v7351 = vadd.f32 %v7081, %v7331
        %v7352 = vadd.f32 %v7082, %v7334
        %v7353 = vld [vmem:[%s6884 + $0x10] sm:$0xc]
        %v7354 = vld [vmem:[%s6884 + $0x14] sm:$0xf]
        %v7355 = vld [vmem:[%s6884 + $0x18] sm:$0x3]
        %v7356 = vld [vmem:[%s6884 + $0x2c] sm:$0xc]
        %v7357 = vld [vmem:[%s6884 + $0x30] sm:$0xf]
        %v7358 = vld [vmem:[%s6884 + $0x34] sm:$0x3]
        %v7359 = vld [vmem:[%s6884 + $0x48] sm:$0xc]
        %v7360 = vld [vmem:[%s6884 + $0x4c] sm:$0xf]
        %v7361 = vld [vmem:[%s6884 + $0x50] sm:$0x3]
        %v7362 = vld [vmem:[%s6884 + $0x64] sm:$0xc]
        %v7363 = vld [vmem:[%s6884 + $0x68] sm:$0xf]
        %v7364 = vld [vmem:[%s6884 + $0x6c] sm:$0x3]
        %v7365 = vld [vmem:[%s6884 + $0x80] sm:$0xc]
        %v7366 = vld [vmem:[%s6884 + $0x84] sm:$0xf]
        %v7367 = vld [vmem:[%s6884 + $0x88] sm:$0x3]
        %v7368 = vld [vmem:[%s6884 + $0x9c] sm:$0xc]
        %v7369 = vld [vmem:[%s6884 + $0xa0] sm:$0xf]
        %v7370 = vld [vmem:[%s6884 + $0xa4] sm:$0x3]
        %v7371 = vld [vmem:[%s6884 + $0xb8] sm:$0xc]
        %v7372 = vld [vmem:[%s6884 + $0xbc] sm:$0xf]
        %v7373 = vld [vmem:[%s6884 + $0xc0] sm:$0x3]
        %v7374 = vld [vmem:[%s6884 + $0xd4] sm:$0xc]
        %v7375 = vld [vmem:[%s6884 + $0xd8] sm:$0xf]
        %v7376 = vld [vmem:[%s6884 + $0xdc] sm:$0x3]
        %v7401 = vrot.slane %v7353, 6
        %v7402 = vrot.slane %v7401, 4
        %v7403 = vrot.slane %v7354, 6
        %v7404 = vsel %vm764, %v7402, %v7403
        %v7405 = vrot.slane %v7403, 4
        %v7406 = vrot.slane %v7355, 6
        %v7407 = vsel %vm764, %v7405, %v7406
        %v7408 = vrot.slane %v7356, 6
        %v7409 = vrot.slane %v7408, 4
        %v7410 = vrot.slane %v7357, 6
        %v7411 = vsel %vm764, %v7409, %v7410
        %v7412 = vrot.slane %v7410, 4
        %v7413 = vrot.slane %v7358, 6
        %v7414 = vsel %vm764, %v7412, %v7413
        %v7415 = vrot.slane %v7359, 6
        %v7416 = vrot.slane %v7415, 4
        %v7417 = vrot.slane %v7360, 6
        %v7418 = vsel %vm764, %v7416, %v7417
        %v7419 = vrot.slane %v7417, 4
        %v7420 = vrot.slane %v7361, 6
        %v7421 = vsel %vm764, %v7419, %v7420
        %v7422 = vrot.slane %v7362, 6
        %v7423 = vrot.slane %v7422, 4
        %v7424 = vrot.slane %v7363, 6
        %v7425 = vsel %vm764, %v7423, %v7424
        %v7426 = vrot.slane %v7424, 4
        %v7427 = vrot.slane %v7364, 6
        %v7428 = vsel %vm764, %v7426, %v7427
        %v7429 = vrot.slane %v7365, 6
        %v7430 = vrot.slane %v7429, 4
        %v7431 = vrot.slane %v7366, 6
        %v7432 = vsel %vm764, %v7430, %v7431
        %v7433 = vrot.slane %v7431, 4
        %v7434 = vrot.slane %v7367, 6
        %v7435 = vsel %vm764, %v7433, %v7434
        %v7436 = vrot.slane %v7368, 6
        %v7437 = vrot.slane %v7436, 4
        %v7438 = vrot.slane %v7369, 6
        %v7439 = vsel %vm764, %v7437, %v7438
        %v7440 = vrot.slane %v7438, 4
        %v7441 = vrot.slane %v7370, 6
        %v7442 = vsel %vm764, %v7440, %v7441
        %v7443 = vrot.slane %v7371, 6
        %v7444 = vrot.slane %v7443, 4
        %v7445 = vrot.slane %v7372, 6
        %v7446 = vsel %vm764, %v7444, %v7445
        %v7447 = vrot.slane %v7445, 4
        %v7448 = vrot.slane %v7373, 6
        %v7449 = vsel %vm764, %v7447, %v7448
        %v7450 = vrot.slane %v7374, 6
        %v7451 = vrot.slane %v7450, 4
        %v7452 = vrot.slane %v7375, 6
        %v7453 = vsel %vm764, %v7451, %v7452
        %v7454 = vrot.slane %v7452, 4
        %v7455 = vrot.slane %v7376, 6
        %v7456 = vsel %vm764, %v7454, %v7455
        %s7457 = scalar_lea.vmem %s4, 16
        %v7458 = vld [vmem:[%s7457] sm:$0x3]
        %v7459 = vunpack.c.l.b16 %v7404
        %v7460 = vunpack.c.l.b16 %v7407
        %v7461 = vunpack.c.l.b16 %v7411
        %v7462 = vunpack.c.l.b16 %v7414
        %v7463 = vunpack.c.l.b16 %v7418
        %v7464 = vunpack.c.l.b16 %v7421
        %v7465 = vunpack.c.l.b16 %v7425
        %v7466 = vunpack.c.l.b16 %v7428
        %v7467 = vunpack.c.l.b16 %v7432
        %v7468 = vunpack.c.l.b16 %v7435
        %v7469 = vunpack.c.l.b16 %v7439
        %v7470 = vunpack.c.l.b16 %v7442
        %v7471 = vunpack.c.l.b16 %v7446
        %v7472 = vunpack.c.l.b16 %v7449
        %v7473 = vunpack.c.l.b16 %v7453
        %v7474 = vunpack.c.l.b16 %v7456
        %v7475 = vpack.c.b16 %v7460, %v7459
        %v7476 = vpack.c.b16 %v7462, %v7461
        %v7477 = vpack.c.b16 %v7464, %v7463
        %v7478 = vpack.c.b16 %v7466, %v7465
        %v7479 = vpack.c.b16 %v7468, %v7467
        %v7480 = vpack.c.b16 %v7470, %v7469
        %v7481 = vpack.c.b16 %v7472, %v7471
        %v7482 = vpack.c.b16 %v7474, %v7473
        %v7484 = vsel %vm498, %v7475, 0
        %v7487 = vsel %vm498, %v7476, 0
        %v7490 = vsel %vm498, %v7477, 0
        %v7493 = vsel %vm498, %v7478, 0
        %v7496 = vsel %vm498, %v7479, 0
        %v7499 = vsel %vm498, %v7480, 0
        %v7502 = vsel %vm498, %v7481, 0
        %v7505 = vsel %vm498, %v7482, 0
        %v7508 = vsel %vm523, %v7458, 0
        %7510 = vmatprep.subr.bf16.mxu0 0
        %7511 = vmatpush1.bf16.msra.mxu0 %v7508
        %7512 = vmatprep.subr.bf16.mxu0 0
        %7513 = vmatpush1.bf16.msra.mxu0 0
        %7514 = vmatprep.subr.bf16.mxu0 0
        %7515 = vmatpush1.bf16.msra.mxu0 0
        %7516 = vmatprep.subr.bf16.mxu0 0
        %7517 = vmatpush1.bf16.msra.mxu0 0
        %7518 = vmatprep.subr.bf16.mxu0 0
        %7519 = vmatpush1.bf16.msra.mxu0 0
        %7520 = vmatprep.subr.bf16.mxu0 0
        %7521 = vmatpush1.bf16.msra.mxu0 0
        %7522 = vmatprep.subr.bf16.mxu0 0
        %7523 = vmatpush1.bf16.msra.mxu0 0
        %7524 = vmatprep.subr.bf16.mxu0 0
        %7525 = vmatpush1.bf16.msra.mxu0 0
        %7526 = vmatprep.subr.bf16.mxu0 0
        %7527 = vmatpush1.bf16.msra.mxu0 0
        %7528 = vmatprep.subr.bf16.mxu0 0
        %7529 = vmatpush1.bf16.msra.mxu0 0
        %7530 = vmatprep.subr.bf16.mxu0 0
        %7531 = vmatpush1.bf16.msra.mxu0 0
        %7532 = vmatprep.subr.bf16.mxu0 0
        %7533 = vmatpush1.bf16.msra.mxu0 0
        %7534 = vmatprep.subr.bf16.mxu0 0
        %7535 = vmatpush1.bf16.msra.mxu0 0
        %7536 = vmatprep.subr.bf16.mxu0 0
        %7537 = vmatpush1.bf16.msra.mxu0 0
        %7538 = vmatprep.subr.bf16.mxu0 0
        %7539 = vmatpush1.bf16.msra.mxu0 0
        %7540 = vmatprep.subr.bf16.mxu0 0
        %7541 = vmatpush1.bf16.msra.mxu0 0
        %7542 = vmatprep.mubr.bf16.mxu0 0
        %7543 = vmatmul.mubr.bf16.gmra.mrb[0].mxu0 %v7484
        %v7544 = vpop.f32.mrb[0].mxu0
        %v7545 = vadd.f32 0.0, %v7544
        %v7546 = vpop.f32.mrb[0].mxu0
        %v7547 = vpop.f32.mrb[0].mxu0
        %v7548 = vadd.f32 0.0, %v7547
        %v7549 = vpop.f32.mrb[0].mxu0
        %7550 = vmatprep.mubr.bf16.mxu0 0
        %7551 = vmatmul.mubr.bf16.gmra.mrb[0].mxu0 %v7487
        %v7552 = vpop.f32.mrb[0].mxu0
        %v7553 = vadd.f32 0.0, %v7552
        %v7554 = vpop.f32.mrb[0].mxu0
        %v7555 = vpop.f32.mrb[0].mxu0
        %v7556 = vadd.f32 0.0, %v7555
        %v7557 = vpop.f32.mrb[0].mxu0
        %7558 = vmatprep.mubr.bf16.mxu0 0
        %7559 = vmatmul.mubr.bf16.gmra.mrb[0].mxu0 %v7490
        %v7560 = vpop.f32.mrb[0].mxu0
        %v7561 = vadd.f32 0.0, %v7560
        %v7562 = vpop.f32.mrb[0].mxu0
        %v7563 = vpop.f32.mrb[0].mxu0
        %v7564 = vadd.f32 0.0, %v7563
        %v7565 = vpop.f32.mrb[0].mxu0
        %7566 = vmatprep.mubr.bf16.mxu0 0
        %7567 = vmatmul.mubr.bf16.gmra.mrb[0].mxu0 %v7493
        %v7568 = vpop.f32.mrb[0].mxu0
        %v7569 = vadd.f32 0.0, %v7568
        %v7570 = vpop.f32.mrb[0].mxu0
        %v7571 = vpop.f32.mrb[0].mxu0
        %v7572 = vadd.f32 0.0, %v7571
        %v7573 = vpop.f32.mrb[0].mxu0
        %7574 = vmatprep.mubr.bf16.mxu0 0
        %7575 = vmatmul.mubr.bf16.gmra.mrb[0].mxu0 %v7496
        %v7576 = vpop.f32.mrb[0].mxu0
        %v7577 = vadd.f32 0.0, %v7576
        %v7578 = vpop.f32.mrb[0].mxu0
        %v7579 = vpop.f32.mrb[0].mxu0
        %v7580 = vadd.f32 0.0, %v7579
        %v7581 = vpop.f32.mrb[0].mxu0
        %7582 = vmatprep.mubr.bf16.mxu0 0
        %7583 = vmatmul.mubr.bf16.gmra.mrb[0].mxu0 %v7499
        %v7584 = vpop.f32.mrb[0].mxu0
        %v7585 = vadd.f32 0.0, %v7584
        %v7586 = vpop.f32.mrb[0].mxu0
        %v7587 = vpop.f32.mrb[0].mxu0
        %v7588 = vadd.f32 0.0, %v7587
        %v7589 = vpop.f32.mrb[0].mxu0
        %7590 = vmatprep.mubr.bf16.mxu0 0
        %7591 = vmatmul.mubr.bf16.gmra.mrb[0].mxu0 %v7502
        %v7592 = vpop.f32.mrb[0].mxu0
        %v7593 = vadd.f32 0.0, %v7592
        %v7594 = vpop.f32.mrb[0].mxu0
        %v7595 = vpop.f32.mrb[0].mxu0
        %v7596 = vadd.f32 0.0, %v7595
        %v7597 = vpop.f32.mrb[0].mxu0
        %7598 = vmatprep.mubr.bf16.mxu0 0
        %7599 = vmatmul.mubr.bf16.gmra.mrb[0].mxu0 %v7505
        %v7600 = vpop.f32.mrb[0].mxu0
        %v7601 = vadd.f32 0.0, %v7600
        %v7602 = vpop.f32.mrb[0].mxu0
        %v7603 = vpop.f32.mrb[0].mxu0
        %v7604 = vadd.f32 0.0, %v7603
        %v7605 = vpop.f32.mrb[0].mxu0
        %7606 = vdwg.mxu0
        %v7607 = vadd.f32 %v7337, %v7545
        %v7608 = vadd.f32 %v7338, %v7548
        %v7609 = vadd.f32 %v7339, %v7553
        %v7610 = vadd.f32 %v7340, %v7556
        %v7611 = vadd.f32 %v7341, %v7561
        %v7612 = vadd.f32 %v7342, %v7564
        %v7613 = vadd.f32 %v7343, %v7569
        %v7614 = vadd.f32 %v7344, %v7572
        %v7615 = vadd.f32 %v7345, %v7577
        %v7616 = vadd.f32 %v7346, %v7580
        %v7617 = vadd.f32 %v7347, %v7585
        %v7618 = vadd.f32 %v7348, %v7588
        %v7619 = vadd.f32 %v7349, %v7593
        %v7620 = vadd.f32 %v7350, %v7596
        %v7621 = vadd.f32 %v7351, %v7601
        %v7622 = vadd.f32 %v7352, %v7604
        %s7623 = scalar_lea.vmem %s6, 3
        %v7624 = vld [vmem:[%s7623] sm:$0x1]
        %v7626 = vlaneseq
        %v7627 = vshrl.u32 %v7626, 7
        %v7628 = vsub.s32 0, %v7627
        %v7629 = vrot.slane %v7624, %v7628
        %v7631 = vmul.f32 %v7607, %v7629
        %v7632 = vmul.f32 %v7608, %v7629
        %v7633 = vmul.f32 %v7609, %v7629
        %v7634 = vmul.f32 %v7610, %v7629
        %v7635 = vmul.f32 %v7611, %v7629
        %v7636 = vmul.f32 %v7612, %v7629
        %v7637 = vmul.f32 %v7613, %v7629
        %v7638 = vmul.f32 %v7614, %v7629
        %v7639 = vmul.f32 %v7615, %v7629
        %v7640 = vmul.f32 %v7616, %v7629
        %v7641 = vmul.f32 %v7617, %v7629
        %v7642 = vmul.f32 %v7618, %v7629
        %v7643 = vmul.f32 %v7619, %v7629
        %v7644 = vmul.f32 %v7620, %v7629
        %v7645 = vmul.f32 %v7621, %v7629
        %v7646 = vmul.f32 %v7622, %v7629
        %s7647 = scalar_lea.vmem %s7, 3
        %v7648 = vld [vmem:[%s7647] sm:$0x1]
        %v7650 = vlaneseq
        %v7651 = vshrl.u32 %v7650, 7
        %v7652 = vsub.s32 0, %v7651
        %v7653 = vrot.slane %v7648, %v7652
        %v7655 = vadd.f32 %v7631, %v7653
        %v7656 = vadd.f32 %v7632, %v7653
        %v7657 = vadd.f32 %v7633, %v7653
        %v7658 = vadd.f32 %v7634, %v7653
        %v7659 = vadd.f32 %v7635, %v7653
        %v7660 = vadd.f32 %v7636, %v7653
        %v7661 = vadd.f32 %v7637, %v7653
        %v7662 = vadd.f32 %v7638, %v7653
        %v7663 = vadd.f32 %v7639, %v7653
        %v7664 = vadd.f32 %v7640, %v7653
        %v7665 = vadd.f32 %v7641, %v7653
        %v7666 = vadd.f32 %v7642, %v7653
        %v7667 = vadd.f32 %v7643, %v7653
        %v7668 = vadd.f32 %v7644, %v7653
        %v7669 = vadd.f32 %v7645, %v7653
        %v7670 = vadd.f32 %v7646, %v7653
        %v7671 = vmax.f32 %v7655, 0.0
        %v7672 = vmax.f32 %v7656, 0.0
        %v7673 = vmax.f32 %v7657, 0.0
        %v7674 = vmax.f32 %v7658, 0.0
        %v7675 = vmax.f32 %v7659, 0.0
        %v7676 = vmax.f32 %v7660, 0.0
        %v7677 = vmax.f32 %v7661, 0.0
        %v7678 = vmax.f32 %v7662, 0.0
        %v7679 = vmax.f32 %v7663, 0.0
        %v7680 = vmax.f32 %v7664, 0.0
        %v7681 = vmax.f32 %v7665, 0.0
        %v7682 = vmax.f32 %v7666, 0.0
        %v7683 = vmax.f32 %v7667, 0.0
        %v7684 = vmax.f32 %v7668, 0.0
        %v7685 = vmax.f32 %v7669, 0.0
        %v7686 = vmax.f32 %v7670, 0.0
        %v7687 = vpack.c.bf16 %v7672, %v7671
        %v7688 = vpack.c.bf16 %v7674, %v7673
        %v7689 = vpack.c.bf16 %v7676, %v7675
        %v7690 = vpack.c.bf16 %v7678, %v7677
        %v7691 = vpack.c.bf16 %v7680, %v7679
        %v7692 = vpack.c.bf16 %v7682, %v7681
        %v7693 = vpack.c.bf16 %v7684, %v7683
        %v7694 = vpack.c.bf16 %v7686, %v7685
        %s7695 = scalar_lea.vmem %s5, 192
        %v7696 = vld [vmem:[%s7695] sm:$0xf]
        %v7697 = vld [vmem:[%s7695 + $0x4] sm:$0xf]
        %v7698 = vld [vmem:[%s7695 + $0x8] sm:$0xf]
        %v7699 = vld [vmem:[%s7695 + $0xc] sm:$0xf]
        %v7700 = vld [vmem:[%s7695 + $0x10] sm:$0xf]
        %v7701 = vld [vmem:[%s7695 + $0x14] sm:$0xf]
        %v7702 = vld [vmem:[%s7695 + $0x18] sm:$0xf]
        %v7703 = vld [vmem:[%s7695 + $0x1c] sm:$0xf]
        %v7704 = vld [vmem:[%s7695 + $0x20] sm:$0xf]
        %v7705 = vld [vmem:[%s7695 + $0x24] sm:$0xf]
        %v7706 = vld [vmem:[%s7695 + $0x28] sm:$0xf]
        %v7707 = vld [vmem:[%s7695 + $0x2c] sm:$0xf]
        %v7708 = vld [vmem:[%s7695 + $0x30] sm:$0xf]
        %v7709 = vld [vmem:[%s7695 + $0x34] sm:$0xf]
        %v7710 = vld [vmem:[%s7695 + $0x38] sm:$0xf]
        %v7711 = vld [vmem:[%s7695 + $0x3c] sm:$0xf]
        %v7728 = vunpack.c.l.b16 %v7696
        %v7729 = vunpack.c.l.b16 %v7697
        %v7730 = vunpack.c.l.b16 %v7698
        %v7731 = vunpack.c.l.b16 %v7699
        %v7732 = vunpack.c.l.b16 %v7700
        %v7733 = vunpack.c.l.b16 %v7701
        %v7734 = vunpack.c.l.b16 %v7702
        %v7735 = vunpack.c.l.b16 %v7703
        %v7736 = vunpack.c.l.b16 %v7704
        %v7737 = vunpack.c.l.b16 %v7705
        %v7738 = vunpack.c.l.b16 %v7706
        %v7739 = vunpack.c.l.b16 %v7707
        %v7740 = vunpack.c.l.b16 %v7708
        %v7741 = vunpack.c.l.b16 %v7709
        %v7742 = vunpack.c.l.b16 %v7710
        %v7743 = vunpack.c.l.b16 %v7711
        %v7744 = vpack.c.b16 %v7729, %v7728
        %v7745 = vpack.c.b16 %v7731, %v7730
        %v7746 = vpack.c.b16 %v7733, %v7732
        %v7747 = vpack.c.b16 %v7735, %v7734
        %v7748 = vpack.c.b16 %v7737, %v7736
        %v7749 = vpack.c.b16 %v7739, %v7738
        %v7750 = vpack.c.b16 %v7741, %v7740
        %v7751 = vpack.c.b16 %v7743, %v7742
        %7760 = vmatprep.subr.bf16.mxu0 0
        %7761 = vmatpush1.bf16.msra.mxu0 %v7744
        %7762 = vmatprep.subr.bf16.mxu0 0
        %7763 = vmatpush1.bf16.msra.mxu0 %v7745
        %7764 = vmatprep.subr.bf16.mxu0 0
        %7765 = vmatpush1.bf16.msra.mxu0 %v7746
        %7766 = vmatprep.subr.bf16.mxu0 0
        %7767 = vmatpush1.bf16.msra.mxu0 %v7747
        %7768 = vmatprep.subr.bf16.mxu0 0
        %7769 = vmatpush1.bf16.msra.mxu0 %v7748
        %7770 = vmatprep.subr.bf16.mxu0 0
        %7771 = vmatpush1.bf16.msra.mxu0 %v7749
        %7772 = vmatprep.subr.bf16.mxu0 0
        %7773 = vmatpush1.bf16.msra.mxu0 %v7750
        %7774 = vmatprep.subr.bf16.mxu0 0
        %7775 = vmatpush1.bf16.msra.mxu0 %v7751
        %7776 = vmatprep.subr.bf16.mxu0 0
        %7777 = vmatpush1.bf16.msra.mxu0 0
        %7778 = vmatprep.subr.bf16.mxu0 0
        %7779 = vmatpush1.bf16.msra.mxu0 0
        %7780 = vmatprep.subr.bf16.mxu0 0
        %7781 = vmatpush1.bf16.msra.mxu0 0
        %7782 = vmatprep.subr.bf16.mxu0 0
        %7783 = vmatpush1.bf16.msra.mxu0 0
        %7784 = vmatprep.subr.bf16.mxu0 0
        %7785 = vmatpush1.bf16.msra.mxu0 0
        %7786 = vmatprep.subr.bf16.mxu0 0
        %7787 = vmatpush1.bf16.msra.mxu0 0
        %7788 = vmatprep.subr.bf16.mxu0 0
        %7789 = vmatpush1.bf16.msra.mxu0 0
        %7790 = vmatprep.subr.bf16.mxu0 0
        %7791 = vmatpush1.bf16.msra.mxu0 0
        %7792 = vmatprep.mubr.bf16.mxu0 0
        %7793 = vmatmul.mubr.bf16.gmra.mrb[0].mxu0 %v7687
        %v7794 = vpop.f32.mrb[0].mxu0
        %v7795 = vadd.f32 0.0, %v7794
        %v7796 = vpop.f32.mrb[0].mxu0
        %v7797 = vpop.f32.mrb[0].mxu0
        %v7798 = vadd.f32 0.0, %v7797
        %v7799 = vpop.f32.mrb[0].mxu0
        %7800 = vmatprep.mubr.bf16.mxu0 0
        %7801 = vmatmul.mubr.bf16.gmra.mrb[0].mxu0 %v7688
        %v7802 = vpop.f32.mrb[0].mxu0
        %v7803 = vadd.f32 0.0, %v7802
        %v7804 = vpop.f32.mrb[0].mxu0
        %v7805 = vpop.f32.mrb[0].mxu0
        %v7806 = vadd.f32 0.0, %v7805
        %v7807 = vpop.f32.mrb[0].mxu0
        %7808 = vmatprep.mubr.bf16.mxu0 0
        %7809 = vmatmul.mubr.bf16.gmra.mrb[0].mxu0 %v7689
        %v7810 = vpop.f32.mrb[0].mxu0
        %v7811 = vadd.f32 0.0, %v7810
        %v7812 = vpop.f32.mrb[0].mxu0
        %v7813 = vpop.f32.mrb[0].mxu0
        %v7814 = vadd.f32 0.0, %v7813
        %v7815 = vpop.f32.mrb[0].mxu0
        %7816 = vmatprep.mubr.bf16.mxu0 0
        %7817 = vmatmul.mubr.bf16.gmra.mrb[0].mxu0 %v7690
        %v7818 = vpop.f32.mrb[0].mxu0
        %v7819 = vadd.f32 0.0, %v7818
        %v7820 = vpop.f32.mrb[0].mxu0
        %v7821 = vpop.f32.mrb[0].mxu0
        %v7822 = vadd.f32 0.0, %v7821
        %v7823 = vpop.f32.mrb[0].mxu0
        %7824 = vmatprep.mubr.bf16.mxu0 0
        %7825 = vmatmul.mubr.bf16.gmra.mrb[0].mxu0 %v7691
        %v7826 = vpop.f32.mrb[0].mxu0
        %v7827 = vadd.f32 0.0, %v7826
        %v7828 = vpop.f32.mrb[0].mxu0
        %v7829 = vpop.f32.mrb[0].mxu0
        %v7830 = vadd.f32 0.0, %v7829
        %v7831 = vpop.f32.mrb[0].mxu0
        %7832 = vmatprep.mubr.bf16.mxu0 0
        %7833 = vmatmul.mubr.bf16.gmra.mrb[0].mxu0 %v7692
        %v7834 = vpop.f32.mrb[0].mxu0
        %v7835 = vadd.f32 0.0, %v7834
        %v7836 = vpop.f32.mrb[0].mxu0
        %v7837 = vpop.f32.mrb[0].mxu0
        %v7838 = vadd.f32 0.0, %v7837
        %v7839 = vpop.f32.mrb[0].mxu0
        %7840 = vmatprep.mubr.bf16.mxu0 0
        %7841 = vmatmul.mubr.bf16.gmra.mrb[0].mxu0 %v7693
        %v7842 = vpop.f32.mrb[0].mxu0
        %v7843 = vadd.f32 0.0, %v7842
        %v7844 = vpop.f32.mrb[0].mxu0
        %v7845 = vpop.f32.mrb[0].mxu0
        %v7846 = vadd.f32 0.0, %v7845
        %v7847 = vpop.f32.mrb[0].mxu0
        %7848 = vmatprep.mubr.bf16.mxu0 0
        %7849 = vmatmul.mubr.bf16.gmra.mrb[0].mxu0 %v7694
        %v7850 = vpop.f32.mrb[0].mxu0
        %v7851 = vadd.f32 0.0, %v7850
        %v7852 = vpop.f32.mrb[0].mxu0
        %v7853 = vpop.f32.mrb[0].mxu0
        %v7854 = vadd.f32 0.0, %v7853
        %v7855 = vpop.f32.mrb[0].mxu0
        %7856 = vdwg.mxu0
        %v7857 = vadd.f32 %v5571, %v7795
        %v7858 = vadd.f32 %v5572, %v7798
        %v7859 = vadd.f32 %v5573, %v7803
        %v7860 = vadd.f32 %v5574, %v7806
        %v7861 = vadd.f32 %v5575, %v7811
        %v7862 = vadd.f32 %v5576, %v7814
        %v7863 = vadd.f32 %v5577, %v7819
        %v7864 = vadd.f32 %v5578, %v7822
        %v7865 = vadd.f32 %v5579, %v7827
        %v7866 = vadd.f32 %v5580, %v7830
        %v7867 = vadd.f32 %v5581, %v7835
        %v7868 = vadd.f32 %v5582, %v7838
        %v7869 = vadd.f32 %v5583, %v7843
        %v7870 = vadd.f32 %v5584, %v7846
        %v7871 = vadd.f32 %v5585, %v7851
        %v7872 = vadd.f32 %v5586, %v7854
        %v7873 = vld [vmem:[%s358] sm:$0x1]
        %v7875 = vlaneseq
        %v7876 = vshrl.u32 %v7875, 7
        %v7877 = vsub.s32 0, %v7876
        %v7878 = vrot.slane %v7873, %v7877
        %v7880 = vadd.f32 %v7857, %v7878
        %v7881 = vadd.f32 %v7858, %v7878
        %v7882 = vadd.f32 %v7859, %v7878
        %v7883 = vadd.f32 %v7860, %v7878
        %v7884 = vadd.f32 %v7861, %v7878
        %v7885 = vadd.f32 %v7862, %v7878
        %v7886 = vadd.f32 %v7863, %v7878
        %v7887 = vadd.f32 %v7864, %v7878
        %v7888 = vadd.f32 %v7865, %v7878
        %v7889 = vadd.f32 %v7866, %v7878
        %v7890 = vadd.f32 %v7867, %v7878
        %v7891 = vadd.f32 %v7868, %v7878
        %v7892 = vadd.f32 %v7869, %v7878
        %v7893 = vadd.f32 %v7870, %v7878
        %v7894 = vadd.f32 %v7871, %v7878
        %v7895 = vadd.f32 %v7872, %v7878
        %s7896 = scalar_lea.vmem %s6, 4
        %v7897 = vld [vmem:[%s7896] sm:$0x1]
        %v7899 = vlaneseq
        %v7900 = vshrl.u32 %v7899, 7
        %v7901 = vsub.s32 0, %v7900
        %v7902 = vrot.slane %v7897, %v7901
        %v7904 = vmul.f32 %v7880, %v7902
        %v7905 = vmul.f32 %v7881, %v7902
        %v7906 = vmul.f32 %v7882, %v7902
        %v7907 = vmul.f32 %v7883, %v7902
        %v7908 = vmul.f32 %v7884, %v7902
        %v7909 = vmul.f32 %v7885, %v7902
        %v7910 = vmul.f32 %v7886, %v7902
        %v7911 = vmul.f32 %v7887, %v7902
        %v7912 = vmul.f32 %v7888, %v7902
        %v7913 = vmul.f32 %v7889, %v7902
        %v7914 = vmul.f32 %v7890, %v7902
        %v7915 = vmul.f32 %v7891, %v7902
        %v7916 = vmul.f32 %v7892, %v7902
        %v7917 = vmul.f32 %v7893, %v7902
        %v7918 = vmul.f32 %v7894, %v7902
        %v7919 = vmul.f32 %v7895, %v7902
        %s7920 = scalar_lea.vmem %s7, 4
        %v7921 = vld [vmem:[%s7920] sm:$0x1]
        %v7923 = vlaneseq
        %v7924 = vshrl.u32 %v7923, 7
        %v7925 = vsub.s32 0, %v7924
        %v7926 = vrot.slane %v7921, %v7925
        %v7928 = vadd.f32 %v7904, %v7926
        %v7929 = vadd.f32 %v7905, %v7926
        %v7930 = vadd.f32 %v7906, %v7926
        %v7931 = vadd.f32 %v7907, %v7926
        %v7932 = vadd.f32 %v7908, %v7926
        %v7933 = vadd.f32 %v7909, %v7926
        %v7934 = vadd.f32 %v7910, %v7926
        %v7935 = vadd.f32 %v7911, %v7926
        %v7936 = vadd.f32 %v7912, %v7926
        %v7937 = vadd.f32 %v7913, %v7926
        %v7938 = vadd.f32 %v7914, %v7926
        %v7939 = vadd.f32 %v7915, %v7926
        %v7940 = vadd.f32 %v7916, %v7926
        %v7941 = vadd.f32 %v7917, %v7926
        %v7942 = vadd.f32 %v7918, %v7926
        %v7943 = vadd.f32 %v7919, %v7926
        %v7944 = vmax.f32 %v7928, 0.0
        %v7945 = vmax.f32 %v7929, 0.0
        %v7946 = vmax.f32 %v7930, 0.0
        %v7947 = vmax.f32 %v7931, 0.0
        %v7948 = vmax.f32 %v7932, 0.0
        %v7949 = vmax.f32 %v7933, 0.0
        %v7950 = vmax.f32 %v7934, 0.0
        %v7951 = vmax.f32 %v7935, 0.0
        %v7952 = vmax.f32 %v7936, 0.0
        %v7953 = vmax.f32 %v7937, 0.0
        %v7954 = vmax.f32 %v7938, 0.0
        %v7955 = vmax.f32 %v7939, 0.0
        %v7956 = vmax.f32 %v7940, 0.0
        %v7957 = vmax.f32 %v7941, 0.0
        %v7958 = vmax.f32 %v7942, 0.0
        %v7959 = vmax.f32 %v7943, 0.0
        %7960 = vst [vmem:[%s350] sm:$0xff] %v7944
        %7961 = vst [vmem:[%s350 + $0x8] sm:$0xff] %v7945
        %7962 = vst [vmem:[%s350 + $0x10] sm:$0xff] %v7946
        %7963 = vst [vmem:[%s350 + $0x18] sm:$0xff] %v7947
        %7964 = vst [vmem:[%s350 + $0x20] sm:$0xff] %v7948
        %7965 = vst [vmem:[%s350 + $0x28] sm:$0xff] %v7949
        %7966 = vst [vmem:[%s350 + $0x30] sm:$0xff] %v7950
        %7967 = vst [vmem:[%s350 + $0x38] sm:$0xff] %v7951
        %7968 = vst [vmem:[%s350 + $0x40] sm:$0xff] %v7952
        %7969 = vst [vmem:[%s350 + $0x48] sm:$0xff] %v7953
        %7970 = vst [vmem:[%s350 + $0x50] sm:$0xff] %v7954
        %7971 = vst [vmem:[%s350 + $0x58] sm:$0xff] %v7955
        %7972 = vst [vmem:[%s350 + $0x60] sm:$0xff] %v7956
        %7973 = vst [vmem:[%s350 + $0x68] sm:$0xff] %v7957
        %7974 = vst [vmem:[%s350 + $0x70] sm:$0xff] %v7958
        %7975 = vst [vmem:[%s350 + $0x78] sm:$0xff] %v7959
        %s7976 = sand.u32 %s244, 1
        %s7977 = scalar_lea.sflag [#allocation3], %s7976
        %s7978 = sand.u32 %s244, 1
        %s7979 = smul.addr %s7978, 128
        %s7980 = scalar_lea.vmem [#allocation2], %s7979
        // Predicated region
        $region57: #{tpu_custom_call.1} parent=55 // pred_check
          %p7981 = pneg %p254
        $region58: #{tpu_custom_call.1} parent=55 // pred_check_branch
          %7983 = sbr.rel (%p7981) target = $region60
        $region59: #{tpu_custom_call.1} parent=55 // pred_region
          %s7984 = smul.u32 8, %s28
          %s7986 = ssub.s32 2048, 2048
          %7987 = vsyncadd %s7977, %s7986
          %s7988 = smul.addr %s7984, 2
          %s7989 = smul.addr %s27, 32
          %s7990 = sadd.s32 %s7988, %s7989
          %s7991 = smul.addr %s7990, 128
          %s7992 = scalar_lea.hbm %s9, %s7991
          %s7993 = sshll.u32 %s7980, 4
          %s7994 = int_to_ptr.vmem [resolvable:$true] %s7993
          %7999 = dma.vmem_to_hbm [thread:$0]  %s7994, 2048, %s7992, %s7977, 128, 128, 8
        $region60: #{tpu_custom_call.1} parent=55 // pred_fallthru
          _
      $region56: #{tpu_custom_call.1} parent=5 // pred_fallthru
        _
      %p8000 = scmp.le.s32.totalorder 2, %s18
      // Predicated region
      $region61: #{tpu_custom_call.1} parent=5 // pred_check
        %p8001 = pneg %p8000
      $region62: #{tpu_custom_call.1} parent=5 // pred_check_branch
        %8003 = sbr.rel (%p8001) target = $region64
      $region63: #{tpu_custom_call.1} parent=5 // pred_region
        %s8004 = ssub.s32 %s18, 2
        // Predicated region
        $region65: #{tpu_custom_call.1} parent=63 // pred_check
          %p8005 = pneg %p260
        $region66: #{tpu_custom_call.1} parent=63 // pred_check_branch
          %8007 = sbr.rel (%p8005) target = $region68
        $region67: #{tpu_custom_call.1} parent=63 // pred_region
          %s8008 = sand.u32 %s245, 1
          %s8009 = scalar_lea.sflag [#allocation3], %s8008
          %s8010 = sand.u32 %s245, 1
          %s8011 = smul.addr %s8010, 128
          %s8012 = scalar_lea.vmem [#allocation2], %s8011
          %8013 = dma.done %s8009, 2048
        $region68: #{tpu_custom_call.1} parent=63 // pred_fallthru
          _
      $region64: #{tpu_custom_call.1} parent=5 // pred_fallthru
        _
    $region6: #{tpu_custom_call.1} parent=1 // loop_footer
      %s22 = sadd.s32 1, %s18
    $region7: #{tpu_custom_call.1} parent=1 // loop_footer_branch
      %17 = sbr.rel target = $region3
    $region8: #{tpu_custom_call.1} parent=1 // loop_exit
      _
    %8014 = vsyncpa [#allocation3], 1
    %s8015 = scalar_lea.sflag [#allocation3], 1
    %8016 = vsyncpa %s8015, 1

</llo_original>
